<compile_context>
chip_gen: v6e
topology: v6e:2x2x1
jax: 0.10.0
libtpu: 0.0.40
codegen_flags: <defaults>
</compile_context>

<pallas_src>
import math

import jax
import jax.numpy as jnp
from jax import lax
from jax.experimental import pallas as pl
from jax.experimental.pallas import tpu as pltpu

_NEG = -1e30  # additive mask value (finite; avoids -inf/NaN propagation)


def _pad_to(n, m):
    return ((n + m - 1) // m) * m


_VMEM_LIMIT_CACHE = None


def _vmem_limit():
    """Generation-dependent VMEM limit: 3/4 of per-core capacity (v5e/v6e ~96MiB, v7x ~48MiB)."""
    global _VMEM_LIMIT_CACHE
    if _VMEM_LIMIT_CACHE is None:
        try:
            cap = int(pltpu.get_tpu_info().vmem_capacity_bytes)
        except Exception:
            cap = 64 * 1024 * 1024
        _VMEM_LIMIT_CACHE = (cap * 3) // 4
    return _VMEM_LIMIT_CACHE


# ----------------------------------------------------------------------------
# Kernel A: PointNetConv message-MLP + masked max aggregation, one batch/step.
#   layer 1 = per-source MXU matmul (A) minus per-target VPU FMA term (C);
#   radius + pad mask computed in-kernel (f32); single dense max + bf16 store.
# ----------------------------------------------------------------------------
def _sa_conv_kernel(k, s_pad, n_src, r2):
    def kernel(src_ref, pos_ref, cent_ref, w1_ref, w1r_ref, b1_ref,
               w2_ref, b2_ref, w3_ref, b3_ref, out_ref):
        h1 = w1_ref.shape[1]
        # layer 1, per-source term (MXU, bf16 -> f32 acc): A = [x_j, pos_j] @ W1 + b1
        a = jnp.dot(src_ref[...], w1_ref[...],
                    preferred_element_type=jnp.float32) + b1_ref[...]      # (s_pad, h1)
        # layer 1, per-target term (3 VPU FMAs, f32): C = pos_i @ W1_rel
        cent = cent_ref[...]                                               # (k, 3) f32
        c = (cent[:, 0:1] * w1r_ref[0:1, :]
             + cent[:, 1:2] * w1r_ref[1:2, :]
             + cent[:, 2:3] * w1r_ref[2:3, :])                             # (k, h1)
        h = a[None, :, :] - c[:, None, :]                                  # (k, s_pad, h1)
        h = jnp.maximum(h, 0.0).astype(jnp.bfloat16).reshape(k * s_pad, h1)
        # layer 2
        h = jnp.dot(h, w2_ref[...], preferred_element_type=jnp.float32) + b2_ref[...]
        h = jnp.maximum(h, 0.0).astype(jnp.bfloat16)
        # layer 3 (plain linear)
        h = jnp.dot(h, w3_ref[...], preferred_element_type=jnp.float32) + b3_ref[...]
        cout = h.shape[-1]
        # radius + padding mask in f32, computed in-kernel (no HBM mask stream)
        pos = pos_ref[...]                                                 # (s_pad, 3) f32
        d2 = ((cent[:, None, 0:1] - pos[None, :, 0:1]) ** 2
              + (cent[:, None, 1:2] - pos[None, :, 1:2]) ** 2
              + (cent[:, None, 2:3] - pos[None, :, 2:3]) ** 2)             # (k, s_pad, 1)
        valid = d2 <= r2
        if s_pad > n_src:  # zero-padded source rows must never count as neighbors
            valid = jnp.logical_and(
                valid,
                lax.broadcasted_iota(jnp.int32, (k, s_pad, 1), 1) < n_src)
        neg = jnp.where(valid, 0.0, _NEG)                                  # (k, s_pad, 1) f32
        h = h.reshape(k, s_pad, cout) + neg
        # every target has >=1 valid source (its own center, d2 == 0 <= r^2),
        # so the masked max is always finite.
        out_ref[...] = jnp.max(h, axis=1).astype(out_ref.dtype)            # (k, cout) bf16
    return kernel


def sa_conv(src, pos_f, cent, params, *, k, s_pad, n_src, r):
    """src: (B, s_pad, Cx+3) bf16, pos_f: (B, s_pad, 3) f32, cent: (B, k, 3) f32."""
    (w1, b1), (w2, b2), (w3, b3) = params
    b, _, cin = src.shape
    cout = w3.shape[1]
    w1b = w1.astype(jnp.bfloat16)          # full (Cx+3, h1)
    w1r = w1[cin - 3:, :]                  # rel rows, kept in f32 (3, h1)
    w2b = w2.astype(jnp.bfloat16)
    w3b = w3.astype(jnp.bfloat16)
    const2 = lambda i: (0, 0)

    out = pl.pallas_call(
        _sa_conv_kernel(k, s_pad, n_src, r * r),
        out_shape=jax.ShapeDtypeStruct((b, k, cout), jnp.bfloat16),
        grid_spec=pltpu.PrefetchScalarGridSpec(
            num_scalar_prefetch=0,
            grid=(b,),
            in_specs=[
                pl.BlockSpec((None, s_pad, cin), lambda i: (i, 0, 0)),
                pl.BlockSpec((None, s_pad, 3), lambda i: (i, 0, 0)),
                pl.BlockSpec((None, k, 3), lambda i: (i, 0, 0)),
                pl.BlockSpec(w1b.shape, const2),
                pl.BlockSpec(w1r.shape, const2),
                pl.BlockSpec(b1.shape, const2),
                pl.BlockSpec(w2b.shape, const2),
                pl.BlockSpec(b2.shape, const2),
                pl.BlockSpec(w3b.shape, const2),
                pl.BlockSpec(b3.shape, const2),
            ],
            out_specs=pl.BlockSpec((None, k, cout), lambda i: (i, 0, 0)),
        ),
        compiler_params=pltpu.CompilerParams(
            dimension_semantics=("parallel",),
            vmem_limit_bytes=_vmem_limit()),
    )(src, pos_f, cent, w1b, w1r, b1, w2b, b2, w3b, b3)
    return out


# ----------------------------------------------------------------------------
# Kernel B: GlobalSAModule — 3-layer MLP + global max pool, one batch/step.
# pos (3 ch) folded in with VPU FMAs so the MXU input stays 256-wide/aligned.
# ----------------------------------------------------------------------------
def _global_sa_kernel(x_ref, pos_ref, w1x_ref, w1p_ref, b1_ref,
                      w2_ref, b2_ref, w3_ref, b3_ref, out_ref):
    pos = pos_ref[...]                                                     # (s, 3) f32
    h = jnp.dot(x_ref[...], w1x_ref[...],
                preferred_element_type=jnp.float32) + b1_ref[...]
    h = h + (pos[:, 0:1] * w1p_ref[0:1, :]
             + pos[:, 1:2] * w1p_ref[1:2, :]
             + pos[:, 2:3] * w1p_ref[2:3, :])
    h = jnp.maximum(h, 0.0).astype(jnp.bfloat16)
    h = jnp.dot(h, w2_ref[...], preferred_element_type=jnp.float32) + b2_ref[...]
    h = jnp.maximum(h, 0.0).astype(jnp.bfloat16)
    h = jnp.dot(h, w3_ref[...], preferred_element_type=jnp.float32) + b3_ref[...]
    out_ref[...] = jnp.max(h, axis=0, keepdims=True).astype(out_ref.dtype)  # (1, 1024)


def global_sa(x, pos, params):
    """x: (B, S, 256) bf16, pos: (B, S, 3) f32 -> (B, 1024) bf16."""
    (w1, b1), (w2, b2), (w3, b3) = params
    b, s, cx = x.shape
    cout = w3.shape[1]
    w1x = w1[:cx].astype(jnp.bfloat16)     # (256, 256)
    w1p = w1[cx:]                          # (3, 256) f32
    w2b = w2.astype(jnp.bfloat16)
    w3b = w3.astype(jnp.bfloat16)
    const2 = lambda i: (0, 0)

    out = pl.pallas_call(
        _global_sa_kernel,
        out_shape=jax.ShapeDtypeStruct((b, 1, cout), jnp.bfloat16),
        grid_spec=pltpu.PrefetchScalarGridSpec(
            num_scalar_prefetch=0,
            grid=(b,),
            in_specs=[
                pl.BlockSpec((None, s, cx), lambda i: (i, 0, 0)),
                pl.BlockSpec((None, s, 3), lambda i: (i, 0, 0)),
                pl.BlockSpec(w1x.shape, const2),
                pl.BlockSpec(w1p.shape, const2),
                pl.BlockSpec(b1.shape, const2),
                pl.BlockSpec(w2b.shape, const2),
                pl.BlockSpec(b2.shape, const2),
                pl.BlockSpec(w3b.shape, const2),
                pl.BlockSpec(b3.shape, const2),
            ],
            out_specs=pl.BlockSpec((None, 1, cout), lambda i: (i, 0, 0)),
        ),
        compiler_params=pltpu.CompilerParams(
            dimension_semantics=("parallel",),
            vmem_limit_bytes=_vmem_limit()),
    )(x.astype(jnp.bfloat16), pos.astype(jnp.float32),
      w1x, w1p, b1, w2b, b2, w3b, b3)
    return out.reshape(b, cout)


# ----------------------------------------------------------------------------
# Kernel C: classifier head — whole batch in one block (M = B), no grid loop.
# ----------------------------------------------------------------------------
def _head_kernel(x_ref, w1_ref, b1_ref, w2_ref, b2_ref, w3_ref, b3_ref, out_ref):
    h = jnp.dot(x_ref[...], w1_ref[...], preferred_element_type=jnp.float32) + b1_ref[...]
    h = jnp.maximum(h, 0.0).astype(jnp.bfloat16)
    h = jnp.dot(h, w2_ref[...], preferred_element_type=jnp.float32) + b2_ref[...]
    h = jnp.maximum(h, 0.0).astype(jnp.bfloat16)
    out_ref[...] = jnp.dot(h, w3_ref[...], preferred_element_type=jnp.float32) + b3_ref[...]


def classifier(x, params):
    # TODO(synk): dropout=0.5 in the reference head is a no-op in eval mode; not modeled.
    (w1, b1), (w2, b2), (w3, b3) = params
    b, c = x.shape
    nc = w3.shape[1]
    w1b, w2b, w3b = (w.astype(jnp.bfloat16) for w in (w1, w2, w3))
    const2 = lambda i: (0, 0)

    out = pl.pallas_call(
        _head_kernel,
        out_shape=jax.ShapeDtypeStruct((b, nc), jnp.float32),
        grid_spec=pltpu.PrefetchScalarGridSpec(
            num_scalar_prefetch=0,
            grid=(1,),
            in_specs=[
                pl.BlockSpec((b, c), const2),
                pl.BlockSpec(w1b.shape, const2), pl.BlockSpec(b1.shape, const2),
                pl.BlockSpec(w2b.shape, const2), pl.BlockSpec(b2.shape, const2),
                pl.BlockSpec(w3b.shape, const2), pl.BlockSpec(b3.shape, const2),
            ],
            out_specs=pl.BlockSpec((b, nc), const2),
        ),
        compiler_params=pltpu.CompilerParams(
            dimension_semantics=("arbitrary",),
            vmem_limit_bytes=_vmem_limit()),
    )(x.astype(jnp.bfloat16), w1b, b1, w2b, b2, w3b, b3)
    return out


# ----------------------------------------------------------------------------
# JAX glue: FPS, SA modules (hot path delegated to the kernels)
# ----------------------------------------------------------------------------
def fps_indices(pos, k):
    """Farthest point sampling on (N, 3); deterministic start at index 0."""
    # TODO(synk): torch_geometric.fps uses random_start=True by default; we use a
    # deterministic start point instead.
    n = pos.shape[0]

    def body(i, carry):
        sel, mind = carry
        last = pos[sel[i - 1]]
        d = jnp.sum((pos - last) ** 2, axis=-1)
        mind = jnp.minimum(mind, d)
        nxt = jnp.argmax(mind).astype(jnp.int32)
        sel = sel.at[i].set(nxt)
        return sel, mind

    sel0 = jnp.zeros((k,), jnp.int32)
    mind0 = jnp.full((n,), jnp.inf, jnp.float32)
    sel, _ = lax.fori_loop(1, k, body, (sel0, mind0))
    return sel


def sa_module(x, pos, ratio, r, params):
    """Dense SAModule: fps -> radius mask (in-kernel) -> PointNetConv(max)."""
    b, n, _ = pos.shape
    k = math.ceil(ratio * n)
    idx = jax.vmap(lambda p: fps_indices(p, k))(pos)                 # (B, k)
    centers = jax.vmap(lambda p, i: p[i])(pos, idx)                  # (B, k, 3) f32

    # TODO(synk): radius() caps at max_num_neighbors=64; not enforced (N <= 64 here).
    s_pad = _pad_to(n, 16)                                           # bf16 sublane packing
    src = jnp.concatenate(
        [x.astype(jnp.bfloat16), pos.astype(jnp.bfloat16)], axis=-1)  # (B, n, Cx+3)
    pos_f = pos.astype(jnp.float32)
    if s_pad != n:
        pz = s_pad - n
        src = jnp.pad(src, ((0, 0), (0, pz), (0, 0)))
        pos_f = jnp.pad(pos_f, ((0, 0), (0, pz), (0, 0)))

    x_new = sa_conv(src, pos_f, centers, params,
                    k=k, s_pad=s_pad, n_src=n, r=r)                  # (B, k, Cout) bf16
    return x_new, centers


def pointnet_forward(data, params):
    pos = data.astype(jnp.float32)                                   # (B, N, 3)
    x = pos                                                          # sa0_out: x == pos
    x, pos = sa_module(x, pos, 0.5, 0.2, params["sa1"])
    x, pos = sa_module(x, pos, 0.25, 0.4, params["sa2"])
    x = global_sa(x, pos, params["sa3"])                             # (B, 1024) bf16
    y = classifier(x, params["head"])                                # (B, num_classes) f32
    return y


# ----------------------------------------------------------------------------
# Deterministic parameter init (fresh module, eval-mode semantics)
# ----------------------------------------------------------------------------
def make_mlp_params(key, channels, use_norm):
    """3-layer MLP params; BatchNorm (default running stats, eval) folded in."""
    assert len(channels) == 4
    params = []
    bn_scale = 1.0 / math.sqrt(1.0 + 1e-5)   # gamma=1, beta=0, mean=0, var=1
    for li in range(3):
        key, kw, kb = jax.random.split(key, 3)
        fan_in = channels[li]
        w = jax.random.normal(kw, (channels[li], channels[li + 1]), jnp.float32)
        w = w * (1.0 / math.sqrt(fan_in))
        bias = jax.random.normal(kb, (1, channels[li + 1]), jnp.float32) * 0.01
        plain_last = (li == 2)
        if use_norm and not plain_last:
            w = w * bn_scale
            bias = bias * bn_scale
        params.append((w, bias))
    return params


def make_pointnet_params(key, num_classes):
    k1, k2, k3, k4 = jax.random.split(key, 4)
    return {
        "sa1": make_mlp_params(k1, [3 * 2, 64, 64, 128], use_norm=True),
        "sa2": make_mlp_params(k2, [128 + 3, 128, 128, 256], use_norm=True),
        "sa3": make_mlp_params(k3, [256 + 3, 256, 512, 1024], use_norm=True),
        "head": make_mlp_params(k4, [1024, 512, 256, num_classes], use_norm=False),
    }


# ----------------------------------------------------------------------------
if __name__ == "__main__":
    num_classes = 10
    batchsize, npoints = 2, 32

    root = jax.random.PRNGKey(0)
    k_data, k_params = jax.random.split(root)
    data = jax.random.uniform(k_data, (batchsize, npoints, 3), jnp.float32)
    params = make_pointnet_params(k_params, num_classes)

    fwd = jax.jit(pointnet_forward)
    y = jax.block_until_ready(fwd(data, params))

    assert y.shape == (batchsize, num_classes), y.shape
    assert bool(jnp.all(jnp.isfinite(y)))
    print("KERNEL_OK")
</pallas_src>

<mosaic_0001>
module attributes {stable_mosaic.version = 11 : i64} {
  func.func @kernel(%arg0: i32, %arg1: memref<1x32x6xbf16, #tpu.memory_space<vmem>>, %arg2: memref<1x32x3xf32, #tpu.memory_space<vmem>>, %arg3: memref<1x16x3xf32, #tpu.memory_space<vmem>>, %arg4: memref<6x64xbf16, #tpu.memory_space<vmem>>, %arg5: memref<3x64xf32, #tpu.memory_space<vmem>>, %arg6: memref<1x64xf32, #tpu.memory_space<vmem>>, %arg7: memref<64x64xbf16, #tpu.memory_space<vmem>>, %arg8: memref<1x64xf32, #tpu.memory_space<vmem>>, %arg9: memref<64x128xbf16, #tpu.memory_space<vmem>>, %arg10: memref<1x128xf32, #tpu.memory_space<vmem>>, %arg11: memref<1x16x128xbf16, #tpu.memory_space<vmem>>) attributes {dimension_semantics = [#tpu.dimension_semantics<parallel>], iteration_bounds = array<i64: 2>, scalar_prefetch = 0 : i64, scratch_operands = 0 : i64, tpu.core_type = #tpu.core_type<tc>, window_params = [{transform_indices = @transform_0, window_bounds = array<i64: 1, 32, 6>}, {transform_indices = @transform_1, window_bounds = array<i64: 1, 32, 3>}, {transform_indices = @transform_2, window_bounds = array<i64: 1, 16, 3>}, {pipeline_mode = #tpu.pipeline_mode<synchronous>, transform_indices = @transform_3, window_bounds = array<i64: 6, 64>}, {pipeline_mode = #tpu.pipeline_mode<synchronous>, transform_indices = @transform_4, window_bounds = array<i64: 3, 64>}, {pipeline_mode = #tpu.pipeline_mode<synchronous>, transform_indices = @transform_5, window_bounds = array<i64: 1, 64>}, {pipeline_mode = #tpu.pipeline_mode<synchronous>, transform_indices = @transform_6, window_bounds = array<i64: 64, 64>}, {pipeline_mode = #tpu.pipeline_mode<synchronous>, transform_indices = @transform_7, window_bounds = array<i64: 1, 64>}, {pipeline_mode = #tpu.pipeline_mode<synchronous>, transform_indices = @transform_8, window_bounds = array<i64: 64, 128>}, {pipeline_mode = #tpu.pipeline_mode<synchronous>, transform_indices = @transform_9, window_bounds = array<i64: 1, 128>}, {transform_indices = @transform_10, window_bounds = array<i64: 1, 16, 128>}]} {
    %c0 = arith.constant 0 : index
    %c0_0 = arith.constant 0 : index
    %c0_1 = arith.constant 0 : index
    %0 = vector.load %arg1[%c0, %c0_0, %c0_1] : memref<1x32x6xbf16, #tpu.memory_space<vmem>>, vector<1x32x6xbf16>
    %1 = vector.shape_cast %0 : vector<1x32x6xbf16> to vector<32x6xbf16>
    %c0_2 = arith.constant 0 : index
    %c0_3 = arith.constant 0 : index
    %2 = vector.load %arg4[%c0_2, %c0_3] : memref<6x64xbf16, #tpu.memory_space<vmem>>, vector<6x64xbf16>
    %cst = arith.constant dense<0.000000e+00> : vector<32x64xf32>
    %3 = tpu.matmul %1, %2, %cst {dimension_numbers = #tpu.dot_dimension_numbers<[1], [0], [0], [1], [0, 0, 1, 1], [], []>} : vector<32x6xbf16>, vector<6x64xbf16>, vector<32x64xf32> -> vector<32x64xf32>
    %c0_4 = arith.constant 0 : index
    %c0_5 = arith.constant 0 : index
    %4 = vector.load %arg6[%c0_4, %c0_5] : memref<1x64xf32, #tpu.memory_space<vmem>>, vector<1x64xf32>
    %5 = vector.broadcast %4 : vector<1x64xf32> to vector<32x64xf32>
    %6 = arith.addf %3, %5 : vector<32x64xf32>
    %c0_6 = arith.constant 0 : index
    %c0_7 = arith.constant 0 : index
    %c0_8 = arith.constant 0 : index
    %7 = vector.load %arg3[%c0_6, %c0_7, %c0_8] : memref<1x16x3xf32, #tpu.memory_space<vmem>>, vector<1x16x3xf32>
    %8 = vector.shape_cast %7 : vector<1x16x3xf32> to vector<16x3xf32>
    %9 = vector.extract_strided_slice %8 {offsets = [0, 0], sizes = [16, 1], strides = [1, 1]} : vector<16x3xf32> to vector<16x1xf32>
    %c0_9 = arith.constant 0 : index
    %c0_10 = arith.constant 0 : index
    %10 = vector.load %arg5[%c0_9, %c0_10] : memref<3x64xf32, #tpu.memory_space<vmem>>, vector<1x64xf32>
    %11 = vector.broadcast %9 : vector<16x1xf32> to vector<16x64xf32>
    %12 = vector.broadcast %10 : vector<1x64xf32> to vector<16x64xf32>
    %13 = arith.mulf %11, %12 : vector<16x64xf32>
    %14 = vector.extract_strided_slice %8 {offsets = [0, 1], sizes = [16, 1], strides = [1, 1]} : vector<16x3xf32> to vector<16x1xf32>
    %c1 = arith.constant 1 : index
    %c0_11 = arith.constant 0 : index
    %15 = vector.load %arg5[%c1, %c0_11] : memref<3x64xf32, #tpu.memory_space<vmem>>, vector<1x64xf32>
    %16 = vector.broadcast %14 : vector<16x1xf32> to vector<16x64xf32>
    %17 = vector.broadcast %15 : vector<1x64xf32> to vector<16x64xf32>
    %18 = arith.mulf %16, %17 : vector<16x64xf32>
    %19 = arith.addf %13, %18 : vector<16x64xf32>
    %20 = vector.extract_strided_slice %8 {offsets = [0, 2], sizes = [16, 1], strides = [1, 1]} : vector<16x3xf32> to vector<16x1xf32>
    %c2 = arith.constant 2 : index
    %c0_12 = arith.constant 0 : index
    %21 = vector.load %arg5[%c2, %c0_12] : memref<3x64xf32, #tpu.memory_space<vmem>>, vector<1x64xf32>
    %22 = vector.broadcast %20 : vector<16x1xf32> to vector<16x64xf32>
    %23 = vector.broadcast %21 : vector<1x64xf32> to vector<16x64xf32>
    %24 = arith.mulf %22, %23 : vector<16x64xf32>
    %25 = arith.addf %19, %24 : vector<16x64xf32>
    %26 = vector.shape_cast %6 : vector<32x64xf32> to vector<1x32x64xf32>
    %27 = vector.shape_cast %25 : vector<16x64xf32> to vector<16x1x64xf32>
    %28 = vector.broadcast %26 : vector<1x32x64xf32> to vector<16x32x64xf32>
    %29 = vector.broadcast %27 : vector<16x1x64xf32> to vector<16x32x64xf32>
    %30 = arith.subf %28, %29 : vector<16x32x64xf32>
    %cst_13 = arith.constant 0.000000e+00 : f32
    %31 = vector.broadcast %cst_13 : f32 to vector<16x32x64xf32>
    %32 = arith.maximumf %30, %31 : vector<16x32x64xf32>
    %33 = arith.truncf %32 : vector<16x32x64xf32> to vector<16x32x64xbf16>
    %34 = vector.shape_cast %33 : vector<16x32x64xbf16> to vector<512x64xbf16>
    %c0_14 = arith.constant 0 : index
    %c0_15 = arith.constant 0 : index
    %35 = vector.load %arg7[%c0_14, %c0_15] : memref<64x64xbf16, #tpu.memory_space<vmem>>, vector<64x64xbf16>
    %cst_16 = arith.constant dense<0.000000e+00> : vector<512x64xf32>
    %36 = tpu.matmul %34, %35, %cst_16 {dimension_numbers = #tpu.dot_dimension_numbers<[1], [0], [0], [1], [0, 0, 1, 1], [], []>} : vector<512x64xbf16>, vector<64x64xbf16>, vector<512x64xf32> -> vector<512x64xf32>
    %c0_17 = arith.constant 0 : index
    %c0_18 = arith.constant 0 : index
    %37 = vector.load %arg8[%c0_17, %c0_18] : memref<1x64xf32, #tpu.memory_space<vmem>>, vector<1x64xf32>
    %38 = vector.broadcast %37 : vector<1x64xf32> to vector<512x64xf32>
    %39 = arith.addf %36, %38 : vector<512x64xf32>
    %cst_19 = arith.constant 0.000000e+00 : f32
    %40 = vector.broadcast %cst_19 : f32 to vector<512x64xf32>
    %41 = arith.maximumf %39, %40 : vector<512x64xf32>
    %42 = arith.truncf %41 : vector<512x64xf32> to vector<512x64xbf16>
    %c0_20 = arith.constant 0 : index
    %c0_21 = arith.constant 0 : index
    %43 = vector.load %arg9[%c0_20, %c0_21] : memref<64x128xbf16, #tpu.memory_space<vmem>>, vector<64x128xbf16>
    %cst_22 = arith.constant dense<0.000000e+00> : vector<512x128xf32>
    %44 = tpu.matmul %42, %43, %cst_22 {dimension_numbers = #tpu.dot_dimension_numbers<[1], [0], [0], [1], [0, 0, 1, 1], [], []>} : vector<512x64xbf16>, vector<64x128xbf16>, vector<512x128xf32> -> vector<512x128xf32>
    %c0_23 = arith.constant 0 : index
    %c0_24 = arith.constant 0 : index
    %45 = vector.load %arg10[%c0_23, %c0_24] : memref<1x128xf32, #tpu.memory_space<vmem>>, vector<1x128xf32>
    %46 = vector.broadcast %45 : vector<1x128xf32> to vector<512x128xf32>
    %47 = arith.addf %44, %46 : vector<512x128xf32>
    %c0_25 = arith.constant 0 : index
    %c0_26 = arith.constant 0 : index
    %c0_27 = arith.constant 0 : index
    %48 = vector.load %arg2[%c0_25, %c0_26, %c0_27] : memref<1x32x3xf32, #tpu.memory_space<vmem>>, vector<1x32x3xf32>
    %49 = vector.shape_cast %48 : vector<1x32x3xf32> to vector<32x3xf32>
    %50 = vector.extract_strided_slice %8 {offsets = [0, 0], sizes = [16, 1], strides = [1, 1]} : vector<16x3xf32> to vector<16x1xf32>
    %51 = vector.shape_cast %50 : vector<16x1xf32> to vector<16x1x1xf32>
    %52 = vector.extract_strided_slice %49 {offsets = [0, 0], sizes = [32, 1], strides = [1, 1]} : vector<32x3xf32> to vector<32x1xf32>
    %53 = vector.shape_cast %52 : vector<32x1xf32> to vector<1x32x1xf32>
    %54 = vector.broadcast %51 : vector<16x1x1xf32> to vector<16x32x1xf32>
    %55 = vector.broadcast %53 : vector<1x32x1xf32> to vector<16x32x1xf32>
    %56 = arith.subf %54, %55 : vector<16x32x1xf32>
    %57 = arith.mulf %56, %56 : vector<16x32x1xf32>
    %58 = vector.extract_strided_slice %8 {offsets = [0, 1], sizes = [16, 1], strides = [1, 1]} : vector<16x3xf32> to vector<16x1xf32>
    %59 = vector.shape_cast %58 : vector<16x1xf32> to vector<16x1x1xf32>
    %60 = vector.extract_strided_slice %49 {offsets = [0, 1], sizes = [32, 1], strides = [1, 1]} : vector<32x3xf32> to vector<32x1xf32>
    %61 = vector.shape_cast %60 : vector<32x1xf32> to vector<1x32x1xf32>
    %62 = vector.broadcast %59 : vector<16x1x1xf32> to vector<16x32x1xf32>
    %63 = vector.broadcast %61 : vector<1x32x1xf32> to vector<16x32x1xf32>
    %64 = arith.subf %62, %63 : vector<16x32x1xf32>
    %65 = arith.mulf %64, %64 : vector<16x32x1xf32>
    %66 = arith.addf %57, %65 : vector<16x32x1xf32>
    %67 = vector.extract_strided_slice %8 {offsets = [0, 2], sizes = [16, 1], strides = [1, 1]} : vector<16x3xf32> to vector<16x1xf32>
    %68 = vector.shape_cast %67 : vector<16x1xf32> to vector<16x1x1xf32>
    %69 = vector.extract_strided_slice %49 {offsets = [0, 2], sizes = [32, 1], strides = [1, 1]} : vector<32x3xf32> to vector<32x1xf32>
    %70 = vector.shape_cast %69 : vector<32x1xf32> to vector<1x32x1xf32>
    %71 = vector.broadcast %68 : vector<16x1x1xf32> to vector<16x32x1xf32>
    %72 = vector.broadcast %70 : vector<1x32x1xf32> to vector<16x32x1xf32>
    %73 = arith.subf %71, %72 : vector<16x32x1xf32>
    %74 = arith.mulf %73, %73 : vector<16x32x1xf32>
    %75 = arith.addf %66, %74 : vector<16x32x1xf32>
    %cst_28 = arith.constant 4.000000e-02 : f32
    %76 = vector.broadcast %cst_28 : f32 to vector<16x32x1xf32>
    %77 = arith.cmpf ole, %75, %76 : vector<16x32x1xf32>
    %cst_29 = arith.constant 0.000000e+00 : f32
    %cst_30 = arith.constant -1.000000e+30 : f32
    %78 = vector.broadcast %cst_29 : f32 to vector<16x32x1xf32>
    %79 = vector.broadcast %cst_30 : f32 to vector<16x32x1xf32>
    %80 = arith.select %77, %78, %79 : vector<16x32x1xi1>, vector<16x32x1xf32>
    %81 = vector.shape_cast %47 : vector<512x128xf32> to vector<16x32x128xf32>
    %82 = vector.broadcast %80 : vector<16x32x1xf32> to vector<16x32x128xf32>
    %83 = arith.addf %81, %82 : vector<16x32x128xf32>
    %cst_31 = arith.constant dense<0xFF800000> : vector<16x128xf32>
    %84 = vector.multi_reduction <maximumf>, %83, %cst_31 [1] : vector<16x32x128xf32> to vector<16x128xf32>
    %85 = arith.truncf %84 : vector<16x128xf32> to vector<16x128xbf16>
    %c0_32 = arith.constant 0 : index
    %c0_33 = arith.constant 0 : index
    %c0_34 = arith.constant 0 : index
    %86 = vector.load %arg11[%c0_32, %c0_33, %c0_34] : memref<1x16x128xbf16, #tpu.memory_space<vmem>>, vector<1x16x128xbf16>
    %87 = vector.shape_cast %86 : vector<1x16x128xbf16> to vector<16x128xbf16>
    %88 = vector.shape_cast %85 : vector<16x128xbf16> to vector<1x16x128xbf16>
    tpu.vector_store %arg11[%c0_32, %c0_33, %c0_34], %88 {strides = array<i32>} : memref<1x16x128xbf16, #tpu.memory_space<vmem>>, vector<1x16x128xbf16>,
    return
  }
  func.func @transform_0(%arg0: i32) -> (i32, i32, i32) {
    %c0_i32 = arith.constant 0 : i32
    %c0_i32_0 = arith.constant 0 : i32
    %c0_i32_1 = arith.constant 0 : i32
    return %arg0, %c0_i32, %c0_i32_0 : i32, i32, i32
  }
  func.func @transform_1(%arg0: i32) -> (i32, i32, i32) {
    %c0_i32 = arith.constant 0 : i32
    %c0_i32_0 = arith.constant 0 : i32
    %c0_i32_1 = arith.constant 0 : i32
    return %arg0, %c0_i32, %c0_i32_0 : i32, i32, i32
  }
  func.func @transform_2(%arg0: i32) -> (i32, i32, i32) {
    %c0_i32 = arith.constant 0 : i32
    %c0_i32_0 = arith.constant 0 : i32
    %c0_i32_1 = arith.constant 0 : i32
    return %arg0, %c0_i32, %c0_i32_0 : i32, i32, i32
  }
  func.func @transform_3(%arg0: i32) -> (i32, i32) {
    %c0_i32 = arith.constant 0 : i32
    %c0_i32_0 = arith.constant 0 : i32
    %c0_i32_1 = arith.constant 0 : i32
    return %c0_i32, %c0_i32_0 : i32, i32
  }
  func.func @transform_4(%arg0: i32) -> (i32, i32) {
    %c0_i32 = arith.constant 0 : i32
    %c0_i32_0 = arith.constant 0 : i32
    %c0_i32_1 = arith.constant 0 : i32
    return %c0_i32, %c0_i32_0 : i32, i32
  }
  func.func @transform_5(%arg0: i32) -> (i32, i32) {
    %c0_i32 = arith.constant 0 : i32
    %c0_i32_0 = arith.constant 0 : i32
    %c0_i32_1 = arith.constant 0 : i32
    return %c0_i32, %c0_i32_0 : i32, i32
  }
  func.func @transform_6(%arg0: i32) -> (i32, i32) {
    %c0_i32 = arith.constant 0 : i32
    %c0_i32_0 = arith.constant 0 : i32
    %c0_i32_1 = arith.constant 0 : i32
    return %c0_i32, %c0_i32_0 : i32, i32
  }
  func.func @transform_7(%arg0: i32) -> (i32, i32) {
    %c0_i32 = arith.constant 0 : i32
    %c0_i32_0 = arith.constant 0 : i32
    %c0_i32_1 = arith.constant 0 : i32
    return %c0_i32, %c0_i32_0 : i32, i32
  }
  func.func @transform_8(%arg0: i32) -> (i32, i32) {
    %c0_i32 = arith.constant 0 : i32
    %c0_i32_0 = arith.constant 0 : i32
    %c0_i32_1 = arith.constant 0 : i32
    return %c0_i32, %c0_i32_0 : i32, i32
  }
  func.func @transform_9(%arg0: i32) -> (i32, i32) {
    %c0_i32 = arith.constant 0 : i32
    %c0_i32_0 = arith.constant 0 : i32
    %c0_i32_1 = arith.constant 0 : i32
    return %c0_i32, %c0_i32_0 : i32, i32
  }
  func.func @transform_10(%arg0: i32) -> (i32, i32, i32) {
    %c0_i32 = arith.constant 0 : i32
    %c0_i32_0 = arith.constant 0 : i32
    %c0_i32_1 = arith.constant 0 : i32
    return %arg0, %c0_i32, %c0_i32_0 : i32, i32, i32
  }
}

module attributes {stable_mosaic.version = 11 : i64} {
  func.func @kernel(%arg0: i32, %arg1: memref<1x16x131xbf16, #tpu.memory_space<vmem>>, %arg2: memref<1x16x3xf32, #tpu.memory_space<vmem>>, %arg3: memref<1x4x3xf32, #tpu.memory_space<vmem>>, %arg4: memref<131x128xbf16, #tpu.memory_space<vmem>>, %arg5: memref<3x128xf32, #tpu.memory_space<vmem>>, %arg6: memref<1x128xf32, #tpu.memory_space<vmem>>, %arg7: memref<128x128xbf16, #tpu.memory_space<vmem>>, %arg8: memref<1x128xf32, #tpu.memory_space<vmem>>, %arg9: memref<128x256xbf16, #tpu.memory_space<vmem>>, %arg10: memref<1x256xf32, #tpu.memory_space<vmem>>, %arg11: memref<1x4x256xbf16, #tpu.memory_space<vmem>>) attributes {dimension_semantics = [#tpu.dimension_semantics<parallel>], iteration_bounds = array<i64: 2>, scalar_prefetch = 0 : i64, scratch_operands = 0 : i64, tpu.core_type = #tpu.core_type<tc>, window_params = [{transform_indices = @transform_0, window_bounds = array<i64: 1, 16, 131>}, {transform_indices = @transform_1, window_bounds = array<i64: 1, 16, 3>}, {transform_indices = @transform_2, window_bounds = array<i64: 1, 4, 3>}, {pipeline_mode = #tpu.pipeline_mode<synchronous>, transform_indices = @transform_3, window_bounds = array<i64: 131, 128>}, {pipeline_mode = #tpu.pipeline_mode<synchronous>, transform_indices = @transform_4, window_bounds = array<i64: 3, 128>}, {pipeline_mode = #tpu.pipeline_mode<synchronous>, transform_indices = @transform_5, window_bounds = array<i64: 1, 128>}, {pipeline_mode = #tpu.pipeline_mode<synchronous>, transform_indices = @transform_6, window_bounds = array<i64: 128, 128>}, {pipeline_mode = #tpu.pipeline_mode<synchronous>, transform_indices = @transform_7, window_bounds = array<i64: 1, 128>}, {pipeline_mode = #tpu.pipeline_mode<synchronous>, transform_indices = @transform_8, window_bounds = array<i64: 128, 256>}, {pipeline_mode = #tpu.pipeline_mode<synchronous>, transform_indices = @transform_9, window_bounds = array<i64: 1, 256>}, {transform_indices = @transform_10, window_bounds = array<i64: 1, 4, 256>}]} {
    %c0 = arith.constant 0 : index
    %c0_0 = arith.constant 0 : index
    %c0_1 = arith.constant 0 : index
    %0 = vector.load %arg1[%c0, %c0_0, %c0_1] : memref<1x16x131xbf16, #tpu.memory_space<vmem>>, vector<1x16x131xbf16>
    %1 = vector.shape_cast %0 : vector<1x16x131xbf16> to vector<16x131xbf16>
    %c0_2 = arith.constant 0 : index
    %c0_3 = arith.constant 0 : index
    %2 = vector.load %arg4[%c0_2, %c0_3] : memref<131x128xbf16, #tpu.memory_space<vmem>>, vector<131x128xbf16>
    %cst = arith.constant dense<0.000000e+00> : vector<16x128xf32>
    %3 = tpu.matmul %1, %2, %cst {dimension_numbers = #tpu.dot_dimension_numbers<[1], [0], [0], [1], [0, 0, 1, 1], [], []>} : vector<16x131xbf16>, vector<131x128xbf16>, vector<16x128xf32> -> vector<16x128xf32>
    %c0_4 = arith.constant 0 : index
    %c0_5 = arith.constant 0 : index
    %4 = vector.load %arg6[%c0_4, %c0_5] : memref<1x128xf32, #tpu.memory_space<vmem>>, vector<1x128xf32>
    %5 = vector.broadcast %4 : vector<1x128xf32> to vector<16x128xf32>
    %6 = arith.addf %3, %5 : vector<16x128xf32>
    %c0_6 = arith.constant 0 : index
    %c0_7 = arith.constant 0 : index
    %c0_8 = arith.constant 0 : index
    %7 = vector.load %arg3[%c0_6, %c0_7, %c0_8] : memref<1x4x3xf32, #tpu.memory_space<vmem>>, vector<1x4x3xf32>
    %8 = vector.shape_cast %7 : vector<1x4x3xf32> to vector<4x3xf32>
    %9 = vector.extract_strided_slice %8 {offsets = [0, 0], sizes = [4, 1], strides = [1, 1]} : vector<4x3xf32> to vector<4x1xf32>
    %c0_9 = arith.constant 0 : index
    %c0_10 = arith.constant 0 : index
    %10 = vector.load %arg5[%c0_9, %c0_10] : memref<3x128xf32, #tpu.memory_space<vmem>>, vector<1x128xf32>
    %11 = vector.broadcast %9 : vector<4x1xf32> to vector<4x128xf32>
    %12 = vector.broadcast %10 : vector<1x128xf32> to vector<4x128xf32>
    %13 = arith.mulf %11, %12 : vector<4x128xf32>
    %14 = vector.extract_strided_slice %8 {offsets = [0, 1], sizes = [4, 1], strides = [1, 1]} : vector<4x3xf32> to vector<4x1xf32>
    %c1 = arith.constant 1 : index
    %c0_11 = arith.constant 0 : index
    %15 = vector.load %arg5[%c1, %c0_11] : memref<3x128xf32, #tpu.memory_space<vmem>>, vector<1x128xf32>
    %16 = vector.broadcast %14 : vector<4x1xf32> to vector<4x128xf32>
    %17 = vector.broadcast %15 : vector<1x128xf32> to vector<4x128xf32>
    %18 = arith.mulf %16, %17 : vector<4x128xf32>
    %19 = arith.addf %13, %18 : vector<4x128xf32>
    %20 = vector.extract_strided_slice %8 {offsets = [0, 2], sizes = [4, 1], strides = [1, 1]} : vector<4x3xf32> to vector<4x1xf32>
    %c2 = arith.constant 2 : index
    %c0_12 = arith.constant 0 : index
    %21 = vector.load %arg5[%c2, %c0_12] : memref<3x128xf32, #tpu.memory_space<vmem>>, vector<1x128xf32>
    %22 = vector.broadcast %20 : vector<4x1xf32> to vector<4x128xf32>
    %23 = vector.broadcast %21 : vector<1x128xf32> to vector<4x128xf32>
    %24 = arith.mulf %22, %23 : vector<4x128xf32>
    %25 = arith.addf %19, %24 : vector<4x128xf32>
    %26 = vector.shape_cast %6 : vector<16x128xf32> to vector<1x16x128xf32>
    %27 = vector.shape_cast %25 : vector<4x128xf32> to vector<4x1x128xf32>
    %28 = vector.broadcast %26 : vector<1x16x128xf32> to vector<4x16x128xf32>
    %29 = vector.broadcast %27 : vector<4x1x128xf32> to vector<4x16x128xf32>
    %30 = arith.subf %28, %29 : vector<4x16x128xf32>
    %cst_13 = arith.constant 0.000000e+00 : f32
    %31 = vector.broadcast %cst_13 : f32 to vector<4x16x128xf32>
    %32 = arith.maximumf %30, %31 : vector<4x16x128xf32>
    %33 = arith.truncf %32 : vector<4x16x128xf32> to vector<4x16x128xbf16>
    %34 = vector.shape_cast %33 : vector<4x16x128xbf16> to vector<64x128xbf16>
    %c0_14 = arith.constant 0 : index
    %c0_15 = arith.constant 0 : index
    %35 = vector.load %arg7[%c0_14, %c0_15] : memref<128x128xbf16, #tpu.memory_space<vmem>>, vector<128x128xbf16>
    %cst_16 = arith.constant dense<0.000000e+00> : vector<64x128xf32>
    %36 = tpu.matmul %34, %35, %cst_16 {dimension_numbers = #tpu.dot_dimension_numbers<[1], [0], [0], [1], [0, 0, 1, 1], [], []>} : vector<64x128xbf16>, vector<128x128xbf16>, vector<64x128xf32> -> vector<64x128xf32>
    %c0_17 = arith.constant 0 : index
    %c0_18 = arith.constant 0 : index
    %37 = vector.load %arg8[%c0_17, %c0_18] : memref<1x128xf32, #tpu.memory_space<vmem>>, vector<1x128xf32>
    %38 = vector.broadcast %37 : vector<1x128xf32> to vector<64x128xf32>
    %39 = arith.addf %36, %38 : vector<64x128xf32>
    %cst_19 = arith.constant 0.000000e+00 : f32
    %40 = vector.broadcast %cst_19 : f32 to vector<64x128xf32>
    %41 = arith.maximumf %39, %40 : vector<64x128xf32>
    %42 = arith.truncf %41 : vector<64x128xf32> to vector<64x128xbf16>
    %c0_20 = arith.constant 0 : index
    %c0_21 = arith.constant 0 : index
    %43 = vector.load %arg9[%c0_20, %c0_21] : memref<128x256xbf16, #tpu.memory_space<vmem>>, vector<128x256xbf16>
    %cst_22 = arith.constant dense<0.000000e+00> : vector<64x256xf32>
    %44 = tpu.matmul %42, %43, %cst_22 {dimension_numbers = #tpu.dot_dimension_numbers<[1], [0], [0], [1], [0, 0, 1, 1], [], []>} : vector<64x128xbf16>, vector<128x256xbf16>, vector<64x256xf32> -> vector<64x256xf32>
    %c0_23 = arith.constant 0 : index
    %c0_24 = arith.constant 0 : index
    %45 = vector.load %arg10[%c0_23, %c0_24] : memref<1x256xf32, #tpu.memory_space<vmem>>, vector<1x256xf32>
    %46 = vector.broadcast %45 : vector<1x256xf32> to vector<64x256xf32>
    %47 = arith.addf %44, %46 : vector<64x256xf32>
    %c0_25 = arith.constant 0 : index
    %c0_26 = arith.constant 0 : index
    %c0_27 = arith.constant 0 : index
    %48 = vector.load %arg2[%c0_25, %c0_26, %c0_27] : memref<1x16x3xf32, #tpu.memory_space<vmem>>, vector<1x16x3xf32>
    %49 = vector.shape_cast %48 : vector<1x16x3xf32> to vector<16x3xf32>
    %50 = vector.extract_strided_slice %8 {offsets = [0, 0], sizes = [4, 1], strides = [1, 1]} : vector<4x3xf32> to vector<4x1xf32>
    %51 = vector.shape_cast %50 : vector<4x1xf32> to vector<4x1x1xf32>
    %52 = vector.extract_strided_slice %49 {offsets = [0, 0], sizes = [16, 1], strides = [1, 1]} : vector<16x3xf32> to vector<16x1xf32>
    %53 = vector.shape_cast %52 : vector<16x1xf32> to vector<1x16x1xf32>
    %54 = vector.broadcast %51 : vector<4x1x1xf32> to vector<4x16x1xf32>
    %55 = vector.broadcast %53 : vector<1x16x1xf32> to vector<4x16x1xf32>
    %56 = arith.subf %54, %55 : vector<4x16x1xf32>
    %57 = arith.mulf %56, %56 : vector<4x16x1xf32>
    %58 = vector.extract_strided_slice %8 {offsets = [0, 1], sizes = [4, 1], strides = [1, 1]} : vector<4x3xf32> to vector<4x1xf32>
    %59 = vector.shape_cast %58 : vector<4x1xf32> to vector<4x1x1xf32>
    %60 = vector.extract_strided_slice %49 {offsets = [0, 1], sizes = [16, 1], strides = [1, 1]} : vector<16x3xf32> to vector<16x1xf32>
    %61 = vector.shape_cast %60 : vector<16x1xf32> to vector<1x16x1xf32>
    %62 = vector.broadcast %59 : vector<4x1x1xf32> to vector<4x16x1xf32>
    %63 = vector.broadcast %61 : vector<1x16x1xf32> to vector<4x16x1xf32>
    %64 = arith.subf %62, %63 : vector<4x16x1xf32>
    %65 = arith.mulf %64, %64 : vector<4x16x1xf32>
    %66 = arith.addf %57, %65 : vector<4x16x1xf32>
    %67 = vector.extract_strided_slice %8 {offsets = [0, 2], sizes = [4, 1], strides = [1, 1]} : vector<4x3xf32> to vector<4x1xf32>
    %68 = vector.shape_cast %67 : vector<4x1xf32> to vector<4x1x1xf32>
    %69 = vector.extract_strided_slice %49 {offsets = [0, 2], sizes = [16, 1], strides = [1, 1]} : vector<16x3xf32> to vector<16x1xf32>
    %70 = vector.shape_cast %69 : vector<16x1xf32> to vector<1x16x1xf32>
    %71 = vector.broadcast %68 : vector<4x1x1xf32> to vector<4x16x1xf32>
    %72 = vector.broadcast %70 : vector<1x16x1xf32> to vector<4x16x1xf32>
    %73 = arith.subf %71, %72 : vector<4x16x1xf32>
    %74 = arith.mulf %73, %73 : vector<4x16x1xf32>
    %75 = arith.addf %66, %74 : vector<4x16x1xf32>
    %cst_28 = arith.constant 1.600000e-01 : f32
    %76 = vector.broadcast %cst_28 : f32 to vector<4x16x1xf32>
    %77 = arith.cmpf ole, %75, %76 : vector<4x16x1xf32>
    %cst_29 = arith.constant 0.000000e+00 : f32
    %cst_30 = arith.constant -1.000000e+30 : f32
    %78 = vector.broadcast %cst_29 : f32 to vector<4x16x1xf32>
    %79 = vector.broadcast %cst_30 : f32 to vector<4x16x1xf32>
    %80 = arith.select %77, %78, %79 : vector<4x16x1xi1>, vector<4x16x1xf32>
    %81 = vector.shape_cast %47 : vector<64x256xf32> to vector<4x16x256xf32>
    %82 = vector.broadcast %80 : vector<4x16x1xf32> to vector<4x16x256xf32>
    %83 = arith.addf %81, %82 : vector<4x16x256xf32>
    %cst_31 = arith.constant dense<0xFF800000> : vector<4x256xf32>
    %84 = vector.multi_reduction <maximumf>, %83, %cst_31 [1] : vector<4x16x256xf32> to vector<4x256xf32>
    %85 = arith.truncf %84 : vector<4x256xf32> to vector<4x256xbf16>
    %c0_32 = arith.constant 0 : index
    %c0_33 = arith.constant 0 : index
    %c0_34 = arith.constant 0 : index
    %86 = vector.load %arg11[%c0_32, %c0_33, %c0_34] : memref<1x4x256xbf16, #tpu.memory_space<vmem>>, vector<1x4x256xbf16>
    %87 = vector.shape_cast %86 : vector<1x4x256xbf16> to vector<4x256xbf16>
    %88 = vector.shape_cast %85 : vector<4x256xbf16> to vector<1x4x256xbf16>
    tpu.vector_store %arg11[%c0_32, %c0_33, %c0_34], %88 {strides = array<i32>} : memref<1x4x256xbf16, #tpu.memory_space<vmem>>, vector<1x4x256xbf16>,
    return
  }
  func.func @transform_0(%arg0: i32) -> (i32, i32, i32) {
    %c0_i32 = arith.constant 0 : i32
    %c0_i32_0 = arith.constant 0 : i32
    %c0_i32_1 = arith.constant 0 : i32
    return %arg0, %c0_i32, %c0_i32_0 : i32, i32, i32
  }
  func.func @transform_1(%arg0: i32) -> (i32, i32, i32) {
    %c0_i32 = arith.constant 0 : i32
    %c0_i32_0 = arith.constant 0 : i32
    %c0_i32_1 = arith.constant 0 : i32
    return %arg0, %c0_i32, %c0_i32_0 : i32, i32, i32
  }
  func.func @transform_2(%arg0: i32) -> (i32, i32, i32) {
    %c0_i32 = arith.constant 0 : i32
    %c0_i32_0 = arith.constant 0 : i32
    %c0_i32_1 = arith.constant 0 : i32
    return %arg0, %c0_i32, %c0_i32_0 : i32, i32, i32
  }
  func.func @transform_3(%arg0: i32) -> (i32, i32) {
    %c0_i32 = arith.constant 0 : i32
    %c0_i32_0 = arith.constant 0 : i32
    %c0_i32_1 = arith.constant 0 : i32
    return %c0_i32, %c0_i32_0 : i32, i32
  }
  func.func @transform_4(%arg0: i32) -> (i32, i32) {
    %c0_i32 = arith.constant 0 : i32
    %c0_i32_0 = arith.constant 0 : i32
    %c0_i32_1 = arith.constant 0 : i32
    return %c0_i32, %c0_i32_0 : i32, i32
  }
  func.func @transform_5(%arg0: i32) -> (i32, i32) {
    %c0_i32 = arith.constant 0 : i32
    %c0_i32_0 = arith.constant 0 : i32
    %c0_i32_1 = arith.constant 0 : i32
    return %c0_i32, %c0_i32_0 : i32, i32
  }
  func.func @transform_6(%arg0: i32) -> (i32, i32) {
    %c0_i32 = arith.constant 0 : i32
    %c0_i32_0 = arith.constant 0 : i32
    %c0_i32_1 = arith.constant 0 : i32
    return %c0_i32, %c0_i32_0 : i32, i32
  }
  func.func @transform_7(%arg0: i32) -> (i32, i32) {
    %c0_i32 = arith.constant 0 : i32
    %c0_i32_0 = arith.constant 0 : i32
    %c0_i32_1 = arith.constant 0 : i32
    return %c0_i32, %c0_i32_0 : i32, i32
  }
  func.func @transform_8(%arg0: i32) -> (i32, i32) {
    %c0_i32 = arith.constant 0 : i32
    %c0_i32_0 = arith.constant 0 : i32
    %c0_i32_1 = arith.constant 0 : i32
    return %c0_i32, %c0_i32_0 : i32, i32
  }
  func.func @transform_9(%arg0: i32) -> (i32, i32) {
    %c0_i32 = arith.constant 0 : i32
    %c0_i32_0 = arith.constant 0 : i32
    %c0_i32_1 = arith.constant 0 : i32
    return %c0_i32, %c0_i32_0 : i32, i32
  }
  func.func @transform_10(%arg0: i32) -> (i32, i32, i32) {
    %c0_i32 = arith.constant 0 : i32
    %c0_i32_0 = arith.constant 0 : i32
    %c0_i32_1 = arith.constant 0 : i32
    return %arg0, %c0_i32, %c0_i32_0 : i32, i32, i32
  }
}

module attributes {stable_mosaic.version = 11 : i64} {
  func.func @_global_sa_kernel(%arg0: i32, %arg1: memref<1x4x256xbf16, #tpu.memory_space<vmem>>, %arg2: memref<1x4x3xf32, #tpu.memory_space<vmem>>, %arg3: memref<256x256xbf16, #tpu.memory_space<vmem>>, %arg4: memref<3x256xf32, #tpu.memory_space<vmem>>, %arg5: memref<1x256xf32, #tpu.memory_space<vmem>>, %arg6: memref<256x512xbf16, #tpu.memory_space<vmem>>, %arg7: memref<1x512xf32, #tpu.memory_space<vmem>>, %arg8: memref<512x1024xbf16, #tpu.memory_space<vmem>>, %arg9: memref<1x1024xf32, #tpu.memory_space<vmem>>, %arg10: memref<1x1x1024xbf16, #tpu.memory_space<vmem>>) attributes {dimension_semantics = [#tpu.dimension_semantics<parallel>], iteration_bounds = array<i64: 2>, scalar_prefetch = 0 : i64, scratch_operands = 0 : i64, tpu.core_type = #tpu.core_type<tc>, window_params = [{transform_indices = @transform_0, window_bounds = array<i64: 1, 4, 256>}, {transform_indices = @transform_1, window_bounds = array<i64: 1, 4, 3>}, {pipeline_mode = #tpu.pipeline_mode<synchronous>, transform_indices = @transform_2, window_bounds = array<i64: 256, 256>}, {pipeline_mode = #tpu.pipeline_mode<synchronous>, transform_indices = @transform_3, window_bounds = array<i64: 3, 256>}, {pipeline_mode = #tpu.pipeline_mode<synchronous>, transform_indices = @transform_4, window_bounds = array<i64: 1, 256>}, {pipeline_mode = #tpu.pipeline_mode<synchronous>, transform_indices = @transform_5, window_bounds = array<i64: 256, 512>}, {pipeline_mode = #tpu.pipeline_mode<synchronous>, transform_indices = @transform_6, window_bounds = array<i64: 1, 512>}, {pipeline_mode = #tpu.pipeline_mode<synchronous>, transform_indices = @transform_7, window_bounds = array<i64: 512, 1024>}, {pipeline_mode = #tpu.pipeline_mode<synchronous>, transform_indices = @transform_8, window_bounds = array<i64: 1, 1024>}, {transform_indices = @transform_9, window_bounds = array<i64: 1, 1, 1024>}]} {
    %c0 = arith.constant 0 : index
    %c0_0 = arith.constant 0 : index
    %c0_1 = arith.constant 0 : index
    %0 = vector.load %arg2[%c0, %c0_0, %c0_1] : memref<1x4x3xf32, #tpu.memory_space<vmem>>, vector<1x4x3xf32>
    %1 = vector.shape_cast %0 : vector<1x4x3xf32> to vector<4x3xf32>
    %c0_2 = arith.constant 0 : index
    %c0_3 = arith.constant 0 : index
    %c0_4 = arith.constant 0 : index
    %2 = vector.load %arg1[%c0_2, %c0_3, %c0_4] : memref<1x4x256xbf16, #tpu.memory_space<vmem>>, vector<1x4x256xbf16>
    %3 = vector.shape_cast %2 : vector<1x4x256xbf16> to vector<4x256xbf16>
    %c0_5 = arith.constant 0 : index
    %c0_6 = arith.constant 0 : index
    %4 = vector.load %arg3[%c0_5, %c0_6] : memref<256x256xbf16, #tpu.memory_space<vmem>>, vector<256x256xbf16>
    %cst = arith.constant dense<0.000000e+00> : vector<4x256xf32>
    %5 = tpu.matmul %3, %4, %cst {dimension_numbers = #tpu.dot_dimension_numbers<[1], [0], [0], [1], [0, 0, 1, 1], [], []>} : vector<4x256xbf16>, vector<256x256xbf16>, vector<4x256xf32> -> vector<4x256xf32>
    %c0_7 = arith.constant 0 : index
    %c0_8 = arith.constant 0 : index
    %6 = vector.load %arg5[%c0_7, %c0_8] : memref<1x256xf32, #tpu.memory_space<vmem>>, vector<1x256xf32>
    %7 = vector.broadcast %6 : vector<1x256xf32> to vector<4x256xf32>
    %8 = arith.addf %5, %7 : vector<4x256xf32>
    %9 = vector.extract_strided_slice %1 {offsets = [0, 0], sizes = [4, 1], strides = [1, 1]} : vector<4x3xf32> to vector<4x1xf32>
    %c0_9 = arith.constant 0 : index
    %c0_10 = arith.constant 0 : index
    %10 = vector.load %arg4[%c0_9, %c0_10] : memref<3x256xf32, #tpu.memory_space<vmem>>, vector<1x256xf32>
    %11 = vector.broadcast %9 : vector<4x1xf32> to vector<4x256xf32>
    %12 = vector.broadcast %10 : vector<1x256xf32> to vector<4x256xf32>
    %13 = arith.mulf %11, %12 : vector<4x256xf32>
    %14 = vector.extract_strided_slice %1 {offsets = [0, 1], sizes = [4, 1], strides = [1, 1]} : vector<4x3xf32> to vector<4x1xf32>
    %c1 = arith.constant 1 : index
    %c0_11 = arith.constant 0 : index
    %15 = vector.load %arg4[%c1, %c0_11] : memref<3x256xf32, #tpu.memory_space<vmem>>, vector<1x256xf32>
    %16 = vector.broadcast %14 : vector<4x1xf32> to vector<4x256xf32>
    %17 = vector.broadcast %15 : vector<1x256xf32> to vector<4x256xf32>
    %18 = arith.mulf %16, %17 : vector<4x256xf32>
    %19 = arith.addf %13, %18 : vector<4x256xf32>
    %20 = vector.extract_strided_slice %1 {offsets = [0, 2], sizes = [4, 1], strides = [1, 1]} : vector<4x3xf32> to vector<4x1xf32>
    %c2 = arith.constant 2 : index
    %c0_12 = arith.constant 0 : index
    %21 = vector.load %arg4[%c2, %c0_12] : memref<3x256xf32, #tpu.memory_space<vmem>>, vector<1x256xf32>
    %22 = vector.broadcast %20 : vector<4x1xf32> to vector<4x256xf32>
    %23 = vector.broadcast %21 : vector<1x256xf32> to vector<4x256xf32>
    %24 = arith.mulf %22, %23 : vector<4x256xf32>
    %25 = arith.addf %19, %24 : vector<4x256xf32>
    %26 = arith.addf %8, %25 : vector<4x256xf32>
    %cst_13 = arith.constant 0.000000e+00 : f32
    %27 = vector.broadcast %cst_13 : f32 to vector<4x256xf32>
    %28 = arith.maximumf %26, %27 : vector<4x256xf32>
    %29 = arith.truncf %28 : vector<4x256xf32> to vector<4x256xbf16>
    %c0_14 = arith.constant 0 : index
    %c0_15 = arith.constant 0 : index
    %30 = vector.load %arg6[%c0_14, %c0_15] : memref<256x512xbf16, #tpu.memory_space<vmem>>, vector<256x512xbf16>
    %cst_16 = arith.constant dense<0.000000e+00> : vector<4x512xf32>
    %31 = tpu.matmul %29, %30, %cst_16 {dimension_numbers = #tpu.dot_dimension_numbers<[1], [0], [0], [1], [0, 0, 1, 1], [], []>} : vector<4x256xbf16>, vector<256x512xbf16>, vector<4x512xf32> -> vector<4x512xf32>
    %c0_17 = arith.constant 0 : index
    %c0_18 = arith.constant 0 : index
    %32 = vector.load %arg7[%c0_17, %c0_18] : memref<1x512xf32, #tpu.memory_space<vmem>>, vector<1x512xf32>
    %33 = vector.broadcast %32 : vector<1x512xf32> to vector<4x512xf32>
    %34 = arith.addf %31, %33 : vector<4x512xf32>
    %cst_19 = arith.constant 0.000000e+00 : f32
    %35 = vector.broadcast %cst_19 : f32 to vector<4x512xf32>
    %36 = arith.maximumf %34, %35 : vector<4x512xf32>
    %37 = arith.truncf %36 : vector<4x512xf32> to vector<4x512xbf16>
    %c0_20 = arith.constant 0 : index
    %c0_21 = arith.constant 0 : index
    %38 = vector.load %arg8[%c0_20, %c0_21] : memref<512x1024xbf16, #tpu.memory_space<vmem>>, vector<512x1024xbf16>
    %cst_22 = arith.constant dense<0.000000e+00> : vector<4x1024xf32>
    %39 = tpu.matmul %37, %38, %cst_22 {dimension_numbers = #tpu.dot_dimension_numbers<[1], [0], [0], [1], [0, 0, 1, 1], [], []>} : vector<4x512xbf16>, vector<512x1024xbf16>, vector<4x1024xf32> -> vector<4x1024xf32>
    %c0_23 = arith.constant 0 : index
    %c0_24 = arith.constant 0 : index
    %40 = vector.load %arg9[%c0_23, %c0_24] : memref<1x1024xf32, #tpu.memory_space<vmem>>, vector<1x1024xf32>
    %41 = vector.broadcast %40 : vector<1x1024xf32> to vector<4x1024xf32>
    %42 = arith.addf %39, %41 : vector<4x1024xf32>
    %cst_25 = arith.constant dense<0xFF800000> : vector<1024xf32>
    %43 = vector.multi_reduction <maximumf>, %42, %cst_25 [0] : vector<4x1024xf32> to vector<1024xf32>
    %44 = vector.shape_cast %43 : vector<1024xf32> to vector<1x1024xf32>
    %45 = arith.truncf %44 : vector<1x1024xf32> to vector<1x1024xbf16>
    %c0_26 = arith.constant 0 : index
    %c0_27 = arith.constant 0 : index
    %c0_28 = arith.constant 0 : index
    %46 = vector.load %arg10[%c0_26, %c0_27, %c0_28] : memref<1x1x1024xbf16, #tpu.memory_space<vmem>>, vector<1x1x1024xbf16>
    %47 = vector.shape_cast %46 : vector<1x1x1024xbf16> to vector<1x1024xbf16>
    %48 = vector.shape_cast %45 : vector<1x1024xbf16> to vector<1x1x1024xbf16>
    tpu.vector_store %arg10[%c0_26, %c0_27, %c0_28], %48 {strides = array<i32>} : memref<1x1x1024xbf16, #tpu.memory_space<vmem>>, vector<1x1x1024xbf16>,
    return
  }
  func.func @transform_0(%arg0: i32) -> (i32, i32, i32) {
    %c0_i32 = arith.constant 0 : i32
    %c0_i32_0 = arith.constant 0 : i32
    %c0_i32_1 = arith.constant 0 : i32
    return %arg0, %c0_i32, %c0_i32_0 : i32, i32, i32
  }
  func.func @transform_1(%arg0: i32) -> (i32, i32, i32) {
    %c0_i32 = arith.constant 0 : i32
    %c0_i32_0 = arith.constant 0 : i32
    %c0_i32_1 = arith.constant 0 : i32
    return %arg0, %c0_i32, %c0_i32_0 : i32, i32, i32
  }
  func.func @transform_2(%arg0: i32) -> (i32, i32) {
    %c0_i32 = arith.constant 0 : i32
    %c0_i32_0 = arith.constant 0 : i32
    %c0_i32_1 = arith.constant 0 : i32
    return %c0_i32, %c0_i32_0 : i32, i32
  }
  func.func @transform_3(%arg0: i32) -> (i32, i32) {
    %c0_i32 = arith.constant 0 : i32
    %c0_i32_0 = arith.constant 0 : i32
    %c0_i32_1 = arith.constant 0 : i32
    return %c0_i32, %c0_i32_0 : i32, i32
  }
  func.func @transform_4(%arg0: i32) -> (i32, i32) {
    %c0_i32 = arith.constant 0 : i32
    %c0_i32_0 = arith.constant 0 : i32
    %c0_i32_1 = arith.constant 0 : i32
    return %c0_i32, %c0_i32_0 : i32, i32
  }
  func.func @transform_5(%arg0: i32) -> (i32, i32) {
    %c0_i32 = arith.constant 0 : i32
    %c0_i32_0 = arith.constant 0 : i32
    %c0_i32_1 = arith.constant 0 : i32
    return %c0_i32, %c0_i32_0 : i32, i32
  }
  func.func @transform_6(%arg0: i32) -> (i32, i32) {
    %c0_i32 = arith.constant 0 : i32
    %c0_i32_0 = arith.constant 0 : i32
    %c0_i32_1 = arith.constant 0 : i32
    return %c0_i32, %c0_i32_0 : i32, i32
  }
  func.func @transform_7(%arg0: i32) -> (i32, i32) {
    %c0_i32 = arith.constant 0 : i32
    %c0_i32_0 = arith.constant 0 : i32
    %c0_i32_1 = arith.constant 0 : i32
    return %c0_i32, %c0_i32_0 : i32, i32
  }
  func.func @transform_8(%arg0: i32) -> (i32, i32) {
    %c0_i32 = arith.constant 0 : i32
    %c0_i32_0 = arith.constant 0 : i32
    %c0_i32_1 = arith.constant 0 : i32
    return %c0_i32, %c0_i32_0 : i32, i32
  }
  func.func @transform_9(%arg0: i32) -> (i32, i32, i32) {
    %c0_i32 = arith.constant 0 : i32
    %c0_i32_0 = arith.constant 0 : i32
    %c0_i32_1 = arith.constant 0 : i32
    return %arg0, %c0_i32, %c0_i32_0 : i32, i32, i32
  }
}

module attributes {stable_mosaic.version = 11 : i64} {
  func.func @_head_kernel(%arg0: i32, %arg1: memref<2x1024xbf16, #tpu.memory_space<vmem>>, %arg2: memref<1024x512xbf16, #tpu.memory_space<vmem>>, %arg3: memref<1x512xf32, #tpu.memory_space<vmem>>, %arg4: memref<512x256xbf16, #tpu.memory_space<vmem>>, %arg5: memref<1x256xf32, #tpu.memory_space<vmem>>, %arg6: memref<256x10xbf16, #tpu.memory_space<vmem>>, %arg7: memref<1x10xf32, #tpu.memory_space<vmem>>, %arg8: memref<2x10xf32, #tpu.memory_space<vmem>>) attributes {dimension_semantics = [#tpu.dimension_semantics<arbitrary>], iteration_bounds = array<i64: 1>, scalar_prefetch = 0 : i64, scratch_operands = 0 : i64, tpu.core_type = #tpu.core_type<tc>, window_params = [{pipeline_mode = #tpu.pipeline_mode<synchronous>, transform_indices = @transform_0, window_bounds = array<i64: 2, 1024>}, {pipeline_mode = #tpu.pipeline_mode<synchronous>, transform_indices = @transform_1, window_bounds = array<i64: 1024, 512>}, {pipeline_mode = #tpu.pipeline_mode<synchronous>, transform_indices = @transform_2, window_bounds = array<i64: 1, 512>}, {pipeline_mode = #tpu.pipeline_mode<synchronous>, transform_indices = @transform_3, window_bounds = array<i64: 512, 256>}, {pipeline_mode = #tpu.pipeline_mode<synchronous>, transform_indices = @transform_4, window_bounds = array<i64: 1, 256>}, {pipeline_mode = #tpu.pipeline_mode<synchronous>, transform_indices = @transform_5, window_bounds = array<i64: 256, 10>}, {pipeline_mode = #tpu.pipeline_mode<synchronous>, transform_indices = @transform_6, window_bounds = array<i64: 1, 10>}, {pipeline_mode = #tpu.pipeline_mode<synchronous>, transform_indices = @transform_7, window_bounds = array<i64: 2, 10>}]} {
    %c0 = arith.constant 0 : index
    %c0_0 = arith.constant 0 : index
    %0 = vector.load %arg1[%c0, %c0_0] : memref<2x1024xbf16, #tpu.memory_space<vmem>>, vector<2x1024xbf16>
    %c0_1 = arith.constant 0 : index
    %c0_2 = arith.constant 0 : index
    %1 = vector.load %arg2[%c0_1, %c0_2] : memref<1024x512xbf16, #tpu.memory_space<vmem>>, vector<1024x512xbf16>
    %cst = arith.constant dense<0.000000e+00> : vector<2x512xf32>
    %2 = tpu.matmul %0, %1, %cst {dimension_numbers = #tpu.dot_dimension_numbers<[1], [0], [0], [1], [0, 0, 1, 1], [], []>} : vector<2x1024xbf16>, vector<1024x512xbf16>, vector<2x512xf32> -> vector<2x512xf32>
    %c0_3 = arith.constant 0 : index
    %c0_4 = arith.constant 0 : index
    %3 = vector.load %arg3[%c0_3, %c0_4] : memref<1x512xf32, #tpu.memory_space<vmem>>, vector<1x512xf32>
    %4 = vector.broadcast %3 : vector<1x512xf32> to vector<2x512xf32>
    %5 = arith.addf %2, %4 : vector<2x512xf32>
    %cst_5 = arith.constant 0.000000e+00 : f32
    %6 = vector.broadcast %cst_5 : f32 to vector<2x512xf32>
    %7 = arith.maximumf %5, %6 : vector<2x512xf32>
    %8 = arith.truncf %7 : vector<2x512xf32> to vector<2x512xbf16>
    %c0_6 = arith.constant 0 : index
    %c0_7 = arith.constant 0 : index
    %9 = vector.load %arg4[%c0_6, %c0_7] : memref<512x256xbf16, #tpu.memory_space<vmem>>, vector<512x256xbf16>
    %cst_8 = arith.constant dense<0.000000e+00> : vector<2x256xf32>
    %10 = tpu.matmul %8, %9, %cst_8 {dimension_numbers = #tpu.dot_dimension_numbers<[1], [0], [0], [1], [0, 0, 1, 1], [], []>} : vector<2x512xbf16>, vector<512x256xbf16>, vector<2x256xf32> -> vector<2x256xf32>
    %c0_9 = arith.constant 0 : index
    %c0_10 = arith.constant 0 : index
    %11 = vector.load %arg5[%c0_9, %c0_10] : memref<1x256xf32, #tpu.memory_space<vmem>>, vector<1x256xf32>
    %12 = vector.broadcast %11 : vector<1x256xf32> to vector<2x256xf32>
    %13 = arith.addf %10, %12 : vector<2x256xf32>
    %cst_11 = arith.constant 0.000000e+00 : f32
    %14 = vector.broadcast %cst_11 : f32 to vector<2x256xf32>
    %15 = arith.maximumf %13, %14 : vector<2x256xf32>
    %16 = arith.truncf %15 : vector<2x256xf32> to vector<2x256xbf16>
    %c0_12 = arith.constant 0 : index
    %c0_13 = arith.constant 0 : index
    %17 = vector.load %arg6[%c0_12, %c0_13] : memref<256x10xbf16, #tpu.memory_space<vmem>>, vector<256x10xbf16>
    %cst_14 = arith.constant dense<0.000000e+00> : vector<2x10xf32>
    %18 = tpu.matmul %16, %17, %cst_14 {dimension_numbers = #tpu.dot_dimension_numbers<[1], [0], [0], [1], [0, 0, 1, 1], [], []>} : vector<2x256xbf16>, vector<256x10xbf16>, vector<2x10xf32> -> vector<2x10xf32>
    %c0_15 = arith.constant 0 : index
    %c0_16 = arith.constant 0 : index
    %19 = vector.load %arg7[%c0_15, %c0_16] : memref<1x10xf32, #tpu.memory_space<vmem>>, vector<1x10xf32>
    %20 = vector.broadcast %19 : vector<1x10xf32> to vector<2x10xf32>
    %21 = arith.addf %18, %20 : vector<2x10xf32>
    %c0_17 = arith.constant 0 : index
    %c0_18 = arith.constant 0 : index
    %22 = vector.load %arg8[%c0_17, %c0_18] : memref<2x10xf32, #tpu.memory_space<vmem>>, vector<2x10xf32>
    tpu.vector_store %arg8[%c0_17, %c0_18], %21 {strides = array<i32>} : memref<2x10xf32, #tpu.memory_space<vmem>>, vector<2x10xf32>,
    return
  }
  func.func @transform_0(%arg0: i32) -> (i32, i32) {
    %c0_i32 = arith.constant 0 : i32
    %c0_i32_0 = arith.constant 0 : i32
    %c0_i32_1 = arith.constant 0 : i32
    return %c0_i32, %c0_i32_0 : i32, i32
  }
  func.func @transform_1(%arg0: i32) -> (i32, i32) {
    %c0_i32 = arith.constant 0 : i32
    %c0_i32_0 = arith.constant 0 : i32
    %c0_i32_1 = arith.constant 0 : i32
    return %c0_i32, %c0_i32_0 : i32, i32
  }
  func.func @transform_2(%arg0: i32) -> (i32, i32) {
    %c0_i32 = arith.constant 0 : i32
    %c0_i32_0 = arith.constant 0 : i32
    %c0_i32_1 = arith.constant 0 : i32
    return %c0_i32, %c0_i32_0 : i32, i32
  }
  func.func @transform_3(%arg0: i32) -> (i32, i32) {
    %c0_i32 = arith.constant 0 : i32
    %c0_i32_0 = arith.constant 0 : i32
    %c0_i32_1 = arith.constant 0 : i32
    return %c0_i32, %c0_i32_0 : i32, i32
  }
  func.func @transform_4(%arg0: i32) -> (i32, i32) {
    %c0_i32 = arith.constant 0 : i32
    %c0_i32_0 = arith.constant 0 : i32
    %c0_i32_1 = arith.constant 0 : i32
    return %c0_i32, %c0_i32_0 : i32, i32
  }
  func.func @transform_5(%arg0: i32) -> (i32, i32) {
    %c0_i32 = arith.constant 0 : i32
    %c0_i32_0 = arith.constant 0 : i32
    %c0_i32_1 = arith.constant 0 : i32
    return %c0_i32, %c0_i32_0 : i32, i32
  }
  func.func @transform_6(%arg0: i32) -> (i32, i32) {
    %c0_i32 = arith.constant 0 : i32
    %c0_i32_0 = arith.constant 0 : i32
    %c0_i32_1 = arith.constant 0 : i32
    return %c0_i32, %c0_i32_0 : i32, i32
  }
  func.func @transform_7(%arg0: i32) -> (i32, i32) {
    %c0_i32 = arith.constant 0 : i32
    %c0_i32_0 = arith.constant 0 : i32
    %c0_i32_1 = arith.constant 0 : i32
    return %c0_i32, %c0_i32_0 : i32, i32
  }
}

</mosaic_0001>

<llo_original>
// kernel: custom-call.8
$region0: #{custom-call.8}
  %s0 = inlined_call_operand.vmem [shape: f32[2,32], index: 0, kind: output, shape index: {}]

// kernel: custom-call.9
$region0: #{custom-call.9}
  %s0 = inlined_call_operand.vmem [shape: f32[2,16], index: 0, kind: output, shape index: {}]

// kernel: pointnet_forward.5
$region0: #{pointnet_forward.5}
  #allocation0 [shape = 'u32[]', space=smem, size = 0x4, offset = 0x4, fixed_abs, tag = 'smem constant byte address 0x4 - core index']
  #allocation1 [shape = 'u32[144,128]{1,0:T(1,128)}', space=vmem, size = 0x12000, scoped, tag = 'internal scratch']
  %s0 = inlined_call_operand.vmem [shape: bf16[2,16,131], index: 0, kind: input, shape index: {}]
  %s1 = inlined_call_operand.vmem [shape: f32[2,16,3], index: 1, kind: input, shape index: {}]
  %s2 = inlined_call_operand.vmem [shape: f32[2,4,3], index: 2, kind: input, shape index: {}]
  %s3 = inlined_call_operand.vmem [shape: bf16[131,128], index: 3, kind: input, shape index: {}]
  %s4 = inlined_call_operand.vmem [shape: f32[3,128], index: 4, kind: input, shape index: {}]
  %s5 = inlined_call_operand.hbm [shape: f32[1,128], index: 5, kind: input, shape index: {}]
  %s6 = inlined_call_operand.vmem [shape: bf16[128,128], index: 6, kind: input, shape index: {}]
  %s7 = inlined_call_operand.hbm [shape: f32[1,128], index: 7, kind: input, shape index: {}]
  %s8 = inlined_call_operand.vmem [shape: bf16[128,256], index: 8, kind: input, shape index: {}]
  %s9 = inlined_call_operand.hbm [shape: f32[1,256], index: 9, kind: input, shape index: {}]
  %s10 = inlined_call_operand.vmem [shape: bf16[2,4,256], index: 10, kind: output, shape index: {}]
  %s11 = sld [smem:[#allocation0]]
  $region85: #{pointnet_forward.5} parent=0
    _
  %s13 = ssub.s32 1, %s11
  %s14 = scalar_select 0, %s13, %s11
  $region1: #{pointnet_forward.5} parent=0
    #allocation2 [shape = 'u8[512]{0}', space=vmem, size = 0x400, scoped, tag = 'input window, operand 5, single buffered']
    #allocation3 [shape = 's32[2]{0}', space=sflag, size = 0x8, scoped, tag = 'scoped memory for pointnet_forward.5']
    #allocation4 [shape = 'u8[512]{0}', space=vmem, size = 0x400, scoped, tag = 'input window, operand 7, single buffered']
    #allocation5 [shape = 's32[1]{0}', space=sflag, size = 0x4, scoped, tag = 'scoped memory for pointnet_forward.5']
    #allocation6 [shape = 'u8[1024]{0}', space=vmem, size = 0x400, scoped, tag = 'input window, operand 9, single buffered']
    %15 = vsyncpa [#allocation3], 0
    %16 = vsyncpa [#allocation5], 0
    loop: start=0, step=1, limit=4
    $region2: #{pointnet_forward.5} parent=1 // loop_pre_header
      _
    $region3: #{pointnet_forward.5} parent=1 // loop_header
      %s18 = sphi 0, %s22
      %p19 = scmp.ge.s32.totalorder %s18, 4
      %s28 = sphi 0, %s30
      %s31 = sphi 0, %s28
      %s32 = sphi 0, %s31
      %s48 = sphi 0, %s32
      %s54 = sphi 0, %s56
      %s57 = sphi 0, %s54
      %s58 = sphi 0, %s57
      %s74 = sphi 0, %s58
      %s80 = sphi 0, %s82
      %s83 = sphi 0, %s80
      %s84 = sphi 0, %s83
      %s100 = sphi 0, %s84
      %s104 = sphi 0, %s104
      %s106 = sphi 0, %s104
      %s107 = sphi 0, %s106
      %s121 = sphi 0, %s107
      %s125 = sphi 0, %s125
      %s127 = sphi 0, %s125
      %s128 = sphi 0, %s127
      %s142 = sphi 0, %s128
      %s146 = sphi 0, %s146
      %s148 = sphi 0, %s146
      %s149 = sphi 0, %s148
      %s163 = sphi 0, %s149
      %s167 = sphi 0, %s167
      %s169 = sphi 0, %s167
      %s170 = sphi 0, %s169
      %s184 = sphi 0, %s170
      %s188 = sphi 0, %s188
      %s190 = sphi 0, %s188
      %s191 = sphi 0, %s190
      %s205 = sphi 0, %s191
      %s209 = sphi 0, %s209
      %s211 = sphi 0, %s209
      %s212 = sphi 0, %s211
      %s226 = sphi 0, %s212
      %s230 = sphi 0, %s230
      %s232 = sphi 0, %s230
      %s233 = sphi 0, %s232
      %s247 = sphi 0, %s233
      %s253 = sphi 0, %s255
      %s256 = sphi 0, %s253
      %s257 = sphi 0, %s256
      %s273 = sphi 0, %s257
    $region4: #{pointnet_forward.5} parent=1 // loop_header_branch
      %21 = sbr.rel (%p19) target = $region8
    $region5: #{pointnet_forward.5} parent=1 // loop_body
      %s23 = ssub.s32 %s18, 1
      %s24 = ssub.s32 %s18, 2
      %s25 = sadd.s32 %s18, 1
      %s26 = ssub.s32 %s18, %s25
      %p27 = scmp.eq.s32.totalorder %s26, 0
      %s29 = sadd.s32 %s28, 1
      %s30 = scalar_select %p27, %s28, %s29
      %p33 = pneg %p27
      %p34 = scmp.eq.s32.totalorder %s18, 1
      %p35 = por %p33, %p34
      %p36 = scmp.ne.s32.totalorder %s28, %s31
      %p37 = scmp.eq.s32.totalorder %s18, 0
      %p38 = por %p36, %p37
      %p39 = scmp.ne.s32.totalorder %s28, %s31
      %p40 = scmp.eq.s32.totalorder %s23, 1
      %p41 = por %p39, %p40
      %p42 = scmp.ne.s32.totalorder %s31, %s32
      %p43 = scmp.eq.s32.totalorder %s23, 0
      %p44 = por %p42, %p43
      %p45 = scmp.ne.s32.totalorder %s31, %s32
      %p46 = scmp.eq.s32.totalorder %s24, 1
      %p47 = por %p45, %p46
      %p49 = scmp.ne.s32.totalorder %s32, %s48
      %p50 = scmp.eq.s32.totalorder %s24, 0
      %p51 = por %p49, %p50
      %s52 = ssub.s32 %s18, %s25
      %p53 = scmp.eq.s32.totalorder %s52, 0
      %s55 = sadd.s32 %s54, 1
      %s56 = scalar_select %p53, %s54, %s55
      %p59 = pneg %p53
      %p60 = scmp.eq.s32.totalorder %s18, 1
      %p61 = por %p59, %p60
      %p62 = scmp.ne.s32.totalorder %s54, %s57
      %p63 = scmp.eq.s32.totalorder %s18, 0
      %p64 = por %p62, %p63
      %p65 = scmp.ne.s32.totalorder %s54, %s57
      %p66 = scmp.eq.s32.totalorder %s23, 1
      %p67 = por %p65, %p66
      %p68 = scmp.ne.s32.totalorder %s57, %s58
      %p69 = scmp.eq.s32.totalorder %s23, 0
      %p70 = por %p68, %p69
      %p71 = scmp.ne.s32.totalorder %s57, %s58
      %p72 = scmp.eq.s32.totalorder %s24, 1
      %p73 = por %p71, %p72
      %p75 = scmp.ne.s32.totalorder %s58, %s74
      %p76 = scmp.eq.s32.totalorder %s24, 0
      %p77 = por %p75, %p76
      %s78 = ssub.s32 %s18, %s25
      %p79 = scmp.eq.s32.totalorder %s78, 0
      %s81 = sadd.s32 %s80, 1
      %s82 = scalar_select %p79, %s80, %s81
      %p85 = pneg %p79
      %p86 = scmp.eq.s32.totalorder %s18, 1
      %p87 = por %p85, %p86
      %p88 = scmp.ne.s32.totalorder %s80, %s83
      %p89 = scmp.eq.s32.totalorder %s18, 0
      %p90 = por %p88, %p89
      %p91 = scmp.ne.s32.totalorder %s80, %s83
      %p92 = scmp.eq.s32.totalorder %s23, 1
      %p93 = por %p91, %p92
      %p94 = scmp.ne.s32.totalorder %s83, %s84
      %p95 = scmp.eq.s32.totalorder %s23, 0
      %p96 = por %p94, %p95
      %p97 = scmp.ne.s32.totalorder %s83, %s84
      %p98 = scmp.eq.s32.totalorder %s24, 1
      %p99 = por %p97, %p98
      %p101 = scmp.ne.s32.totalorder %s84, %s100
      %p102 = scmp.eq.s32.totalorder %s24, 0
      %p103 = por %p101, %p102
      %s105 = sadd.s32 %s104, 1
      %p108 = scmp.eq.s32.totalorder %s18, 1
      %p109 = scmp.ne.s32.totalorder %s104, %s106
      %p110 = scmp.eq.s32.totalorder %s18, 0
      %p111 = por %p109, %p110
      %p112 = scmp.ne.s32.totalorder %s104, %s106
      %p113 = scmp.eq.s32.totalorder %s23, 1
      %p114 = por %p112, %p113
      %p115 = scmp.ne.s32.totalorder %s106, %s107
      %p116 = scmp.eq.s32.totalorder %s23, 0
      %p117 = por %p115, %p116
      %p118 = scmp.ne.s32.totalorder %s106, %s107
      %p119 = scmp.eq.s32.totalorder %s24, 1
      %p120 = por %p118, %p119
      %p122 = scmp.ne.s32.totalorder %s107, %s121
      %p123 = scmp.eq.s32.totalorder %s24, 0
      %p124 = por %p122, %p123
      %s126 = sadd.s32 %s125, 1
      %p129 = scmp.eq.s32.totalorder %s18, 1
      %p130 = scmp.ne.s32.totalorder %s125, %s127
      %p131 = scmp.eq.s32.totalorder %s18, 0
      %p132 = por %p130, %p131
      %p133 = scmp.ne.s32.totalorder %s125, %s127
      %p134 = scmp.eq.s32.totalorder %s23, 1
      %p135 = por %p133, %p134
      %p136 = scmp.ne.s32.totalorder %s127, %s128
      %p137 = scmp.eq.s32.totalorder %s23, 0
      %p138 = por %p136, %p137
      %p139 = scmp.ne.s32.totalorder %s127, %s128
      %p140 = scmp.eq.s32.totalorder %s24, 1
      %p141 = por %p139, %p140
      %p143 = scmp.ne.s32.totalorder %s128, %s142
      %p144 = scmp.eq.s32.totalorder %s24, 0
      %p145 = por %p143, %p144
      %s147 = sadd.s32 %s146, 1
      %p150 = scmp.eq.s32.totalorder %s18, 1
      %p151 = scmp.ne.s32.totalorder %s146, %s148
      %p152 = scmp.eq.s32.totalorder %s18, 0
      %p153 = por %p151, %p152
      %p154 = scmp.ne.s32.totalorder %s146, %s148
      %p155 = scmp.eq.s32.totalorder %s23, 1
      %p156 = por %p154, %p155
      %p157 = scmp.ne.s32.totalorder %s148, %s149
      %p158 = scmp.eq.s32.totalorder %s23, 0
      %p159 = por %p157, %p158
      %p160 = scmp.ne.s32.totalorder %s148, %s149
      %p161 = scmp.eq.s32.totalorder %s24, 1
      %p162 = por %p160, %p161
      %p164 = scmp.ne.s32.totalorder %s149, %s163
      %p165 = scmp.eq.s32.totalorder %s24, 0
      %p166 = por %p164, %p165
      %s168 = sadd.s32 %s167, 1
      %p171 = scmp.eq.s32.totalorder %s18, 1
      %p172 = scmp.ne.s32.totalorder %s167, %s169
      %p173 = scmp.eq.s32.totalorder %s18, 0
      %p174 = por %p172, %p173
      %p175 = scmp.ne.s32.totalorder %s167, %s169
      %p176 = scmp.eq.s32.totalorder %s23, 1
      %p177 = por %p175, %p176
      %p178 = scmp.ne.s32.totalorder %s169, %s170
      %p179 = scmp.eq.s32.totalorder %s23, 0
      %p180 = por %p178, %p179
      %p181 = scmp.ne.s32.totalorder %s169, %s170
      %p182 = scmp.eq.s32.totalorder %s24, 1
      %p183 = por %p181, %p182
      %p185 = scmp.ne.s32.totalorder %s170, %s184
      %p186 = scmp.eq.s32.totalorder %s24, 0
      %p187 = por %p185, %p186
      %s189 = sadd.s32 %s188, 1
      %p192 = scmp.eq.s32.totalorder %s18, 1
      %p193 = scmp.ne.s32.totalorder %s188, %s190
      %p194 = scmp.eq.s32.totalorder %s18, 0
      %p195 = por %p193, %p194
      %p196 = scmp.ne.s32.totalorder %s188, %s190
      %p197 = scmp.eq.s32.totalorder %s23, 1
      %p198 = por %p196, %p197
      %p199 = scmp.ne.s32.totalorder %s190, %s191
      %p200 = scmp.eq.s32.totalorder %s23, 0
      %p201 = por %p199, %p200
      %p202 = scmp.ne.s32.totalorder %s190, %s191
      %p203 = scmp.eq.s32.totalorder %s24, 1
      %p204 = por %p202, %p203
      %p206 = scmp.ne.s32.totalorder %s191, %s205
      %p207 = scmp.eq.s32.totalorder %s24, 0
      %p208 = por %p206, %p207
      %s210 = sadd.s32 %s209, 1
      %p213 = scmp.eq.s32.totalorder %s18, 1
      %p214 = scmp.ne.s32.totalorder %s209, %s211
      %p215 = scmp.eq.s32.totalorder %s18, 0
      %p216 = por %p214, %p215
      %p217 = scmp.ne.s32.totalorder %s209, %s211
      %p218 = scmp.eq.s32.totalorder %s23, 1
      %p219 = por %p217, %p218
      %p220 = scmp.ne.s32.totalorder %s211, %s212
      %p221 = scmp.eq.s32.totalorder %s23, 0
      %p222 = por %p220, %p221
      %p223 = scmp.ne.s32.totalorder %s211, %s212
      %p224 = scmp.eq.s32.totalorder %s24, 1
      %p225 = por %p223, %p224
      %p227 = scmp.ne.s32.totalorder %s212, %s226
      %p228 = scmp.eq.s32.totalorder %s24, 0
      %p229 = por %p227, %p228
      %s231 = sadd.s32 %s230, 1
      %p234 = scmp.eq.s32.totalorder %s18, 1
      %p235 = scmp.ne.s32.totalorder %s230, %s232
      %p236 = scmp.eq.s32.totalorder %s18, 0
      %p237 = por %p235, %p236
      %p238 = scmp.ne.s32.totalorder %s230, %s232
      %p239 = scmp.eq.s32.totalorder %s23, 1
      %p240 = por %p238, %p239
      %p241 = scmp.ne.s32.totalorder %s232, %s233
      %p242 = scmp.eq.s32.totalorder %s23, 0
      %p243 = por %p241, %p242
      %p244 = scmp.ne.s32.totalorder %s232, %s233
      %p245 = scmp.eq.s32.totalorder %s24, 1
      %p246 = por %p244, %p245
      %p248 = scmp.ne.s32.totalorder %s233, %s247
      %p249 = scmp.eq.s32.totalorder %s24, 0
      %p250 = por %p248, %p249
      %s251 = ssub.s32 %s18, %s25
      %p252 = scmp.eq.s32.totalorder %s251, 0
      %s254 = sadd.s32 %s253, 1
      %s255 = scalar_select %p252, %s253, %s254
      %p258 = pneg %p252
      %p259 = scmp.eq.s32.totalorder %s18, 1
      %p260 = por %p258, %p259
      %p261 = scmp.ne.s32.totalorder %s253, %s256
      %p262 = scmp.eq.s32.totalorder %s18, 0
      %p263 = por %p261, %p262
      %p264 = scmp.ne.s32.totalorder %s253, %s256
      %p265 = scmp.eq.s32.totalorder %s23, 1
      %p266 = por %p264, %p265
      %p267 = scmp.ne.s32.totalorder %s256, %s257
      %p268 = scmp.eq.s32.totalorder %s23, 0
      %p269 = por %p267, %p268
      %p270 = scmp.ne.s32.totalorder %s256, %s257
      %p271 = scmp.eq.s32.totalorder %s24, 1
      %p272 = por %p270, %p271
      %p274 = scmp.ne.s32.totalorder %s257, %s273
      %p275 = scmp.eq.s32.totalorder %s24, 0
      %p276 = por %p274, %p275
      %p277 = scmp.le.s32.totalorder 1, %s18
      %p278 = scmp.lt.s32.totalorder %s18, 3
      %p279 = pnand %p277, %p278
      %p280 = pneg %p279
      // Predicated region
      $region9: #{pointnet_forward.5} parent=5 // pred_check
        _
      $region10: #{pointnet_forward.5} parent=5 // pred_check_branch
        %282 = sbr.rel (%p279) target = $region12
      $region11: #{pointnet_forward.5} parent=5 // pred_region
        %s283 = ssub.s32 %s18, 1
        // Predicated region
        $region13: #{pointnet_forward.5} parent=11 // pred_check
          %p284 = pneg %p117
        $region14: #{pointnet_forward.5} parent=11 // pred_check_branch
          %286 = sbr.rel (%p284) target = $region16
        $region15: #{pointnet_forward.5} parent=11 // pred_region
          _
        $region16: #{pointnet_forward.5} parent=11 // pred_fallthru
          _
        // Predicated region
        $region17: #{pointnet_forward.5} parent=11 // pred_check
          %p287 = pneg %p138
        $region18: #{pointnet_forward.5} parent=11 // pred_check_branch
          %289 = sbr.rel (%p287) target = $region20
        $region19: #{pointnet_forward.5} parent=11 // pred_region
          _
        $region20: #{pointnet_forward.5} parent=11 // pred_fallthru
          _
        // Predicated region
        $region21: #{pointnet_forward.5} parent=11 // pred_check
          %p290 = pneg %p159
        $region22: #{pointnet_forward.5} parent=11 // pred_check_branch
          %292 = sbr.rel (%p290) target = $region24
        $region23: #{pointnet_forward.5} parent=11 // pred_region
          %s294 = ssub.s32 16, 16
          %295 = vsyncadd [#allocation3], %s294
          %s297 = sshll.u32 [#allocation2], 4
          %s298 = int_to_ptr.vmem [resolvable:$true] %s297
          %300 = dma.hbm_to_vmem [thread:$0]  %s5, 16, %s298, [#allocation3]
        $region24: #{pointnet_forward.5} parent=11 // pred_fallthru
          _
        // Predicated region
        $region25: #{pointnet_forward.5} parent=11 // pred_check
          %p301 = pneg %p180
        $region26: #{pointnet_forward.5} parent=11 // pred_check_branch
          %303 = sbr.rel (%p301) target = $region28
        $region27: #{pointnet_forward.5} parent=11 // pred_region
          _
        $region28: #{pointnet_forward.5} parent=11 // pred_fallthru
          _
        // Predicated region
        $region29: #{pointnet_forward.5} parent=11 // pred_check
          %p304 = pneg %p201
        $region30: #{pointnet_forward.5} parent=11 // pred_check_branch
          %306 = sbr.rel (%p304) target = $region32
        $region31: #{pointnet_forward.5} parent=11 // pred_region
          %s308 = ssub.s32 16, 16
          %309 = vsyncadd [#allocation5], %s308
          %s311 = sshll.u32 [#allocation4], 4
          %s312 = int_to_ptr.vmem [resolvable:$true] %s311
          %314 = dma.hbm_to_vmem [thread:$0]  %s7, 16, %s312, [#allocation5]
        $region32: #{pointnet_forward.5} parent=11 // pred_fallthru
          _
        // Predicated region
        $region33: #{pointnet_forward.5} parent=11 // pred_check
          %p315 = pneg %p222
        $region34: #{pointnet_forward.5} parent=11 // pred_check_branch
          %317 = sbr.rel (%p315) target = $region36
        $region35: #{pointnet_forward.5} parent=11 // pred_region
          _
        $region36: #{pointnet_forward.5} parent=11 // pred_fallthru
          _
        // Predicated region
        $region37: #{pointnet_forward.5} parent=11 // pred_check
          %p318 = pneg %p243
        $region38: #{pointnet_forward.5} parent=11 // pred_check_branch
          %320 = sbr.rel (%p318) target = $region40
        $region39: #{pointnet_forward.5} parent=11 // pred_region
          %s322 = ssub.s32 32, 32
          %323 = vsyncadd [#allocation5], %s322
          %s325 = sshll.u32 [#allocation6], 4
          %s326 = int_to_ptr.vmem [resolvable:$true] %s325
          %328 = dma.hbm_to_vmem [thread:$0]  %s9, 32, %s326, [#allocation5]
        $region40: #{pointnet_forward.5} parent=11 // pred_fallthru
          _
      $region12: #{pointnet_forward.5} parent=5 // pred_fallthru
        _
      %p329 = scmp.lt.s32.totalorder %s18, 2
      // Predicated region
      $region41: #{pointnet_forward.5} parent=5 // pred_check
        %p330 = pneg %p329
      $region42: #{pointnet_forward.5} parent=5 // pred_check_branch
        %332 = sbr.rel (%p330) target = $region44
      $region43: #{pointnet_forward.5} parent=5 // pred_region
        // Predicated region
        $region45: #{pointnet_forward.5} parent=43 // pred_check
          %p333 = pneg %p38
        $region46: #{pointnet_forward.5} parent=43 // pred_check_branch
          %335 = sbr.rel (%p333) target = $region48
        $region47: #{pointnet_forward.5} parent=43 // pred_region
          %p336 = scmp.lt.s32.totalorder %s18, 1
          %s337 = scalar_select %p336, %s18, 1
          %s338 = smul.addr %s337, 4
          %s339 = smul.addr %s338, 4
          %s340 = scalar_lea.vmem %s0, %s339
        $region48: #{pointnet_forward.5} parent=43 // pred_fallthru
          _
        // Predicated region
        $region49: #{pointnet_forward.5} parent=43 // pred_check
          %p341 = pneg %p64
        $region50: #{pointnet_forward.5} parent=43 // pred_check_branch
          %343 = sbr.rel (%p341) target = $region52
        $region51: #{pointnet_forward.5} parent=43 // pred_region
          %p344 = scmp.lt.s32.totalorder %s18, 1
          %s345 = scalar_select %p344, %s18, 1
          %s346 = smul.addr %s345, 2
          %s347 = smul.addr %s346, 8
          %s348 = scalar_lea.vmem %s1, %s347
        $region52: #{pointnet_forward.5} parent=43 // pred_fallthru
          _
        // Predicated region
        $region53: #{pointnet_forward.5} parent=43 // pred_check
          %p349 = pneg %p90
        $region54: #{pointnet_forward.5} parent=43 // pred_check_branch
          %351 = sbr.rel (%p349) target = $region56
        $region55: #{pointnet_forward.5} parent=43 // pred_region
          %p352 = scmp.lt.s32.totalorder %s18, 1
          %s353 = scalar_select %p352, %s18, 1
          %s354 = smul.addr %s353, 4
          %s355 = scalar_lea.vmem %s2, %s354
        $region56: #{pointnet_forward.5} parent=43 // pred_fallthru
          _
      $region44: #{pointnet_forward.5} parent=5 // pred_fallthru
        _
      %p356 = scmp.le.s32.totalorder 1, %s18
      %p357 = scmp.lt.s32.totalorder %s18, 3
      %p358 = pnand %p356, %p357
      %p359 = pneg %p358
      // Predicated region
      $region57: #{pointnet_forward.5} parent=5 // pred_check
        _
      $region58: #{pointnet_forward.5} parent=5 // pred_check_branch
        %361 = sbr.rel (%p358) target = $region60
      $region59: #{pointnet_forward.5} parent=5 // pred_region
        %s362 = ssub.s32 %s18, 1
        // Predicated region
        $region61: #{pointnet_forward.5} parent=59 // pred_check
          %p363 = pneg %p159
        $region62: #{pointnet_forward.5} parent=59 // pred_check_branch
          %365 = sbr.rel (%p363) target = $region64
        $region63: #{pointnet_forward.5} parent=59 // pred_region
          %366 = dma.done [#allocation3], 16
        $region64: #{pointnet_forward.5} parent=59 // pred_fallthru
          _
        // Predicated region
        $region65: #{pointnet_forward.5} parent=59 // pred_check
          %p367 = pneg %p201
        $region66: #{pointnet_forward.5} parent=59 // pred_check_branch
          %369 = sbr.rel (%p367) target = $region68
        $region67: #{pointnet_forward.5} parent=59 // pred_region
          %370 = dma.done [#allocation5], 16
        $region68: #{pointnet_forward.5} parent=59 // pred_fallthru
          _
        // Predicated region
        $region69: #{pointnet_forward.5} parent=59 // pred_check
          %p371 = pneg %p243
        $region70: #{pointnet_forward.5} parent=59 // pred_check_branch
          %373 = sbr.rel (%p371) target = $region72
        $region71: #{pointnet_forward.5} parent=59 // pred_region
          %374 = dma.done [#allocation5], 32
        $region72: #{pointnet_forward.5} parent=59 // pred_fallthru
          _
        %p375 = scmp.lt.s32.totalorder %s23, 1
        %s376 = scalar_select %p375, %s23, 1
        %s377 = smul.addr %s376, 4
        %s378 = smul.addr %s377, 4
        %s379 = scalar_lea.vmem %s0, %s378
        %p380 = pneg %p44
        %p381 = pneg %p41
        %p382 = scmp.lt.s32.totalorder %s23, 1
        %s383 = scalar_select %p382, %s23, 1
        %s384 = smul.addr %s383, 2
        %s385 = smul.addr %s384, 8
        %s386 = scalar_lea.vmem %s1, %s385
        %p387 = pneg %p70
        %p388 = pneg %p67
        %p389 = scmp.lt.s32.totalorder %s23, 1
        %s390 = scalar_select %p389, %s23, 1
        %s391 = smul.addr %s390, 4
        %s392 = scalar_lea.vmem %s2, %s391
        %p393 = pneg %p96
        %p394 = pneg %p93
        %p395 = pneg %p117
        %p396 = pneg %p114
        %p397 = pneg %p138
        %p398 = pneg %p135
        %p399 = pneg %p159
        %p400 = pneg %p156
        %p401 = pneg %p180
        %p402 = pneg %p177
        %p403 = pneg %p201
        %p404 = pneg %p198
        %p405 = pneg %p222
        %p406 = pneg %p219
        %p407 = pneg %p243
        %p408 = pneg %p240
        %p409 = pneg %p269
        %p410 = pneg %p266
        %p411 = scmp.lt.s32.totalorder %s23, 1
        %s412 = scalar_select %p411, %s23, 1
        %s413 = smul.addr %s412, 2
        %s414 = smul.addr %s413, 2
        %s415 = scalar_lea.vmem %s10, %s414
        %p416 = scmp.lt.s32.totalorder %s23, 1
        %s417 = scalar_select %p416, %s23, 1
        %s418 = smul.addr %s417, 4
        %s419 = smul.addr %s418, 4
        %s420 = scalar_lea.vmem %s0, %s419
        %p421 = scmp.lt.s32.totalorder %s23, 1
        %s422 = scalar_select %p421, %s23, 1
        %s423 = smul.addr %s422, 2
        %s424 = smul.addr %s423, 8
        %s425 = scalar_lea.vmem %s1, %s424
        %p426 = scmp.lt.s32.totalorder %s23, 1
        %s427 = scalar_select %p426, %s23, 1
        %s428 = smul.addr %s427, 4
        %s429 = scalar_lea.vmem %s2, %s428
        %p430 = scmp.lt.s32.totalorder %s23, 1
        %s431 = scalar_select %p430, %s23, 1
        %s432 = smul.addr %s431, 2
        %s433 = smul.addr %s432, 2
        %s434 = scalar_lea.vmem %s10, %s433
        %v436 = vld [vmem:[%s420] sm:$0xff]
        %v437 = vld [vmem:[%s420 + $0x8] sm:$0xff]
        %v438 = vld [vmem:[%s3] sm:$0xf]
        %v439 = vld [vmem:[%s3 + $0x4] sm:$0xf]
        %v440 = vld [vmem:[%s3 + $0x8] sm:$0xf]
        %v441 = vld [vmem:[%s3 + $0xc] sm:$0xf]
        %v442 = vld [vmem:[%s3 + $0x10] sm:$0xf]
        %v443 = vld [vmem:[%s3 + $0x14] sm:$0xf]
        %v444 = vld [vmem:[%s3 + $0x18] sm:$0xf]
        %v445 = vld [vmem:[%s3 + $0x1c] sm:$0xf]
        %v446 = vld [vmem:[%s3 + $0x20] sm:$0xf]
        %v447 = vld [vmem:[%s3 + $0x24] sm:$0xf]
        %v448 = vld [vmem:[%s3 + $0x28] sm:$0xf]
        %v449 = vld [vmem:[%s3 + $0x2c] sm:$0xf]
        %v450 = vld [vmem:[%s3 + $0x30] sm:$0xf]
        %v451 = vld [vmem:[%s3 + $0x34] sm:$0xf]
        %v452 = vld [vmem:[%s3 + $0x38] sm:$0xf]
        %v453 = vld [vmem:[%s3 + $0x3c] sm:$0xf]
        %v454 = vld [vmem:[%s3 + $0x40] sm:$0x3]
        %v455 = vld [vmem:[#allocation2] sm:$0x1]
        %v457 = vlaneseq
        %v458 = vshrl.u32 %v457, 7
        %v459 = vsub.s32 0, %v458
        %v460 = vrot.slane %v455, %v459
        %v464 = vunpack.c.l.b16 %v436
        %v465 = vunpack.c.h.b16 %v436
        %v466 = vunpack.c.l.b16 %v437
        %v467 = vunpack.c.h.b16 %v437
        %v468 = vpack.c.b16 %v466, %v464
        %v469 = vpack.c.b16 %v467, %v465
        %v488 = vunpack.c.l.b16 %v438
        %v489 = vunpack.c.l.b16 %v439
        %v490 = vunpack.c.l.b16 %v440
        %v491 = vunpack.c.l.b16 %v441
        %v492 = vunpack.c.l.b16 %v442
        %v493 = vunpack.c.l.b16 %v443
        %v494 = vunpack.c.l.b16 %v444
        %v495 = vunpack.c.l.b16 %v445
        %v496 = vunpack.c.l.b16 %v446
        %v497 = vunpack.c.l.b16 %v447
        %v498 = vunpack.c.l.b16 %v448
        %v499 = vunpack.c.l.b16 %v449
        %v500 = vunpack.c.l.b16 %v450
        %v501 = vunpack.c.l.b16 %v451
        %v502 = vunpack.c.l.b16 %v452
        %v503 = vunpack.c.l.b16 %v453
        %v504 = vunpack.c.l.b16 %v454
        %v505 = vpack.c.b16 %v489, %v488
        %v506 = vpack.c.b16 %v491, %v490
        %v507 = vpack.c.b16 %v493, %v492
        %v508 = vpack.c.b16 %v495, %v494
        %v509 = vpack.c.b16 %v497, %v496
        %v510 = vpack.c.b16 %v499, %v498
        %v511 = vpack.c.b16 %v501, %v500
        %v512 = vpack.c.b16 %v503, %v502
        %v513 = vpack.c.b16 %v504, %v504
        %vm522 = vcmask 23552
        %v524 = vsel %vm522, %v469, 0
        %vm526 = vcmask 1040384
        %vm527 = vcmask 1041408
        %v528 = vsel %vm526, 4294967295, 65535
        %v529 = vsel %vm527, %v528, 0
        %v531 = vand.u32 %v513, %v529
        %533 = vmatprep.subr.bf16.mxu0 0
        %534 = vmatpush1.bf16.msra.mxu0 %v512
        %535 = vmatprep.subr.bf16.mxu0 0
        %536 = vmatpush1.bf16.msra.mxu0 %v511
        %537 = vmatprep.subr.bf16.mxu0 0
        %538 = vmatpush1.bf16.msra.mxu0 %v510
        %539 = vmatprep.subr.bf16.mxu0 0
        %540 = vmatpush1.bf16.msra.mxu0 %v509
        %541 = vmatprep.subr.bf16.mxu0 0
        %542 = vmatpush1.bf16.msra.mxu0 %v508
        %543 = vmatprep.subr.bf16.mxu0 0
        %544 = vmatpush1.bf16.msra.mxu0 %v507
        %545 = vmatprep.subr.bf16.mxu0 0
        %546 = vmatpush1.bf16.msra.mxu0 %v506
        %547 = vmatprep.subr.bf16.mxu0 0
        %548 = vmatpush1.bf16.msra.mxu0 %v505
        %549 = vmatprep.subr.bf16.mxu0 0
        %550 = vmatpush2.bf16.msra.mxu0 0
        %551 = vmatprep.subr.bf16.mxu0 0
        %552 = vmatpush2.bf16.msra.mxu0 0
        %553 = vmatprep.subr.bf16.mxu0 0
        %554 = vmatpush2.bf16.msra.mxu0 0
        %555 = vmatprep.subr.bf16.mxu0 0
        %556 = vmatpush2.bf16.msra.mxu0 0
        %557 = vmatprep.subr.bf16.mxu0 0
        %558 = vmatpush2.bf16.msra.mxu0 0
        %559 = vmatprep.subr.bf16.mxu0 0
        %560 = vmatpush2.bf16.msra.mxu0 0
        %561 = vmatprep.subr.bf16.mxu0 0
        %562 = vmatpush2.bf16.msra.mxu0 0
        %563 = vmatprep.subr.bf16.mxu0 0
        %564 = vmatpush2.bf16.msra.mxu0 %v531
        %565 = vmatprep.mubr.bf16.mxu0 %v524
        %566 = vmatmul.mubr.bf16.gmra.mxu0 %v468
        %v567 = vpop.f32.mrf.mxu0
        %v568 = vadd.f32 %v460, %v567
        %v569 = vpop.f32.mrf.mxu0
        %v570 = vpop.f32.mrf.mxu0
        %v571 = vadd.f32 %v460, %v570
        %v572 = vpop.f32.mrf.mxu0
        %573 = vdwg.mxu0
        %v574 = vld [vmem:[%s429] sm:$0xf]
        %v575 = vld [vmem:[%s4] sm:$0x1]
        %577 = vset.pattern.permute.xlu0 0
        %578 = vperm.xlu0 %577, %v574
        %v579 = vpop.permute.xlu0 %578
        %v581 = vlaneseq
        %v582 = vshrl.u32 %v581, 7
        %v583 = vsub.s32 0, %v582
        %v584 = vrot.slane %v575, %v583
        %v585 = vmul.f32 %v579, %v584
        %v586 = vld [vmem:[%s4 + $0x1] sm:$0x1]
        %587 = vset.pattern.permute.xlu0 1
        %588 = vperm.xlu0 %587, %v574
        %v589 = vpop.permute.xlu0 %588
        %v591 = vlaneseq
        %v592 = vshrl.u32 %v591, 7
        %v593 = vsub.s32 0, %v592
        %v594 = vrot.slane %v586, %v593
        %v595 = vmul.f32 %v589, %v594
        %v596 = vadd.f32 %v585, %v595
        %v597 = vld [vmem:[%s4 + $0x2] sm:$0x1]
        %598 = vset.pattern.permute.xlu0 2
        %599 = vperm.xlu0 %598, %v574
        %v600 = vpop.permute.xlu0 %599
        %v602 = vlaneseq
        %v603 = vshrl.u32 %v602, 7
        %v604 = vsub.s32 0, %v603
        %v605 = vrot.slane %v597, %v604
        %v606 = vmul.f32 %v600, %v605
        %v607 = vadd.f32 %v596, %v606
        %v610 = vunpack.c.l.s4 1966171168
        %v611 = vunpack.c.0.s8 %v610
        %v612 = vlaneseq
        %v613 = vshrl.u32 %v612, 7
        %v614 = vsub.s32 %v611, %v613
        %v615 = vrot.slane %v607, %v614
        %v616 = vcombine.high %v615, %v615
        %v618 = vunpack.c.l.s4 1966171168
        %v619 = vunpack.c.0.s8 %v618
        %v620 = vlaneseq
        %v621 = vshrl.u32 %v620, 7
        %v622 = vsub.s32 %v619, %v621
        %v623 = vrot.slane %v615, %v622
        %v625 = vunpack.c.l.s4 1966171168
        %v626 = vunpack.c.0.s8 %v625
        %v627 = vlaneseq
        %v628 = vshrl.u32 %v627, 7
        %v629 = vsub.s32 %v626, %v628
        %v630 = vrot.slane %v616, %v629
        %v631 = vcombine.high %v623, %v623
        %v632 = vcombine.high %v630, %v630
        %v633 = vlaneseq
        %v634 = vshrl.u32 %v633, 7
        %v635 = vsub.s32 0, %v634
        %v636 = vrot.slane %v623, %v635
        %v637 = vlaneseq
        %v638 = vshrl.u32 %v637, 7
        %v639 = vsub.s32 0, %v638
        %v640 = vrot.slane %v630, %v639
        %v641 = vlaneseq
        %v642 = vshrl.u32 %v641, 7
        %v643 = vsub.s32 0, %v642
        %v644 = vrot.slane %v631, %v643
        %v645 = vlaneseq
        %v646 = vshrl.u32 %v645, 7
        %v647 = vsub.s32 0, %v646
        %v648 = vrot.slane %v632, %v647
        %v653 = vsub.f32 %v568, %v636
        %v654 = vsub.f32 %v571, %v636
        %v655 = vsub.f32 %v568, %v640
        %v656 = vsub.f32 %v571, %v640
        %v657 = vsub.f32 %v568, %v644
        %v658 = vsub.f32 %v571, %v644
        %v659 = vsub.f32 %v568, %v648
        %v660 = vsub.f32 %v571, %v648
        %v661 = vmax.f32 %v653, 0.0
        %v662 = vmax.f32 %v654, 0.0
        %v663 = vmax.f32 %v655, 0.0
        %v664 = vmax.f32 %v656, 0.0
        %v665 = vmax.f32 %v657, 0.0
        %v666 = vmax.f32 %v658, 0.0
        %v667 = vmax.f32 %v659, 0.0
        %v668 = vmax.f32 %v660, 0.0
        %v669 = vpack.c.bf16 %v662, %v661
        %v670 = vpack.c.bf16 %v664, %v663
        %v671 = vpack.c.bf16 %v666, %v665
        %v672 = vpack.c.bf16 %v668, %v667
        %v673 = vld [vmem:[%s6] sm:$0xf]
        %v674 = vld [vmem:[%s6 + $0x4] sm:$0xf]
        %v675 = vld [vmem:[%s6 + $0x8] sm:$0xf]
        %v676 = vld [vmem:[%s6 + $0xc] sm:$0xf]
        %v677 = vld [vmem:[%s6 + $0x10] sm:$0xf]
        %v678 = vld [vmem:[%s6 + $0x14] sm:$0xf]
        %v679 = vld [vmem:[%s6 + $0x18] sm:$0xf]
        %v680 = vld [vmem:[%s6 + $0x1c] sm:$0xf]
        %v681 = vld [vmem:[%s6 + $0x20] sm:$0xf]
        %v682 = vld [vmem:[%s6 + $0x24] sm:$0xf]
        %v683 = vld [vmem:[%s6 + $0x28] sm:$0xf]
        %v684 = vld [vmem:[%s6 + $0x2c] sm:$0xf]
        %v685 = vld [vmem:[%s6 + $0x30] sm:$0xf]
        %v686 = vld [vmem:[%s6 + $0x34] sm:$0xf]
        %v687 = vld [vmem:[%s6 + $0x38] sm:$0xf]
        %v688 = vld [vmem:[%s6 + $0x3c] sm:$0xf]
        %v689 = vld [vmem:[#allocation4] sm:$0x1]
        %v691 = vlaneseq
        %v692 = vshrl.u32 %v691, 7
        %v693 = vsub.s32 0, %v692
        %v694 = vrot.slane %v689, %v693
        %v712 = vunpack.c.l.b16 %v673
        %v713 = vunpack.c.l.b16 %v674
        %v714 = vunpack.c.l.b16 %v675
        %v715 = vunpack.c.l.b16 %v676
        %v716 = vunpack.c.l.b16 %v677
        %v717 = vunpack.c.l.b16 %v678
        %v718 = vunpack.c.l.b16 %v679
        %v719 = vunpack.c.l.b16 %v680
        %v720 = vunpack.c.l.b16 %v681
        %v721 = vunpack.c.l.b16 %v682
        %v722 = vunpack.c.l.b16 %v683
        %v723 = vunpack.c.l.b16 %v684
        %v724 = vunpack.c.l.b16 %v685
        %v725 = vunpack.c.l.b16 %v686
        %v726 = vunpack.c.l.b16 %v687
        %v727 = vunpack.c.l.b16 %v688
        %v728 = vpack.c.b16 %v713, %v712
        %v729 = vpack.c.b16 %v715, %v714
        %v730 = vpack.c.b16 %v717, %v716
        %v731 = vpack.c.b16 %v719, %v718
        %v732 = vpack.c.b16 %v721, %v720
        %v733 = vpack.c.b16 %v723, %v722
        %v734 = vpack.c.b16 %v725, %v724
        %v735 = vpack.c.b16 %v727, %v726
        %744 = vmatprep.subr.bf16.mxu0 0
        %745 = vmatpush1.bf16.msra.mxu0 %v735
        %746 = vmatprep.subr.bf16.mxu0 0
        %747 = vmatpush1.bf16.msra.mxu0 %v734
        %748 = vmatprep.subr.bf16.mxu0 0
        %749 = vmatpush1.bf16.msra.mxu0 %v733
        %750 = vmatprep.subr.bf16.mxu0 0
        %751 = vmatpush1.bf16.msra.mxu0 %v732
        %752 = vmatprep.subr.bf16.mxu0 0
        %753 = vmatpush1.bf16.msra.mxu0 %v731
        %754 = vmatprep.subr.bf16.mxu0 0
        %755 = vmatpush1.bf16.msra.mxu0 %v730
        %756 = vmatprep.subr.bf16.mxu0 0
        %757 = vmatpush1.bf16.msra.mxu0 %v729
        %758 = vmatprep.subr.bf16.mxu0 0
        %759 = vmatpush1.bf16.msra.mxu0 %v728
        %760 = vmatprep.subr.bf16.mxu0 0
        %761 = vmatpush2.bf16.msra.mxu0 0
        %762 = vmatprep.subr.bf16.mxu0 0
        %763 = vmatpush2.bf16.msra.mxu0 0
        %764 = vmatprep.subr.bf16.mxu0 0
        %765 = vmatpush2.bf16.msra.mxu0 0
        %766 = vmatprep.subr.bf16.mxu0 0
        %767 = vmatpush2.bf16.msra.mxu0 0
        %768 = vmatprep.subr.bf16.mxu0 0
        %769 = vmatpush2.bf16.msra.mxu0 0
        %770 = vmatprep.subr.bf16.mxu0 0
        %771 = vmatpush2.bf16.msra.mxu0 0
        %772 = vmatprep.subr.bf16.mxu0 0
        %773 = vmatpush2.bf16.msra.mxu0 0
        %774 = vmatprep.subr.bf16.mxu0 0
        %775 = vmatpush2.bf16.msra.mxu0 0
        %776 = vmatprep.mubr.bf16.mxu0 0
        %777 = vmatmul.mubr.bf16.gmra.mxu0 %v669
        %v778 = vpop.f32.mrf.mxu0
        %v779 = vadd.f32 %v694, %v778
        %v780 = vpop.f32.mrf.mxu0
        %v781 = vpop.f32.mrf.mxu0
        %v782 = vadd.f32 %v694, %v781
        %v783 = vpop.f32.mrf.mxu0
        %784 = vmatprep.mubr.bf16.mxu0 0
        %785 = vmatmul.mubr.bf16.gmra.mxu0 %v670
        %v786 = vpop.f32.mrf.mxu0
        %v787 = vadd.f32 %v694, %v786
        %v788 = vpop.f32.mrf.mxu0
        %v789 = vpop.f32.mrf.mxu0
        %v790 = vadd.f32 %v694, %v789
        %v791 = vpop.f32.mrf.mxu0
        %792 = vmatprep.mubr.bf16.mxu0 0
        %793 = vmatmul.mubr.bf16.gmra.mxu0 %v671
        %v794 = vpop.f32.mrf.mxu0
        %v795 = vadd.f32 %v694, %v794
        %v796 = vpop.f32.mrf.mxu0
        %v797 = vpop.f32.mrf.mxu0
        %v798 = vadd.f32 %v694, %v797
        %v799 = vpop.f32.mrf.mxu0
        %800 = vmatprep.mubr.bf16.mxu0 0
        %801 = vmatmul.mubr.bf16.gmra.mxu0 %v672
        %v802 = vpop.f32.mrf.mxu0
        %v803 = vadd.f32 %v694, %v802
        %v804 = vpop.f32.mrf.mxu0
        %v805 = vpop.f32.mrf.mxu0
        %v806 = vadd.f32 %v694, %v805
        %v807 = vpop.f32.mrf.mxu0
        %808 = vdwg.mxu0
        %v809 = vmax.f32 %v779, 0.0
        %v810 = vmax.f32 %v782, 0.0
        %v811 = vmax.f32 %v787, 0.0
        %v812 = vmax.f32 %v790, 0.0
        %v813 = vmax.f32 %v795, 0.0
        %v814 = vmax.f32 %v798, 0.0
        %v815 = vmax.f32 %v803, 0.0
        %v816 = vmax.f32 %v806, 0.0
        %v817 = vpack.c.bf16 %v810, %v809
        %v818 = vpack.c.bf16 %v812, %v811
        %v819 = vpack.c.bf16 %v814, %v813
        %v820 = vpack.c.bf16 %v816, %v815
        %v821 = vld [vmem:[%s8] sm:$0xff]
        %v822 = vld [vmem:[%s8 + $0x8] sm:$0xff]
        %v823 = vld [vmem:[%s8 + $0x10] sm:$0xff]
        %v824 = vld [vmem:[%s8 + $0x18] sm:$0xff]
        %v825 = vld [vmem:[%s8 + $0x20] sm:$0xff]
        %v826 = vld [vmem:[%s8 + $0x28] sm:$0xff]
        %v827 = vld [vmem:[%s8 + $0x30] sm:$0xff]
        %v828 = vld [vmem:[%s8 + $0x38] sm:$0xff]
        %v829 = vld [vmem:[%s8 + $0x40] sm:$0xff]
        %v830 = vld [vmem:[%s8 + $0x48] sm:$0xff]
        %v831 = vld [vmem:[%s8 + $0x50] sm:$0xff]
        %v832 = vld [vmem:[%s8 + $0x58] sm:$0xff]
        %v833 = vld [vmem:[%s8 + $0x60] sm:$0xff]
        %v834 = vld [vmem:[%s8 + $0x68] sm:$0xff]
        %v835 = vld [vmem:[%s8 + $0x70] sm:$0xff]
        %v836 = vld [vmem:[%s8 + $0x78] sm:$0xff]
        %v837 = vld [vmem:[#allocation6] sm:$0x3]
        %v839 = vlaneseq
        %v840 = vshrl.u32 %v839, 7
        %v841 = vsub.s32 0, %v840
        %v842 = vrot.slane %v837, %v841
        %v843 = vlaneseq
        %v844 = vshrl.u32 %v843, 7
        %v845 = vsub.s32 1, %v844
        %v846 = vrot.slane %v837, %v845
        %v865 = vunpack.c.l.b16 %v821
        %v866 = vunpack.c.h.b16 %v821
        %v867 = vunpack.c.l.b16 %v822
        %v868 = vunpack.c.h.b16 %v822
        %v869 = vunpack.c.l.b16 %v823
        %v870 = vunpack.c.h.b16 %v823
        %v871 = vunpack.c.l.b16 %v824
        %v872 = vunpack.c.h.b16 %v824
        %v873 = vunpack.c.l.b16 %v825
        %v874 = vunpack.c.h.b16 %v825
        %v875 = vunpack.c.l.b16 %v826
        %v876 = vunpack.c.h.b16 %v826
        %v877 = vunpack.c.l.b16 %v827
        %v878 = vunpack.c.h.b16 %v827
        %v879 = vunpack.c.l.b16 %v828
        %v880 = vunpack.c.h.b16 %v828
        %v881 = vunpack.c.l.b16 %v829
        %v882 = vunpack.c.h.b16 %v829
        %v883 = vunpack.c.l.b16 %v830
        %v884 = vunpack.c.h.b16 %v830
        %v885 = vunpack.c.l.b16 %v831
        %v886 = vunpack.c.h.b16 %v831
        %v887 = vunpack.c.l.b16 %v832
        %v888 = vunpack.c.h.b16 %v832
        %v889 = vunpack.c.l.b16 %v833
        %v890 = vunpack.c.h.b16 %v833
        %v891 = vunpack.c.l.b16 %v834
        %v892 = vunpack.c.h.b16 %v834
        %v893 = vunpack.c.l.b16 %v835
        %v894 = vunpack.c.h.b16 %v835
        %v895 = vunpack.c.l.b16 %v836
        %v896 = vunpack.c.h.b16 %v836
        %v897 = vpack.c.b16 %v867, %v865
        %v898 = vpack.c.b16 %v868, %v866
        %v899 = vpack.c.b16 %v871, %v869
        %v900 = vpack.c.b16 %v872, %v870
        %v901 = vpack.c.b16 %v875, %v873
        %v902 = vpack.c.b16 %v876, %v874
        %v903 = vpack.c.b16 %v879, %v877
        %v904 = vpack.c.b16 %v880, %v878
        %v905 = vpack.c.b16 %v883, %v881
        %v906 = vpack.c.b16 %v884, %v882
        %v907 = vpack.c.b16 %v887, %v885
        %v908 = vpack.c.b16 %v888, %v886
        %v909 = vpack.c.b16 %v891, %v889
        %v910 = vpack.c.b16 %v892, %v890
        %v911 = vpack.c.b16 %v895, %v893
        %v912 = vpack.c.b16 %v896, %v894
        %929 = vmatprep.subr.bf16.mxu0 %v912
        %930 = vmatpush1.bf16.msra.mxu0 %v911
        %931 = vmatprep.subr.bf16.mxu0 %v910
        %932 = vmatpush1.bf16.msra.mxu0 %v909
        %933 = vmatprep.subr.bf16.mxu0 %v908
        %934 = vmatpush1.bf16.msra.mxu0 %v907
        %935 = vmatprep.subr.bf16.mxu0 %v906
        %936 = vmatpush1.bf16.msra.mxu0 %v905
        %937 = vmatprep.subr.bf16.mxu0 %v904
        %938 = vmatpush1.bf16.msra.mxu0 %v903
        %939 = vmatprep.subr.bf16.mxu0 %v902
        %940 = vmatpush1.bf16.msra.mxu0 %v901
        %941 = vmatprep.subr.bf16.mxu0 %v900
        %942 = vmatpush1.bf16.msra.mxu0 %v899
        %943 = vmatprep.subr.bf16.mxu0 %v898
        %944 = vmatpush1.bf16.msra.mxu0 %v897
        %945 = vmatprep.subr.bf16.mxu0 0
        %946 = vmatpush2.bf16.msra.mxu0 0
        %947 = vmatprep.subr.bf16.mxu0 0
        %948 = vmatpush2.bf16.msra.mxu0 0
        %949 = vmatprep.subr.bf16.mxu0 0
        %950 = vmatpush2.bf16.msra.mxu0 0
        %951 = vmatprep.subr.bf16.mxu0 0
        %952 = vmatpush2.bf16.msra.mxu0 0
        %953 = vmatprep.subr.bf16.mxu0 0
        %954 = vmatpush2.bf16.msra.mxu0 0
        %955 = vmatprep.subr.bf16.mxu0 0
        %956 = vmatpush2.bf16.msra.mxu0 0
        %957 = vmatprep.subr.bf16.mxu0 0
        %958 = vmatpush2.bf16.msra.mxu0 0
        %959 = vmatprep.subr.bf16.mxu0 0
        %960 = vmatpush2.bf16.msra.mxu0 0
        %961 = vmatprep.mubr.bf16.mxu0 0
        %962 = vmatmul.mubr.bf16.gmra.mxu0 %v817
        %v963 = vpop.f32.mrf.mxu0
        %v964 = vadd.f32 %v842, %v963
        %v965 = vpop.f32.mrf.mxu0
        %v966 = vadd.f32 %v846, %v965
        %v967 = vpop.f32.mrf.mxu0
        %v968 = vadd.f32 %v842, %v967
        %v969 = vpop.f32.mrf.mxu0
        %v970 = vadd.f32 %v846, %v969
        %971 = vmatprep.mubr.bf16.mxu0 0
        %972 = vmatmul.mubr.bf16.gmra.mxu0 %v818
        %v973 = vpop.f32.mrf.mxu0
        %v974 = vadd.f32 %v842, %v973
        %v975 = vpop.f32.mrf.mxu0
        %v976 = vadd.f32 %v846, %v975
        %v977 = vpop.f32.mrf.mxu0
        %v978 = vadd.f32 %v842, %v977
        %v979 = vpop.f32.mrf.mxu0
        %v980 = vadd.f32 %v846, %v979
        %981 = vmatprep.mubr.bf16.mxu0 0
        %982 = vmatmul.mubr.bf16.gmra.mxu0 %v819
        %v983 = vpop.f32.mrf.mxu0
        %v984 = vadd.f32 %v842, %v983
        %v985 = vpop.f32.mrf.mxu0
        %v986 = vadd.f32 %v846, %v985
        %v987 = vpop.f32.mrf.mxu0
        %v988 = vadd.f32 %v842, %v987
        %v989 = vpop.f32.mrf.mxu0
        %v990 = vadd.f32 %v846, %v989
        %991 = vmatprep.mubr.bf16.mxu0 0
        %992 = vmatmul.mubr.bf16.gmra.mxu0 %v820
        %v993 = vpop.f32.mrf.mxu0
        %v994 = vadd.f32 %v842, %v993
        %v995 = vpop.f32.mrf.mxu0
        %v996 = vadd.f32 %v846, %v995
        %v997 = vpop.f32.mrf.mxu0
        %v998 = vadd.f32 %v842, %v997
        %v999 = vpop.f32.mrf.mxu0
        %v1000 = vadd.f32 %v846, %v999
        %1001 = vdwg.mxu0
        %v1002 = vld [vmem:[%s425] sm:$0xff]
        %v1003 = vld [vmem:[%s425 + $0x8] sm:$0xff]
        %v1005 = vunpack.c.l.s4 1966171168
        %v1006 = vunpack.c.0.s8 %v1005
        %v1007 = vlaneseq
        %v1008 = vshrl.u32 %v1007, 7
        %v1009 = vsub.s32 %v1006, %v1008
        %v1010 = vrot.slane %v574, %v1009
        %v1011 = vcombine.high %v1010, %v1010
        %v1013 = vunpack.c.l.s4 1966171168
        %v1014 = vunpack.c.0.s8 %v1013
        %v1015 = vlaneseq
        %v1016 = vshrl.u32 %v1015, 7
        %v1017 = vsub.s32 %v1014, %v1016
        %v1018 = vrot.slane %v1010, %v1017
        %v1020 = vunpack.c.l.s4 1966171168
        %v1021 = vunpack.c.0.s8 %v1020
        %v1022 = vlaneseq
        %v1023 = vshrl.u32 %v1022, 7
        %v1024 = vsub.s32 %v1021, %v1023
        %v1025 = vrot.slane %v1011, %v1024
        %v1026 = vcombine.high %v1018, %v1018
        %v1027 = vcombine.high %v1025, %v1025
        %v1028 = vlaneseq
        %v1029 = vshrl.u32 %v1028, 7
        %v1030 = vsub.s32 0, %v1029
        %v1031 = vrot.slane %v1018, %v1030
        %v1032 = vlaneseq
        %v1033 = vshrl.u32 %v1032, 7
        %v1034 = vsub.s32 0, %v1033
        %v1035 = vrot.slane %v1025, %v1034
        %v1036 = vlaneseq
        %v1037 = vshrl.u32 %v1036, 7
        %v1038 = vsub.s32 0, %v1037
        %v1039 = vrot.slane %v1026, %v1038
        %v1040 = vlaneseq
        %v1041 = vshrl.u32 %v1040, 7
        %v1042 = vsub.s32 0, %v1041
        %v1043 = vrot.slane %v1027, %v1042
        %v1048 = vsub.f32 %v1031, %v1002
        %v1049 = vsub.f32 %v1031, %v1003
        %v1050 = vsub.f32 %v1035, %v1002
        %v1051 = vsub.f32 %v1035, %v1003
        %v1052 = vsub.f32 %v1039, %v1002
        %v1053 = vsub.f32 %v1039, %v1003
        %v1054 = vsub.f32 %v1043, %v1002
        %v1055 = vsub.f32 %v1043, %v1003
        %v1056 = vmul.f32 %v1048, %v1048
        %v1057 = vmul.f32 %v1049, %v1049
        %v1058 = vmul.f32 %v1050, %v1050
        %v1059 = vmul.f32 %v1051, %v1051
        %v1060 = vmul.f32 %v1052, %v1052
        %v1061 = vmul.f32 %v1053, %v1053
        %v1062 = vmul.f32 %v1054, %v1054
        %v1063 = vmul.f32 %v1055, %v1055
        %1072 = vrot.lane.b32.xlu0 %v1056, 127
        %v1073 = vpop.permute.xlu0 %1072
        %1074 = vrot.lane.b32.xlu0 %v1057, 127
        %v1075 = vpop.permute.xlu0 %1074
        %1076 = vrot.lane.b32.xlu0 %v1058, 127
        %v1077 = vpop.permute.xlu0 %1076
        %1078 = vrot.lane.b32.xlu0 %v1059, 127
        %v1079 = vpop.permute.xlu0 %1078
        %1080 = vrot.lane.b32.xlu0 %v1060, 127
        %v1081 = vpop.permute.xlu0 %1080
        %1082 = vrot.lane.b32.xlu0 %v1061, 127
        %v1083 = vpop.permute.xlu0 %1082
        %1084 = vrot.lane.b32.xlu0 %v1062, 127
        %v1085 = vpop.permute.xlu0 %1084
        %1086 = vrot.lane.b32.xlu0 %v1063, 127
        %v1087 = vpop.permute.xlu0 %1086
        %v1096 = vadd.f32 %v1056, %v1073
        %v1097 = vadd.f32 %v1057, %v1075
        %v1098 = vadd.f32 %v1058, %v1077
        %v1099 = vadd.f32 %v1059, %v1079
        %v1100 = vadd.f32 %v1060, %v1081
        %v1101 = vadd.f32 %v1061, %v1083
        %v1102 = vadd.f32 %v1062, %v1085
        %v1103 = vadd.f32 %v1063, %v1087
        %1104 = vrot.lane.b32.xlu0 %v1056, 126
        %v1105 = vpop.permute.xlu0 %1104
        %1106 = vrot.lane.b32.xlu0 %v1057, 126
        %v1107 = vpop.permute.xlu0 %1106
        %1108 = vrot.lane.b32.xlu0 %v1058, 126
        %v1109 = vpop.permute.xlu0 %1108
        %1110 = vrot.lane.b32.xlu0 %v1059, 126
        %v1111 = vpop.permute.xlu0 %1110
        %1112 = vrot.lane.b32.xlu0 %v1060, 126
        %v1113 = vpop.permute.xlu0 %1112
        %1114 = vrot.lane.b32.xlu0 %v1061, 126
        %v1115 = vpop.permute.xlu0 %1114
        %1116 = vrot.lane.b32.xlu0 %v1062, 126
        %v1117 = vpop.permute.xlu0 %1116
        %1118 = vrot.lane.b32.xlu0 %v1063, 126
        %v1119 = vpop.permute.xlu0 %1118
        %v1128 = vadd.f32 %v1096, %v1105
        %v1129 = vadd.f32 %v1097, %v1107
        %v1130 = vadd.f32 %v1098, %v1109
        %v1131 = vadd.f32 %v1099, %v1111
        %v1132 = vadd.f32 %v1100, %v1113
        %v1133 = vadd.f32 %v1101, %v1115
        %v1134 = vadd.f32 %v1102, %v1117
        %v1135 = vadd.f32 %v1103, %v1119
        %vm1136 = vcmp.le.f32.partialorder %v1128, 0.16
        %vm1137 = vcmp.le.f32.partialorder %v1129, 0.16
        %vm1138 = vcmp.le.f32.partialorder %v1130, 0.16
        %vm1139 = vcmp.le.f32.partialorder %v1131, 0.16
        %vm1140 = vcmp.le.f32.partialorder %v1132, 0.16
        %vm1141 = vcmp.le.f32.partialorder %v1133, 0.16
        %vm1142 = vcmp.le.f32.partialorder %v1134, 0.16
        %vm1143 = vcmp.le.f32.partialorder %v1135, 0.16
        %v1144 = vsel %vm1136, 0.0, -1e+30
        %v1145 = vsel %vm1137, 0.0, -1e+30
        %v1146 = vsel %vm1138, 0.0, -1e+30
        %v1147 = vsel %vm1139, 0.0, -1e+30
        %v1148 = vsel %vm1140, 0.0, -1e+30
        %v1149 = vsel %vm1141, 0.0, -1e+30
        %v1150 = vsel %vm1142, 0.0, -1e+30
        %v1151 = vsel %vm1143, 0.0, -1e+30
        %1153 = vset.pattern.permute.xlu0 0
        %1154 = vperm.xlu0 %1153, %v1144
        %v1155 = vpop.permute.xlu0 %1154
        %1158 = vset.pattern.permute.xlu0 0
        %1159 = vperm.xlu0 %1158, %v1145
        %v1160 = vpop.permute.xlu0 %1159
        %1163 = vset.pattern.permute.xlu0 0
        %1164 = vperm.xlu0 %1163, %v1146
        %v1165 = vpop.permute.xlu0 %1164
        %1168 = vset.pattern.permute.xlu0 0
        %1169 = vperm.xlu0 %1168, %v1147
        %v1170 = vpop.permute.xlu0 %1169
        %1173 = vset.pattern.permute.xlu0 0
        %1174 = vperm.xlu0 %1173, %v1148
        %v1175 = vpop.permute.xlu0 %1174
        %1178 = vset.pattern.permute.xlu0 0
        %1179 = vperm.xlu0 %1178, %v1149
        %v1180 = vpop.permute.xlu0 %1179
        %1183 = vset.pattern.permute.xlu0 0
        %1184 = vperm.xlu0 %1183, %v1150
        %v1185 = vpop.permute.xlu0 %1184
        %1188 = vset.pattern.permute.xlu0 0
        %1189 = vperm.xlu0 %1188, %v1151
        %v1190 = vpop.permute.xlu0 %1189
        %v1192 = vadd.f32 %v964, %v1155
        %v1193 = vadd.f32 %v966, %v1155
        %v1194 = vadd.f32 %v968, %v1160
        %v1195 = vadd.f32 %v970, %v1160
        %v1196 = vadd.f32 %v974, %v1165
        %v1197 = vadd.f32 %v976, %v1165
        %v1198 = vadd.f32 %v978, %v1170
        %v1199 = vadd.f32 %v980, %v1170
        %v1200 = vadd.f32 %v984, %v1175
        %v1201 = vadd.f32 %v986, %v1175
        %v1202 = vadd.f32 %v988, %v1180
        %v1203 = vadd.f32 %v990, %v1180
        %v1204 = vadd.f32 %v994, %v1185
        %v1205 = vadd.f32 %v996, %v1185
        %v1206 = vadd.f32 %v998, %v1190
        %v1207 = vadd.f32 %v1000, %v1190
        %v1208 = vmax.f32 %v1192, %v1194
        %v1209 = vrot.slane %v1208, 4
        %v1210 = vmax.f32 %v1208, %v1209
        %v1211 = vrot.slane %v1210, 2
        %v1212 = vmax.f32 %v1210, %v1211
        %v1213 = vrot.slane %v1212, 1
        %v1214 = vmax.f32 %v1212, %v1213
        %v1215 = vmax.f32 %v1193, %v1195
        %v1216 = vrot.slane %v1215, 4
        %v1217 = vmax.f32 %v1215, %v1216
        %v1218 = vrot.slane %v1217, 2
        %v1219 = vmax.f32 %v1217, %v1218
        %v1220 = vrot.slane %v1219, 1
        %v1221 = vmax.f32 %v1219, %v1220
        %v1222 = vmax.f32 %v1196, %v1198
        %v1223 = vrot.slane %v1222, 4
        %v1224 = vmax.f32 %v1222, %v1223
        %v1225 = vrot.slane %v1224, 2
        %v1226 = vmax.f32 %v1224, %v1225
        %v1227 = vrot.slane %v1226, 1
        %v1228 = vmax.f32 %v1226, %v1227
        %v1229 = vmax.f32 %v1197, %v1199
        %v1230 = vrot.slane %v1229, 4
        %v1231 = vmax.f32 %v1229, %v1230
        %v1232 = vrot.slane %v1231, 2
        %v1233 = vmax.f32 %v1231, %v1232
        %v1234 = vrot.slane %v1233, 1
        %v1235 = vmax.f32 %v1233, %v1234
        %v1236 = vmax.f32 %v1200, %v1202
        %v1237 = vrot.slane %v1236, 4
        %v1238 = vmax.f32 %v1236, %v1237
        %v1239 = vrot.slane %v1238, 2
        %v1240 = vmax.f32 %v1238, %v1239
        %v1241 = vrot.slane %v1240, 1
        %v1242 = vmax.f32 %v1240, %v1241
        %v1243 = vmax.f32 %v1201, %v1203
        %v1244 = vrot.slane %v1243, 4
        %v1245 = vmax.f32 %v1243, %v1244
        %v1246 = vrot.slane %v1245, 2
        %v1247 = vmax.f32 %v1245, %v1246
        %v1248 = vrot.slane %v1247, 1
        %v1249 = vmax.f32 %v1247, %v1248
        %v1250 = vmax.f32 %v1204, %v1206
        %v1251 = vrot.slane %v1250, 4
        %v1252 = vmax.f32 %v1250, %v1251
        %v1253 = vrot.slane %v1252, 2
        %v1254 = vmax.f32 %v1252, %v1253
        %v1255 = vrot.slane %v1254, 1
        %v1256 = vmax.f32 %v1254, %v1255
        %v1257 = vmax.f32 %v1205, %v1207
        %v1258 = vrot.slane %v1257, 4
        %v1259 = vmax.f32 %v1257, %v1258
        %v1260 = vrot.slane %v1259, 2
        %v1261 = vmax.f32 %v1259, %v1260
        %v1262 = vrot.slane %v1261, 1
        %v1263 = vmax.f32 %v1261, %v1262
        %v1264 = vpack.c.bf16 %v1214, %v1214
        %v1265 = vpack.c.bf16 %v1221, %v1221
        %v1266 = vpack.c.bf16 %v1228, %v1228
        %v1267 = vpack.c.bf16 %v1235, %v1235
        %v1268 = vpack.c.bf16 %v1242, %v1242
        %v1269 = vpack.c.bf16 %v1249, %v1249
        %v1270 = vpack.c.bf16 %v1256, %v1256
        %v1271 = vpack.c.bf16 %v1263, %v1263
        %v1280 = vcombine.low %v1264, %v1265
        %v1282 = vunpack.c.l.s4 1983009808
        %v1283 = vunpack.c.0.s8 %v1282
        %v1284 = vlaneseq
        %v1285 = vshrl.u32 %v1284, 7
        %v1286 = vsub.s32 %v1283, %v1285
        %v1287 = vrot.slane %v1280, %v1286
        %v1288 = vcombine.low %v1266, %v1267
        %v1290 = vunpack.c.l.s4 1983009808
        %v1291 = vunpack.c.0.s8 %v1290
        %v1292 = vlaneseq
        %v1293 = vshrl.u32 %v1292, 7
        %v1294 = vsub.s32 %v1291, %v1293
        %v1295 = vrot.slane %v1288, %v1294
        %v1296 = vcombine.low %v1268, %v1269
        %v1298 = vunpack.c.l.s4 1983009808
        %v1299 = vunpack.c.0.s8 %v1298
        %v1300 = vlaneseq
        %v1301 = vshrl.u32 %v1300, 7
        %v1302 = vsub.s32 %v1299, %v1301
        %v1303 = vrot.slane %v1296, %v1302
        %v1304 = vcombine.low %v1270, %v1271
        %v1306 = vunpack.c.l.s4 1983009808
        %v1307 = vunpack.c.0.s8 %v1306
        %v1308 = vlaneseq
        %v1309 = vshrl.u32 %v1308, 7
        %v1310 = vsub.s32 %v1307, %v1309
        %v1311 = vrot.slane %v1304, %v1310
        %v1313 = vunpack.c.l.s4 1983009808
        %v1314 = vunpack.c.0.s8 %v1313
        %v1315 = vlaneseq
        %v1316 = vshrl.u32 %v1315, 7
        %v1317 = vsub.s32 %v1314, %v1316
        %v1318 = vrot.slane %v1287, %v1317
        %v1320 = vunpack.c.l.s4 1983009808
        %v1321 = vunpack.c.0.s8 %v1320
        %v1322 = vlaneseq
        %v1323 = vshrl.u32 %v1322, 7
        %v1324 = vsub.s32 %v1321, %v1323
        %v1325 = vrot.slane %v1295, %v1324
        %v1327 = vunpack.c.l.s4 1983009808
        %v1328 = vunpack.c.0.s8 %v1327
        %v1329 = vlaneseq
        %v1330 = vshrl.u32 %v1329, 7
        %v1331 = vsub.s32 %v1328, %v1330
        %v1332 = vrot.slane %v1303, %v1331
        %v1334 = vunpack.c.l.s4 1983009808
        %v1335 = vunpack.c.0.s8 %v1334
        %v1336 = vlaneseq
        %v1337 = vshrl.u32 %v1336, 7
        %v1338 = vsub.s32 %v1335, %v1337
        %v1339 = vrot.slane %v1311, %v1338
        %v1340 = vunpack.c.l.b16 %v1318
        %v1341 = vunpack.c.h.b16 %v1318
        %v1342 = vunpack.c.l.b16 %v1325
        %v1343 = vunpack.c.h.b16 %v1325
        %v1344 = vunpack.c.l.b16 %v1332
        %v1345 = vunpack.c.h.b16 %v1332
        %v1346 = vunpack.c.l.b16 %v1339
        %v1347 = vunpack.c.h.b16 %v1339
        %v1348 = vrot.slane %v1342, 7
        %vm1349 = vcmask 1041409
        %v1350 = vsel %vm1349, %v1348, %v1340
        %v1351 = vrot.slane %v1344, 6
        %vm1352 = vcmask 1042434
        %v1353 = vsel %vm1352, %v1351, %v1350
        %v1354 = vrot.slane %v1346, 5
        %vm1355 = vcmask 1043459
        %v1356 = vsel %vm1355, %v1354, %v1353
        %v1357 = vrot.slane %v1343, 7
        %v1358 = vsel %vm1349, %v1357, %v1341
        %v1359 = vrot.slane %v1345, 6
        %v1360 = vsel %vm1352, %v1359, %v1358
        %v1361 = vrot.slane %v1347, 5
        %v1362 = vsel %vm1355, %v1361, %v1360
        %v1363 = vpack.c.b16 %v1362, %v1356
        %v1365 = vunpack.c.l.s4 1983009808
        %v1366 = vunpack.c.0.s8 %v1365
        %v1367 = vlaneseq
        %v1368 = vshrl.u32 %v1367, 7
        %v1369 = vsub.s32 %v1366, %v1368
        %v1370 = vrot.slane %v1363, %v1369
        %1372 = vst [vmem:[%s434] sm:$0xf] %v1370
        %p1373 = scmp.lt.s32.totalorder %s23, 1
        %s1374 = scalar_select %p1373, %s23, 1
        %s1375 = smul.addr %s1374, 2
        %s1376 = smul.addr %s1375, 2
        %s1377 = scalar_lea.vmem %s10, %s1376
        // Predicated region
        $region73: #{pointnet_forward.5} parent=59 // pred_check
          %p1378 = pneg %p266
        $region74: #{pointnet_forward.5} parent=59 // pred_check_branch
          %1380 = sbr.rel (%p1378) target = $region76
        $region75: #{pointnet_forward.5} parent=59 // pred_region
          _
        $region76: #{pointnet_forward.5} parent=59 // pred_fallthru
          _
      $region60: #{pointnet_forward.5} parent=5 // pred_fallthru
        _
      %p1381 = scmp.le.s32.totalorder 2, %s18
      // Predicated region
      $region77: #{pointnet_forward.5} parent=5 // pred_check
        %p1382 = pneg %p1381
      $region78: #{pointnet_forward.5} parent=5 // pred_check_branch
        %1384 = sbr.rel (%p1382) target = $region80
      $region79: #{pointnet_forward.5} parent=5 // pred_region
        %s1385 = ssub.s32 %s18, 2
        // Predicated region
        $region81: #{pointnet_forward.5} parent=79 // pred_check
          %p1386 = pneg %p272
        $region82: #{pointnet_forward.5} parent=79 // pred_check_branch
          %1388 = sbr.rel (%p1386) target = $region84
        $region83: #{pointnet_forward.5} parent=79 // pred_region
          %p1389 = scmp.lt.s32.totalorder %s24, 1
          %s1390 = scalar_select %p1389, %s24, 1
          %s1391 = smul.addr %s1390, 2
          %s1392 = smul.addr %s1391, 2
          %s1393 = scalar_lea.vmem %s10, %s1392
        $region84: #{pointnet_forward.5} parent=79 // pred_fallthru
          _
      $region80: #{pointnet_forward.5} parent=5 // pred_fallthru
        _
    $region6: #{pointnet_forward.5} parent=1 // loop_footer
      %s22 = sadd.s32 1, %s18
    $region7: #{pointnet_forward.5} parent=1 // loop_footer_branch
      %17 = sbr.rel target = $region3
    $region8: #{pointnet_forward.5} parent=1 // loop_exit
      _
    %1394 = vsyncpa [#allocation3], 1
    %s1395 = scalar_lea.sflag [#allocation3], 1
    %1396 = vsyncpa %s1395, 1
    %1397 = vsyncpa [#allocation5], 1

// kernel: pointnet_forward.4
$region0: #{pointnet_forward.4}
  #allocation0 [shape = 'u32[]', space=smem, size = 0x4, offset = 0x4, fixed_abs, tag = 'smem constant byte address 0x4 - core index']
  #allocation1 [shape = 'u32[144,128]{1,0:T(1,128)}', space=vmem, size = 0x12000, scoped, tag = 'internal scratch']
  %s0 = inlined_call_operand.vmem [shape: bf16[2,32,6], index: 0, kind: input, shape index: {}]
  %s1 = inlined_call_operand.vmem [shape: f32[2,32,3], index: 1, kind: input, shape index: {}]
  %s2 = inlined_call_operand.vmem [shape: f32[2,16,3], index: 2, kind: input, shape index: {}]
  %s3 = inlined_call_operand.vmem [shape: bf16[6,64], index: 3, kind: input, shape index: {}]
  %s4 = inlined_call_operand.vmem [shape: f32[3,64], index: 4, kind: input, shape index: {}]
  %s5 = inlined_call_operand.hbm [shape: f32[1,64], index: 5, kind: input, shape index: {}]
  %s6 = inlined_call_operand.vmem [shape: bf16[64,64], index: 6, kind: input, shape index: {}]
  %s7 = inlined_call_operand.hbm [shape: f32[1,64], index: 7, kind: input, shape index: {}]
  %s8 = inlined_call_operand.vmem [shape: bf16[64,128], index: 8, kind: input, shape index: {}]
  %s9 = inlined_call_operand.hbm [shape: f32[1,128], index: 9, kind: input, shape index: {}]
  %s10 = inlined_call_operand.vmem [shape: bf16[2,16,128], index: 10, kind: output, shape index: {}]
  %s11 = sld [smem:[#allocation0]]
  $region85: #{pointnet_forward.4} parent=0
    _
  %s13 = ssub.s32 1, %s11
  %s14 = scalar_select 0, %s13, %s11
  $region1: #{pointnet_forward.4} parent=0
    #allocation2 [shape = 'u8[512]{0}', space=vmem, size = 0x400, scoped, tag = 'input window, operand 5, single buffered']
    #allocation3 [shape = 's32[2]{0}', space=sflag, size = 0x8, scoped, tag = 'scoped memory for pointnet_forward.4']
    #allocation4 [shape = 'u8[512]{0}', space=vmem, size = 0x400, scoped, tag = 'input window, operand 7, single buffered']
    #allocation5 [shape = 's32[1]{0}', space=sflag, size = 0x4, scoped, tag = 'scoped memory for pointnet_forward.4']
    #allocation6 [shape = 'u8[512]{0}', space=vmem, size = 0x400, scoped, tag = 'input window, operand 9, single buffered']
    %15 = vsyncpa [#allocation3], 0
    %16 = vsyncpa [#allocation5], 0
    loop: start=0, step=1, limit=4
    $region2: #{pointnet_forward.4} parent=1 // loop_pre_header
      _
    $region3: #{pointnet_forward.4} parent=1 // loop_header
      %s18 = sphi 0, %s22
      %p19 = scmp.ge.s32.totalorder %s18, 4
      %s28 = sphi 0, %s30
      %s31 = sphi 0, %s28
      %s32 = sphi 0, %s31
      %s48 = sphi 0, %s32
      %s54 = sphi 0, %s56
      %s57 = sphi 0, %s54
      %s58 = sphi 0, %s57
      %s74 = sphi 0, %s58
      %s80 = sphi 0, %s82
      %s83 = sphi 0, %s80
      %s84 = sphi 0, %s83
      %s100 = sphi 0, %s84
      %s104 = sphi 0, %s104
      %s106 = sphi 0, %s104
      %s107 = sphi 0, %s106
      %s121 = sphi 0, %s107
      %s125 = sphi 0, %s125
      %s127 = sphi 0, %s125
      %s128 = sphi 0, %s127
      %s142 = sphi 0, %s128
      %s146 = sphi 0, %s146
      %s148 = sphi 0, %s146
      %s149 = sphi 0, %s148
      %s163 = sphi 0, %s149
      %s167 = sphi 0, %s167
      %s169 = sphi 0, %s167
      %s170 = sphi 0, %s169
      %s184 = sphi 0, %s170
      %s188 = sphi 0, %s188
      %s190 = sphi 0, %s188
      %s191 = sphi 0, %s190
      %s205 = sphi 0, %s191
      %s209 = sphi 0, %s209
      %s211 = sphi 0, %s209
      %s212 = sphi 0, %s211
      %s226 = sphi 0, %s212
      %s230 = sphi 0, %s230
      %s232 = sphi 0, %s230
      %s233 = sphi 0, %s232
      %s247 = sphi 0, %s233
      %s253 = sphi 0, %s255
      %s256 = sphi 0, %s253
      %s257 = sphi 0, %s256
      %s273 = sphi 0, %s257
    $region4: #{pointnet_forward.4} parent=1 // loop_header_branch
      %21 = sbr.rel (%p19) target = $region8
    $region5: #{pointnet_forward.4} parent=1 // loop_body
      %s23 = ssub.s32 %s18, 1
      %s24 = ssub.s32 %s18, 2
      %s25 = sadd.s32 %s18, 1
      %s26 = ssub.s32 %s18, %s25
      %p27 = scmp.eq.s32.totalorder %s26, 0
      %s29 = sadd.s32 %s28, 1
      %s30 = scalar_select %p27, %s28, %s29
      %p33 = pneg %p27
      %p34 = scmp.eq.s32.totalorder %s18, 1
      %p35 = por %p33, %p34
      %p36 = scmp.ne.s32.totalorder %s28, %s31
      %p37 = scmp.eq.s32.totalorder %s18, 0
      %p38 = por %p36, %p37
      %p39 = scmp.ne.s32.totalorder %s28, %s31
      %p40 = scmp.eq.s32.totalorder %s23, 1
      %p41 = por %p39, %p40
      %p42 = scmp.ne.s32.totalorder %s31, %s32
      %p43 = scmp.eq.s32.totalorder %s23, 0
      %p44 = por %p42, %p43
      %p45 = scmp.ne.s32.totalorder %s31, %s32
      %p46 = scmp.eq.s32.totalorder %s24, 1
      %p47 = por %p45, %p46
      %p49 = scmp.ne.s32.totalorder %s32, %s48
      %p50 = scmp.eq.s32.totalorder %s24, 0
      %p51 = por %p49, %p50
      %s52 = ssub.s32 %s18, %s25
      %p53 = scmp.eq.s32.totalorder %s52, 0
      %s55 = sadd.s32 %s54, 1
      %s56 = scalar_select %p53, %s54, %s55
      %p59 = pneg %p53
      %p60 = scmp.eq.s32.totalorder %s18, 1
      %p61 = por %p59, %p60
      %p62 = scmp.ne.s32.totalorder %s54, %s57
      %p63 = scmp.eq.s32.totalorder %s18, 0
      %p64 = por %p62, %p63
      %p65 = scmp.ne.s32.totalorder %s54, %s57
      %p66 = scmp.eq.s32.totalorder %s23, 1
      %p67 = por %p65, %p66
      %p68 = scmp.ne.s32.totalorder %s57, %s58
      %p69 = scmp.eq.s32.totalorder %s23, 0
      %p70 = por %p68, %p69
      %p71 = scmp.ne.s32.totalorder %s57, %s58
      %p72 = scmp.eq.s32.totalorder %s24, 1
      %p73 = por %p71, %p72
      %p75 = scmp.ne.s32.totalorder %s58, %s74
      %p76 = scmp.eq.s32.totalorder %s24, 0
      %p77 = por %p75, %p76
      %s78 = ssub.s32 %s18, %s25
      %p79 = scmp.eq.s32.totalorder %s78, 0
      %s81 = sadd.s32 %s80, 1
      %s82 = scalar_select %p79, %s80, %s81
      %p85 = pneg %p79
      %p86 = scmp.eq.s32.totalorder %s18, 1
      %p87 = por %p85, %p86
      %p88 = scmp.ne.s32.totalorder %s80, %s83
      %p89 = scmp.eq.s32.totalorder %s18, 0
      %p90 = por %p88, %p89
      %p91 = scmp.ne.s32.totalorder %s80, %s83
      %p92 = scmp.eq.s32.totalorder %s23, 1
      %p93 = por %p91, %p92
      %p94 = scmp.ne.s32.totalorder %s83, %s84
      %p95 = scmp.eq.s32.totalorder %s23, 0
      %p96 = por %p94, %p95
      %p97 = scmp.ne.s32.totalorder %s83, %s84
      %p98 = scmp.eq.s32.totalorder %s24, 1
      %p99 = por %p97, %p98
      %p101 = scmp.ne.s32.totalorder %s84, %s100
      %p102 = scmp.eq.s32.totalorder %s24, 0
      %p103 = por %p101, %p102
      %s105 = sadd.s32 %s104, 1
      %p108 = scmp.eq.s32.totalorder %s18, 1
      %p109 = scmp.ne.s32.totalorder %s104, %s106
      %p110 = scmp.eq.s32.totalorder %s18, 0
      %p111 = por %p109, %p110
      %p112 = scmp.ne.s32.totalorder %s104, %s106
      %p113 = scmp.eq.s32.totalorder %s23, 1
      %p114 = por %p112, %p113
      %p115 = scmp.ne.s32.totalorder %s106, %s107
      %p116 = scmp.eq.s32.totalorder %s23, 0
      %p117 = por %p115, %p116
      %p118 = scmp.ne.s32.totalorder %s106, %s107
      %p119 = scmp.eq.s32.totalorder %s24, 1
      %p120 = por %p118, %p119
      %p122 = scmp.ne.s32.totalorder %s107, %s121
      %p123 = scmp.eq.s32.totalorder %s24, 0
      %p124 = por %p122, %p123
      %s126 = sadd.s32 %s125, 1
      %p129 = scmp.eq.s32.totalorder %s18, 1
      %p130 = scmp.ne.s32.totalorder %s125, %s127
      %p131 = scmp.eq.s32.totalorder %s18, 0
      %p132 = por %p130, %p131
      %p133 = scmp.ne.s32.totalorder %s125, %s127
      %p134 = scmp.eq.s32.totalorder %s23, 1
      %p135 = por %p133, %p134
      %p136 = scmp.ne.s32.totalorder %s127, %s128
      %p137 = scmp.eq.s32.totalorder %s23, 0
      %p138 = por %p136, %p137
      %p139 = scmp.ne.s32.totalorder %s127, %s128
      %p140 = scmp.eq.s32.totalorder %s24, 1
      %p141 = por %p139, %p140
      %p143 = scmp.ne.s32.totalorder %s128, %s142
      %p144 = scmp.eq.s32.totalorder %s24, 0
      %p145 = por %p143, %p144
      %s147 = sadd.s32 %s146, 1
      %p150 = scmp.eq.s32.totalorder %s18, 1
      %p151 = scmp.ne.s32.totalorder %s146, %s148
      %p152 = scmp.eq.s32.totalorder %s18, 0
      %p153 = por %p151, %p152
      %p154 = scmp.ne.s32.totalorder %s146, %s148
      %p155 = scmp.eq.s32.totalorder %s23, 1
      %p156 = por %p154, %p155
      %p157 = scmp.ne.s32.totalorder %s148, %s149
      %p158 = scmp.eq.s32.totalorder %s23, 0
      %p159 = por %p157, %p158
      %p160 = scmp.ne.s32.totalorder %s148, %s149
      %p161 = scmp.eq.s32.totalorder %s24, 1
      %p162 = por %p160, %p161
      %p164 = scmp.ne.s32.totalorder %s149, %s163
      %p165 = scmp.eq.s32.totalorder %s24, 0
      %p166 = por %p164, %p165
      %s168 = sadd.s32 %s167, 1
      %p171 = scmp.eq.s32.totalorder %s18, 1
      %p172 = scmp.ne.s32.totalorder %s167, %s169
      %p173 = scmp.eq.s32.totalorder %s18, 0
      %p174 = por %p172, %p173
      %p175 = scmp.ne.s32.totalorder %s167, %s169
      %p176 = scmp.eq.s32.totalorder %s23, 1
      %p177 = por %p175, %p176
      %p178 = scmp.ne.s32.totalorder %s169, %s170
      %p179 = scmp.eq.s32.totalorder %s23, 0
      %p180 = por %p178, %p179
      %p181 = scmp.ne.s32.totalorder %s169, %s170
      %p182 = scmp.eq.s32.totalorder %s24, 1
      %p183 = por %p181, %p182
      %p185 = scmp.ne.s32.totalorder %s170, %s184
      %p186 = scmp.eq.s32.totalorder %s24, 0
      %p187 = por %p185, %p186
      %s189 = sadd.s32 %s188, 1
      %p192 = scmp.eq.s32.totalorder %s18, 1
      %p193 = scmp.ne.s32.totalorder %s188, %s190
      %p194 = scmp.eq.s32.totalorder %s18, 0
      %p195 = por %p193, %p194
      %p196 = scmp.ne.s32.totalorder %s188, %s190
      %p197 = scmp.eq.s32.totalorder %s23, 1
      %p198 = por %p196, %p197
      %p199 = scmp.ne.s32.totalorder %s190, %s191
      %p200 = scmp.eq.s32.totalorder %s23, 0
      %p201 = por %p199, %p200
      %p202 = scmp.ne.s32.totalorder %s190, %s191
      %p203 = scmp.eq.s32.totalorder %s24, 1
      %p204 = por %p202, %p203
      %p206 = scmp.ne.s32.totalorder %s191, %s205
      %p207 = scmp.eq.s32.totalorder %s24, 0
      %p208 = por %p206, %p207
      %s210 = sadd.s32 %s209, 1
      %p213 = scmp.eq.s32.totalorder %s18, 1
      %p214 = scmp.ne.s32.totalorder %s209, %s211
      %p215 = scmp.eq.s32.totalorder %s18, 0
      %p216 = por %p214, %p215
      %p217 = scmp.ne.s32.totalorder %s209, %s211
      %p218 = scmp.eq.s32.totalorder %s23, 1
      %p219 = por %p217, %p218
      %p220 = scmp.ne.s32.totalorder %s211, %s212
      %p221 = scmp.eq.s32.totalorder %s23, 0
      %p222 = por %p220, %p221
      %p223 = scmp.ne.s32.totalorder %s211, %s212
      %p224 = scmp.eq.s32.totalorder %s24, 1
      %p225 = por %p223, %p224
      %p227 = scmp.ne.s32.totalorder %s212, %s226
      %p228 = scmp.eq.s32.totalorder %s24, 0
      %p229 = por %p227, %p228
      %s231 = sadd.s32 %s230, 1
      %p234 = scmp.eq.s32.totalorder %s18, 1
      %p235 = scmp.ne.s32.totalorder %s230, %s232
      %p236 = scmp.eq.s32.totalorder %s18, 0
      %p237 = por %p235, %p236
      %p238 = scmp.ne.s32.totalorder %s230, %s232
      %p239 = scmp.eq.s32.totalorder %s23, 1
      %p240 = por %p238, %p239
      %p241 = scmp.ne.s32.totalorder %s232, %s233
      %p242 = scmp.eq.s32.totalorder %s23, 0
      %p243 = por %p241, %p242
      %p244 = scmp.ne.s32.totalorder %s232, %s233
      %p245 = scmp.eq.s32.totalorder %s24, 1
      %p246 = por %p244, %p245
      %p248 = scmp.ne.s32.totalorder %s233, %s247
      %p249 = scmp.eq.s32.totalorder %s24, 0
      %p250 = por %p248, %p249
      %s251 = ssub.s32 %s18, %s25
      %p252 = scmp.eq.s32.totalorder %s251, 0
      %s254 = sadd.s32 %s253, 1
      %s255 = scalar_select %p252, %s253, %s254
      %p258 = pneg %p252
      %p259 = scmp.eq.s32.totalorder %s18, 1
      %p260 = por %p258, %p259
      %p261 = scmp.ne.s32.totalorder %s253, %s256
      %p262 = scmp.eq.s32.totalorder %s18, 0
      %p263 = por %p261, %p262
      %p264 = scmp.ne.s32.totalorder %s253, %s256
      %p265 = scmp.eq.s32.totalorder %s23, 1
      %p266 = por %p264, %p265
      %p267 = scmp.ne.s32.totalorder %s256, %s257
      %p268 = scmp.eq.s32.totalorder %s23, 0
      %p269 = por %p267, %p268
      %p270 = scmp.ne.s32.totalorder %s256, %s257
      %p271 = scmp.eq.s32.totalorder %s24, 1
      %p272 = por %p270, %p271
      %p274 = scmp.ne.s32.totalorder %s257, %s273
      %p275 = scmp.eq.s32.totalorder %s24, 0
      %p276 = por %p274, %p275
      %p277 = scmp.le.s32.totalorder 1, %s18
      %p278 = scmp.lt.s32.totalorder %s18, 3
      %p279 = pnand %p277, %p278
      %p280 = pneg %p279
      // Predicated region
      $region9: #{pointnet_forward.4} parent=5 // pred_check
        _
      $region10: #{pointnet_forward.4} parent=5 // pred_check_branch
        %282 = sbr.rel (%p279) target = $region12
      $region11: #{pointnet_forward.4} parent=5 // pred_region
        %s283 = ssub.s32 %s18, 1
        // Predicated region
        $region13: #{pointnet_forward.4} parent=11 // pred_check
          %p284 = pneg %p117
        $region14: #{pointnet_forward.4} parent=11 // pred_check_branch
          %286 = sbr.rel (%p284) target = $region16
        $region15: #{pointnet_forward.4} parent=11 // pred_region
          _
        $region16: #{pointnet_forward.4} parent=11 // pred_fallthru
          _
        // Predicated region
        $region17: #{pointnet_forward.4} parent=11 // pred_check
          %p287 = pneg %p138
        $region18: #{pointnet_forward.4} parent=11 // pred_check_branch
          %289 = sbr.rel (%p287) target = $region20
        $region19: #{pointnet_forward.4} parent=11 // pred_region
          _
        $region20: #{pointnet_forward.4} parent=11 // pred_fallthru
          _
        // Predicated region
        $region21: #{pointnet_forward.4} parent=11 // pred_check
          %p290 = pneg %p159
        $region22: #{pointnet_forward.4} parent=11 // pred_check_branch
          %292 = sbr.rel (%p290) target = $region24
        $region23: #{pointnet_forward.4} parent=11 // pred_region
          %s294 = ssub.s32 16, 16
          %295 = vsyncadd [#allocation3], %s294
          %s297 = sshll.u32 [#allocation2], 4
          %s298 = int_to_ptr.vmem [resolvable:$true] %s297
          %300 = dma.hbm_to_vmem [thread:$0]  %s5, 16, %s298, [#allocation3]
        $region24: #{pointnet_forward.4} parent=11 // pred_fallthru
          _
        // Predicated region
        $region25: #{pointnet_forward.4} parent=11 // pred_check
          %p301 = pneg %p180
        $region26: #{pointnet_forward.4} parent=11 // pred_check_branch
          %303 = sbr.rel (%p301) target = $region28
        $region27: #{pointnet_forward.4} parent=11 // pred_region
          _
        $region28: #{pointnet_forward.4} parent=11 // pred_fallthru
          _
        // Predicated region
        $region29: #{pointnet_forward.4} parent=11 // pred_check
          %p304 = pneg %p201
        $region30: #{pointnet_forward.4} parent=11 // pred_check_branch
          %306 = sbr.rel (%p304) target = $region32
        $region31: #{pointnet_forward.4} parent=11 // pred_region
          %s308 = ssub.s32 16, 16
          %309 = vsyncadd [#allocation5], %s308
          %s311 = sshll.u32 [#allocation4], 4
          %s312 = int_to_ptr.vmem [resolvable:$true] %s311
          %314 = dma.hbm_to_vmem [thread:$0]  %s7, 16, %s312, [#allocation5]
        $region32: #{pointnet_forward.4} parent=11 // pred_fallthru
          _
        // Predicated region
        $region33: #{pointnet_forward.4} parent=11 // pred_check
          %p315 = pneg %p222
        $region34: #{pointnet_forward.4} parent=11 // pred_check_branch
          %317 = sbr.rel (%p315) target = $region36
        $region35: #{pointnet_forward.4} parent=11 // pred_region
          _
        $region36: #{pointnet_forward.4} parent=11 // pred_fallthru
          _
        // Predicated region
        $region37: #{pointnet_forward.4} parent=11 // pred_check
          %p318 = pneg %p243
        $region38: #{pointnet_forward.4} parent=11 // pred_check_branch
          %320 = sbr.rel (%p318) target = $region40
        $region39: #{pointnet_forward.4} parent=11 // pred_region
          %s322 = ssub.s32 16, 16
          %323 = vsyncadd [#allocation5], %s322
          %s325 = sshll.u32 [#allocation6], 4
          %s326 = int_to_ptr.vmem [resolvable:$true] %s325
          %328 = dma.hbm_to_vmem [thread:$0]  %s9, 16, %s326, [#allocation5]
        $region40: #{pointnet_forward.4} parent=11 // pred_fallthru
          _
      $region12: #{pointnet_forward.4} parent=5 // pred_fallthru
        _
      %p329 = scmp.lt.s32.totalorder %s18, 2
      // Predicated region
      $region41: #{pointnet_forward.4} parent=5 // pred_check
        %p330 = pneg %p329
      $region42: #{pointnet_forward.4} parent=5 // pred_check_branch
        %332 = sbr.rel (%p330) target = $region44
      $region43: #{pointnet_forward.4} parent=5 // pred_region
        // Predicated region
        $region45: #{pointnet_forward.4} parent=43 // pred_check
          %p333 = pneg %p38
        $region46: #{pointnet_forward.4} parent=43 // pred_check_branch
          %335 = sbr.rel (%p333) target = $region48
        $region47: #{pointnet_forward.4} parent=43 // pred_region
          %p336 = scmp.lt.s32.totalorder %s18, 1
          %s337 = scalar_select %p336, %s18, 1
          %s338 = smul.addr %s337, 4
          %s339 = smul.addr %s338, 4
          %s340 = scalar_lea.vmem %s0, %s339
        $region48: #{pointnet_forward.4} parent=43 // pred_fallthru
          _
        // Predicated region
        $region49: #{pointnet_forward.4} parent=43 // pred_check
          %p341 = pneg %p64
        $region50: #{pointnet_forward.4} parent=43 // pred_check_branch
          %343 = sbr.rel (%p341) target = $region52
        $region51: #{pointnet_forward.4} parent=43 // pred_region
          %p344 = scmp.lt.s32.totalorder %s18, 1
          %s345 = scalar_select %p344, %s18, 1
          %s346 = smul.addr %s345, 4
          %s347 = smul.addr %s346, 8
          %s348 = scalar_lea.vmem %s1, %s347
        $region52: #{pointnet_forward.4} parent=43 // pred_fallthru
          _
        // Predicated region
        $region53: #{pointnet_forward.4} parent=43 // pred_check
          %p349 = pneg %p90
        $region54: #{pointnet_forward.4} parent=43 // pred_check_branch
          %351 = sbr.rel (%p349) target = $region56
        $region55: #{pointnet_forward.4} parent=43 // pred_region
          %p352 = scmp.lt.s32.totalorder %s18, 1
          %s353 = scalar_select %p352, %s18, 1
          %s354 = smul.addr %s353, 2
          %s355 = smul.addr %s354, 8
          %s356 = scalar_lea.vmem %s2, %s355
        $region56: #{pointnet_forward.4} parent=43 // pred_fallthru
          _
      $region44: #{pointnet_forward.4} parent=5 // pred_fallthru
        _
      %p357 = scmp.le.s32.totalorder 1, %s18
      %p358 = scmp.lt.s32.totalorder %s18, 3
      %p359 = pnand %p357, %p358
      %p360 = pneg %p359
      // Predicated region
      $region57: #{pointnet_forward.4} parent=5 // pred_check
        _
      $region58: #{pointnet_forward.4} parent=5 // pred_check_branch
        %362 = sbr.rel (%p359) target = $region60
      $region59: #{pointnet_forward.4} parent=5 // pred_region
        %s363 = ssub.s32 %s18, 1
        // Predicated region
        $region61: #{pointnet_forward.4} parent=59 // pred_check
          %p364 = pneg %p159
        $region62: #{pointnet_forward.4} parent=59 // pred_check_branch
          %366 = sbr.rel (%p364) target = $region64
        $region63: #{pointnet_forward.4} parent=59 // pred_region
          %367 = dma.done [#allocation3], 16
        $region64: #{pointnet_forward.4} parent=59 // pred_fallthru
          _
        // Predicated region
        $region65: #{pointnet_forward.4} parent=59 // pred_check
          %p368 = pneg %p201
        $region66: #{pointnet_forward.4} parent=59 // pred_check_branch
          %370 = sbr.rel (%p368) target = $region68
        $region67: #{pointnet_forward.4} parent=59 // pred_region
          %371 = dma.done [#allocation5], 16
        $region68: #{pointnet_forward.4} parent=59 // pred_fallthru
          _
        // Predicated region
        $region69: #{pointnet_forward.4} parent=59 // pred_check
          %p372 = pneg %p243
        $region70: #{pointnet_forward.4} parent=59 // pred_check_branch
          %374 = sbr.rel (%p372) target = $region72
        $region71: #{pointnet_forward.4} parent=59 // pred_region
          %375 = dma.done [#allocation5], 16
        $region72: #{pointnet_forward.4} parent=59 // pred_fallthru
          _
        %p376 = scmp.lt.s32.totalorder %s23, 1
        %s377 = scalar_select %p376, %s23, 1
        %s378 = smul.addr %s377, 4
        %s379 = smul.addr %s378, 4
        %s380 = scalar_lea.vmem %s0, %s379
        %p381 = pneg %p44
        %p382 = pneg %p41
        %p383 = scmp.lt.s32.totalorder %s23, 1
        %s384 = scalar_select %p383, %s23, 1
        %s385 = smul.addr %s384, 4
        %s386 = smul.addr %s385, 8
        %s387 = scalar_lea.vmem %s1, %s386
        %p388 = pneg %p70
        %p389 = pneg %p67
        %p390 = scmp.lt.s32.totalorder %s23, 1
        %s391 = scalar_select %p390, %s23, 1
        %s392 = smul.addr %s391, 2
        %s393 = smul.addr %s392, 8
        %s394 = scalar_lea.vmem %s2, %s393
        %p395 = pneg %p96
        %p396 = pneg %p93
        %p397 = pneg %p117
        %p398 = pneg %p114
        %p399 = pneg %p138
        %p400 = pneg %p135
        %p401 = pneg %p159
        %p402 = pneg %p156
        %p403 = pneg %p180
        %p404 = pneg %p177
        %p405 = pneg %p201
        %p406 = pneg %p198
        %p407 = pneg %p222
        %p408 = pneg %p219
        %p409 = pneg %p243
        %p410 = pneg %p240
        %p411 = pneg %p269
        %p412 = pneg %p266
        %p413 = scmp.lt.s32.totalorder %s23, 1
        %s414 = scalar_select %p413, %s23, 1
        %s415 = smul.addr %s414, 2
        %s416 = smul.addr %s415, 4
        %s417 = scalar_lea.vmem %s10, %s416
        %p418 = scmp.lt.s32.totalorder %s23, 1
        %s419 = scalar_select %p418, %s23, 1
        %s420 = smul.addr %s419, 4
        %s421 = smul.addr %s420, 4
        %s422 = scalar_lea.vmem %s0, %s421
        %p423 = scmp.lt.s32.totalorder %s23, 1
        %s424 = scalar_select %p423, %s23, 1
        %s425 = smul.addr %s424, 4
        %s426 = smul.addr %s425, 8
        %s427 = scalar_lea.vmem %s1, %s426
        %p428 = scmp.lt.s32.totalorder %s23, 1
        %s429 = scalar_select %p428, %s23, 1
        %s430 = smul.addr %s429, 2
        %s431 = smul.addr %s430, 8
        %s432 = scalar_lea.vmem %s2, %s431
        %p433 = scmp.lt.s32.totalorder %s23, 1
        %s434 = scalar_select %p433, %s23, 1
        %s435 = smul.addr %s434, 2
        %s436 = smul.addr %s435, 4
        %s437 = scalar_lea.vmem %s10, %s436
        %v439 = vld [vmem:[%s422] sm:$0xf]
        %v440 = vld [vmem:[%s422 + $0x4] sm:$0xf]
        %v441 = vld [vmem:[%s422 + $0x8] sm:$0xf]
        %v442 = vld [vmem:[%s422 + $0xc] sm:$0xf]
        %v443 = vld [vmem:[%s3] sm:$0x7]
        %v444 = vld [vmem:[#allocation2] sm:$0x1]
        %v446 = vlaneseq
        %v447 = vshrl.u32 %v446, 7
        %v448 = vsub.s32 0, %v447
        %v449 = vrot.slane %v444, %v448
        %v455 = vunpack.c.l.b16 %v439
        %v456 = vunpack.c.l.b16 %v440
        %v457 = vunpack.c.l.b16 %v441
        %v458 = vunpack.c.l.b16 %v442
        %v459 = vpack.c.b16 %v456, %v455
        %v460 = vpack.c.b16 %v458, %v457
        %vm461 = vcmask 48128
        %v463 = vsel %vm461, %v459, 0
        %v466 = vsel %vm461, %v460, 0
        %vm468 = vcmask 1042432
        %v470 = vsel %vm468, %v443, 0
        %472 = vmatprep.subr.bf16.mxu0 0
        %473 = vmatpush1.bf16.msra.mxu0 0
        %474 = vmatprep.subr.bf16.mxu0 0
        %475 = vmatpush1.bf16.msra.mxu0 0
        %476 = vmatprep.subr.bf16.mxu0 0
        %477 = vmatpush1.bf16.msra.mxu0 0
        %478 = vmatprep.subr.bf16.mxu0 0
        %479 = vmatpush1.bf16.msra.mxu0 0
        %480 = vmatprep.subr.bf16.mxu0 0
        %481 = vmatpush1.bf16.msra.mxu0 0
        %482 = vmatprep.subr.bf16.mxu0 0
        %483 = vmatpush1.bf16.msra.mxu0 0
        %484 = vmatprep.subr.bf16.mxu0 0
        %485 = vmatpush1.bf16.msra.mxu0 0
        %486 = vmatprep.subr.bf16.mxu0 0
        %487 = vmatpush1.bf16.msra.mxu0 %v470
        %488 = vmatprep.subr.bf16.mxu0 0
        %489 = vmatpush2.bf16.msra.mxu0 0
        %490 = vmatprep.subr.bf16.mxu0 0
        %491 = vmatpush2.bf16.msra.mxu0 0
        %492 = vmatprep.subr.bf16.mxu0 0
        %493 = vmatpush2.bf16.msra.mxu0 0
        %494 = vmatprep.subr.bf16.mxu0 0
        %495 = vmatpush2.bf16.msra.mxu0 0
        %496 = vmatprep.subr.bf16.mxu0 0
        %497 = vmatpush2.bf16.msra.mxu0 0
        %498 = vmatprep.subr.bf16.mxu0 0
        %499 = vmatpush2.bf16.msra.mxu0 0
        %500 = vmatprep.subr.bf16.mxu0 0
        %501 = vmatpush2.bf16.msra.mxu0 0
        %502 = vmatprep.subr.bf16.mxu0 0
        %503 = vmatpush2.bf16.msra.mxu0 0
        %504 = vmatprep.mubr.bf16.mxu0 0
        %505 = vmatmul.mubr.bf16.gmra.mxu0 %v463
        %v506 = vpop.f32.mrf.mxu0
        %v507 = vadd.f32 %v449, %v506
        %v508 = vpop.f32.mrf.mxu0
        %v509 = vpop.f32.mrf.mxu0
        %v510 = vadd.f32 %v449, %v509
        %v511 = vpop.f32.mrf.mxu0
        %512 = vmatprep.mubr.bf16.mxu0 0
        %513 = vmatmul.mubr.bf16.gmra.mxu0 %v466
        %v514 = vpop.f32.mrf.mxu0
        %v515 = vadd.f32 %v449, %v514
        %v516 = vpop.f32.mrf.mxu0
        %v517 = vpop.f32.mrf.mxu0
        %v518 = vadd.f32 %v449, %v517
        %v519 = vpop.f32.mrf.mxu0
        %520 = vdwg.mxu0
        %v521 = vld [vmem:[%s432] sm:$0xff]
        %v522 = vld [vmem:[%s432 + $0x8] sm:$0xff]
        %v523 = vld [vmem:[%s4] sm:$0x1]
        %525 = vset.pattern.permute.xlu0 0
        %526 = vperm.xlu0 %525, %v521
        %v527 = vpop.permute.xlu0 %526
        %530 = vset.pattern.permute.xlu0 0
        %531 = vperm.xlu0 %530, %v522
        %v532 = vpop.permute.xlu0 %531
        %v534 = vlaneseq
        %v535 = vshrl.u32 %v534, 7
        %v536 = vsub.s32 0, %v535
        %v537 = vrot.slane %v523, %v536
        %v538 = vmul.f32 %v527, %v537
        %v539 = vmul.f32 %v532, %v537
        %v540 = vld [vmem:[%s4 + $0x1] sm:$0x1]
        %541 = vset.pattern.permute.xlu0 1
        %542 = vperm.xlu0 %541, %v521
        %v543 = vpop.permute.xlu0 %542
        %545 = vset.pattern.permute.xlu0 1
        %546 = vperm.xlu0 %545, %v522
        %v547 = vpop.permute.xlu0 %546
        %v549 = vlaneseq
        %v550 = vshrl.u32 %v549, 7
        %v551 = vsub.s32 0, %v550
        %v552 = vrot.slane %v540, %v551
        %v553 = vmul.f32 %v543, %v552
        %v554 = vmul.f32 %v547, %v552
        %v555 = vadd.f32 %v538, %v553
        %v556 = vadd.f32 %v539, %v554
        %v557 = vld [vmem:[%s4 + $0x2] sm:$0x1]
        %558 = vset.pattern.permute.xlu0 2
        %559 = vperm.xlu0 %558, %v521
        %v560 = vpop.permute.xlu0 %559
        %562 = vset.pattern.permute.xlu0 2
        %563 = vperm.xlu0 %562, %v522
        %v564 = vpop.permute.xlu0 %563
        %v566 = vlaneseq
        %v567 = vshrl.u32 %v566, 7
        %v568 = vsub.s32 0, %v567
        %v569 = vrot.slane %v557, %v568
        %v570 = vmul.f32 %v560, %v569
        %v571 = vmul.f32 %v564, %v569
        %v572 = vadd.f32 %v555, %v570
        %v573 = vadd.f32 %v556, %v571
        %v576 = vcombine.high %v572, %v572
        %v578 = vunpack.c.l.s4 1966171168
        %v579 = vunpack.c.0.s8 %v578
        %v580 = vlaneseq
        %v581 = vshrl.u32 %v580, 7
        %v582 = vsub.s32 %v579, %v581
        %v583 = vrot.slane %v572, %v582
        %v585 = vunpack.c.l.s4 1966171168
        %v586 = vunpack.c.0.s8 %v585
        %v587 = vlaneseq
        %v588 = vshrl.u32 %v587, 7
        %v589 = vsub.s32 %v586, %v588
        %v590 = vrot.slane %v576, %v589
        %v591 = vcombine.high %v583, %v583
        %v592 = vcombine.high %v590, %v590
        %v594 = vunpack.c.l.s4 1966171168
        %v595 = vunpack.c.0.s8 %v594
        %v596 = vlaneseq
        %v597 = vshrl.u32 %v596, 7
        %v598 = vsub.s32 %v595, %v597
        %v599 = vrot.slane %v583, %v598
        %v601 = vunpack.c.l.s4 1966171168
        %v602 = vunpack.c.0.s8 %v601
        %v603 = vlaneseq
        %v604 = vshrl.u32 %v603, 7
        %v605 = vsub.s32 %v602, %v604
        %v606 = vrot.slane %v590, %v605
        %v608 = vunpack.c.l.s4 1966171168
        %v609 = vunpack.c.0.s8 %v608
        %v610 = vlaneseq
        %v611 = vshrl.u32 %v610, 7
        %v612 = vsub.s32 %v609, %v611
        %v613 = vrot.slane %v591, %v612
        %v615 = vunpack.c.l.s4 1966171168
        %v616 = vunpack.c.0.s8 %v615
        %v617 = vlaneseq
        %v618 = vshrl.u32 %v617, 7
        %v619 = vsub.s32 %v616, %v618
        %v620 = vrot.slane %v592, %v619
        %v621 = vcombine.high %v599, %v599
        %v622 = vcombine.high %v606, %v606
        %v623 = vcombine.high %v613, %v613
        %v624 = vcombine.high %v620, %v620
        %v625 = vcombine.high %v573, %v573
        %v627 = vunpack.c.l.s4 1966171168
        %v628 = vunpack.c.0.s8 %v627
        %v629 = vlaneseq
        %v630 = vshrl.u32 %v629, 7
        %v631 = vsub.s32 %v628, %v630
        %v632 = vrot.slane %v573, %v631
        %v634 = vunpack.c.l.s4 1966171168
        %v635 = vunpack.c.0.s8 %v634
        %v636 = vlaneseq
        %v637 = vshrl.u32 %v636, 7
        %v638 = vsub.s32 %v635, %v637
        %v639 = vrot.slane %v625, %v638
        %v640 = vcombine.high %v632, %v632
        %v641 = vcombine.high %v639, %v639
        %v643 = vunpack.c.l.s4 1966171168
        %v644 = vunpack.c.0.s8 %v643
        %v645 = vlaneseq
        %v646 = vshrl.u32 %v645, 7
        %v647 = vsub.s32 %v644, %v646
        %v648 = vrot.slane %v632, %v647
        %v650 = vunpack.c.l.s4 1966171168
        %v651 = vunpack.c.0.s8 %v650
        %v652 = vlaneseq
        %v653 = vshrl.u32 %v652, 7
        %v654 = vsub.s32 %v651, %v653
        %v655 = vrot.slane %v639, %v654
        %v657 = vunpack.c.l.s4 1966171168
        %v658 = vunpack.c.0.s8 %v657
        %v659 = vlaneseq
        %v660 = vshrl.u32 %v659, 7
        %v661 = vsub.s32 %v658, %v660
        %v662 = vrot.slane %v640, %v661
        %v664 = vunpack.c.l.s4 1966171168
        %v665 = vunpack.c.0.s8 %v664
        %v666 = vlaneseq
        %v667 = vshrl.u32 %v666, 7
        %v668 = vsub.s32 %v665, %v667
        %v669 = vrot.slane %v641, %v668
        %v670 = vcombine.high %v648, %v648
        %v671 = vcombine.high %v655, %v655
        %v672 = vcombine.high %v662, %v662
        %v673 = vcombine.high %v669, %v669
        %v674 = vlaneseq
        %v675 = vshrl.u32 %v674, 7
        %v676 = vsub.s32 0, %v675
        %v677 = vrot.slane %v599, %v676
        %v678 = vlaneseq
        %v679 = vshrl.u32 %v678, 7
        %v680 = vsub.s32 0, %v679
        %v681 = vrot.slane %v613, %v680
        %v682 = vlaneseq
        %v683 = vshrl.u32 %v682, 7
        %v684 = vsub.s32 0, %v683
        %v685 = vrot.slane %v621, %v684
        %v686 = vlaneseq
        %v687 = vshrl.u32 %v686, 7
        %v688 = vsub.s32 0, %v687
        %v689 = vrot.slane %v623, %v688
        %v690 = vlaneseq
        %v691 = vshrl.u32 %v690, 7
        %v692 = vsub.s32 0, %v691
        %v693 = vrot.slane %v606, %v692
        %v694 = vlaneseq
        %v695 = vshrl.u32 %v694, 7
        %v696 = vsub.s32 0, %v695
        %v697 = vrot.slane %v620, %v696
        %v698 = vlaneseq
        %v699 = vshrl.u32 %v698, 7
        %v700 = vsub.s32 0, %v699
        %v701 = vrot.slane %v622, %v700
        %v702 = vlaneseq
        %v703 = vshrl.u32 %v702, 7
        %v704 = vsub.s32 0, %v703
        %v705 = vrot.slane %v624, %v704
        %v706 = vlaneseq
        %v707 = vshrl.u32 %v706, 7
        %v708 = vsub.s32 0, %v707
        %v709 = vrot.slane %v648, %v708
        %v710 = vlaneseq
        %v711 = vshrl.u32 %v710, 7
        %v712 = vsub.s32 0, %v711
        %v713 = vrot.slane %v662, %v712
        %v714 = vlaneseq
        %v715 = vshrl.u32 %v714, 7
        %v716 = vsub.s32 0, %v715
        %v717 = vrot.slane %v670, %v716
        %v718 = vlaneseq
        %v719 = vshrl.u32 %v718, 7
        %v720 = vsub.s32 0, %v719
        %v721 = vrot.slane %v672, %v720
        %v722 = vlaneseq
        %v723 = vshrl.u32 %v722, 7
        %v724 = vsub.s32 0, %v723
        %v725 = vrot.slane %v655, %v724
        %v726 = vlaneseq
        %v727 = vshrl.u32 %v726, 7
        %v728 = vsub.s32 0, %v727
        %v729 = vrot.slane %v669, %v728
        %v730 = vlaneseq
        %v731 = vshrl.u32 %v730, 7
        %v732 = vsub.s32 0, %v731
        %v733 = vrot.slane %v671, %v732
        %v734 = vlaneseq
        %v735 = vshrl.u32 %v734, 7
        %v736 = vsub.s32 0, %v735
        %v737 = vrot.slane %v673, %v736
        %v754 = vsub.f32 %v507, %v677
        %v755 = vsub.f32 %v510, %v677
        %v756 = vsub.f32 %v515, %v677
        %v757 = vsub.f32 %v518, %v677
        %v758 = vsub.f32 %v507, %v681
        %v759 = vsub.f32 %v510, %v681
        %v760 = vsub.f32 %v515, %v681
        %v761 = vsub.f32 %v518, %v681
        %v762 = vsub.f32 %v507, %v685
        %v763 = vsub.f32 %v510, %v685
        %v764 = vsub.f32 %v515, %v685
        %v765 = vsub.f32 %v518, %v685
        %v766 = vsub.f32 %v507, %v689
        %v767 = vsub.f32 %v510, %v689
        %v768 = vsub.f32 %v515, %v689
        %v769 = vsub.f32 %v518, %v689
        %v770 = vsub.f32 %v507, %v693
        %v771 = vsub.f32 %v510, %v693
        %v772 = vsub.f32 %v515, %v693
        %v773 = vsub.f32 %v518, %v693
        %v774 = vsub.f32 %v507, %v697
        %v775 = vsub.f32 %v510, %v697
        %v776 = vsub.f32 %v515, %v697
        %v777 = vsub.f32 %v518, %v697
        %v778 = vsub.f32 %v507, %v701
        %v779 = vsub.f32 %v510, %v701
        %v780 = vsub.f32 %v515, %v701
        %v781 = vsub.f32 %v518, %v701
        %v782 = vsub.f32 %v507, %v705
        %v783 = vsub.f32 %v510, %v705
        %v784 = vsub.f32 %v515, %v705
        %v785 = vsub.f32 %v518, %v705
        %v786 = vsub.f32 %v507, %v709
        %v787 = vsub.f32 %v510, %v709
        %v788 = vsub.f32 %v515, %v709
        %v789 = vsub.f32 %v518, %v709
        %v790 = vsub.f32 %v507, %v713
        %v791 = vsub.f32 %v510, %v713
        %v792 = vsub.f32 %v515, %v713
        %v793 = vsub.f32 %v518, %v713
        %v794 = vsub.f32 %v507, %v717
        %v795 = vsub.f32 %v510, %v717
        %v796 = vsub.f32 %v515, %v717
        %v797 = vsub.f32 %v518, %v717
        %v798 = vsub.f32 %v507, %v721
        %v799 = vsub.f32 %v510, %v721
        %v800 = vsub.f32 %v515, %v721
        %v801 = vsub.f32 %v518, %v721
        %v802 = vsub.f32 %v507, %v725
        %v803 = vsub.f32 %v510, %v725
        %v804 = vsub.f32 %v515, %v725
        %v805 = vsub.f32 %v518, %v725
        %v806 = vsub.f32 %v507, %v729
        %v807 = vsub.f32 %v510, %v729
        %v808 = vsub.f32 %v515, %v729
        %v809 = vsub.f32 %v518, %v729
        %v810 = vsub.f32 %v507, %v733
        %v811 = vsub.f32 %v510, %v733
        %v812 = vsub.f32 %v515, %v733
        %v813 = vsub.f32 %v518, %v733
        %v814 = vsub.f32 %v507, %v737
        %v815 = vsub.f32 %v510, %v737
        %v816 = vsub.f32 %v515, %v737
        %v817 = vsub.f32 %v518, %v737
        %v818 = vmax.f32 %v754, 0.0
        %v819 = vmax.f32 %v755, 0.0
        %v820 = vmax.f32 %v756, 0.0
        %v821 = vmax.f32 %v757, 0.0
        %v822 = vmax.f32 %v758, 0.0
        %v823 = vmax.f32 %v759, 0.0
        %v824 = vmax.f32 %v760, 0.0
        %v825 = vmax.f32 %v761, 0.0
        %v826 = vmax.f32 %v762, 0.0
        %v827 = vmax.f32 %v763, 0.0
        %v828 = vmax.f32 %v764, 0.0
        %v829 = vmax.f32 %v765, 0.0
        %v830 = vmax.f32 %v766, 0.0
        %v831 = vmax.f32 %v767, 0.0
        %v832 = vmax.f32 %v768, 0.0
        %v833 = vmax.f32 %v769, 0.0
        %v834 = vmax.f32 %v770, 0.0
        %v835 = vmax.f32 %v771, 0.0
        %v836 = vmax.f32 %v772, 0.0
        %v837 = vmax.f32 %v773, 0.0
        %v838 = vmax.f32 %v774, 0.0
        %v839 = vmax.f32 %v775, 0.0
        %v840 = vmax.f32 %v776, 0.0
        %v841 = vmax.f32 %v777, 0.0
        %v842 = vmax.f32 %v778, 0.0
        %v843 = vmax.f32 %v779, 0.0
        %v844 = vmax.f32 %v780, 0.0
        %v845 = vmax.f32 %v781, 0.0
        %v846 = vmax.f32 %v782, 0.0
        %v847 = vmax.f32 %v783, 0.0
        %v848 = vmax.f32 %v784, 0.0
        %v849 = vmax.f32 %v785, 0.0
        %v850 = vmax.f32 %v786, 0.0
        %v851 = vmax.f32 %v787, 0.0
        %v852 = vmax.f32 %v788, 0.0
        %v853 = vmax.f32 %v789, 0.0
        %v854 = vmax.f32 %v790, 0.0
        %v855 = vmax.f32 %v791, 0.0
        %v856 = vmax.f32 %v792, 0.0
        %v857 = vmax.f32 %v793, 0.0
        %v858 = vmax.f32 %v794, 0.0
        %v859 = vmax.f32 %v795, 0.0
        %v860 = vmax.f32 %v796, 0.0
        %v861 = vmax.f32 %v797, 0.0
        %v862 = vmax.f32 %v798, 0.0
        %v863 = vmax.f32 %v799, 0.0
        %v864 = vmax.f32 %v800, 0.0
        %v865 = vmax.f32 %v801, 0.0
        %v866 = vmax.f32 %v802, 0.0
        %v867 = vmax.f32 %v803, 0.0
        %v868 = vmax.f32 %v804, 0.0
        %v869 = vmax.f32 %v805, 0.0
        %v870 = vmax.f32 %v806, 0.0
        %v871 = vmax.f32 %v807, 0.0
        %v872 = vmax.f32 %v808, 0.0
        %v873 = vmax.f32 %v809, 0.0
        %v874 = vmax.f32 %v810, 0.0
        %v875 = vmax.f32 %v811, 0.0
        %v876 = vmax.f32 %v812, 0.0
        %v877 = vmax.f32 %v813, 0.0
        %v878 = vmax.f32 %v814, 0.0
        %v879 = vmax.f32 %v815, 0.0
        %v880 = vmax.f32 %v816, 0.0
        %v881 = vmax.f32 %v817, 0.0
        %v882 = vpack.c.bf16 %v819, %v818
        %v883 = vpack.c.bf16 %v821, %v820
        %v884 = vpack.c.bf16 %v823, %v822
        %v885 = vpack.c.bf16 %v825, %v824
        %v886 = vpack.c.bf16 %v827, %v826
        %v887 = vpack.c.bf16 %v829, %v828
        %v888 = vpack.c.bf16 %v831, %v830
        %v889 = vpack.c.bf16 %v833, %v832
        %v890 = vpack.c.bf16 %v835, %v834
        %v891 = vpack.c.bf16 %v837, %v836
        %v892 = vpack.c.bf16 %v839, %v838
        %v893 = vpack.c.bf16 %v841, %v840
        %v894 = vpack.c.bf16 %v843, %v842
        %v895 = vpack.c.bf16 %v845, %v844
        %v896 = vpack.c.bf16 %v847, %v846
        %v897 = vpack.c.bf16 %v849, %v848
        %v898 = vpack.c.bf16 %v851, %v850
        %v899 = vpack.c.bf16 %v853, %v852
        %v900 = vpack.c.bf16 %v855, %v854
        %v901 = vpack.c.bf16 %v857, %v856
        %v902 = vpack.c.bf16 %v859, %v858
        %v903 = vpack.c.bf16 %v861, %v860
        %v904 = vpack.c.bf16 %v863, %v862
        %v905 = vpack.c.bf16 %v865, %v864
        %v906 = vpack.c.bf16 %v867, %v866
        %v907 = vpack.c.bf16 %v869, %v868
        %v908 = vpack.c.bf16 %v871, %v870
        %v909 = vpack.c.bf16 %v873, %v872
        %v910 = vpack.c.bf16 %v875, %v874
        %v911 = vpack.c.bf16 %v877, %v876
        %v912 = vpack.c.bf16 %v879, %v878
        %v913 = vpack.c.bf16 %v881, %v880
        %v914 = vld [vmem:[%s6] sm:$0xf]
        %v915 = vld [vmem:[%s6 + $0x4] sm:$0xf]
        %v916 = vld [vmem:[%s6 + $0x8] sm:$0xf]
        %v917 = vld [vmem:[%s6 + $0xc] sm:$0xf]
        %v918 = vld [vmem:[%s6 + $0x10] sm:$0xf]
        %v919 = vld [vmem:[%s6 + $0x14] sm:$0xf]
        %v920 = vld [vmem:[%s6 + $0x18] sm:$0xf]
        %v921 = vld [vmem:[%s6 + $0x1c] sm:$0xf]
        %v922 = vld [vmem:[#allocation4] sm:$0x1]
        %v924 = vlaneseq
        %v925 = vshrl.u32 %v924, 7
        %v926 = vsub.s32 0, %v925
        %v927 = vrot.slane %v922, %v926
        %v937 = vunpack.c.l.b16 %v914
        %v938 = vunpack.c.l.b16 %v915
        %v939 = vunpack.c.l.b16 %v916
        %v940 = vunpack.c.l.b16 %v917
        %v941 = vunpack.c.l.b16 %v918
        %v942 = vunpack.c.l.b16 %v919
        %v943 = vunpack.c.l.b16 %v920
        %v944 = vunpack.c.l.b16 %v921
        %v945 = vpack.c.b16 %v938, %v937
        %v946 = vpack.c.b16 %v940, %v939
        %v947 = vpack.c.b16 %v942, %v941
        %v948 = vpack.c.b16 %v944, %v943
        %vm953 = vcmask 523264
        %v955 = vsel %vm953, %v882, 0
        %v958 = vsel %vm953, %v883, 0
        %v961 = vsel %vm953, %v884, 0
        %v964 = vsel %vm953, %v885, 0
        %v967 = vsel %vm953, %v886, 0
        %v970 = vsel %vm953, %v887, 0
        %v973 = vsel %vm953, %v888, 0
        %v976 = vsel %vm953, %v889, 0
        %v979 = vsel %vm953, %v890, 0
        %v982 = vsel %vm953, %v891, 0
        %v985 = vsel %vm953, %v892, 0
        %v988 = vsel %vm953, %v893, 0
        %v991 = vsel %vm953, %v894, 0
        %v994 = vsel %vm953, %v895, 0
        %v997 = vsel %vm953, %v896, 0
        %v1000 = vsel %vm953, %v897, 0
        %v1003 = vsel %vm953, %v898, 0
        %v1006 = vsel %vm953, %v899, 0
        %v1009 = vsel %vm953, %v900, 0
        %v1012 = vsel %vm953, %v901, 0
        %v1015 = vsel %vm953, %v902, 0
        %v1018 = vsel %vm953, %v903, 0
        %v1021 = vsel %vm953, %v904, 0
        %v1024 = vsel %vm953, %v905, 0
        %v1027 = vsel %vm953, %v906, 0
        %v1030 = vsel %vm953, %v907, 0
        %v1033 = vsel %vm953, %v908, 0
        %v1036 = vsel %vm953, %v909, 0
        %v1039 = vsel %vm953, %v910, 0
        %v1042 = vsel %vm953, %v911, 0
        %v1045 = vsel %vm953, %v912, 0
        %v1048 = vsel %vm953, %v913, 0
        %1050 = vmatprep.subr.bf16.mxu0 0
        %1051 = vmatpush1.bf16.msra.mxu0 0
        %1052 = vmatprep.subr.bf16.mxu0 0
        %1053 = vmatpush1.bf16.msra.mxu0 0
        %1054 = vmatprep.subr.bf16.mxu0 0
        %1055 = vmatpush1.bf16.msra.mxu0 0
        %1056 = vmatprep.subr.bf16.mxu0 0
        %1057 = vmatpush1.bf16.msra.mxu0 0
        %1058 = vmatprep.subr.bf16.mxu0 0
        %1059 = vmatpush1.bf16.msra.mxu0 %v948
        %1060 = vmatprep.subr.bf16.mxu0 0
        %1061 = vmatpush1.bf16.msra.mxu0 %v947
        %1062 = vmatprep.subr.bf16.mxu0 0
        %1063 = vmatpush1.bf16.msra.mxu0 %v946
        %1064 = vmatprep.subr.bf16.mxu0 0
        %1065 = vmatpush1.bf16.msra.mxu0 %v945
        %1066 = vmatprep.subr.bf16.mxu0 0
        %1067 = vmatpush2.bf16.msra.mxu0 0
        %1068 = vmatprep.subr.bf16.mxu0 0
        %1069 = vmatpush2.bf16.msra.mxu0 0
        %1070 = vmatprep.subr.bf16.mxu0 0
        %1071 = vmatpush2.bf16.msra.mxu0 0
        %1072 = vmatprep.subr.bf16.mxu0 0
        %1073 = vmatpush2.bf16.msra.mxu0 0
        %1074 = vmatprep.subr.bf16.mxu0 0
        %1075 = vmatpush2.bf16.msra.mxu0 0
        %1076 = vmatprep.subr.bf16.mxu0 0
        %1077 = vmatpush2.bf16.msra.mxu0 0
        %1078 = vmatprep.subr.bf16.mxu0 0
        %1079 = vmatpush2.bf16.msra.mxu0 0
        %1080 = vmatprep.subr.bf16.mxu0 0
        %1081 = vmatpush2.bf16.msra.mxu0 0
        %1082 = vmatprep.mubr.bf16.mxu0 0
        %1083 = vmatmul.mubr.bf16.gmra.mxu0 %v955
        %v1084 = vpop.f32.mrf.mxu0
        %v1085 = vadd.f32 %v927, %v1084
        %v1086 = vpop.f32.mrf.mxu0
        %v1087 = vpop.f32.mrf.mxu0
        %v1088 = vadd.f32 %v927, %v1087
        %v1089 = vpop.f32.mrf.mxu0
        %1090 = vmatprep.mubr.bf16.mxu0 0
        %1091 = vmatmul.mubr.bf16.gmra.mxu0 %v958
        %v1092 = vpop.f32.mrf.mxu0
        %v1093 = vadd.f32 %v927, %v1092
        %v1094 = vpop.f32.mrf.mxu0
        %v1095 = vpop.f32.mrf.mxu0
        %v1096 = vadd.f32 %v927, %v1095
        %v1097 = vpop.f32.mrf.mxu0
        %1098 = vmatprep.mubr.bf16.mxu0 0
        %1099 = vmatmul.mubr.bf16.gmra.mxu0 %v961
        %v1100 = vpop.f32.mrf.mxu0
        %v1101 = vadd.f32 %v927, %v1100
        %v1102 = vpop.f32.mrf.mxu0
        %v1103 = vpop.f32.mrf.mxu0
        %v1104 = vadd.f32 %v927, %v1103
        %v1105 = vpop.f32.mrf.mxu0
        %1106 = vmatprep.mubr.bf16.mxu0 0
        %1107 = vmatmul.mubr.bf16.gmra.mxu0 %v964
        %v1108 = vpop.f32.mrf.mxu0
        %v1109 = vadd.f32 %v927, %v1108
        %v1110 = vpop.f32.mrf.mxu0
        %v1111 = vpop.f32.mrf.mxu0
        %v1112 = vadd.f32 %v927, %v1111
        %v1113 = vpop.f32.mrf.mxu0
        %1114 = vmatprep.mubr.bf16.mxu0 0
        %1115 = vmatmul.mubr.bf16.gmra.mxu0 %v967
        %v1116 = vpop.f32.mrf.mxu0
        %v1117 = vadd.f32 %v927, %v1116
        %v1118 = vpop.f32.mrf.mxu0
        %v1119 = vpop.f32.mrf.mxu0
        %v1120 = vadd.f32 %v927, %v1119
        %v1121 = vpop.f32.mrf.mxu0
        %1122 = vmatprep.mubr.bf16.mxu0 0
        %1123 = vmatmul.mubr.bf16.gmra.mxu0 %v970
        %v1124 = vpop.f32.mrf.mxu0
        %v1125 = vadd.f32 %v927, %v1124
        %v1126 = vpop.f32.mrf.mxu0
        %v1127 = vpop.f32.mrf.mxu0
        %v1128 = vadd.f32 %v927, %v1127
        %v1129 = vpop.f32.mrf.mxu0
        %1130 = vmatprep.mubr.bf16.mxu0 0
        %1131 = vmatmul.mubr.bf16.gmra.mxu0 %v973
        %v1132 = vpop.f32.mrf.mxu0
        %v1133 = vadd.f32 %v927, %v1132
        %v1134 = vpop.f32.mrf.mxu0
        %v1135 = vpop.f32.mrf.mxu0
        %v1136 = vadd.f32 %v927, %v1135
        %v1137 = vpop.f32.mrf.mxu0
        %1138 = vmatprep.mubr.bf16.mxu0 0
        %1139 = vmatmul.mubr.bf16.gmra.mxu0 %v976
        %v1140 = vpop.f32.mrf.mxu0
        %v1141 = vadd.f32 %v927, %v1140
        %v1142 = vpop.f32.mrf.mxu0
        %v1143 = vpop.f32.mrf.mxu0
        %v1144 = vadd.f32 %v927, %v1143
        %v1145 = vpop.f32.mrf.mxu0
        %1146 = vmatprep.mubr.bf16.mxu0 0
        %1147 = vmatmul.mubr.bf16.gmra.mxu0 %v979
        %v1148 = vpop.f32.mrf.mxu0
        %v1149 = vadd.f32 %v927, %v1148
        %v1150 = vpop.f32.mrf.mxu0
        %v1151 = vpop.f32.mrf.mxu0
        %v1152 = vadd.f32 %v927, %v1151
        %v1153 = vpop.f32.mrf.mxu0
        %1154 = vmatprep.mubr.bf16.mxu0 0
        %1155 = vmatmul.mubr.bf16.gmra.mxu0 %v982
        %v1156 = vpop.f32.mrf.mxu0
        %v1157 = vadd.f32 %v927, %v1156
        %v1158 = vpop.f32.mrf.mxu0
        %v1159 = vpop.f32.mrf.mxu0
        %v1160 = vadd.f32 %v927, %v1159
        %v1161 = vpop.f32.mrf.mxu0
        %1162 = vmatprep.mubr.bf16.mxu0 0
        %1163 = vmatmul.mubr.bf16.gmra.mxu0 %v985
        %v1164 = vpop.f32.mrf.mxu0
        %v1165 = vadd.f32 %v927, %v1164
        %v1166 = vpop.f32.mrf.mxu0
        %v1167 = vpop.f32.mrf.mxu0
        %v1168 = vadd.f32 %v927, %v1167
        %v1169 = vpop.f32.mrf.mxu0
        %1170 = vmatprep.mubr.bf16.mxu0 0
        %1171 = vmatmul.mubr.bf16.gmra.mxu0 %v988
        %v1172 = vpop.f32.mrf.mxu0
        %v1173 = vadd.f32 %v927, %v1172
        %v1174 = vpop.f32.mrf.mxu0
        %v1175 = vpop.f32.mrf.mxu0
        %v1176 = vadd.f32 %v927, %v1175
        %v1177 = vpop.f32.mrf.mxu0
        %1178 = vmatprep.mubr.bf16.mxu0 0
        %1179 = vmatmul.mubr.bf16.gmra.mxu0 %v991
        %v1180 = vpop.f32.mrf.mxu0
        %v1181 = vadd.f32 %v927, %v1180
        %v1182 = vpop.f32.mrf.mxu0
        %v1183 = vpop.f32.mrf.mxu0
        %v1184 = vadd.f32 %v927, %v1183
        %v1185 = vpop.f32.mrf.mxu0
        %1186 = vmatprep.mubr.bf16.mxu0 0
        %1187 = vmatmul.mubr.bf16.gmra.mxu0 %v994
        %v1188 = vpop.f32.mrf.mxu0
        %v1189 = vadd.f32 %v927, %v1188
        %v1190 = vpop.f32.mrf.mxu0
        %v1191 = vpop.f32.mrf.mxu0
        %v1192 = vadd.f32 %v927, %v1191
        %v1193 = vpop.f32.mrf.mxu0
        %1194 = vmatprep.mubr.bf16.mxu0 0
        %1195 = vmatmul.mubr.bf16.gmra.mxu0 %v997
        %v1196 = vpop.f32.mrf.mxu0
        %v1197 = vadd.f32 %v927, %v1196
        %v1198 = vpop.f32.mrf.mxu0
        %v1199 = vpop.f32.mrf.mxu0
        %v1200 = vadd.f32 %v927, %v1199
        %v1201 = vpop.f32.mrf.mxu0
        %1202 = vmatprep.mubr.bf16.mxu0 0
        %1203 = vmatmul.mubr.bf16.gmra.mxu0 %v1000
        %v1204 = vpop.f32.mrf.mxu0
        %v1205 = vadd.f32 %v927, %v1204
        %v1206 = vpop.f32.mrf.mxu0
        %v1207 = vpop.f32.mrf.mxu0
        %v1208 = vadd.f32 %v927, %v1207
        %v1209 = vpop.f32.mrf.mxu0
        %1210 = vmatprep.mubr.bf16.mxu0 0
        %1211 = vmatmul.mubr.bf16.gmra.mxu0 %v1003
        %v1212 = vpop.f32.mrf.mxu0
        %v1213 = vadd.f32 %v927, %v1212
        %v1214 = vpop.f32.mrf.mxu0
        %v1215 = vpop.f32.mrf.mxu0
        %v1216 = vadd.f32 %v927, %v1215
        %v1217 = vpop.f32.mrf.mxu0
        %1218 = vmatprep.mubr.bf16.mxu0 0
        %1219 = vmatmul.mubr.bf16.gmra.mxu0 %v1006
        %v1220 = vpop.f32.mrf.mxu0
        %v1221 = vadd.f32 %v927, %v1220
        %v1222 = vpop.f32.mrf.mxu0
        %v1223 = vpop.f32.mrf.mxu0
        %v1224 = vadd.f32 %v927, %v1223
        %v1225 = vpop.f32.mrf.mxu0
        %1226 = vmatprep.mubr.bf16.mxu0 0
        %1227 = vmatmul.mubr.bf16.gmra.mxu0 %v1009
        %v1228 = vpop.f32.mrf.mxu0
        %v1229 = vadd.f32 %v927, %v1228
        %v1230 = vpop.f32.mrf.mxu0
        %v1231 = vpop.f32.mrf.mxu0
        %v1232 = vadd.f32 %v927, %v1231
        %v1233 = vpop.f32.mrf.mxu0
        %1234 = vmatprep.mubr.bf16.mxu0 0
        %1235 = vmatmul.mubr.bf16.gmra.mxu0 %v1012
        %v1236 = vpop.f32.mrf.mxu0
        %v1237 = vadd.f32 %v927, %v1236
        %v1238 = vpop.f32.mrf.mxu0
        %v1239 = vpop.f32.mrf.mxu0
        %v1240 = vadd.f32 %v927, %v1239
        %v1241 = vpop.f32.mrf.mxu0
        %1242 = vmatprep.mubr.bf16.mxu0 0
        %1243 = vmatmul.mubr.bf16.gmra.mxu0 %v1015
        %v1244 = vpop.f32.mrf.mxu0
        %v1245 = vadd.f32 %v927, %v1244
        %v1246 = vpop.f32.mrf.mxu0
        %v1247 = vpop.f32.mrf.mxu0
        %v1248 = vadd.f32 %v927, %v1247
        %v1249 = vpop.f32.mrf.mxu0
        %1250 = vmatprep.mubr.bf16.mxu0 0
        %1251 = vmatmul.mubr.bf16.gmra.mxu0 %v1018
        %v1252 = vpop.f32.mrf.mxu0
        %v1253 = vadd.f32 %v927, %v1252
        %v1254 = vpop.f32.mrf.mxu0
        %v1255 = vpop.f32.mrf.mxu0
        %v1256 = vadd.f32 %v927, %v1255
        %v1257 = vpop.f32.mrf.mxu0
        %1258 = vmatprep.mubr.bf16.mxu0 0
        %1259 = vmatmul.mubr.bf16.gmra.mxu0 %v1021
        %v1260 = vpop.f32.mrf.mxu0
        %v1261 = vadd.f32 %v927, %v1260
        %v1262 = vpop.f32.mrf.mxu0
        %v1263 = vpop.f32.mrf.mxu0
        %v1264 = vadd.f32 %v927, %v1263
        %v1265 = vpop.f32.mrf.mxu0
        %1266 = vmatprep.mubr.bf16.mxu0 0
        %1267 = vmatmul.mubr.bf16.gmra.mxu0 %v1024
        %v1268 = vpop.f32.mrf.mxu0
        %v1269 = vadd.f32 %v927, %v1268
        %v1270 = vpop.f32.mrf.mxu0
        %v1271 = vpop.f32.mrf.mxu0
        %v1272 = vadd.f32 %v927, %v1271
        %v1273 = vpop.f32.mrf.mxu0
        %1274 = vmatprep.mubr.bf16.mxu0 0
        %1275 = vmatmul.mubr.bf16.gmra.mxu0 %v1027
        %v1276 = vpop.f32.mrf.mxu0
        %v1277 = vadd.f32 %v927, %v1276
        %v1278 = vpop.f32.mrf.mxu0
        %v1279 = vpop.f32.mrf.mxu0
        %v1280 = vadd.f32 %v927, %v1279
        %v1281 = vpop.f32.mrf.mxu0
        %1282 = vmatprep.mubr.bf16.mxu0 0
        %1283 = vmatmul.mubr.bf16.gmra.mxu0 %v1030
        %v1284 = vpop.f32.mrf.mxu0
        %v1285 = vadd.f32 %v927, %v1284
        %v1286 = vpop.f32.mrf.mxu0
        %v1287 = vpop.f32.mrf.mxu0
        %v1288 = vadd.f32 %v927, %v1287
        %v1289 = vpop.f32.mrf.mxu0
        %1290 = vmatprep.mubr.bf16.mxu0 0
        %1291 = vmatmul.mubr.bf16.gmra.mxu0 %v1033
        %v1292 = vpop.f32.mrf.mxu0
        %v1293 = vadd.f32 %v927, %v1292
        %v1294 = vpop.f32.mrf.mxu0
        %v1295 = vpop.f32.mrf.mxu0
        %v1296 = vadd.f32 %v927, %v1295
        %v1297 = vpop.f32.mrf.mxu0
        %1298 = vmatprep.mubr.bf16.mxu0 0
        %1299 = vmatmul.mubr.bf16.gmra.mxu0 %v1036
        %v1300 = vpop.f32.mrf.mxu0
        %v1301 = vadd.f32 %v927, %v1300
        %v1302 = vpop.f32.mrf.mxu0
        %v1303 = vpop.f32.mrf.mxu0
        %v1304 = vadd.f32 %v927, %v1303
        %v1305 = vpop.f32.mrf.mxu0
        %1306 = vmatprep.mubr.bf16.mxu0 0
        %1307 = vmatmul.mubr.bf16.gmra.mxu0 %v1039
        %v1308 = vpop.f32.mrf.mxu0
        %v1309 = vadd.f32 %v927, %v1308
        %v1310 = vpop.f32.mrf.mxu0
        %v1311 = vpop.f32.mrf.mxu0
        %v1312 = vadd.f32 %v927, %v1311
        %v1313 = vpop.f32.mrf.mxu0
        %1314 = vmatprep.mubr.bf16.mxu0 0
        %1315 = vmatmul.mubr.bf16.gmra.mxu0 %v1042
        %v1316 = vpop.f32.mrf.mxu0
        %v1317 = vadd.f32 %v927, %v1316
        %v1318 = vpop.f32.mrf.mxu0
        %v1319 = vpop.f32.mrf.mxu0
        %v1320 = vadd.f32 %v927, %v1319
        %v1321 = vpop.f32.mrf.mxu0
        %1322 = vmatprep.mubr.bf16.mxu0 0
        %1323 = vmatmul.mubr.bf16.gmra.mxu0 %v1045
        %v1324 = vpop.f32.mrf.mxu0
        %v1325 = vadd.f32 %v927, %v1324
        %v1326 = vpop.f32.mrf.mxu0
        %v1327 = vpop.f32.mrf.mxu0
        %v1328 = vadd.f32 %v927, %v1327
        %v1329 = vpop.f32.mrf.mxu0
        %1330 = vmatprep.mubr.bf16.mxu0 0
        %1331 = vmatmul.mubr.bf16.gmra.mxu0 %v1048
        %v1332 = vpop.f32.mrf.mxu0
        %v1333 = vadd.f32 %v927, %v1332
        %v1334 = vpop.f32.mrf.mxu0
        %v1335 = vpop.f32.mrf.mxu0
        %v1336 = vadd.f32 %v927, %v1335
        %v1337 = vpop.f32.mrf.mxu0
        %1338 = vdwg.mxu0
        %v1339 = vmax.f32 %v1085, 0.0
        %v1340 = vmax.f32 %v1088, 0.0
        %v1341 = vmax.f32 %v1093, 0.0
        %v1342 = vmax.f32 %v1096, 0.0
        %v1343 = vmax.f32 %v1101, 0.0
        %v1344 = vmax.f32 %v1104, 0.0
        %v1345 = vmax.f32 %v1109, 0.0
        %v1346 = vmax.f32 %v1112, 0.0
        %v1347 = vmax.f32 %v1117, 0.0
        %v1348 = vmax.f32 %v1120, 0.0
        %v1349 = vmax.f32 %v1125, 0.0
        %v1350 = vmax.f32 %v1128, 0.0
        %v1351 = vmax.f32 %v1133, 0.0
        %v1352 = vmax.f32 %v1136, 0.0
        %v1353 = vmax.f32 %v1141, 0.0
        %v1354 = vmax.f32 %v1144, 0.0
        %v1355 = vmax.f32 %v1149, 0.0
        %v1356 = vmax.f32 %v1152, 0.0
        %v1357 = vmax.f32 %v1157, 0.0
        %v1358 = vmax.f32 %v1160, 0.0
        %v1359 = vmax.f32 %v1165, 0.0
        %v1360 = vmax.f32 %v1168, 0.0
        %v1361 = vmax.f32 %v1173, 0.0
        %v1362 = vmax.f32 %v1176, 0.0
        %v1363 = vmax.f32 %v1181, 0.0
        %v1364 = vmax.f32 %v1184, 0.0
        %v1365 = vmax.f32 %v1189, 0.0
        %v1366 = vmax.f32 %v1192, 0.0
        %v1367 = vmax.f32 %v1197, 0.0
        %v1368 = vmax.f32 %v1200, 0.0
        %v1369 = vmax.f32 %v1205, 0.0
        %v1370 = vmax.f32 %v1208, 0.0
        %v1371 = vmax.f32 %v1213, 0.0
        %v1372 = vmax.f32 %v1216, 0.0
        %v1373 = vmax.f32 %v1221, 0.0
        %v1374 = vmax.f32 %v1224, 0.0
        %v1375 = vmax.f32 %v1229, 0.0
        %v1376 = vmax.f32 %v1232, 0.0
        %v1377 = vmax.f32 %v1237, 0.0
        %v1378 = vmax.f32 %v1240, 0.0
        %v1379 = vmax.f32 %v1245, 0.0
        %v1380 = vmax.f32 %v1248, 0.0
        %v1381 = vmax.f32 %v1253, 0.0
        %v1382 = vmax.f32 %v1256, 0.0
        %v1383 = vmax.f32 %v1261, 0.0
        %v1384 = vmax.f32 %v1264, 0.0
        %v1385 = vmax.f32 %v1269, 0.0
        %v1386 = vmax.f32 %v1272, 0.0
        %v1387 = vmax.f32 %v1277, 0.0
        %v1388 = vmax.f32 %v1280, 0.0
        %v1389 = vmax.f32 %v1285, 0.0
        %v1390 = vmax.f32 %v1288, 0.0
        %v1391 = vmax.f32 %v1293, 0.0
        %v1392 = vmax.f32 %v1296, 0.0
        %v1393 = vmax.f32 %v1301, 0.0
        %v1394 = vmax.f32 %v1304, 0.0
        %v1395 = vmax.f32 %v1309, 0.0
        %v1396 = vmax.f32 %v1312, 0.0
        %v1397 = vmax.f32 %v1317, 0.0
        %v1398 = vmax.f32 %v1320, 0.0
        %v1399 = vmax.f32 %v1325, 0.0
        %v1400 = vmax.f32 %v1328, 0.0
        %v1401 = vmax.f32 %v1333, 0.0
        %v1402 = vmax.f32 %v1336, 0.0
        %v1403 = vpack.c.bf16 %v1340, %v1339
        %v1404 = vpack.c.bf16 %v1342, %v1341
        %v1405 = vpack.c.bf16 %v1344, %v1343
        %v1406 = vpack.c.bf16 %v1346, %v1345
        %v1407 = vpack.c.bf16 %v1348, %v1347
        %v1408 = vpack.c.bf16 %v1350, %v1349
        %v1409 = vpack.c.bf16 %v1352, %v1351
        %v1410 = vpack.c.bf16 %v1354, %v1353
        %v1411 = vpack.c.bf16 %v1356, %v1355
        %v1412 = vpack.c.bf16 %v1358, %v1357
        %v1413 = vpack.c.bf16 %v1360, %v1359
        %v1414 = vpack.c.bf16 %v1362, %v1361
        %v1415 = vpack.c.bf16 %v1364, %v1363
        %v1416 = vpack.c.bf16 %v1366, %v1365
        %v1417 = vpack.c.bf16 %v1368, %v1367
        %v1418 = vpack.c.bf16 %v1370, %v1369
        %v1419 = vpack.c.bf16 %v1372, %v1371
        %v1420 = vpack.c.bf16 %v1374, %v1373
        %v1421 = vpack.c.bf16 %v1376, %v1375
        %v1422 = vpack.c.bf16 %v1378, %v1377
        %v1423 = vpack.c.bf16 %v1380, %v1379
        %v1424 = vpack.c.bf16 %v1382, %v1381
        %v1425 = vpack.c.bf16 %v1384, %v1383
        %v1426 = vpack.c.bf16 %v1386, %v1385
        %v1427 = vpack.c.bf16 %v1388, %v1387
        %v1428 = vpack.c.bf16 %v1390, %v1389
        %v1429 = vpack.c.bf16 %v1392, %v1391
        %v1430 = vpack.c.bf16 %v1394, %v1393
        %v1431 = vpack.c.bf16 %v1396, %v1395
        %v1432 = vpack.c.bf16 %v1398, %v1397
        %v1433 = vpack.c.bf16 %v1400, %v1399
        %v1434 = vpack.c.bf16 %v1402, %v1401
        %v1435 = vld [vmem:[%s8] sm:$0xf]
        %v1436 = vld [vmem:[%s8 + $0x4] sm:$0xf]
        %v1437 = vld [vmem:[%s8 + $0x8] sm:$0xf]
        %v1438 = vld [vmem:[%s8 + $0xc] sm:$0xf]
        %v1439 = vld [vmem:[%s8 + $0x10] sm:$0xf]
        %v1440 = vld [vmem:[%s8 + $0x14] sm:$0xf]
        %v1441 = vld [vmem:[%s8 + $0x18] sm:$0xf]
        %v1442 = vld [vmem:[%s8 + $0x1c] sm:$0xf]
        %v1443 = vld [vmem:[#allocation6] sm:$0x1]
        %v1445 = vlaneseq
        %v1446 = vshrl.u32 %v1445, 7
        %v1447 = vsub.s32 0, %v1446
        %v1448 = vrot.slane %v1443, %v1447
        %v1458 = vunpack.c.l.b16 %v1435
        %v1459 = vunpack.c.l.b16 %v1436
        %v1460 = vunpack.c.l.b16 %v1437
        %v1461 = vunpack.c.l.b16 %v1438
        %v1462 = vunpack.c.l.b16 %v1439
        %v1463 = vunpack.c.l.b16 %v1440
        %v1464 = vunpack.c.l.b16 %v1441
        %v1465 = vunpack.c.l.b16 %v1442
        %v1466 = vpack.c.b16 %v1459, %v1458
        %v1467 = vpack.c.b16 %v1461, %v1460
        %v1468 = vpack.c.b16 %v1463, %v1462
        %v1469 = vpack.c.b16 %v1465, %v1464
        %v1475 = vsel %vm953, %v1403, 0
        %v1478 = vsel %vm953, %v1404, 0
        %v1481 = vsel %vm953, %v1405, 0
        %v1484 = vsel %vm953, %v1406, 0
        %v1487 = vsel %vm953, %v1407, 0
        %v1490 = vsel %vm953, %v1408, 0
        %v1493 = vsel %vm953, %v1409, 0
        %v1496 = vsel %vm953, %v1410, 0
        %v1499 = vsel %vm953, %v1411, 0
        %v1502 = vsel %vm953, %v1412, 0
        %v1505 = vsel %vm953, %v1413, 0
        %v1508 = vsel %vm953, %v1414, 0
        %v1511 = vsel %vm953, %v1415, 0
        %v1514 = vsel %vm953, %v1416, 0
        %v1517 = vsel %vm953, %v1417, 0
        %v1520 = vsel %vm953, %v1418, 0
        %v1523 = vsel %vm953, %v1419, 0
        %v1526 = vsel %vm953, %v1420, 0
        %v1529 = vsel %vm953, %v1421, 0
        %v1532 = vsel %vm953, %v1422, 0
        %v1535 = vsel %vm953, %v1423, 0
        %v1538 = vsel %vm953, %v1424, 0
        %v1541 = vsel %vm953, %v1425, 0
        %v1544 = vsel %vm953, %v1426, 0
        %v1547 = vsel %vm953, %v1427, 0
        %v1550 = vsel %vm953, %v1428, 0
        %v1553 = vsel %vm953, %v1429, 0
        %v1556 = vsel %vm953, %v1430, 0
        %v1559 = vsel %vm953, %v1431, 0
        %v1562 = vsel %vm953, %v1432, 0
        %v1565 = vsel %vm953, %v1433, 0
        %v1568 = vsel %vm953, %v1434, 0
        %1570 = vmatprep.subr.bf16.mxu0 0
        %1571 = vmatpush1.bf16.msra.mxu0 0
        %1572 = vmatprep.subr.bf16.mxu0 0
        %1573 = vmatpush1.bf16.msra.mxu0 0
        %1574 = vmatprep.subr.bf16.mxu0 0
        %1575 = vmatpush1.bf16.msra.mxu0 0
        %1576 = vmatprep.subr.bf16.mxu0 0
        %1577 = vmatpush1.bf16.msra.mxu0 0
        %1578 = vmatprep.subr.bf16.mxu0 0
        %1579 = vmatpush1.bf16.msra.mxu0 %v1469
        %1580 = vmatprep.subr.bf16.mxu0 0
        %1581 = vmatpush1.bf16.msra.mxu0 %v1468
        %1582 = vmatprep.subr.bf16.mxu0 0
        %1583 = vmatpush1.bf16.msra.mxu0 %v1467
        %1584 = vmatprep.subr.bf16.mxu0 0
        %1585 = vmatpush1.bf16.msra.mxu0 %v1466
        %1586 = vmatprep.subr.bf16.mxu0 0
        %1587 = vmatpush2.bf16.msra.mxu0 0
        %1588 = vmatprep.subr.bf16.mxu0 0
        %1589 = vmatpush2.bf16.msra.mxu0 0
        %1590 = vmatprep.subr.bf16.mxu0 0
        %1591 = vmatpush2.bf16.msra.mxu0 0
        %1592 = vmatprep.subr.bf16.mxu0 0
        %1593 = vmatpush2.bf16.msra.mxu0 0
        %1594 = vmatprep.subr.bf16.mxu0 0
        %1595 = vmatpush2.bf16.msra.mxu0 0
        %1596 = vmatprep.subr.bf16.mxu0 0
        %1597 = vmatpush2.bf16.msra.mxu0 0
        %1598 = vmatprep.subr.bf16.mxu0 0
        %1599 = vmatpush2.bf16.msra.mxu0 0
        %1600 = vmatprep.subr.bf16.mxu0 0
        %1601 = vmatpush2.bf16.msra.mxu0 0
        %1602 = vmatprep.mubr.bf16.mxu0 0
        %1603 = vmatmul.mubr.bf16.gmra.mxu0 %v1475
        %v1604 = vpop.f32.mrf.mxu0
        %v1605 = vadd.f32 %v1448, %v1604
        %v1606 = vpop.f32.mrf.mxu0
        %v1607 = vpop.f32.mrf.mxu0
        %v1608 = vadd.f32 %v1448, %v1607
        %v1609 = vpop.f32.mrf.mxu0
        %1610 = vmatprep.mubr.bf16.mxu0 0
        %1611 = vmatmul.mubr.bf16.gmra.mxu0 %v1478
        %v1612 = vpop.f32.mrf.mxu0
        %v1613 = vadd.f32 %v1448, %v1612
        %v1614 = vpop.f32.mrf.mxu0
        %v1615 = vpop.f32.mrf.mxu0
        %v1616 = vadd.f32 %v1448, %v1615
        %v1617 = vpop.f32.mrf.mxu0
        %1618 = vmatprep.mubr.bf16.mxu0 0
        %1619 = vmatmul.mubr.bf16.gmra.mxu0 %v1481
        %v1620 = vpop.f32.mrf.mxu0
        %v1621 = vadd.f32 %v1448, %v1620
        %v1622 = vpop.f32.mrf.mxu0
        %v1623 = vpop.f32.mrf.mxu0
        %v1624 = vadd.f32 %v1448, %v1623
        %v1625 = vpop.f32.mrf.mxu0
        %1626 = vmatprep.mubr.bf16.mxu0 0
        %1627 = vmatmul.mubr.bf16.gmra.mxu0 %v1484
        %v1628 = vpop.f32.mrf.mxu0
        %v1629 = vadd.f32 %v1448, %v1628
        %v1630 = vpop.f32.mrf.mxu0
        %v1631 = vpop.f32.mrf.mxu0
        %v1632 = vadd.f32 %v1448, %v1631
        %v1633 = vpop.f32.mrf.mxu0
        %1634 = vmatprep.mubr.bf16.mxu0 0
        %1635 = vmatmul.mubr.bf16.gmra.mxu0 %v1487
        %v1636 = vpop.f32.mrf.mxu0
        %v1637 = vadd.f32 %v1448, %v1636
        %v1638 = vpop.f32.mrf.mxu0
        %v1639 = vpop.f32.mrf.mxu0
        %v1640 = vadd.f32 %v1448, %v1639
        %v1641 = vpop.f32.mrf.mxu0
        %1642 = vmatprep.mubr.bf16.mxu0 0
        %1643 = vmatmul.mubr.bf16.gmra.mxu0 %v1490
        %v1644 = vpop.f32.mrf.mxu0
        %v1645 = vadd.f32 %v1448, %v1644
        %v1646 = vpop.f32.mrf.mxu0
        %v1647 = vpop.f32.mrf.mxu0
        %v1648 = vadd.f32 %v1448, %v1647
        %v1649 = vpop.f32.mrf.mxu0
        %1650 = vmatprep.mubr.bf16.mxu0 0
        %1651 = vmatmul.mubr.bf16.gmra.mxu0 %v1493
        %v1652 = vpop.f32.mrf.mxu0
        %v1653 = vadd.f32 %v1448, %v1652
        %v1654 = vpop.f32.mrf.mxu0
        %v1655 = vpop.f32.mrf.mxu0
        %v1656 = vadd.f32 %v1448, %v1655
        %v1657 = vpop.f32.mrf.mxu0
        %1658 = vmatprep.mubr.bf16.mxu0 0
        %1659 = vmatmul.mubr.bf16.gmra.mxu0 %v1496
        %v1660 = vpop.f32.mrf.mxu0
        %v1661 = vadd.f32 %v1448, %v1660
        %v1662 = vpop.f32.mrf.mxu0
        %v1663 = vpop.f32.mrf.mxu0
        %v1664 = vadd.f32 %v1448, %v1663
        %v1665 = vpop.f32.mrf.mxu0
        %1666 = vmatprep.mubr.bf16.mxu0 0
        %1667 = vmatmul.mubr.bf16.gmra.mxu0 %v1499
        %v1668 = vpop.f32.mrf.mxu0
        %v1669 = vadd.f32 %v1448, %v1668
        %v1670 = vpop.f32.mrf.mxu0
        %v1671 = vpop.f32.mrf.mxu0
        %v1672 = vadd.f32 %v1448, %v1671
        %v1673 = vpop.f32.mrf.mxu0
        %1674 = vmatprep.mubr.bf16.mxu0 0
        %1675 = vmatmul.mubr.bf16.gmra.mxu0 %v1502
        %v1676 = vpop.f32.mrf.mxu0
        %v1677 = vadd.f32 %v1448, %v1676
        %v1678 = vpop.f32.mrf.mxu0
        %v1679 = vpop.f32.mrf.mxu0
        %v1680 = vadd.f32 %v1448, %v1679
        %v1681 = vpop.f32.mrf.mxu0
        %1682 = vmatprep.mubr.bf16.mxu0 0
        %1683 = vmatmul.mubr.bf16.gmra.mxu0 %v1505
        %v1684 = vpop.f32.mrf.mxu0
        %v1685 = vadd.f32 %v1448, %v1684
        %v1686 = vpop.f32.mrf.mxu0
        %v1687 = vpop.f32.mrf.mxu0
        %v1688 = vadd.f32 %v1448, %v1687
        %v1689 = vpop.f32.mrf.mxu0
        %1690 = vmatprep.mubr.bf16.mxu0 0
        %1691 = vmatmul.mubr.bf16.gmra.mxu0 %v1508
        %v1692 = vpop.f32.mrf.mxu0
        %v1693 = vadd.f32 %v1448, %v1692
        %v1694 = vpop.f32.mrf.mxu0
        %v1695 = vpop.f32.mrf.mxu0
        %v1696 = vadd.f32 %v1448, %v1695
        %v1697 = vpop.f32.mrf.mxu0
        %1698 = vmatprep.mubr.bf16.mxu0 0
        %1699 = vmatmul.mubr.bf16.gmra.mxu0 %v1511
        %v1700 = vpop.f32.mrf.mxu0
        %v1701 = vadd.f32 %v1448, %v1700
        %v1702 = vpop.f32.mrf.mxu0
        %v1703 = vpop.f32.mrf.mxu0
        %v1704 = vadd.f32 %v1448, %v1703
        %v1705 = vpop.f32.mrf.mxu0
        %1706 = vmatprep.mubr.bf16.mxu0 0
        %1707 = vmatmul.mubr.bf16.gmra.mxu0 %v1514
        %v1708 = vpop.f32.mrf.mxu0
        %v1709 = vadd.f32 %v1448, %v1708
        %v1710 = vpop.f32.mrf.mxu0
        %v1711 = vpop.f32.mrf.mxu0
        %v1712 = vadd.f32 %v1448, %v1711
        %v1713 = vpop.f32.mrf.mxu0
        %1714 = vmatprep.mubr.bf16.mxu0 0
        %1715 = vmatmul.mubr.bf16.gmra.mxu0 %v1517
        %v1716 = vpop.f32.mrf.mxu0
        %v1717 = vadd.f32 %v1448, %v1716
        %v1718 = vpop.f32.mrf.mxu0
        %v1719 = vpop.f32.mrf.mxu0
        %v1720 = vadd.f32 %v1448, %v1719
        %v1721 = vpop.f32.mrf.mxu0
        %1722 = vmatprep.mubr.bf16.mxu0 0
        %1723 = vmatmul.mubr.bf16.gmra.mxu0 %v1520
        %v1724 = vpop.f32.mrf.mxu0
        %v1725 = vadd.f32 %v1448, %v1724
        %v1726 = vpop.f32.mrf.mxu0
        %v1727 = vpop.f32.mrf.mxu0
        %v1728 = vadd.f32 %v1448, %v1727
        %v1729 = vpop.f32.mrf.mxu0
        %1730 = vmatprep.mubr.bf16.mxu0 0
        %1731 = vmatmul.mubr.bf16.gmra.mxu0 %v1523
        %v1732 = vpop.f32.mrf.mxu0
        %v1733 = vadd.f32 %v1448, %v1732
        %v1734 = vpop.f32.mrf.mxu0
        %v1735 = vpop.f32.mrf.mxu0
        %v1736 = vadd.f32 %v1448, %v1735
        %v1737 = vpop.f32.mrf.mxu0
        %1738 = vmatprep.mubr.bf16.mxu0 0
        %1739 = vmatmul.mubr.bf16.gmra.mxu0 %v1526
        %v1740 = vpop.f32.mrf.mxu0
        %v1741 = vadd.f32 %v1448, %v1740
        %v1742 = vpop.f32.mrf.mxu0
        %v1743 = vpop.f32.mrf.mxu0
        %v1744 = vadd.f32 %v1448, %v1743
        %v1745 = vpop.f32.mrf.mxu0
        %1746 = vmatprep.mubr.bf16.mxu0 0
        %1747 = vmatmul.mubr.bf16.gmra.mxu0 %v1529
        %v1748 = vpop.f32.mrf.mxu0
        %v1749 = vadd.f32 %v1448, %v1748
        %v1750 = vpop.f32.mrf.mxu0
        %v1751 = vpop.f32.mrf.mxu0
        %v1752 = vadd.f32 %v1448, %v1751
        %v1753 = vpop.f32.mrf.mxu0
        %1754 = vmatprep.mubr.bf16.mxu0 0
        %1755 = vmatmul.mubr.bf16.gmra.mxu0 %v1532
        %v1756 = vpop.f32.mrf.mxu0
        %v1757 = vadd.f32 %v1448, %v1756
        %v1758 = vpop.f32.mrf.mxu0
        %v1759 = vpop.f32.mrf.mxu0
        %v1760 = vadd.f32 %v1448, %v1759
        %v1761 = vpop.f32.mrf.mxu0
        %1762 = vmatprep.mubr.bf16.mxu0 0
        %1763 = vmatmul.mubr.bf16.gmra.mxu0 %v1535
        %v1764 = vpop.f32.mrf.mxu0
        %v1765 = vadd.f32 %v1448, %v1764
        %v1766 = vpop.f32.mrf.mxu0
        %v1767 = vpop.f32.mrf.mxu0
        %v1768 = vadd.f32 %v1448, %v1767
        %v1769 = vpop.f32.mrf.mxu0
        %1770 = vmatprep.mubr.bf16.mxu0 0
        %1771 = vmatmul.mubr.bf16.gmra.mxu0 %v1538
        %v1772 = vpop.f32.mrf.mxu0
        %v1773 = vadd.f32 %v1448, %v1772
        %v1774 = vpop.f32.mrf.mxu0
        %v1775 = vpop.f32.mrf.mxu0
        %v1776 = vadd.f32 %v1448, %v1775
        %v1777 = vpop.f32.mrf.mxu0
        %1778 = vmatprep.mubr.bf16.mxu0 0
        %1779 = vmatmul.mubr.bf16.gmra.mxu0 %v1541
        %v1780 = vpop.f32.mrf.mxu0
        %v1781 = vadd.f32 %v1448, %v1780
        %v1782 = vpop.f32.mrf.mxu0
        %v1783 = vpop.f32.mrf.mxu0
        %v1784 = vadd.f32 %v1448, %v1783
        %v1785 = vpop.f32.mrf.mxu0
        %1786 = vmatprep.mubr.bf16.mxu0 0
        %1787 = vmatmul.mubr.bf16.gmra.mxu0 %v1544
        %v1788 = vpop.f32.mrf.mxu0
        %v1789 = vadd.f32 %v1448, %v1788
        %v1790 = vpop.f32.mrf.mxu0
        %v1791 = vpop.f32.mrf.mxu0
        %v1792 = vadd.f32 %v1448, %v1791
        %v1793 = vpop.f32.mrf.mxu0
        %1794 = vmatprep.mubr.bf16.mxu0 0
        %1795 = vmatmul.mubr.bf16.gmra.mxu0 %v1547
        %v1796 = vpop.f32.mrf.mxu0
        %v1797 = vadd.f32 %v1448, %v1796
        %v1798 = vpop.f32.mrf.mxu0
        %v1799 = vpop.f32.mrf.mxu0
        %v1800 = vadd.f32 %v1448, %v1799
        %v1801 = vpop.f32.mrf.mxu0
        %1802 = vmatprep.mubr.bf16.mxu0 0
        %1803 = vmatmul.mubr.bf16.gmra.mxu0 %v1550
        %v1804 = vpop.f32.mrf.mxu0
        %v1805 = vadd.f32 %v1448, %v1804
        %v1806 = vpop.f32.mrf.mxu0
        %v1807 = vpop.f32.mrf.mxu0
        %v1808 = vadd.f32 %v1448, %v1807
        %v1809 = vpop.f32.mrf.mxu0
        %1810 = vmatprep.mubr.bf16.mxu0 0
        %1811 = vmatmul.mubr.bf16.gmra.mxu0 %v1553
        %v1812 = vpop.f32.mrf.mxu0
        %v1813 = vadd.f32 %v1448, %v1812
        %v1814 = vpop.f32.mrf.mxu0
        %v1815 = vpop.f32.mrf.mxu0
        %v1816 = vadd.f32 %v1448, %v1815
        %v1817 = vpop.f32.mrf.mxu0
        %1818 = vmatprep.mubr.bf16.mxu0 0
        %1819 = vmatmul.mubr.bf16.gmra.mxu0 %v1556
        %v1820 = vpop.f32.mrf.mxu0
        %v1821 = vadd.f32 %v1448, %v1820
        %v1822 = vpop.f32.mrf.mxu0
        %v1823 = vpop.f32.mrf.mxu0
        %v1824 = vadd.f32 %v1448, %v1823
        %v1825 = vpop.f32.mrf.mxu0
        %1826 = vmatprep.mubr.bf16.mxu0 0
        %1827 = vmatmul.mubr.bf16.gmra.mxu0 %v1559
        %v1828 = vpop.f32.mrf.mxu0
        %v1829 = vadd.f32 %v1448, %v1828
        %v1830 = vpop.f32.mrf.mxu0
        %v1831 = vpop.f32.mrf.mxu0
        %v1832 = vadd.f32 %v1448, %v1831
        %v1833 = vpop.f32.mrf.mxu0
        %1834 = vmatprep.mubr.bf16.mxu0 0
        %1835 = vmatmul.mubr.bf16.gmra.mxu0 %v1562
        %v1836 = vpop.f32.mrf.mxu0
        %v1837 = vadd.f32 %v1448, %v1836
        %v1838 = vpop.f32.mrf.mxu0
        %v1839 = vpop.f32.mrf.mxu0
        %v1840 = vadd.f32 %v1448, %v1839
        %v1841 = vpop.f32.mrf.mxu0
        %1842 = vmatprep.mubr.bf16.mxu0 0
        %1843 = vmatmul.mubr.bf16.gmra.mxu0 %v1565
        %v1844 = vpop.f32.mrf.mxu0
        %v1845 = vadd.f32 %v1448, %v1844
        %v1846 = vpop.f32.mrf.mxu0
        %v1847 = vpop.f32.mrf.mxu0
        %v1848 = vadd.f32 %v1448, %v1847
        %v1849 = vpop.f32.mrf.mxu0
        %1850 = vmatprep.mubr.bf16.mxu0 0
        %1851 = vmatmul.mubr.bf16.gmra.mxu0 %v1568
        %v1852 = vpop.f32.mrf.mxu0
        %v1853 = vadd.f32 %v1448, %v1852
        %v1854 = vpop.f32.mrf.mxu0
        %v1855 = vpop.f32.mrf.mxu0
        %v1856 = vadd.f32 %v1448, %v1855
        %v1857 = vpop.f32.mrf.mxu0
        %1858 = vdwg.mxu0
        %v1859 = vld [vmem:[%s427] sm:$0xff]
        %v1860 = vld [vmem:[%s427 + $0x8] sm:$0xff]
        %v1861 = vld [vmem:[%s427 + $0x10] sm:$0xff]
        %v1862 = vld [vmem:[%s427 + $0x18] sm:$0xff]
        %v1863 = vcombine.high %v521, %v521
        %v1865 = vunpack.c.l.s4 1966171168
        %v1866 = vunpack.c.0.s8 %v1865
        %v1867 = vlaneseq
        %v1868 = vshrl.u32 %v1867, 7
        %v1869 = vsub.s32 %v1866, %v1868
        %v1870 = vrot.slane %v521, %v1869
        %v1872 = vunpack.c.l.s4 1966171168
        %v1873 = vunpack.c.0.s8 %v1872
        %v1874 = vlaneseq
        %v1875 = vshrl.u32 %v1874, 7
        %v1876 = vsub.s32 %v1873, %v1875
        %v1877 = vrot.slane %v1863, %v1876
        %v1878 = vcombine.high %v1870, %v1870
        %v1879 = vcombine.high %v1877, %v1877
        %v1881 = vunpack.c.l.s4 1966171168
        %v1882 = vunpack.c.0.s8 %v1881
        %v1883 = vlaneseq
        %v1884 = vshrl.u32 %v1883, 7
        %v1885 = vsub.s32 %v1882, %v1884
        %v1886 = vrot.slane %v1870, %v1885
        %v1888 = vunpack.c.l.s4 1966171168
        %v1889 = vunpack.c.0.s8 %v1888
        %v1890 = vlaneseq
        %v1891 = vshrl.u32 %v1890, 7
        %v1892 = vsub.s32 %v1889, %v1891
        %v1893 = vrot.slane %v1877, %v1892
        %v1895 = vunpack.c.l.s4 1966171168
        %v1896 = vunpack.c.0.s8 %v1895
        %v1897 = vlaneseq
        %v1898 = vshrl.u32 %v1897, 7
        %v1899 = vsub.s32 %v1896, %v1898
        %v1900 = vrot.slane %v1878, %v1899
        %v1902 = vunpack.c.l.s4 1966171168
        %v1903 = vunpack.c.0.s8 %v1902
        %v1904 = vlaneseq
        %v1905 = vshrl.u32 %v1904, 7
        %v1906 = vsub.s32 %v1903, %v1905
        %v1907 = vrot.slane %v1879, %v1906
        %v1908 = vcombine.high %v1886, %v1886
        %v1909 = vcombine.high %v1893, %v1893
        %v1910 = vcombine.high %v1900, %v1900
        %v1911 = vcombine.high %v1907, %v1907
        %v1912 = vcombine.high %v522, %v522
        %v1914 = vunpack.c.l.s4 1966171168
        %v1915 = vunpack.c.0.s8 %v1914
        %v1916 = vlaneseq
        %v1917 = vshrl.u32 %v1916, 7
        %v1918 = vsub.s32 %v1915, %v1917
        %v1919 = vrot.slane %v522, %v1918
        %v1921 = vunpack.c.l.s4 1966171168
        %v1922 = vunpack.c.0.s8 %v1921
        %v1923 = vlaneseq
        %v1924 = vshrl.u32 %v1923, 7
        %v1925 = vsub.s32 %v1922, %v1924
        %v1926 = vrot.slane %v1912, %v1925
        %v1927 = vcombine.high %v1919, %v1919
        %v1928 = vcombine.high %v1926, %v1926
        %v1930 = vunpack.c.l.s4 1966171168
        %v1931 = vunpack.c.0.s8 %v1930
        %v1932 = vlaneseq
        %v1933 = vshrl.u32 %v1932, 7
        %v1934 = vsub.s32 %v1931, %v1933
        %v1935 = vrot.slane %v1919, %v1934
        %v1937 = vunpack.c.l.s4 1966171168
        %v1938 = vunpack.c.0.s8 %v1937
        %v1939 = vlaneseq
        %v1940 = vshrl.u32 %v1939, 7
        %v1941 = vsub.s32 %v1938, %v1940
        %v1942 = vrot.slane %v1926, %v1941
        %v1944 = vunpack.c.l.s4 1966171168
        %v1945 = vunpack.c.0.s8 %v1944
        %v1946 = vlaneseq
        %v1947 = vshrl.u32 %v1946, 7
        %v1948 = vsub.s32 %v1945, %v1947
        %v1949 = vrot.slane %v1927, %v1948
        %v1951 = vunpack.c.l.s4 1966171168
        %v1952 = vunpack.c.0.s8 %v1951
        %v1953 = vlaneseq
        %v1954 = vshrl.u32 %v1953, 7
        %v1955 = vsub.s32 %v1952, %v1954
        %v1956 = vrot.slane %v1928, %v1955
        %v1957 = vcombine.high %v1935, %v1935
        %v1958 = vcombine.high %v1942, %v1942
        %v1959 = vcombine.high %v1949, %v1949
        %v1960 = vcombine.high %v1956, %v1956
        %v1961 = vlaneseq
        %v1962 = vshrl.u32 %v1961, 7
        %v1963 = vsub.s32 0, %v1962
        %v1964 = vrot.slane %v1886, %v1963
        %v1965 = vlaneseq
        %v1966 = vshrl.u32 %v1965, 7
        %v1967 = vsub.s32 0, %v1966
        %v1968 = vrot.slane %v1900, %v1967
        %v1969 = vlaneseq
        %v1970 = vshrl.u32 %v1969, 7
        %v1971 = vsub.s32 0, %v1970
        %v1972 = vrot.slane %v1908, %v1971
        %v1973 = vlaneseq
        %v1974 = vshrl.u32 %v1973, 7
        %v1975 = vsub.s32 0, %v1974
        %v1976 = vrot.slane %v1910, %v1975
        %v1977 = vlaneseq
        %v1978 = vshrl.u32 %v1977, 7
        %v1979 = vsub.s32 0, %v1978
        %v1980 = vrot.slane %v1893, %v1979
        %v1981 = vlaneseq
        %v1982 = vshrl.u32 %v1981, 7
        %v1983 = vsub.s32 0, %v1982
        %v1984 = vrot.slane %v1907, %v1983
        %v1985 = vlaneseq
        %v1986 = vshrl.u32 %v1985, 7
        %v1987 = vsub.s32 0, %v1986
        %v1988 = vrot.slane %v1909, %v1987
        %v1989 = vlaneseq
        %v1990 = vshrl.u32 %v1989, 7
        %v1991 = vsub.s32 0, %v1990
        %v1992 = vrot.slane %v1911, %v1991
        %v1993 = vlaneseq
        %v1994 = vshrl.u32 %v1993, 7
        %v1995 = vsub.s32 0, %v1994
        %v1996 = vrot.slane %v1935, %v1995
        %v1997 = vlaneseq
        %v1998 = vshrl.u32 %v1997, 7
        %v1999 = vsub.s32 0, %v1998
        %v2000 = vrot.slane %v1949, %v1999
        %v2001 = vlaneseq
        %v2002 = vshrl.u32 %v2001, 7
        %v2003 = vsub.s32 0, %v2002
        %v2004 = vrot.slane %v1957, %v2003
        %v2005 = vlaneseq
        %v2006 = vshrl.u32 %v2005, 7
        %v2007 = vsub.s32 0, %v2006
        %v2008 = vrot.slane %v1959, %v2007
        %v2009 = vlaneseq
        %v2010 = vshrl.u32 %v2009, 7
        %v2011 = vsub.s32 0, %v2010
        %v2012 = vrot.slane %v1942, %v2011
        %v2013 = vlaneseq
        %v2014 = vshrl.u32 %v2013, 7
        %v2015 = vsub.s32 0, %v2014
        %v2016 = vrot.slane %v1956, %v2015
        %v2017 = vlaneseq
        %v2018 = vshrl.u32 %v2017, 7
        %v2019 = vsub.s32 0, %v2018
        %v2020 = vrot.slane %v1958, %v2019
        %v2021 = vlaneseq
        %v2022 = vshrl.u32 %v2021, 7
        %v2023 = vsub.s32 0, %v2022
        %v2024 = vrot.slane %v1960, %v2023
        %v2041 = vsub.f32 %v1964, %v1859
        %v2042 = vsub.f32 %v1964, %v1860
        %v2043 = vsub.f32 %v1964, %v1861
        %v2044 = vsub.f32 %v1964, %v1862
        %v2045 = vsub.f32 %v1968, %v1859
        %v2046 = vsub.f32 %v1968, %v1860
        %v2047 = vsub.f32 %v1968, %v1861
        %v2048 = vsub.f32 %v1968, %v1862
        %v2049 = vsub.f32 %v1972, %v1859
        %v2050 = vsub.f32 %v1972, %v1860
        %v2051 = vsub.f32 %v1972, %v1861
        %v2052 = vsub.f32 %v1972, %v1862
        %v2053 = vsub.f32 %v1976, %v1859
        %v2054 = vsub.f32 %v1976, %v1860
        %v2055 = vsub.f32 %v1976, %v1861
        %v2056 = vsub.f32 %v1976, %v1862
        %v2057 = vsub.f32 %v1980, %v1859
        %v2058 = vsub.f32 %v1980, %v1860
        %v2059 = vsub.f32 %v1980, %v1861
        %v2060 = vsub.f32 %v1980, %v1862
        %v2061 = vsub.f32 %v1984, %v1859
        %v2062 = vsub.f32 %v1984, %v1860
        %v2063 = vsub.f32 %v1984, %v1861
        %v2064 = vsub.f32 %v1984, %v1862
        %v2065 = vsub.f32 %v1988, %v1859
        %v2066 = vsub.f32 %v1988, %v1860
        %v2067 = vsub.f32 %v1988, %v1861
        %v2068 = vsub.f32 %v1988, %v1862
        %v2069 = vsub.f32 %v1992, %v1859
        %v2070 = vsub.f32 %v1992, %v1860
        %v2071 = vsub.f32 %v1992, %v1861
        %v2072 = vsub.f32 %v1992, %v1862
        %v2073 = vsub.f32 %v1996, %v1859
        %v2074 = vsub.f32 %v1996, %v1860
        %v2075 = vsub.f32 %v1996, %v1861
        %v2076 = vsub.f32 %v1996, %v1862
        %v2077 = vsub.f32 %v2000, %v1859
        %v2078 = vsub.f32 %v2000, %v1860
        %v2079 = vsub.f32 %v2000, %v1861
        %v2080 = vsub.f32 %v2000, %v1862
        %v2081 = vsub.f32 %v2004, %v1859
        %v2082 = vsub.f32 %v2004, %v1860
        %v2083 = vsub.f32 %v2004, %v1861
        %v2084 = vsub.f32 %v2004, %v1862
        %v2085 = vsub.f32 %v2008, %v1859
        %v2086 = vsub.f32 %v2008, %v1860
        %v2087 = vsub.f32 %v2008, %v1861
        %v2088 = vsub.f32 %v2008, %v1862
        %v2089 = vsub.f32 %v2012, %v1859
        %v2090 = vsub.f32 %v2012, %v1860
        %v2091 = vsub.f32 %v2012, %v1861
        %v2092 = vsub.f32 %v2012, %v1862
        %v2093 = vsub.f32 %v2016, %v1859
        %v2094 = vsub.f32 %v2016, %v1860
        %v2095 = vsub.f32 %v2016, %v1861
        %v2096 = vsub.f32 %v2016, %v1862
        %v2097 = vsub.f32 %v2020, %v1859
        %v2098 = vsub.f32 %v2020, %v1860
        %v2099 = vsub.f32 %v2020, %v1861
        %v2100 = vsub.f32 %v2020, %v1862
        %v2101 = vsub.f32 %v2024, %v1859
        %v2102 = vsub.f32 %v2024, %v1860
        %v2103 = vsub.f32 %v2024, %v1861
        %v2104 = vsub.f32 %v2024, %v1862
        %v2105 = vmul.f32 %v2041, %v2041
        %v2106 = vmul.f32 %v2042, %v2042
        %v2107 = vmul.f32 %v2043, %v2043
        %v2108 = vmul.f32 %v2044, %v2044
        %v2109 = vmul.f32 %v2045, %v2045
        %v2110 = vmul.f32 %v2046, %v2046
        %v2111 = vmul.f32 %v2047, %v2047
        %v2112 = vmul.f32 %v2048, %v2048
        %v2113 = vmul.f32 %v2049, %v2049
        %v2114 = vmul.f32 %v2050, %v2050
        %v2115 = vmul.f32 %v2051, %v2051
        %v2116 = vmul.f32 %v2052, %v2052
        %v2117 = vmul.f32 %v2053, %v2053
        %v2118 = vmul.f32 %v2054, %v2054
        %v2119 = vmul.f32 %v2055, %v2055
        %v2120 = vmul.f32 %v2056, %v2056
        %v2121 = vmul.f32 %v2057, %v2057
        %v2122 = vmul.f32 %v2058, %v2058
        %v2123 = vmul.f32 %v2059, %v2059
        %v2124 = vmul.f32 %v2060, %v2060
        %v2125 = vmul.f32 %v2061, %v2061
        %v2126 = vmul.f32 %v2062, %v2062
        %v2127 = vmul.f32 %v2063, %v2063
        %v2128 = vmul.f32 %v2064, %v2064
        %v2129 = vmul.f32 %v2065, %v2065
        %v2130 = vmul.f32 %v2066, %v2066
        %v2131 = vmul.f32 %v2067, %v2067
        %v2132 = vmul.f32 %v2068, %v2068
        %v2133 = vmul.f32 %v2069, %v2069
        %v2134 = vmul.f32 %v2070, %v2070
        %v2135 = vmul.f32 %v2071, %v2071
        %v2136 = vmul.f32 %v2072, %v2072
        %v2137 = vmul.f32 %v2073, %v2073
        %v2138 = vmul.f32 %v2074, %v2074
        %v2139 = vmul.f32 %v2075, %v2075
        %v2140 = vmul.f32 %v2076, %v2076
        %v2141 = vmul.f32 %v2077, %v2077
        %v2142 = vmul.f32 %v2078, %v2078
        %v2143 = vmul.f32 %v2079, %v2079
        %v2144 = vmul.f32 %v2080, %v2080
        %v2145 = vmul.f32 %v2081, %v2081
        %v2146 = vmul.f32 %v2082, %v2082
        %v2147 = vmul.f32 %v2083, %v2083
        %v2148 = vmul.f32 %v2084, %v2084
        %v2149 = vmul.f32 %v2085, %v2085
        %v2150 = vmul.f32 %v2086, %v2086
        %v2151 = vmul.f32 %v2087, %v2087
        %v2152 = vmul.f32 %v2088, %v2088
        %v2153 = vmul.f32 %v2089, %v2089
        %v2154 = vmul.f32 %v2090, %v2090
        %v2155 = vmul.f32 %v2091, %v2091
        %v2156 = vmul.f32 %v2092, %v2092
        %v2157 = vmul.f32 %v2093, %v2093
        %v2158 = vmul.f32 %v2094, %v2094
        %v2159 = vmul.f32 %v2095, %v2095
        %v2160 = vmul.f32 %v2096, %v2096
        %v2161 = vmul.f32 %v2097, %v2097
        %v2162 = vmul.f32 %v2098, %v2098
        %v2163 = vmul.f32 %v2099, %v2099
        %v2164 = vmul.f32 %v2100, %v2100
        %v2165 = vmul.f32 %v2101, %v2101
        %v2166 = vmul.f32 %v2102, %v2102
        %v2167 = vmul.f32 %v2103, %v2103
        %v2168 = vmul.f32 %v2104, %v2104
        %2233 = vrot.lane.b32.xlu0 %v2105, 127
        %v2234 = vpop.permute.xlu0 %2233
        %2235 = vrot.lane.b32.xlu0 %v2106, 127
        %v2236 = vpop.permute.xlu0 %2235
        %2237 = vrot.lane.b32.xlu0 %v2107, 127
        %v2238 = vpop.permute.xlu0 %2237
        %2239 = vrot.lane.b32.xlu0 %v2108, 127
        %v2240 = vpop.permute.xlu0 %2239
        %2241 = vrot.lane.b32.xlu0 %v2109, 127
        %v2242 = vpop.permute.xlu0 %2241
        %2243 = vrot.lane.b32.xlu0 %v2110, 127
        %v2244 = vpop.permute.xlu0 %2243
        %2245 = vrot.lane.b32.xlu0 %v2111, 127
        %v2246 = vpop.permute.xlu0 %2245
        %2247 = vrot.lane.b32.xlu0 %v2112, 127
        %v2248 = vpop.permute.xlu0 %2247
        %2249 = vrot.lane.b32.xlu0 %v2113, 127
        %v2250 = vpop.permute.xlu0 %2249
        %2251 = vrot.lane.b32.xlu0 %v2114, 127
        %v2252 = vpop.permute.xlu0 %2251
        %2253 = vrot.lane.b32.xlu0 %v2115, 127
        %v2254 = vpop.permute.xlu0 %2253
        %2255 = vrot.lane.b32.xlu0 %v2116, 127
        %v2256 = vpop.permute.xlu0 %2255
        %2257 = vrot.lane.b32.xlu0 %v2117, 127
        %v2258 = vpop.permute.xlu0 %2257
        %2259 = vrot.lane.b32.xlu0 %v2118, 127
        %v2260 = vpop.permute.xlu0 %2259
        %2261 = vrot.lane.b32.xlu0 %v2119, 127
        %v2262 = vpop.permute.xlu0 %2261
        %2263 = vrot.lane.b32.xlu0 %v2120, 127
        %v2264 = vpop.permute.xlu0 %2263
        %2265 = vrot.lane.b32.xlu0 %v2121, 127
        %v2266 = vpop.permute.xlu0 %2265
        %2267 = vrot.lane.b32.xlu0 %v2122, 127
        %v2268 = vpop.permute.xlu0 %2267
        %2269 = vrot.lane.b32.xlu0 %v2123, 127
        %v2270 = vpop.permute.xlu0 %2269
        %2271 = vrot.lane.b32.xlu0 %v2124, 127
        %v2272 = vpop.permute.xlu0 %2271
        %2273 = vrot.lane.b32.xlu0 %v2125, 127
        %v2274 = vpop.permute.xlu0 %2273
        %2275 = vrot.lane.b32.xlu0 %v2126, 127
        %v2276 = vpop.permute.xlu0 %2275
        %2277 = vrot.lane.b32.xlu0 %v2127, 127
        %v2278 = vpop.permute.xlu0 %2277
        %2279 = vrot.lane.b32.xlu0 %v2128, 127
        %v2280 = vpop.permute.xlu0 %2279
        %2281 = vrot.lane.b32.xlu0 %v2129, 127
        %v2282 = vpop.permute.xlu0 %2281
        %2283 = vrot.lane.b32.xlu0 %v2130, 127
        %v2284 = vpop.permute.xlu0 %2283
        %2285 = vrot.lane.b32.xlu0 %v2131, 127
        %v2286 = vpop.permute.xlu0 %2285
        %2287 = vrot.lane.b32.xlu0 %v2132, 127
        %v2288 = vpop.permute.xlu0 %2287
        %2289 = vrot.lane.b32.xlu0 %v2133, 127
        %v2290 = vpop.permute.xlu0 %2289
        %2291 = vrot.lane.b32.xlu0 %v2134, 127
        %v2292 = vpop.permute.xlu0 %2291
        %2293 = vrot.lane.b32.xlu0 %v2135, 127
        %v2294 = vpop.permute.xlu0 %2293
        %2295 = vrot.lane.b32.xlu0 %v2136, 127
        %v2296 = vpop.permute.xlu0 %2295
        %2297 = vrot.lane.b32.xlu0 %v2137, 127
        %v2298 = vpop.permute.xlu0 %2297
        %2299 = vrot.lane.b32.xlu0 %v2138, 127
        %v2300 = vpop.permute.xlu0 %2299
        %2301 = vrot.lane.b32.xlu0 %v2139, 127
        %v2302 = vpop.permute.xlu0 %2301
        %2303 = vrot.lane.b32.xlu0 %v2140, 127
        %v2304 = vpop.permute.xlu0 %2303
        %2305 = vrot.lane.b32.xlu0 %v2141, 127
        %v2306 = vpop.permute.xlu0 %2305
        %2307 = vrot.lane.b32.xlu0 %v2142, 127
        %v2308 = vpop.permute.xlu0 %2307
        %2309 = vrot.lane.b32.xlu0 %v2143, 127
        %v2310 = vpop.permute.xlu0 %2309
        %2311 = vrot.lane.b32.xlu0 %v2144, 127
        %v2312 = vpop.permute.xlu0 %2311
        %2313 = vrot.lane.b32.xlu0 %v2145, 127
        %v2314 = vpop.permute.xlu0 %2313
        %2315 = vrot.lane.b32.xlu0 %v2146, 127
        %v2316 = vpop.permute.xlu0 %2315
        %2317 = vrot.lane.b32.xlu0 %v2147, 127
        %v2318 = vpop.permute.xlu0 %2317
        %2319 = vrot.lane.b32.xlu0 %v2148, 127
        %v2320 = vpop.permute.xlu0 %2319
        %2321 = vrot.lane.b32.xlu0 %v2149, 127
        %v2322 = vpop.permute.xlu0 %2321
        %2323 = vrot.lane.b32.xlu0 %v2150, 127
        %v2324 = vpop.permute.xlu0 %2323
        %2325 = vrot.lane.b32.xlu0 %v2151, 127
        %v2326 = vpop.permute.xlu0 %2325
        %2327 = vrot.lane.b32.xlu0 %v2152, 127
        %v2328 = vpop.permute.xlu0 %2327
        %2329 = vrot.lane.b32.xlu0 %v2153, 127
        %v2330 = vpop.permute.xlu0 %2329
        %2331 = vrot.lane.b32.xlu0 %v2154, 127
        %v2332 = vpop.permute.xlu0 %2331
        %2333 = vrot.lane.b32.xlu0 %v2155, 127
        %v2334 = vpop.permute.xlu0 %2333
        %2335 = vrot.lane.b32.xlu0 %v2156, 127
        %v2336 = vpop.permute.xlu0 %2335
        %2337 = vrot.lane.b32.xlu0 %v2157, 127
        %v2338 = vpop.permute.xlu0 %2337
        %2339 = vrot.lane.b32.xlu0 %v2158, 127
        %v2340 = vpop.permute.xlu0 %2339
        %2341 = vrot.lane.b32.xlu0 %v2159, 127
        %v2342 = vpop.permute.xlu0 %2341
        %2343 = vrot.lane.b32.xlu0 %v2160, 127
        %v2344 = vpop.permute.xlu0 %2343
        %2345 = vrot.lane.b32.xlu0 %v2161, 127
        %v2346 = vpop.permute.xlu0 %2345
        %2347 = vrot.lane.b32.xlu0 %v2162, 127
        %v2348 = vpop.permute.xlu0 %2347
        %2349 = vrot.lane.b32.xlu0 %v2163, 127
        %v2350 = vpop.permute.xlu0 %2349
        %2351 = vrot.lane.b32.xlu0 %v2164, 127
        %v2352 = vpop.permute.xlu0 %2351
        %2353 = vrot.lane.b32.xlu0 %v2165, 127
        %v2354 = vpop.permute.xlu0 %2353
        %2355 = vrot.lane.b32.xlu0 %v2166, 127
        %v2356 = vpop.permute.xlu0 %2355
        %2357 = vrot.lane.b32.xlu0 %v2167, 127
        %v2358 = vpop.permute.xlu0 %2357
        %2359 = vrot.lane.b32.xlu0 %v2168, 127
        %v2360 = vpop.permute.xlu0 %2359
        %v2425 = vadd.f32 %v2105, %v2234
        %v2426 = vadd.f32 %v2106, %v2236
        %v2427 = vadd.f32 %v2107, %v2238
        %v2428 = vadd.f32 %v2108, %v2240
        %v2429 = vadd.f32 %v2109, %v2242
        %v2430 = vadd.f32 %v2110, %v2244
        %v2431 = vadd.f32 %v2111, %v2246
        %v2432 = vadd.f32 %v2112, %v2248
        %v2433 = vadd.f32 %v2113, %v2250
        %v2434 = vadd.f32 %v2114, %v2252
        %v2435 = vadd.f32 %v2115, %v2254
        %v2436 = vadd.f32 %v2116, %v2256
        %v2437 = vadd.f32 %v2117, %v2258
        %v2438 = vadd.f32 %v2118, %v2260
        %v2439 = vadd.f32 %v2119, %v2262
        %v2440 = vadd.f32 %v2120, %v2264
        %v2441 = vadd.f32 %v2121, %v2266
        %v2442 = vadd.f32 %v2122, %v2268
        %v2443 = vadd.f32 %v2123, %v2270
        %v2444 = vadd.f32 %v2124, %v2272
        %v2445 = vadd.f32 %v2125, %v2274
        %v2446 = vadd.f32 %v2126, %v2276
        %v2447 = vadd.f32 %v2127, %v2278
        %v2448 = vadd.f32 %v2128, %v2280
        %v2449 = vadd.f32 %v2129, %v2282
        %v2450 = vadd.f32 %v2130, %v2284
        %v2451 = vadd.f32 %v2131, %v2286
        %v2452 = vadd.f32 %v2132, %v2288
        %v2453 = vadd.f32 %v2133, %v2290
        %v2454 = vadd.f32 %v2134, %v2292
        %v2455 = vadd.f32 %v2135, %v2294
        %v2456 = vadd.f32 %v2136, %v2296
        %v2457 = vadd.f32 %v2137, %v2298
        %v2458 = vadd.f32 %v2138, %v2300
        %v2459 = vadd.f32 %v2139, %v2302
        %v2460 = vadd.f32 %v2140, %v2304
        %v2461 = vadd.f32 %v2141, %v2306
        %v2462 = vadd.f32 %v2142, %v2308
        %v2463 = vadd.f32 %v2143, %v2310
        %v2464 = vadd.f32 %v2144, %v2312
        %v2465 = vadd.f32 %v2145, %v2314
        %v2466 = vadd.f32 %v2146, %v2316
        %v2467 = vadd.f32 %v2147, %v2318
        %v2468 = vadd.f32 %v2148, %v2320
        %v2469 = vadd.f32 %v2149, %v2322
        %v2470 = vadd.f32 %v2150, %v2324
        %v2471 = vadd.f32 %v2151, %v2326
        %v2472 = vadd.f32 %v2152, %v2328
        %v2473 = vadd.f32 %v2153, %v2330
        %v2474 = vadd.f32 %v2154, %v2332
        %v2475 = vadd.f32 %v2155, %v2334
        %v2476 = vadd.f32 %v2156, %v2336
        %v2477 = vadd.f32 %v2157, %v2338
        %v2478 = vadd.f32 %v2158, %v2340
        %v2479 = vadd.f32 %v2159, %v2342
        %v2480 = vadd.f32 %v2160, %v2344
        %v2481 = vadd.f32 %v2161, %v2346
        %v2482 = vadd.f32 %v2162, %v2348
        %v2483 = vadd.f32 %v2163, %v2350
        %v2484 = vadd.f32 %v2164, %v2352
        %v2485 = vadd.f32 %v2165, %v2354
        %v2486 = vadd.f32 %v2166, %v2356
        %v2487 = vadd.f32 %v2167, %v2358
        %v2488 = vadd.f32 %v2168, %v2360
        %2489 = vrot.lane.b32.xlu0 %v2105, 126
        %v2490 = vpop.permute.xlu0 %2489
        %2491 = vrot.lane.b32.xlu0 %v2106, 126
        %v2492 = vpop.permute.xlu0 %2491
        %2493 = vrot.lane.b32.xlu0 %v2107, 126
        %v2494 = vpop.permute.xlu0 %2493
        %2495 = vrot.lane.b32.xlu0 %v2108, 126
        %v2496 = vpop.permute.xlu0 %2495
        %2497 = vrot.lane.b32.xlu0 %v2109, 126
        %v2498 = vpop.permute.xlu0 %2497
        %2499 = vrot.lane.b32.xlu0 %v2110, 126
        %v2500 = vpop.permute.xlu0 %2499
        %2501 = vrot.lane.b32.xlu0 %v2111, 126
        %v2502 = vpop.permute.xlu0 %2501
        %2503 = vrot.lane.b32.xlu0 %v2112, 126
        %v2504 = vpop.permute.xlu0 %2503
        %2505 = vrot.lane.b32.xlu0 %v2113, 126
        %v2506 = vpop.permute.xlu0 %2505
        %2507 = vrot.lane.b32.xlu0 %v2114, 126
        %v2508 = vpop.permute.xlu0 %2507
        %2509 = vrot.lane.b32.xlu0 %v2115, 126
        %v2510 = vpop.permute.xlu0 %2509
        %2511 = vrot.lane.b32.xlu0 %v2116, 126
        %v2512 = vpop.permute.xlu0 %2511
        %2513 = vrot.lane.b32.xlu0 %v2117, 126
        %v2514 = vpop.permute.xlu0 %2513
        %2515 = vrot.lane.b32.xlu0 %v2118, 126
        %v2516 = vpop.permute.xlu0 %2515
        %2517 = vrot.lane.b32.xlu0 %v2119, 126
        %v2518 = vpop.permute.xlu0 %2517
        %2519 = vrot.lane.b32.xlu0 %v2120, 126
        %v2520 = vpop.permute.xlu0 %2519
        %2521 = vrot.lane.b32.xlu0 %v2121, 126
        %v2522 = vpop.permute.xlu0 %2521
        %2523 = vrot.lane.b32.xlu0 %v2122, 126
        %v2524 = vpop.permute.xlu0 %2523
        %2525 = vrot.lane.b32.xlu0 %v2123, 126
        %v2526 = vpop.permute.xlu0 %2525
        %2527 = vrot.lane.b32.xlu0 %v2124, 126
        %v2528 = vpop.permute.xlu0 %2527
        %2529 = vrot.lane.b32.xlu0 %v2125, 126
        %v2530 = vpop.permute.xlu0 %2529
        %2531 = vrot.lane.b32.xlu0 %v2126, 126
        %v2532 = vpop.permute.xlu0 %2531
        %2533 = vrot.lane.b32.xlu0 %v2127, 126
        %v2534 = vpop.permute.xlu0 %2533
        %2535 = vrot.lane.b32.xlu0 %v2128, 126
        %v2536 = vpop.permute.xlu0 %2535
        %2537 = vrot.lane.b32.xlu0 %v2129, 126
        %v2538 = vpop.permute.xlu0 %2537
        %2539 = vrot.lane.b32.xlu0 %v2130, 126
        %v2540 = vpop.permute.xlu0 %2539
        %2541 = vrot.lane.b32.xlu0 %v2131, 126
        %v2542 = vpop.permute.xlu0 %2541
        %2543 = vrot.lane.b32.xlu0 %v2132, 126
        %v2544 = vpop.permute.xlu0 %2543
        %2545 = vrot.lane.b32.xlu0 %v2133, 126
        %v2546 = vpop.permute.xlu0 %2545
        %2547 = vrot.lane.b32.xlu0 %v2134, 126
        %v2548 = vpop.permute.xlu0 %2547
        %2549 = vrot.lane.b32.xlu0 %v2135, 126
        %v2550 = vpop.permute.xlu0 %2549
        %2551 = vrot.lane.b32.xlu0 %v2136, 126
        %v2552 = vpop.permute.xlu0 %2551
        %2553 = vrot.lane.b32.xlu0 %v2137, 126
        %v2554 = vpop.permute.xlu0 %2553
        %2555 = vrot.lane.b32.xlu0 %v2138, 126
        %v2556 = vpop.permute.xlu0 %2555
        %2557 = vrot.lane.b32.xlu0 %v2139, 126
        %v2558 = vpop.permute.xlu0 %2557
        %2559 = vrot.lane.b32.xlu0 %v2140, 126
        %v2560 = vpop.permute.xlu0 %2559
        %2561 = vrot.lane.b32.xlu0 %v2141, 126
        %v2562 = vpop.permute.xlu0 %2561
        %2563 = vrot.lane.b32.xlu0 %v2142, 126
        %v2564 = vpop.permute.xlu0 %2563
        %2565 = vrot.lane.b32.xlu0 %v2143, 126
        %v2566 = vpop.permute.xlu0 %2565
        %2567 = vrot.lane.b32.xlu0 %v2144, 126
        %v2568 = vpop.permute.xlu0 %2567
        %2569 = vrot.lane.b32.xlu0 %v2145, 126
        %v2570 = vpop.permute.xlu0 %2569
        %2571 = vrot.lane.b32.xlu0 %v2146, 126
        %v2572 = vpop.permute.xlu0 %2571
        %2573 = vrot.lane.b32.xlu0 %v2147, 126
        %v2574 = vpop.permute.xlu0 %2573
        %2575 = vrot.lane.b32.xlu0 %v2148, 126
        %v2576 = vpop.permute.xlu0 %2575
        %2577 = vrot.lane.b32.xlu0 %v2149, 126
        %v2578 = vpop.permute.xlu0 %2577
        %2579 = vrot.lane.b32.xlu0 %v2150, 126
        %v2580 = vpop.permute.xlu0 %2579
        %2581 = vrot.lane.b32.xlu0 %v2151, 126
        %v2582 = vpop.permute.xlu0 %2581
        %2583 = vrot.lane.b32.xlu0 %v2152, 126
        %v2584 = vpop.permute.xlu0 %2583
        %2585 = vrot.lane.b32.xlu0 %v2153, 126
        %v2586 = vpop.permute.xlu0 %2585
        %2587 = vrot.lane.b32.xlu0 %v2154, 126
        %v2588 = vpop.permute.xlu0 %2587
        %2589 = vrot.lane.b32.xlu0 %v2155, 126
        %v2590 = vpop.permute.xlu0 %2589
        %2591 = vrot.lane.b32.xlu0 %v2156, 126
        %v2592 = vpop.permute.xlu0 %2591
        %2593 = vrot.lane.b32.xlu0 %v2157, 126
        %v2594 = vpop.permute.xlu0 %2593
        %2595 = vrot.lane.b32.xlu0 %v2158, 126
        %v2596 = vpop.permute.xlu0 %2595
        %2597 = vrot.lane.b32.xlu0 %v2159, 126
        %v2598 = vpop.permute.xlu0 %2597
        %2599 = vrot.lane.b32.xlu0 %v2160, 126
        %v2600 = vpop.permute.xlu0 %2599
        %2601 = vrot.lane.b32.xlu0 %v2161, 126
        %v2602 = vpop.permute.xlu0 %2601
        %2603 = vrot.lane.b32.xlu0 %v2162, 126
        %v2604 = vpop.permute.xlu0 %2603
        %2605 = vrot.lane.b32.xlu0 %v2163, 126
        %v2606 = vpop.permute.xlu0 %2605
        %2607 = vrot.lane.b32.xlu0 %v2164, 126
        %v2608 = vpop.permute.xlu0 %2607
        %2609 = vrot.lane.b32.xlu0 %v2165, 126
        %v2610 = vpop.permute.xlu0 %2609
        %2611 = vrot.lane.b32.xlu0 %v2166, 126
        %v2612 = vpop.permute.xlu0 %2611
        %2613 = vrot.lane.b32.xlu0 %v2167, 126
        %v2614 = vpop.permute.xlu0 %2613
        %2615 = vrot.lane.b32.xlu0 %v2168, 126
        %v2616 = vpop.permute.xlu0 %2615
        %v2681 = vadd.f32 %v2425, %v2490
        %v2682 = vadd.f32 %v2426, %v2492
        %v2683 = vadd.f32 %v2427, %v2494
        %v2684 = vadd.f32 %v2428, %v2496
        %v2685 = vadd.f32 %v2429, %v2498
        %v2686 = vadd.f32 %v2430, %v2500
        %v2687 = vadd.f32 %v2431, %v2502
        %v2688 = vadd.f32 %v2432, %v2504
        %v2689 = vadd.f32 %v2433, %v2506
        %v2690 = vadd.f32 %v2434, %v2508
        %v2691 = vadd.f32 %v2435, %v2510
        %v2692 = vadd.f32 %v2436, %v2512
        %v2693 = vadd.f32 %v2437, %v2514
        %v2694 = vadd.f32 %v2438, %v2516
        %v2695 = vadd.f32 %v2439, %v2518
        %v2696 = vadd.f32 %v2440, %v2520
        %v2697 = vadd.f32 %v2441, %v2522
        %v2698 = vadd.f32 %v2442, %v2524
        %v2699 = vadd.f32 %v2443, %v2526
        %v2700 = vadd.f32 %v2444, %v2528
        %v2701 = vadd.f32 %v2445, %v2530
        %v2702 = vadd.f32 %v2446, %v2532
        %v2703 = vadd.f32 %v2447, %v2534
        %v2704 = vadd.f32 %v2448, %v2536
        %v2705 = vadd.f32 %v2449, %v2538
        %v2706 = vadd.f32 %v2450, %v2540
        %v2707 = vadd.f32 %v2451, %v2542
        %v2708 = vadd.f32 %v2452, %v2544
        %v2709 = vadd.f32 %v2453, %v2546
        %v2710 = vadd.f32 %v2454, %v2548
        %v2711 = vadd.f32 %v2455, %v2550
        %v2712 = vadd.f32 %v2456, %v2552
        %v2713 = vadd.f32 %v2457, %v2554
        %v2714 = vadd.f32 %v2458, %v2556
        %v2715 = vadd.f32 %v2459, %v2558
        %v2716 = vadd.f32 %v2460, %v2560
        %v2717 = vadd.f32 %v2461, %v2562
        %v2718 = vadd.f32 %v2462, %v2564
        %v2719 = vadd.f32 %v2463, %v2566
        %v2720 = vadd.f32 %v2464, %v2568
        %v2721 = vadd.f32 %v2465, %v2570
        %v2722 = vadd.f32 %v2466, %v2572
        %v2723 = vadd.f32 %v2467, %v2574
        %v2724 = vadd.f32 %v2468, %v2576
        %v2725 = vadd.f32 %v2469, %v2578
        %v2726 = vadd.f32 %v2470, %v2580
        %v2727 = vadd.f32 %v2471, %v2582
        %v2728 = vadd.f32 %v2472, %v2584
        %v2729 = vadd.f32 %v2473, %v2586
        %v2730 = vadd.f32 %v2474, %v2588
        %v2731 = vadd.f32 %v2475, %v2590
        %v2732 = vadd.f32 %v2476, %v2592
        %v2733 = vadd.f32 %v2477, %v2594
        %v2734 = vadd.f32 %v2478, %v2596
        %v2735 = vadd.f32 %v2479, %v2598
        %v2736 = vadd.f32 %v2480, %v2600
        %v2737 = vadd.f32 %v2481, %v2602
        %v2738 = vadd.f32 %v2482, %v2604
        %v2739 = vadd.f32 %v2483, %v2606
        %v2740 = vadd.f32 %v2484, %v2608
        %v2741 = vadd.f32 %v2485, %v2610
        %v2742 = vadd.f32 %v2486, %v2612
        %v2743 = vadd.f32 %v2487, %v2614
        %v2744 = vadd.f32 %v2488, %v2616
        %vm2745 = vcmp.le.f32.partialorder %v2681, 0.04
        %vm2746 = vcmp.le.f32.partialorder %v2682, 0.04
        %vm2747 = vcmp.le.f32.partialorder %v2683, 0.04
        %vm2748 = vcmp.le.f32.partialorder %v2684, 0.04
        %vm2749 = vcmp.le.f32.partialorder %v2685, 0.04
        %vm2750 = vcmp.le.f32.partialorder %v2686, 0.04
        %vm2751 = vcmp.le.f32.partialorder %v2687, 0.04
        %vm2752 = vcmp.le.f32.partialorder %v2688, 0.04
        %vm2753 = vcmp.le.f32.partialorder %v2689, 0.04
        %vm2754 = vcmp.le.f32.partialorder %v2690, 0.04
        %vm2755 = vcmp.le.f32.partialorder %v2691, 0.04
        %vm2756 = vcmp.le.f32.partialorder %v2692, 0.04
        %vm2757 = vcmp.le.f32.partialorder %v2693, 0.04
        %vm2758 = vcmp.le.f32.partialorder %v2694, 0.04
        %vm2759 = vcmp.le.f32.partialorder %v2695, 0.04
        %vm2760 = vcmp.le.f32.partialorder %v2696, 0.04
        %vm2761 = vcmp.le.f32.partialorder %v2697, 0.04
        %vm2762 = vcmp.le.f32.partialorder %v2698, 0.04
        %vm2763 = vcmp.le.f32.partialorder %v2699, 0.04
        %vm2764 = vcmp.le.f32.partialorder %v2700, 0.04
        %vm2765 = vcmp.le.f32.partialorder %v2701, 0.04
        %vm2766 = vcmp.le.f32.partialorder %v2702, 0.04
        %vm2767 = vcmp.le.f32.partialorder %v2703, 0.04
        %vm2768 = vcmp.le.f32.partialorder %v2704, 0.04
        %vm2769 = vcmp.le.f32.partialorder %v2705, 0.04
        %vm2770 = vcmp.le.f32.partialorder %v2706, 0.04
        %vm2771 = vcmp.le.f32.partialorder %v2707, 0.04
        %vm2772 = vcmp.le.f32.partialorder %v2708, 0.04
        %vm2773 = vcmp.le.f32.partialorder %v2709, 0.04
        %vm2774 = vcmp.le.f32.partialorder %v2710, 0.04
        %vm2775 = vcmp.le.f32.partialorder %v2711, 0.04
        %vm2776 = vcmp.le.f32.partialorder %v2712, 0.04
        %vm2777 = vcmp.le.f32.partialorder %v2713, 0.04
        %vm2778 = vcmp.le.f32.partialorder %v2714, 0.04
        %vm2779 = vcmp.le.f32.partialorder %v2715, 0.04
        %vm2780 = vcmp.le.f32.partialorder %v2716, 0.04
        %vm2781 = vcmp.le.f32.partialorder %v2717, 0.04
        %vm2782 = vcmp.le.f32.partialorder %v2718, 0.04
        %vm2783 = vcmp.le.f32.partialorder %v2719, 0.04
        %vm2784 = vcmp.le.f32.partialorder %v2720, 0.04
        %vm2785 = vcmp.le.f32.partialorder %v2721, 0.04
        %vm2786 = vcmp.le.f32.partialorder %v2722, 0.04
        %vm2787 = vcmp.le.f32.partialorder %v2723, 0.04
        %vm2788 = vcmp.le.f32.partialorder %v2724, 0.04
        %vm2789 = vcmp.le.f32.partialorder %v2725, 0.04
        %vm2790 = vcmp.le.f32.partialorder %v2726, 0.04
        %vm2791 = vcmp.le.f32.partialorder %v2727, 0.04
        %vm2792 = vcmp.le.f32.partialorder %v2728, 0.04
        %vm2793 = vcmp.le.f32.partialorder %v2729, 0.04
        %vm2794 = vcmp.le.f32.partialorder %v2730, 0.04
        %vm2795 = vcmp.le.f32.partialorder %v2731, 0.04
        %vm2796 = vcmp.le.f32.partialorder %v2732, 0.04
        %vm2797 = vcmp.le.f32.partialorder %v2733, 0.04
        %vm2798 = vcmp.le.f32.partialorder %v2734, 0.04
        %vm2799 = vcmp.le.f32.partialorder %v2735, 0.04
        %vm2800 = vcmp.le.f32.partialorder %v2736, 0.04
        %vm2801 = vcmp.le.f32.partialorder %v2737, 0.04
        %vm2802 = vcmp.le.f32.partialorder %v2738, 0.04
        %vm2803 = vcmp.le.f32.partialorder %v2739, 0.04
        %vm2804 = vcmp.le.f32.partialorder %v2740, 0.04
        %vm2805 = vcmp.le.f32.partialorder %v2741, 0.04
        %vm2806 = vcmp.le.f32.partialorder %v2742, 0.04
        %vm2807 = vcmp.le.f32.partialorder %v2743, 0.04
        %vm2808 = vcmp.le.f32.partialorder %v2744, 0.04
        %v2809 = vsel %vm2745, 0.0, -1e+30
        %v2810 = vsel %vm2746, 0.0, -1e+30
        %v2811 = vsel %vm2747, 0.0, -1e+30
        %v2812 = vsel %vm2748, 0.0, -1e+30
        %v2813 = vsel %vm2749, 0.0, -1e+30
        %v2814 = vsel %vm2750, 0.0, -1e+30
        %v2815 = vsel %vm2751, 0.0, -1e+30
        %v2816 = vsel %vm2752, 0.0, -1e+30
        %v2817 = vsel %vm2753, 0.0, -1e+30
        %v2818 = vsel %vm2754, 0.0, -1e+30
        %v2819 = vsel %vm2755, 0.0, -1e+30
        %v2820 = vsel %vm2756, 0.0, -1e+30
        %v2821 = vsel %vm2757, 0.0, -1e+30
        %v2822 = vsel %vm2758, 0.0, -1e+30
        %v2823 = vsel %vm2759, 0.0, -1e+30
        %v2824 = vsel %vm2760, 0.0, -1e+30
        %v2825 = vsel %vm2761, 0.0, -1e+30
        %v2826 = vsel %vm2762, 0.0, -1e+30
        %v2827 = vsel %vm2763, 0.0, -1e+30
        %v2828 = vsel %vm2764, 0.0, -1e+30
        %v2829 = vsel %vm2765, 0.0, -1e+30
        %v2830 = vsel %vm2766, 0.0, -1e+30
        %v2831 = vsel %vm2767, 0.0, -1e+30
        %v2832 = vsel %vm2768, 0.0, -1e+30
        %v2833 = vsel %vm2769, 0.0, -1e+30
        %v2834 = vsel %vm2770, 0.0, -1e+30
        %v2835 = vsel %vm2771, 0.0, -1e+30
        %v2836 = vsel %vm2772, 0.0, -1e+30
        %v2837 = vsel %vm2773, 0.0, -1e+30
        %v2838 = vsel %vm2774, 0.0, -1e+30
        %v2839 = vsel %vm2775, 0.0, -1e+30
        %v2840 = vsel %vm2776, 0.0, -1e+30
        %v2841 = vsel %vm2777, 0.0, -1e+30
        %v2842 = vsel %vm2778, 0.0, -1e+30
        %v2843 = vsel %vm2779, 0.0, -1e+30
        %v2844 = vsel %vm2780, 0.0, -1e+30
        %v2845 = vsel %vm2781, 0.0, -1e+30
        %v2846 = vsel %vm2782, 0.0, -1e+30
        %v2847 = vsel %vm2783, 0.0, -1e+30
        %v2848 = vsel %vm2784, 0.0, -1e+30
        %v2849 = vsel %vm2785, 0.0, -1e+30
        %v2850 = vsel %vm2786, 0.0, -1e+30
        %v2851 = vsel %vm2787, 0.0, -1e+30
        %v2852 = vsel %vm2788, 0.0, -1e+30
        %v2853 = vsel %vm2789, 0.0, -1e+30
        %v2854 = vsel %vm2790, 0.0, -1e+30
        %v2855 = vsel %vm2791, 0.0, -1e+30
        %v2856 = vsel %vm2792, 0.0, -1e+30
        %v2857 = vsel %vm2793, 0.0, -1e+30
        %v2858 = vsel %vm2794, 0.0, -1e+30
        %v2859 = vsel %vm2795, 0.0, -1e+30
        %v2860 = vsel %vm2796, 0.0, -1e+30
        %v2861 = vsel %vm2797, 0.0, -1e+30
        %v2862 = vsel %vm2798, 0.0, -1e+30
        %v2863 = vsel %vm2799, 0.0, -1e+30
        %v2864 = vsel %vm2800, 0.0, -1e+30
        %v2865 = vsel %vm2801, 0.0, -1e+30
        %v2866 = vsel %vm2802, 0.0, -1e+30
        %v2867 = vsel %vm2803, 0.0, -1e+30
        %v2868 = vsel %vm2804, 0.0, -1e+30
        %v2869 = vsel %vm2805, 0.0, -1e+30
        %v2870 = vsel %vm2806, 0.0, -1e+30
        %v2871 = vsel %vm2807, 0.0, -1e+30
        %v2872 = vsel %vm2808, 0.0, -1e+30
        %2874 = vset.pattern.permute.xlu0 0
        %2875 = vperm.xlu0 %2874, %v2809
        %v2876 = vpop.permute.xlu0 %2875
        %2879 = vset.pattern.permute.xlu0 0
        %2880 = vperm.xlu0 %2879, %v2810
        %v2881 = vpop.permute.xlu0 %2880
        %2884 = vset.pattern.permute.xlu0 0
        %2885 = vperm.xlu0 %2884, %v2811
        %v2886 = vpop.permute.xlu0 %2885
        %2889 = vset.pattern.permute.xlu0 0
        %2890 = vperm.xlu0 %2889, %v2812
        %v2891 = vpop.permute.xlu0 %2890
        %2894 = vset.pattern.permute.xlu0 0
        %2895 = vperm.xlu0 %2894, %v2813
        %v2896 = vpop.permute.xlu0 %2895
        %2899 = vset.pattern.permute.xlu0 0
        %2900 = vperm.xlu0 %2899, %v2814
        %v2901 = vpop.permute.xlu0 %2900
        %2904 = vset.pattern.permute.xlu0 0
        %2905 = vperm.xlu0 %2904, %v2815
        %v2906 = vpop.permute.xlu0 %2905
        %2909 = vset.pattern.permute.xlu0 0
        %2910 = vperm.xlu0 %2909, %v2816
        %v2911 = vpop.permute.xlu0 %2910
        %2914 = vset.pattern.permute.xlu0 0
        %2915 = vperm.xlu0 %2914, %v2817
        %v2916 = vpop.permute.xlu0 %2915
        %2919 = vset.pattern.permute.xlu0 0
        %2920 = vperm.xlu0 %2919, %v2818
        %v2921 = vpop.permute.xlu0 %2920
        %2924 = vset.pattern.permute.xlu0 0
        %2925 = vperm.xlu0 %2924, %v2819
        %v2926 = vpop.permute.xlu0 %2925
        %2929 = vset.pattern.permute.xlu0 0
        %2930 = vperm.xlu0 %2929, %v2820
        %v2931 = vpop.permute.xlu0 %2930
        %2934 = vset.pattern.permute.xlu0 0
        %2935 = vperm.xlu0 %2934, %v2821
        %v2936 = vpop.permute.xlu0 %2935
        %2939 = vset.pattern.permute.xlu0 0
        %2940 = vperm.xlu0 %2939, %v2822
        %v2941 = vpop.permute.xlu0 %2940
        %2944 = vset.pattern.permute.xlu0 0
        %2945 = vperm.xlu0 %2944, %v2823
        %v2946 = vpop.permute.xlu0 %2945
        %2949 = vset.pattern.permute.xlu0 0
        %2950 = vperm.xlu0 %2949, %v2824
        %v2951 = vpop.permute.xlu0 %2950
        %2954 = vset.pattern.permute.xlu0 0
        %2955 = vperm.xlu0 %2954, %v2825
        %v2956 = vpop.permute.xlu0 %2955
        %2959 = vset.pattern.permute.xlu0 0
        %2960 = vperm.xlu0 %2959, %v2826
        %v2961 = vpop.permute.xlu0 %2960
        %2964 = vset.pattern.permute.xlu0 0
        %2965 = vperm.xlu0 %2964, %v2827
        %v2966 = vpop.permute.xlu0 %2965
        %2969 = vset.pattern.permute.xlu0 0
        %2970 = vperm.xlu0 %2969, %v2828
        %v2971 = vpop.permute.xlu0 %2970
        %2974 = vset.pattern.permute.xlu0 0
        %2975 = vperm.xlu0 %2974, %v2829
        %v2976 = vpop.permute.xlu0 %2975
        %2979 = vset.pattern.permute.xlu0 0
        %2980 = vperm.xlu0 %2979, %v2830
        %v2981 = vpop.permute.xlu0 %2980
        %2984 = vset.pattern.permute.xlu0 0
        %2985 = vperm.xlu0 %2984, %v2831
        %v2986 = vpop.permute.xlu0 %2985
        %2989 = vset.pattern.permute.xlu0 0
        %2990 = vperm.xlu0 %2989, %v2832
        %v2991 = vpop.permute.xlu0 %2990
        %2994 = vset.pattern.permute.xlu0 0
        %2995 = vperm.xlu0 %2994, %v2833
        %v2996 = vpop.permute.xlu0 %2995
        %2999 = vset.pattern.permute.xlu0 0
        %3000 = vperm.xlu0 %2999, %v2834
        %v3001 = vpop.permute.xlu0 %3000
        %3004 = vset.pattern.permute.xlu0 0
        %3005 = vperm.xlu0 %3004, %v2835
        %v3006 = vpop.permute.xlu0 %3005
        %3009 = vset.pattern.permute.xlu0 0
        %3010 = vperm.xlu0 %3009, %v2836
        %v3011 = vpop.permute.xlu0 %3010
        %3014 = vset.pattern.permute.xlu0 0
        %3015 = vperm.xlu0 %3014, %v2837
        %v3016 = vpop.permute.xlu0 %3015
        %3019 = vset.pattern.permute.xlu0 0
        %3020 = vperm.xlu0 %3019, %v2838
        %v3021 = vpop.permute.xlu0 %3020
        %3024 = vset.pattern.permute.xlu0 0
        %3025 = vperm.xlu0 %3024, %v2839
        %v3026 = vpop.permute.xlu0 %3025
        %3029 = vset.pattern.permute.xlu0 0
        %3030 = vperm.xlu0 %3029, %v2840
        %v3031 = vpop.permute.xlu0 %3030
        %3034 = vset.pattern.permute.xlu0 0
        %3035 = vperm.xlu0 %3034, %v2841
        %v3036 = vpop.permute.xlu0 %3035
        %3039 = vset.pattern.permute.xlu0 0
        %3040 = vperm.xlu0 %3039, %v2842
        %v3041 = vpop.permute.xlu0 %3040
        %3044 = vset.pattern.permute.xlu0 0
        %3045 = vperm.xlu0 %3044, %v2843
        %v3046 = vpop.permute.xlu0 %3045
        %3049 = vset.pattern.permute.xlu0 0
        %3050 = vperm.xlu0 %3049, %v2844
        %v3051 = vpop.permute.xlu0 %3050
        %3054 = vset.pattern.permute.xlu0 0
        %3055 = vperm.xlu0 %3054, %v2845
        %v3056 = vpop.permute.xlu0 %3055
        %3059 = vset.pattern.permute.xlu0 0
        %3060 = vperm.xlu0 %3059, %v2846
        %v3061 = vpop.permute.xlu0 %3060
        %3064 = vset.pattern.permute.xlu0 0
        %3065 = vperm.xlu0 %3064, %v2847
        %v3066 = vpop.permute.xlu0 %3065
        %3069 = vset.pattern.permute.xlu0 0
        %3070 = vperm.xlu0 %3069, %v2848
        %v3071 = vpop.permute.xlu0 %3070
        %3074 = vset.pattern.permute.xlu0 0
        %3075 = vperm.xlu0 %3074, %v2849
        %v3076 = vpop.permute.xlu0 %3075
        %3079 = vset.pattern.permute.xlu0 0
        %3080 = vperm.xlu0 %3079, %v2850
        %v3081 = vpop.permute.xlu0 %3080
        %3084 = vset.pattern.permute.xlu0 0
        %3085 = vperm.xlu0 %3084, %v2851
        %v3086 = vpop.permute.xlu0 %3085
        %3089 = vset.pattern.permute.xlu0 0
        %3090 = vperm.xlu0 %3089, %v2852
        %v3091 = vpop.permute.xlu0 %3090
        %3094 = vset.pattern.permute.xlu0 0
        %3095 = vperm.xlu0 %3094, %v2853
        %v3096 = vpop.permute.xlu0 %3095
        %3099 = vset.pattern.permute.xlu0 0
        %3100 = vperm.xlu0 %3099, %v2854
        %v3101 = vpop.permute.xlu0 %3100
        %3104 = vset.pattern.permute.xlu0 0
        %3105 = vperm.xlu0 %3104, %v2855
        %v3106 = vpop.permute.xlu0 %3105
        %3109 = vset.pattern.permute.xlu0 0
        %3110 = vperm.xlu0 %3109, %v2856
        %v3111 = vpop.permute.xlu0 %3110
        %3114 = vset.pattern.permute.xlu0 0
        %3115 = vperm.xlu0 %3114, %v2857
        %v3116 = vpop.permute.xlu0 %3115
        %3119 = vset.pattern.permute.xlu0 0
        %3120 = vperm.xlu0 %3119, %v2858
        %v3121 = vpop.permute.xlu0 %3120
        %3124 = vset.pattern.permute.xlu0 0
        %3125 = vperm.xlu0 %3124, %v2859
        %v3126 = vpop.permute.xlu0 %3125
        %3129 = vset.pattern.permute.xlu0 0
        %3130 = vperm.xlu0 %3129, %v2860
        %v3131 = vpop.permute.xlu0 %3130
        %3134 = vset.pattern.permute.xlu0 0
        %3135 = vperm.xlu0 %3134, %v2861
        %v3136 = vpop.permute.xlu0 %3135
        %3139 = vset.pattern.permute.xlu0 0
        %3140 = vperm.xlu0 %3139, %v2862
        %v3141 = vpop.permute.xlu0 %3140
        %3144 = vset.pattern.permute.xlu0 0
        %3145 = vperm.xlu0 %3144, %v2863
        %v3146 = vpop.permute.xlu0 %3145
        %3149 = vset.pattern.permute.xlu0 0
        %3150 = vperm.xlu0 %3149, %v2864
        %v3151 = vpop.permute.xlu0 %3150
        %3154 = vset.pattern.permute.xlu0 0
        %3155 = vperm.xlu0 %3154, %v2865
        %v3156 = vpop.permute.xlu0 %3155
        %3159 = vset.pattern.permute.xlu0 0
        %3160 = vperm.xlu0 %3159, %v2866
        %v3161 = vpop.permute.xlu0 %3160
        %3164 = vset.pattern.permute.xlu0 0
        %3165 = vperm.xlu0 %3164, %v2867
        %v3166 = vpop.permute.xlu0 %3165
        %3169 = vset.pattern.permute.xlu0 0
        %3170 = vperm.xlu0 %3169, %v2868
        %v3171 = vpop.permute.xlu0 %3170
        %3174 = vset.pattern.permute.xlu0 0
        %3175 = vperm.xlu0 %3174, %v2869
        %v3176 = vpop.permute.xlu0 %3175
        %3179 = vset.pattern.permute.xlu0 0
        %3180 = vperm.xlu0 %3179, %v2870
        %v3181 = vpop.permute.xlu0 %3180
        %3184 = vset.pattern.permute.xlu0 0
        %3185 = vperm.xlu0 %3184, %v2871
        %v3186 = vpop.permute.xlu0 %3185
        %3189 = vset.pattern.permute.xlu0 0
        %3190 = vperm.xlu0 %3189, %v2872
        %v3191 = vpop.permute.xlu0 %3190
        %v3193 = vadd.f32 %v1605, %v2876
        %v3194 = vadd.f32 %v1608, %v2881
        %v3195 = vadd.f32 %v1613, %v2886
        %v3196 = vadd.f32 %v1616, %v2891
        %v3197 = vadd.f32 %v1621, %v2896
        %v3198 = vadd.f32 %v1624, %v2901
        %v3199 = vadd.f32 %v1629, %v2906
        %v3200 = vadd.f32 %v1632, %v2911
        %v3201 = vadd.f32 %v1637, %v2916
        %v3202 = vadd.f32 %v1640, %v2921
        %v3203 = vadd.f32 %v1645, %v2926
        %v3204 = vadd.f32 %v1648, %v2931
        %v3205 = vadd.f32 %v1653, %v2936
        %v3206 = vadd.f32 %v1656, %v2941
        %v3207 = vadd.f32 %v1661, %v2946
        %v3208 = vadd.f32 %v1664, %v2951
        %v3209 = vadd.f32 %v1669, %v2956
        %v3210 = vadd.f32 %v1672, %v2961
        %v3211 = vadd.f32 %v1677, %v2966
        %v3212 = vadd.f32 %v1680, %v2971
        %v3213 = vadd.f32 %v1685, %v2976
        %v3214 = vadd.f32 %v1688, %v2981
        %v3215 = vadd.f32 %v1693, %v2986
        %v3216 = vadd.f32 %v1696, %v2991
        %v3217 = vadd.f32 %v1701, %v2996
        %v3218 = vadd.f32 %v1704, %v3001
        %v3219 = vadd.f32 %v1709, %v3006
        %v3220 = vadd.f32 %v1712, %v3011
        %v3221 = vadd.f32 %v1717, %v3016
        %v3222 = vadd.f32 %v1720, %v3021
        %v3223 = vadd.f32 %v1725, %v3026
        %v3224 = vadd.f32 %v1728, %v3031
        %v3225 = vadd.f32 %v1733, %v3036
        %v3226 = vadd.f32 %v1736, %v3041
        %v3227 = vadd.f32 %v1741, %v3046
        %v3228 = vadd.f32 %v1744, %v3051
        %v3229 = vadd.f32 %v1749, %v3056
        %v3230 = vadd.f32 %v1752, %v3061
        %v3231 = vadd.f32 %v1757, %v3066
        %v3232 = vadd.f32 %v1760, %v3071
        %v3233 = vadd.f32 %v1765, %v3076
        %v3234 = vadd.f32 %v1768, %v3081
        %v3235 = vadd.f32 %v1773, %v3086
        %v3236 = vadd.f32 %v1776, %v3091
        %v3237 = vadd.f32 %v1781, %v3096
        %v3238 = vadd.f32 %v1784, %v3101
        %v3239 = vadd.f32 %v1789, %v3106
        %v3240 = vadd.f32 %v1792, %v3111
        %v3241 = vadd.f32 %v1797, %v3116
        %v3242 = vadd.f32 %v1800, %v3121
        %v3243 = vadd.f32 %v1805, %v3126
        %v3244 = vadd.f32 %v1808, %v3131
        %v3245 = vadd.f32 %v1813, %v3136
        %v3246 = vadd.f32 %v1816, %v3141
        %v3247 = vadd.f32 %v1821, %v3146
        %v3248 = vadd.f32 %v1824, %v3151
        %v3249 = vadd.f32 %v1829, %v3156
        %v3250 = vadd.f32 %v1832, %v3161
        %v3251 = vadd.f32 %v1837, %v3166
        %v3252 = vadd.f32 %v1840, %v3171
        %v3253 = vadd.f32 %v1845, %v3176
        %v3254 = vadd.f32 %v1848, %v3181
        %v3255 = vadd.f32 %v1853, %v3186
        %v3256 = vadd.f32 %v1856, %v3191
        %v3257 = vmax.f32 %v3193, %v3194
        %v3258 = vmax.f32 %v3257, %v3195
        %v3259 = vmax.f32 %v3258, %v3196
        %v3260 = vrot.slane %v3259, 4
        %v3261 = vmax.f32 %v3259, %v3260
        %v3262 = vrot.slane %v3261, 2
        %v3263 = vmax.f32 %v3261, %v3262
        %v3264 = vrot.slane %v3263, 1
        %v3265 = vmax.f32 %v3263, %v3264
        %v3266 = vmax.f32 %v3197, %v3198
        %v3267 = vmax.f32 %v3266, %v3199
        %v3268 = vmax.f32 %v3267, %v3200
        %v3269 = vrot.slane %v3268, 4
        %v3270 = vmax.f32 %v3268, %v3269
        %v3271 = vrot.slane %v3270, 2
        %v3272 = vmax.f32 %v3270, %v3271
        %v3273 = vrot.slane %v3272, 1
        %v3274 = vmax.f32 %v3272, %v3273
        %v3275 = vmax.f32 %v3201, %v3202
        %v3276 = vmax.f32 %v3275, %v3203
        %v3277 = vmax.f32 %v3276, %v3204
        %v3278 = vrot.slane %v3277, 4
        %v3279 = vmax.f32 %v3277, %v3278
        %v3280 = vrot.slane %v3279, 2
        %v3281 = vmax.f32 %v3279, %v3280
        %v3282 = vrot.slane %v3281, 1
        %v3283 = vmax.f32 %v3281, %v3282
        %v3284 = vmax.f32 %v3205, %v3206
        %v3285 = vmax.f32 %v3284, %v3207
        %v3286 = vmax.f32 %v3285, %v3208
        %v3287 = vrot.slane %v3286, 4
        %v3288 = vmax.f32 %v3286, %v3287
        %v3289 = vrot.slane %v3288, 2
        %v3290 = vmax.f32 %v3288, %v3289
        %v3291 = vrot.slane %v3290, 1
        %v3292 = vmax.f32 %v3290, %v3291
        %v3293 = vmax.f32 %v3209, %v3210
        %v3294 = vmax.f32 %v3293, %v3211
        %v3295 = vmax.f32 %v3294, %v3212
        %v3296 = vrot.slane %v3295, 4
        %v3297 = vmax.f32 %v3295, %v3296
        %v3298 = vrot.slane %v3297, 2
        %v3299 = vmax.f32 %v3297, %v3298
        %v3300 = vrot.slane %v3299, 1
        %v3301 = vmax.f32 %v3299, %v3300
        %v3302 = vmax.f32 %v3213, %v3214
        %v3303 = vmax.f32 %v3302, %v3215
        %v3304 = vmax.f32 %v3303, %v3216
        %v3305 = vrot.slane %v3304, 4
        %v3306 = vmax.f32 %v3304, %v3305
        %v3307 = vrot.slane %v3306, 2
        %v3308 = vmax.f32 %v3306, %v3307
        %v3309 = vrot.slane %v3308, 1
        %v3310 = vmax.f32 %v3308, %v3309
        %v3311 = vmax.f32 %v3217, %v3218
        %v3312 = vmax.f32 %v3311, %v3219
        %v3313 = vmax.f32 %v3312, %v3220
        %v3314 = vrot.slane %v3313, 4
        %v3315 = vmax.f32 %v3313, %v3314
        %v3316 = vrot.slane %v3315, 2
        %v3317 = vmax.f32 %v3315, %v3316
        %v3318 = vrot.slane %v3317, 1
        %v3319 = vmax.f32 %v3317, %v3318
        %v3320 = vmax.f32 %v3221, %v3222
        %v3321 = vmax.f32 %v3320, %v3223
        %v3322 = vmax.f32 %v3321, %v3224
        %v3323 = vrot.slane %v3322, 4
        %v3324 = vmax.f32 %v3322, %v3323
        %v3325 = vrot.slane %v3324, 2
        %v3326 = vmax.f32 %v3324, %v3325
        %v3327 = vrot.slane %v3326, 1
        %v3328 = vmax.f32 %v3326, %v3327
        %v3329 = vmax.f32 %v3225, %v3226
        %v3330 = vmax.f32 %v3329, %v3227
        %v3331 = vmax.f32 %v3330, %v3228
        %v3332 = vrot.slane %v3331, 4
        %v3333 = vmax.f32 %v3331, %v3332
        %v3334 = vrot.slane %v3333, 2
        %v3335 = vmax.f32 %v3333, %v3334
        %v3336 = vrot.slane %v3335, 1
        %v3337 = vmax.f32 %v3335, %v3336
        %v3338 = vmax.f32 %v3229, %v3230
        %v3339 = vmax.f32 %v3338, %v3231
        %v3340 = vmax.f32 %v3339, %v3232
        %v3341 = vrot.slane %v3340, 4
        %v3342 = vmax.f32 %v3340, %v3341
        %v3343 = vrot.slane %v3342, 2
        %v3344 = vmax.f32 %v3342, %v3343
        %v3345 = vrot.slane %v3344, 1
        %v3346 = vmax.f32 %v3344, %v3345
        %v3347 = vmax.f32 %v3233, %v3234
        %v3348 = vmax.f32 %v3347, %v3235
        %v3349 = vmax.f32 %v3348, %v3236
        %v3350 = vrot.slane %v3349, 4
        %v3351 = vmax.f32 %v3349, %v3350
        %v3352 = vrot.slane %v3351, 2
        %v3353 = vmax.f32 %v3351, %v3352
        %v3354 = vrot.slane %v3353, 1
        %v3355 = vmax.f32 %v3353, %v3354
        %v3356 = vmax.f32 %v3237, %v3238
        %v3357 = vmax.f32 %v3356, %v3239
        %v3358 = vmax.f32 %v3357, %v3240
        %v3359 = vrot.slane %v3358, 4
        %v3360 = vmax.f32 %v3358, %v3359
        %v3361 = vrot.slane %v3360, 2
        %v3362 = vmax.f32 %v3360, %v3361
        %v3363 = vrot.slane %v3362, 1
        %v3364 = vmax.f32 %v3362, %v3363
        %v3365 = vmax.f32 %v3241, %v3242
        %v3366 = vmax.f32 %v3365, %v3243
        %v3367 = vmax.f32 %v3366, %v3244
        %v3368 = vrot.slane %v3367, 4
        %v3369 = vmax.f32 %v3367, %v3368
        %v3370 = vrot.slane %v3369, 2
        %v3371 = vmax.f32 %v3369, %v3370
        %v3372 = vrot.slane %v3371, 1
        %v3373 = vmax.f32 %v3371, %v3372
        %v3374 = vmax.f32 %v3245, %v3246
        %v3375 = vmax.f32 %v3374, %v3247
        %v3376 = vmax.f32 %v3375, %v3248
        %v3377 = vrot.slane %v3376, 4
        %v3378 = vmax.f32 %v3376, %v3377
        %v3379 = vrot.slane %v3378, 2
        %v3380 = vmax.f32 %v3378, %v3379
        %v3381 = vrot.slane %v3380, 1
        %v3382 = vmax.f32 %v3380, %v3381
        %v3383 = vmax.f32 %v3249, %v3250
        %v3384 = vmax.f32 %v3383, %v3251
        %v3385 = vmax.f32 %v3384, %v3252
        %v3386 = vrot.slane %v3385, 4
        %v3387 = vmax.f32 %v3385, %v3386
        %v3388 = vrot.slane %v3387, 2
        %v3389 = vmax.f32 %v3387, %v3388
        %v3390 = vrot.slane %v3389, 1
        %v3391 = vmax.f32 %v3389, %v3390
        %v3392 = vmax.f32 %v3253, %v3254
        %v3393 = vmax.f32 %v3392, %v3255
        %v3394 = vmax.f32 %v3393, %v3256
        %v3395 = vrot.slane %v3394, 4
        %v3396 = vmax.f32 %v3394, %v3395
        %v3397 = vrot.slane %v3396, 2
        %v3398 = vmax.f32 %v3396, %v3397
        %v3399 = vrot.slane %v3398, 1
        %v3400 = vmax.f32 %v3398, %v3399
        %v3401 = vpack.c.bf16 %v3265, %v3265
        %v3402 = vpack.c.bf16 %v3274, %v3274
        %v3403 = vpack.c.bf16 %v3283, %v3283
        %v3404 = vpack.c.bf16 %v3292, %v3292
        %v3405 = vpack.c.bf16 %v3301, %v3301
        %v3406 = vpack.c.bf16 %v3310, %v3310
        %v3407 = vpack.c.bf16 %v3319, %v3319
        %v3408 = vpack.c.bf16 %v3328, %v3328
        %v3409 = vpack.c.bf16 %v3337, %v3337
        %v3410 = vpack.c.bf16 %v3346, %v3346
        %v3411 = vpack.c.bf16 %v3355, %v3355
        %v3412 = vpack.c.bf16 %v3364, %v3364
        %v3413 = vpack.c.bf16 %v3373, %v3373
        %v3414 = vpack.c.bf16 %v3382, %v3382
        %v3415 = vpack.c.bf16 %v3391, %v3391
        %v3416 = vpack.c.bf16 %v3400, %v3400
        %v3433 = vunpack.c.l.b16 %v3401
        %v3434 = vunpack.c.l.b16 %v3402
        %v3435 = vunpack.c.l.b16 %v3403
        %v3436 = vunpack.c.l.b16 %v3404
        %v3437 = vunpack.c.l.b16 %v3405
        %v3438 = vunpack.c.l.b16 %v3406
        %v3439 = vunpack.c.l.b16 %v3407
        %v3440 = vunpack.c.l.b16 %v3408
        %v3441 = vunpack.c.l.b16 %v3409
        %v3442 = vunpack.c.l.b16 %v3410
        %v3443 = vunpack.c.l.b16 %v3411
        %v3444 = vunpack.c.l.b16 %v3412
        %v3445 = vunpack.c.l.b16 %v3413
        %v3446 = vunpack.c.l.b16 %v3414
        %v3447 = vunpack.c.l.b16 %v3415
        %v3448 = vunpack.c.l.b16 %v3416
        %v3449 = vpack.c.b16 %v3433, %v3433
        %v3450 = vpack.c.b16 %v3434, %v3434
        %v3451 = vpack.c.b16 %v3435, %v3435
        %v3452 = vpack.c.b16 %v3436, %v3436
        %v3453 = vpack.c.b16 %v3437, %v3437
        %v3454 = vpack.c.b16 %v3438, %v3438
        %v3455 = vpack.c.b16 %v3439, %v3439
        %v3456 = vpack.c.b16 %v3440, %v3440
        %v3457 = vpack.c.b16 %v3441, %v3441
        %v3458 = vpack.c.b16 %v3442, %v3442
        %v3459 = vpack.c.b16 %v3443, %v3443
        %v3460 = vpack.c.b16 %v3444, %v3444
        %v3461 = vpack.c.b16 %v3445, %v3445
        %v3462 = vpack.c.b16 %v3446, %v3446
        %v3463 = vpack.c.b16 %v3447, %v3447
        %v3464 = vpack.c.b16 %v3448, %v3448
        %v3465 = vunpack.c.l.b16 %v3449
        %v3466 = vunpack.c.l.b16 %v3450
        %v3467 = vunpack.c.l.b16 %v3451
        %v3468 = vunpack.c.l.b16 %v3452
        %v3469 = vunpack.c.l.b16 %v3453
        %v3470 = vunpack.c.l.b16 %v3454
        %v3471 = vunpack.c.l.b16 %v3455
        %v3472 = vunpack.c.l.b16 %v3456
        %v3473 = vunpack.c.l.b16 %v3457
        %v3474 = vunpack.c.l.b16 %v3458
        %v3475 = vunpack.c.l.b16 %v3459
        %v3476 = vunpack.c.l.b16 %v3460
        %v3477 = vunpack.c.l.b16 %v3461
        %v3478 = vunpack.c.l.b16 %v3462
        %v3479 = vunpack.c.l.b16 %v3463
        %v3480 = vunpack.c.l.b16 %v3464
        %vm3481 = vcmask 1041409
        %v3482 = vsel %vm3481, %v3466, %v3465
        %vm3483 = vcmask 1042434
        %v3484 = vsel %vm3483, %v3467, %v3482
        %vm3485 = vcmask 1043459
        %v3486 = vsel %vm3485, %v3468, %v3484
        %vm3487 = vcmask 1044484
        %v3488 = vsel %vm3487, %v3469, %v3486
        %vm3489 = vcmask 1045509
        %v3490 = vsel %vm3489, %v3470, %v3488
        %vm3491 = vcmask 1046534
        %v3492 = vsel %vm3491, %v3471, %v3490
        %vm3493 = vcmask 1047559
        %v3494 = vsel %vm3493, %v3472, %v3492
        %v3495 = vsel %vm3481, %v3474, %v3473
        %v3496 = vsel %vm3483, %v3475, %v3495
        %v3497 = vsel %vm3485, %v3476, %v3496
        %v3498 = vsel %vm3487, %v3477, %v3497
        %v3499 = vsel %vm3489, %v3478, %v3498
        %v3500 = vsel %vm3491, %v3479, %v3499
        %v3501 = vsel %vm3493, %v3480, %v3500
        %v3502 = vpack.c.b16 %v3494, %v3494
        %v3503 = vpack.c.b16 %v3501, %v3501
        %3506 = vst [vmem:[%s437] sm:$0xf] %v3502
        %3507 = vst [vmem:[%s437 + $0x4] sm:$0xf] %v3503
        %p3508 = scmp.lt.s32.totalorder %s23, 1
        %s3509 = scalar_select %p3508, %s23, 1
        %s3510 = smul.addr %s3509, 2
        %s3511 = smul.addr %s3510, 4
        %s3512 = scalar_lea.vmem %s10, %s3511
        // Predicated region
        $region73: #{pointnet_forward.4} parent=59 // pred_check
          %p3513 = pneg %p266
        $region74: #{pointnet_forward.4} parent=59 // pred_check_branch
          %3515 = sbr.rel (%p3513) target = $region76
        $region75: #{pointnet_forward.4} parent=59 // pred_region
          _
        $region76: #{pointnet_forward.4} parent=59 // pred_fallthru
          _
      $region60: #{pointnet_forward.4} parent=5 // pred_fallthru
        _
      %p3516 = scmp.le.s32.totalorder 2, %s18
      // Predicated region
      $region77: #{pointnet_forward.4} parent=5 // pred_check
        %p3517 = pneg %p3516
      $region78: #{pointnet_forward.4} parent=5 // pred_check_branch
        %3519 = sbr.rel (%p3517) target = $region80
      $region79: #{pointnet_forward.4} parent=5 // pred_region
        %s3520 = ssub.s32 %s18, 2
        // Predicated region
        $region81: #{pointnet_forward.4} parent=79 // pred_check
          %p3521 = pneg %p272
        $region82: #{pointnet_forward.4} parent=79 // pred_check_branch
          %3523 = sbr.rel (%p3521) target = $region84
        $region83: #{pointnet_forward.4} parent=79 // pred_region
          %p3524 = scmp.lt.s32.totalorder %s24, 1
          %s3525 = scalar_select %p3524, %s24, 1
          %s3526 = smul.addr %s3525, 2
          %s3527 = smul.addr %s3526, 4
          %s3528 = scalar_lea.vmem %s10, %s3527
        $region84: #{pointnet_forward.4} parent=79 // pred_fallthru
          _
      $region80: #{pointnet_forward.4} parent=5 // pred_fallthru
        _
    $region6: #{pointnet_forward.4} parent=1 // loop_footer
      %s22 = sadd.s32 1, %s18
    $region7: #{pointnet_forward.4} parent=1 // loop_footer_branch
      %17 = sbr.rel target = $region3
    $region8: #{pointnet_forward.4} parent=1 // loop_exit
      _
    %3529 = vsyncpa [#allocation3], 1
    %s3530 = scalar_lea.sflag [#allocation3], 1
    %3531 = vsyncpa %s3530, 1
    %3532 = vsyncpa [#allocation5], 1

// kernel: pointnet_forward.6
$region0: #{pointnet_forward.6}
  #allocation0 [shape = 'u32[]', space=smem, size = 0x4, offset = 0x4, fixed_abs, tag = 'smem constant byte address 0x4 - core index']
  #allocation1 [shape = 'u32[144,128]{1,0:T(1,128)}', space=vmem, size = 0x12000, scoped, tag = 'internal scratch']
  %s0 = inlined_call_operand.vmem [shape: bf16[2,4,256], index: 0, kind: input, shape index: {}]
  %s1 = inlined_call_operand.vmem [shape: f32[2,4,3], index: 1, kind: input, shape index: {}]
  %s2 = inlined_call_operand.vmem [shape: bf16[256,256], index: 2, kind: input, shape index: {}]
  %s3 = inlined_call_operand.vmem [shape: f32[3,256], index: 3, kind: input, shape index: {}]
  %s4 = inlined_call_operand.vmem [shape: f32[1,256], index: 4, kind: input, shape index: {}]
  %s5 = inlined_call_operand.vmem [shape: bf16[256,512], index: 5, kind: input, shape index: {}]
  %s6 = inlined_call_operand.vmem [shape: f32[1,512], index: 6, kind: input, shape index: {}]
  %s7 = inlined_call_operand.vmem [shape: bf16[512,1024], index: 7, kind: input, shape index: {}]
  %s8 = inlined_call_operand.vmem [shape: f32[1,1024], index: 8, kind: input, shape index: {}]
  %s9 = inlined_call_operand.vmem [shape: bf16[2,1,1024], index: 9, kind: output, shape index: {}]
  %s10 = sld [smem:[#allocation0]]
  $region69: #{pointnet_forward.6} parent=0
    _
  %s12 = ssub.s32 1, %s10
  %s13 = scalar_select 0, %s12, %s10
  loop: start=0, step=1, limit=4
  $region2: #{pointnet_forward.6} parent=0 // loop_pre_header
    _
  $region3: #{pointnet_forward.6} parent=0 // loop_header
    %s15 = sphi 0, %s19
    %p16 = scmp.ge.s32.totalorder %s15, 4
    %s25 = sphi 0, %s27
    %s28 = sphi 0, %s25
    %s29 = sphi 0, %s28
    %s45 = sphi 0, %s29
    %s51 = sphi 0, %s53
    %s54 = sphi 0, %s51
    %s55 = sphi 0, %s54
    %s71 = sphi 0, %s55
    %s75 = sphi 0, %s75
    %s77 = sphi 0, %s75
    %s78 = sphi 0, %s77
    %s92 = sphi 0, %s78
    %s96 = sphi 0, %s96
    %s98 = sphi 0, %s96
    %s99 = sphi 0, %s98
    %s113 = sphi 0, %s99
    %s117 = sphi 0, %s117
    %s119 = sphi 0, %s117
    %s120 = sphi 0, %s119
    %s134 = sphi 0, %s120
    %s138 = sphi 0, %s138
    %s140 = sphi 0, %s138
    %s141 = sphi 0, %s140
    %s155 = sphi 0, %s141
    %s159 = sphi 0, %s159
    %s161 = sphi 0, %s159
    %s162 = sphi 0, %s161
    %s176 = sphi 0, %s162
    %s180 = sphi 0, %s180
    %s182 = sphi 0, %s180
    %s183 = sphi 0, %s182
    %s197 = sphi 0, %s183
    %s201 = sphi 0, %s201
    %s203 = sphi 0, %s201
    %s204 = sphi 0, %s203
    %s218 = sphi 0, %s204
    %s224 = sphi 0, %s226
    %s227 = sphi 0, %s224
    %s228 = sphi 0, %s227
    %s244 = sphi 0, %s228
  $region4: #{pointnet_forward.6} parent=0 // loop_header_branch
    %18 = sbr.rel (%p16) target = $region8
  $region5: #{pointnet_forward.6} parent=0 // loop_body
    %s20 = ssub.s32 %s15, 1
    %s21 = ssub.s32 %s15, 2
    %s22 = sadd.s32 %s15, 1
    %s23 = ssub.s32 %s15, %s22
    %p24 = scmp.eq.s32.totalorder %s23, 0
    %s26 = sadd.s32 %s25, 1
    %s27 = scalar_select %p24, %s25, %s26
    %p30 = pneg %p24
    %p31 = scmp.eq.s32.totalorder %s15, 1
    %p32 = por %p30, %p31
    %p33 = scmp.ne.s32.totalorder %s25, %s28
    %p34 = scmp.eq.s32.totalorder %s15, 0
    %p35 = por %p33, %p34
    %p36 = scmp.ne.s32.totalorder %s25, %s28
    %p37 = scmp.eq.s32.totalorder %s20, 1
    %p38 = por %p36, %p37
    %p39 = scmp.ne.s32.totalorder %s28, %s29
    %p40 = scmp.eq.s32.totalorder %s20, 0
    %p41 = por %p39, %p40
    %p42 = scmp.ne.s32.totalorder %s28, %s29
    %p43 = scmp.eq.s32.totalorder %s21, 1
    %p44 = por %p42, %p43
    %p46 = scmp.ne.s32.totalorder %s29, %s45
    %p47 = scmp.eq.s32.totalorder %s21, 0
    %p48 = por %p46, %p47
    %s49 = ssub.s32 %s15, %s22
    %p50 = scmp.eq.s32.totalorder %s49, 0
    %s52 = sadd.s32 %s51, 1
    %s53 = scalar_select %p50, %s51, %s52
    %p56 = pneg %p50
    %p57 = scmp.eq.s32.totalorder %s15, 1
    %p58 = por %p56, %p57
    %p59 = scmp.ne.s32.totalorder %s51, %s54
    %p60 = scmp.eq.s32.totalorder %s15, 0
    %p61 = por %p59, %p60
    %p62 = scmp.ne.s32.totalorder %s51, %s54
    %p63 = scmp.eq.s32.totalorder %s20, 1
    %p64 = por %p62, %p63
    %p65 = scmp.ne.s32.totalorder %s54, %s55
    %p66 = scmp.eq.s32.totalorder %s20, 0
    %p67 = por %p65, %p66
    %p68 = scmp.ne.s32.totalorder %s54, %s55
    %p69 = scmp.eq.s32.totalorder %s21, 1
    %p70 = por %p68, %p69
    %p72 = scmp.ne.s32.totalorder %s55, %s71
    %p73 = scmp.eq.s32.totalorder %s21, 0
    %p74 = por %p72, %p73
    %s76 = sadd.s32 %s75, 1
    %p79 = scmp.eq.s32.totalorder %s15, 1
    %p80 = scmp.ne.s32.totalorder %s75, %s77
    %p81 = scmp.eq.s32.totalorder %s15, 0
    %p82 = por %p80, %p81
    %p83 = scmp.ne.s32.totalorder %s75, %s77
    %p84 = scmp.eq.s32.totalorder %s20, 1
    %p85 = por %p83, %p84
    %p86 = scmp.ne.s32.totalorder %s77, %s78
    %p87 = scmp.eq.s32.totalorder %s20, 0
    %p88 = por %p86, %p87
    %p89 = scmp.ne.s32.totalorder %s77, %s78
    %p90 = scmp.eq.s32.totalorder %s21, 1
    %p91 = por %p89, %p90
    %p93 = scmp.ne.s32.totalorder %s78, %s92
    %p94 = scmp.eq.s32.totalorder %s21, 0
    %p95 = por %p93, %p94
    %s97 = sadd.s32 %s96, 1
    %p100 = scmp.eq.s32.totalorder %s15, 1
    %p101 = scmp.ne.s32.totalorder %s96, %s98
    %p102 = scmp.eq.s32.totalorder %s15, 0
    %p103 = por %p101, %p102
    %p104 = scmp.ne.s32.totalorder %s96, %s98
    %p105 = scmp.eq.s32.totalorder %s20, 1
    %p106 = por %p104, %p105
    %p107 = scmp.ne.s32.totalorder %s98, %s99
    %p108 = scmp.eq.s32.totalorder %s20, 0
    %p109 = por %p107, %p108
    %p110 = scmp.ne.s32.totalorder %s98, %s99
    %p111 = scmp.eq.s32.totalorder %s21, 1
    %p112 = por %p110, %p111
    %p114 = scmp.ne.s32.totalorder %s99, %s113
    %p115 = scmp.eq.s32.totalorder %s21, 0
    %p116 = por %p114, %p115
    %s118 = sadd.s32 %s117, 1
    %p121 = scmp.eq.s32.totalorder %s15, 1
    %p122 = scmp.ne.s32.totalorder %s117, %s119
    %p123 = scmp.eq.s32.totalorder %s15, 0
    %p124 = por %p122, %p123
    %p125 = scmp.ne.s32.totalorder %s117, %s119
    %p126 = scmp.eq.s32.totalorder %s20, 1
    %p127 = por %p125, %p126
    %p128 = scmp.ne.s32.totalorder %s119, %s120
    %p129 = scmp.eq.s32.totalorder %s20, 0
    %p130 = por %p128, %p129
    %p131 = scmp.ne.s32.totalorder %s119, %s120
    %p132 = scmp.eq.s32.totalorder %s21, 1
    %p133 = por %p131, %p132
    %p135 = scmp.ne.s32.totalorder %s120, %s134
    %p136 = scmp.eq.s32.totalorder %s21, 0
    %p137 = por %p135, %p136
    %s139 = sadd.s32 %s138, 1
    %p142 = scmp.eq.s32.totalorder %s15, 1
    %p143 = scmp.ne.s32.totalorder %s138, %s140
    %p144 = scmp.eq.s32.totalorder %s15, 0
    %p145 = por %p143, %p144
    %p146 = scmp.ne.s32.totalorder %s138, %s140
    %p147 = scmp.eq.s32.totalorder %s20, 1
    %p148 = por %p146, %p147
    %p149 = scmp.ne.s32.totalorder %s140, %s141
    %p150 = scmp.eq.s32.totalorder %s20, 0
    %p151 = por %p149, %p150
    %p152 = scmp.ne.s32.totalorder %s140, %s141
    %p153 = scmp.eq.s32.totalorder %s21, 1
    %p154 = por %p152, %p153
    %p156 = scmp.ne.s32.totalorder %s141, %s155
    %p157 = scmp.eq.s32.totalorder %s21, 0
    %p158 = por %p156, %p157
    %s160 = sadd.s32 %s159, 1
    %p163 = scmp.eq.s32.totalorder %s15, 1
    %p164 = scmp.ne.s32.totalorder %s159, %s161
    %p165 = scmp.eq.s32.totalorder %s15, 0
    %p166 = por %p164, %p165
    %p167 = scmp.ne.s32.totalorder %s159, %s161
    %p168 = scmp.eq.s32.totalorder %s20, 1
    %p169 = por %p167, %p168
    %p170 = scmp.ne.s32.totalorder %s161, %s162
    %p171 = scmp.eq.s32.totalorder %s20, 0
    %p172 = por %p170, %p171
    %p173 = scmp.ne.s32.totalorder %s161, %s162
    %p174 = scmp.eq.s32.totalorder %s21, 1
    %p175 = por %p173, %p174
    %p177 = scmp.ne.s32.totalorder %s162, %s176
    %p178 = scmp.eq.s32.totalorder %s21, 0
    %p179 = por %p177, %p178
    %s181 = sadd.s32 %s180, 1
    %p184 = scmp.eq.s32.totalorder %s15, 1
    %p185 = scmp.ne.s32.totalorder %s180, %s182
    %p186 = scmp.eq.s32.totalorder %s15, 0
    %p187 = por %p185, %p186
    %p188 = scmp.ne.s32.totalorder %s180, %s182
    %p189 = scmp.eq.s32.totalorder %s20, 1
    %p190 = por %p188, %p189
    %p191 = scmp.ne.s32.totalorder %s182, %s183
    %p192 = scmp.eq.s32.totalorder %s20, 0
    %p193 = por %p191, %p192
    %p194 = scmp.ne.s32.totalorder %s182, %s183
    %p195 = scmp.eq.s32.totalorder %s21, 1
    %p196 = por %p194, %p195
    %p198 = scmp.ne.s32.totalorder %s183, %s197
    %p199 = scmp.eq.s32.totalorder %s21, 0
    %p200 = por %p198, %p199
    %s202 = sadd.s32 %s201, 1
    %p205 = scmp.eq.s32.totalorder %s15, 1
    %p206 = scmp.ne.s32.totalorder %s201, %s203
    %p207 = scmp.eq.s32.totalorder %s15, 0
    %p208 = por %p206, %p207
    %p209 = scmp.ne.s32.totalorder %s201, %s203
    %p210 = scmp.eq.s32.totalorder %s20, 1
    %p211 = por %p209, %p210
    %p212 = scmp.ne.s32.totalorder %s203, %s204
    %p213 = scmp.eq.s32.totalorder %s20, 0
    %p214 = por %p212, %p213
    %p215 = scmp.ne.s32.totalorder %s203, %s204
    %p216 = scmp.eq.s32.totalorder %s21, 1
    %p217 = por %p215, %p216
    %p219 = scmp.ne.s32.totalorder %s204, %s218
    %p220 = scmp.eq.s32.totalorder %s21, 0
    %p221 = por %p219, %p220
    %s222 = ssub.s32 %s15, %s22
    %p223 = scmp.eq.s32.totalorder %s222, 0
    %s225 = sadd.s32 %s224, 1
    %s226 = scalar_select %p223, %s224, %s225
    %p229 = pneg %p223
    %p230 = scmp.eq.s32.totalorder %s15, 1
    %p231 = por %p229, %p230
    %p232 = scmp.ne.s32.totalorder %s224, %s227
    %p233 = scmp.eq.s32.totalorder %s15, 0
    %p234 = por %p232, %p233
    %p235 = scmp.ne.s32.totalorder %s224, %s227
    %p236 = scmp.eq.s32.totalorder %s20, 1
    %p237 = por %p235, %p236
    %p238 = scmp.ne.s32.totalorder %s227, %s228
    %p239 = scmp.eq.s32.totalorder %s20, 0
    %p240 = por %p238, %p239
    %p241 = scmp.ne.s32.totalorder %s227, %s228
    %p242 = scmp.eq.s32.totalorder %s21, 1
    %p243 = por %p241, %p242
    %p245 = scmp.ne.s32.totalorder %s228, %s244
    %p246 = scmp.eq.s32.totalorder %s21, 0
    %p247 = por %p245, %p246
    %p248 = scmp.le.s32.totalorder 1, %s15
    %p249 = scmp.lt.s32.totalorder %s15, 3
    %p250 = pnand %p248, %p249
    %p251 = pneg %p250
    // Predicated region
    $region9: #{pointnet_forward.6} parent=5 // pred_check
      _
    $region10: #{pointnet_forward.6} parent=5 // pred_check_branch
      %253 = sbr.rel (%p250) target = $region12
    $region11: #{pointnet_forward.6} parent=5 // pred_region
      %s254 = ssub.s32 %s15, 1
      // Predicated region
      $region13: #{pointnet_forward.6} parent=11 // pred_check
        %p255 = pneg %p88
      $region14: #{pointnet_forward.6} parent=11 // pred_check_branch
        %257 = sbr.rel (%p255) target = $region16
      $region15: #{pointnet_forward.6} parent=11 // pred_region
        _
      $region16: #{pointnet_forward.6} parent=11 // pred_fallthru
        _
      // Predicated region
      $region17: #{pointnet_forward.6} parent=11 // pred_check
        %p258 = pneg %p109
      $region18: #{pointnet_forward.6} parent=11 // pred_check_branch
        %260 = sbr.rel (%p258) target = $region20
      $region19: #{pointnet_forward.6} parent=11 // pred_region
        _
      $region20: #{pointnet_forward.6} parent=11 // pred_fallthru
        _
      // Predicated region
      $region21: #{pointnet_forward.6} parent=11 // pred_check
        %p261 = pneg %p130
      $region22: #{pointnet_forward.6} parent=11 // pred_check_branch
        %263 = sbr.rel (%p261) target = $region24
      $region23: #{pointnet_forward.6} parent=11 // pred_region
        _
      $region24: #{pointnet_forward.6} parent=11 // pred_fallthru
        _
      // Predicated region
      $region25: #{pointnet_forward.6} parent=11 // pred_check
        %p264 = pneg %p151
      $region26: #{pointnet_forward.6} parent=11 // pred_check_branch
        %266 = sbr.rel (%p264) target = $region28
      $region27: #{pointnet_forward.6} parent=11 // pred_region
        _
      $region28: #{pointnet_forward.6} parent=11 // pred_fallthru
        _
      // Predicated region
      $region29: #{pointnet_forward.6} parent=11 // pred_check
        %p267 = pneg %p172
      $region30: #{pointnet_forward.6} parent=11 // pred_check_branch
        %269 = sbr.rel (%p267) target = $region32
      $region31: #{pointnet_forward.6} parent=11 // pred_region
        _
      $region32: #{pointnet_forward.6} parent=11 // pred_fallthru
        _
      // Predicated region
      $region33: #{pointnet_forward.6} parent=11 // pred_check
        %p270 = pneg %p193
      $region34: #{pointnet_forward.6} parent=11 // pred_check_branch
        %272 = sbr.rel (%p270) target = $region36
      $region35: #{pointnet_forward.6} parent=11 // pred_region
        _
      $region36: #{pointnet_forward.6} parent=11 // pred_fallthru
        _
      // Predicated region
      $region37: #{pointnet_forward.6} parent=11 // pred_check
        %p273 = pneg %p214
      $region38: #{pointnet_forward.6} parent=11 // pred_check_branch
        %275 = sbr.rel (%p273) target = $region40
      $region39: #{pointnet_forward.6} parent=11 // pred_region
        _
      $region40: #{pointnet_forward.6} parent=11 // pred_fallthru
        _
    $region12: #{pointnet_forward.6} parent=5 // pred_fallthru
      _
    %p276 = scmp.lt.s32.totalorder %s15, 2
    // Predicated region
    $region41: #{pointnet_forward.6} parent=5 // pred_check
      %p277 = pneg %p276
    $region42: #{pointnet_forward.6} parent=5 // pred_check_branch
      %279 = sbr.rel (%p277) target = $region44
    $region43: #{pointnet_forward.6} parent=5 // pred_region
      // Predicated region
      $region45: #{pointnet_forward.6} parent=43 // pred_check
        %p280 = pneg %p35
      $region46: #{pointnet_forward.6} parent=43 // pred_check_branch
        %282 = sbr.rel (%p280) target = $region48
      $region47: #{pointnet_forward.6} parent=43 // pred_region
        %p283 = scmp.lt.s32.totalorder %s15, 1
        %s284 = scalar_select %p283, %s15, 1
        %s285 = smul.addr %s284, 2
        %s286 = smul.addr %s285, 2
        %s287 = scalar_lea.vmem %s0, %s286
      $region48: #{pointnet_forward.6} parent=43 // pred_fallthru
        _
      // Predicated region
      $region49: #{pointnet_forward.6} parent=43 // pred_check
        %p288 = pneg %p61
      $region50: #{pointnet_forward.6} parent=43 // pred_check_branch
        %290 = sbr.rel (%p288) target = $region52
      $region51: #{pointnet_forward.6} parent=43 // pred_region
        %p291 = scmp.lt.s32.totalorder %s15, 1
        %s292 = scalar_select %p291, %s15, 1
        %s293 = smul.addr %s292, 4
        %s294 = scalar_lea.vmem %s1, %s293
      $region52: #{pointnet_forward.6} parent=43 // pred_fallthru
        _
    $region44: #{pointnet_forward.6} parent=5 // pred_fallthru
      _
    %p295 = scmp.le.s32.totalorder 1, %s15
    %p296 = scmp.lt.s32.totalorder %s15, 3
    %p297 = pnand %p295, %p296
    %p298 = pneg %p297
    // Predicated region
    $region53: #{pointnet_forward.6} parent=5 // pred_check
      _
    $region54: #{pointnet_forward.6} parent=5 // pred_check_branch
      %300 = sbr.rel (%p297) target = $region56
    $region55: #{pointnet_forward.6} parent=5 // pred_region
      %s301 = ssub.s32 %s15, 1
      %p302 = scmp.lt.s32.totalorder %s20, 1
      %s303 = scalar_select %p302, %s20, 1
      %s304 = smul.addr %s303, 2
      %s305 = smul.addr %s304, 2
      %s306 = scalar_lea.vmem %s0, %s305
      %p307 = pneg %p41
      %p308 = pneg %p38
      %p309 = scmp.lt.s32.totalorder %s20, 1
      %s310 = scalar_select %p309, %s20, 1
      %s311 = smul.addr %s310, 4
      %s312 = scalar_lea.vmem %s1, %s311
      %p313 = pneg %p67
      %p314 = pneg %p64
      %p315 = pneg %p88
      %p316 = pneg %p85
      %p317 = pneg %p109
      %p318 = pneg %p106
      %p319 = pneg %p130
      %p320 = pneg %p127
      %p321 = pneg %p151
      %p322 = pneg %p148
      %p323 = pneg %p172
      %p324 = pneg %p169
      %p325 = pneg %p193
      %p326 = pneg %p190
      %p327 = pneg %p214
      %p328 = pneg %p211
      %p329 = pneg %p240
      %p330 = pneg %p237
      %p331 = scmp.lt.s32.totalorder %s20, 1
      %s332 = scalar_select %p331, %s20, 1
      %s333 = smul.addr %s332, 8
      %s334 = scalar_lea.vmem %s9, %s333
      %p335 = scmp.lt.s32.totalorder %s20, 1
      %s336 = scalar_select %p335, %s20, 1
      %s337 = smul.addr %s336, 2
      %s338 = smul.addr %s337, 2
      %s339 = scalar_lea.vmem %s0, %s338
      %p340 = scmp.lt.s32.totalorder %s20, 1
      %s341 = scalar_select %p340, %s20, 1
      %s342 = smul.addr %s341, 4
      %s343 = scalar_lea.vmem %s1, %s342
      %p344 = scmp.lt.s32.totalorder %s20, 1
      %s345 = scalar_select %p344, %s20, 1
      %s346 = smul.addr %s345, 8
      %s347 = scalar_lea.vmem %s9, %s346
      %v348 = vld [vmem:[%s343] sm:$0xf]
      %v349 = vld [vmem:[%s339] sm:$0xf]
      %v350 = vld [vmem:[%s2] sm:$0xff]
      %v351 = vld [vmem:[%s2 + $0x8] sm:$0xff]
      %v352 = vld [vmem:[%s2 + $0x10] sm:$0xff]
      %v353 = vld [vmem:[%s2 + $0x18] sm:$0xff]
      %v354 = vld [vmem:[%s2 + $0x20] sm:$0xff]
      %v355 = vld [vmem:[%s2 + $0x28] sm:$0xff]
      %v356 = vld [vmem:[%s2 + $0x30] sm:$0xff]
      %v357 = vld [vmem:[%s2 + $0x38] sm:$0xff]
      %v358 = vld [vmem:[%s2 + $0x40] sm:$0xff]
      %v359 = vld [vmem:[%s2 + $0x48] sm:$0xff]
      %v360 = vld [vmem:[%s2 + $0x50] sm:$0xff]
      %v361 = vld [vmem:[%s2 + $0x58] sm:$0xff]
      %v362 = vld [vmem:[%s2 + $0x60] sm:$0xff]
      %v363 = vld [vmem:[%s2 + $0x68] sm:$0xff]
      %v364 = vld [vmem:[%s2 + $0x70] sm:$0xff]
      %v365 = vld [vmem:[%s2 + $0x78] sm:$0xff]
      %v366 = vld [vmem:[%s2 + $0x80] sm:$0xff]
      %v367 = vld [vmem:[%s2 + $0x88] sm:$0xff]
      %v368 = vld [vmem:[%s2 + $0x90] sm:$0xff]
      %v369 = vld [vmem:[%s2 + $0x98] sm:$0xff]
      %v370 = vld [vmem:[%s2 + $0xa0] sm:$0xff]
      %v371 = vld [vmem:[%s2 + $0xa8] sm:$0xff]
      %v372 = vld [vmem:[%s2 + $0xb0] sm:$0xff]
      %v373 = vld [vmem:[%s2 + $0xb8] sm:$0xff]
      %v374 = vld [vmem:[%s2 + $0xc0] sm:$0xff]
      %v375 = vld [vmem:[%s2 + $0xc8] sm:$0xff]
      %v376 = vld [vmem:[%s2 + $0xd0] sm:$0xff]
      %v377 = vld [vmem:[%s2 + $0xd8] sm:$0xff]
      %v378 = vld [vmem:[%s2 + $0xe0] sm:$0xff]
      %v379 = vld [vmem:[%s2 + $0xe8] sm:$0xff]
      %v380 = vld [vmem:[%s2 + $0xf0] sm:$0xff]
      %v381 = vld [vmem:[%s2 + $0xf8] sm:$0xff]
      %v382 = vld [vmem:[%s4] sm:$0x3]
      %v384 = vlaneseq
      %v385 = vshrl.u32 %v384, 7
      %v386 = vsub.s32 0, %v385
      %v387 = vrot.slane %v382, %v386
      %v388 = vlaneseq
      %v389 = vshrl.u32 %v388, 7
      %v390 = vsub.s32 1, %v389
      %v391 = vrot.slane %v382, %v390
      %v396 = vunpack.c.l.s4 1983009808
      %v397 = vunpack.c.0.s8 %v396
      %v398 = vlaneseq
      %v399 = vshrl.u32 %v398, 7
      %v400 = vsub.s32 %v397, %v399
      %v401 = vrot.slane %v349, %v400
      %v402 = vcombine.high %v401, %v401
      %v437 = vunpack.c.l.b16 %v350
      %v438 = vunpack.c.h.b16 %v350
      %v439 = vunpack.c.l.b16 %v351
      %v440 = vunpack.c.h.b16 %v351
      %v441 = vunpack.c.l.b16 %v352
      %v442 = vunpack.c.h.b16 %v352
      %v443 = vunpack.c.l.b16 %v353
      %v444 = vunpack.c.h.b16 %v353
      %v445 = vunpack.c.l.b16 %v354
      %v446 = vunpack.c.h.b16 %v354
      %v447 = vunpack.c.l.b16 %v355
      %v448 = vunpack.c.h.b16 %v355
      %v449 = vunpack.c.l.b16 %v356
      %v450 = vunpack.c.h.b16 %v356
      %v451 = vunpack.c.l.b16 %v357
      %v452 = vunpack.c.h.b16 %v357
      %v453 = vunpack.c.l.b16 %v358
      %v454 = vunpack.c.h.b16 %v358
      %v455 = vunpack.c.l.b16 %v359
      %v456 = vunpack.c.h.b16 %v359
      %v457 = vunpack.c.l.b16 %v360
      %v458 = vunpack.c.h.b16 %v360
      %v459 = vunpack.c.l.b16 %v361
      %v460 = vunpack.c.h.b16 %v361
      %v461 = vunpack.c.l.b16 %v362
      %v462 = vunpack.c.h.b16 %v362
      %v463 = vunpack.c.l.b16 %v363
      %v464 = vunpack.c.h.b16 %v363
      %v465 = vunpack.c.l.b16 %v364
      %v466 = vunpack.c.h.b16 %v364
      %v467 = vunpack.c.l.b16 %v365
      %v468 = vunpack.c.h.b16 %v365
      %v469 = vunpack.c.l.b16 %v366
      %v470 = vunpack.c.h.b16 %v366
      %v471 = vunpack.c.l.b16 %v367
      %v472 = vunpack.c.h.b16 %v367
      %v473 = vunpack.c.l.b16 %v368
      %v474 = vunpack.c.h.b16 %v368
      %v475 = vunpack.c.l.b16 %v369
      %v476 = vunpack.c.h.b16 %v369
      %v477 = vunpack.c.l.b16 %v370
      %v478 = vunpack.c.h.b16 %v370
      %v479 = vunpack.c.l.b16 %v371
      %v480 = vunpack.c.h.b16 %v371
      %v481 = vunpack.c.l.b16 %v372
      %v482 = vunpack.c.h.b16 %v372
      %v483 = vunpack.c.l.b16 %v373
      %v484 = vunpack.c.h.b16 %v373
      %v485 = vunpack.c.l.b16 %v374
      %v486 = vunpack.c.h.b16 %v374
      %v487 = vunpack.c.l.b16 %v375
      %v488 = vunpack.c.h.b16 %v375
      %v489 = vunpack.c.l.b16 %v376
      %v490 = vunpack.c.h.b16 %v376
      %v491 = vunpack.c.l.b16 %v377
      %v492 = vunpack.c.h.b16 %v377
      %v493 = vunpack.c.l.b16 %v378
      %v494 = vunpack.c.h.b16 %v378
      %v495 = vunpack.c.l.b16 %v379
      %v496 = vunpack.c.h.b16 %v379
      %v497 = vunpack.c.l.b16 %v380
      %v498 = vunpack.c.h.b16 %v380
      %v499 = vunpack.c.l.b16 %v381
      %v500 = vunpack.c.h.b16 %v381
      %v501 = vpack.c.b16 %v439, %v437
      %v502 = vpack.c.b16 %v440, %v438
      %v503 = vpack.c.b16 %v443, %v441
      %v504 = vpack.c.b16 %v444, %v442
      %v505 = vpack.c.b16 %v447, %v445
      %v506 = vpack.c.b16 %v448, %v446
      %v507 = vpack.c.b16 %v451, %v449
      %v508 = vpack.c.b16 %v452, %v450
      %v509 = vpack.c.b16 %v455, %v453
      %v510 = vpack.c.b16 %v456, %v454
      %v511 = vpack.c.b16 %v459, %v457
      %v512 = vpack.c.b16 %v460, %v458
      %v513 = vpack.c.b16 %v463, %v461
      %v514 = vpack.c.b16 %v464, %v462
      %v515 = vpack.c.b16 %v467, %v465
      %v516 = vpack.c.b16 %v468, %v466
      %v517 = vpack.c.b16 %v471, %v469
      %v518 = vpack.c.b16 %v472, %v470
      %v519 = vpack.c.b16 %v475, %v473
      %v520 = vpack.c.b16 %v476, %v474
      %v521 = vpack.c.b16 %v479, %v477
      %v522 = vpack.c.b16 %v480, %v478
      %v523 = vpack.c.b16 %v483, %v481
      %v524 = vpack.c.b16 %v484, %v482
      %v525 = vpack.c.b16 %v487, %v485
      %v526 = vpack.c.b16 %v488, %v486
      %v527 = vpack.c.b16 %v491, %v489
      %v528 = vpack.c.b16 %v492, %v490
      %v529 = vpack.c.b16 %v495, %v493
      %v530 = vpack.c.b16 %v496, %v494
      %v531 = vpack.c.b16 %v499, %v497
      %v532 = vpack.c.b16 %v500, %v498
      %565 = vmatprep.subr.bf16.mxu0 %v516
      %566 = vmatpush1.bf16.msra.mxu0 %v515
      %567 = vmatprep.subr.bf16.mxu0 %v514
      %568 = vmatpush1.bf16.msra.mxu0 %v513
      %569 = vmatprep.subr.bf16.mxu0 %v512
      %570 = vmatpush1.bf16.msra.mxu0 %v511
      %571 = vmatprep.subr.bf16.mxu0 %v510
      %572 = vmatpush1.bf16.msra.mxu0 %v509
      %573 = vmatprep.subr.bf16.mxu0 %v508
      %574 = vmatpush1.bf16.msra.mxu0 %v507
      %575 = vmatprep.subr.bf16.mxu0 %v506
      %576 = vmatpush1.bf16.msra.mxu0 %v505
      %577 = vmatprep.subr.bf16.mxu0 %v504
      %578 = vmatpush1.bf16.msra.mxu0 %v503
      %579 = vmatprep.subr.bf16.mxu0 %v502
      %580 = vmatpush1.bf16.msra.mxu0 %v501
      %581 = vmatprep.subr.bf16.mxu0 %v532
      %582 = vmatpush2.bf16.msra.mxu0 %v531
      %583 = vmatprep.subr.bf16.mxu0 %v530
      %584 = vmatpush2.bf16.msra.mxu0 %v529
      %585 = vmatprep.subr.bf16.mxu0 %v528
      %586 = vmatpush2.bf16.msra.mxu0 %v527
      %587 = vmatprep.subr.bf16.mxu0 %v526
      %588 = vmatpush2.bf16.msra.mxu0 %v525
      %589 = vmatprep.subr.bf16.mxu0 %v524
      %590 = vmatpush2.bf16.msra.mxu0 %v523
      %591 = vmatprep.subr.bf16.mxu0 %v522
      %592 = vmatpush2.bf16.msra.mxu0 %v521
      %593 = vmatprep.subr.bf16.mxu0 %v520
      %594 = vmatpush2.bf16.msra.mxu0 %v519
      %595 = vmatprep.subr.bf16.mxu0 %v518
      %596 = vmatpush2.bf16.msra.mxu0 %v517
      %597 = vmatprep.mubr.bf16.mxu0 %v402
      %598 = vmatmul.mubr.bf16.gmra.mxu0 %v401
      %v599 = vpop.f32.mrf.mxu0
      %v600 = vadd.f32 %v387, %v599
      %v601 = vpop.f32.mrf.mxu0
      %v602 = vadd.f32 %v391, %v601
      %v603 = vpop.f32.mrf.mxu0
      %v604 = vpop.f32.mrf.mxu0
      %605 = vdwg.mxu0
      %v606 = vld [vmem:[%s3] ss:$4 sm:$0x3]
      %608 = vset.pattern.permute.xlu0 0
      %609 = vperm.xlu0 %608, %v348
      %v610 = vpop.permute.xlu0 %609
      %v613 = vlaneseq
      %v614 = vshrl.u32 %v613, 7
      %v615 = vsub.s32 0, %v614
      %v616 = vrot.slane %v606, %v615
      %v617 = vlaneseq
      %v618 = vshrl.u32 %v617, 7
      %v619 = vsub.s32 1, %v618
      %v620 = vrot.slane %v606, %v619
      %v623 = vmul.f32 %v610, %v616
      %v624 = vmul.f32 %v610, %v620
      %s625 = scalar_lea.vmem %s3, 1
      %v626 = vld [vmem:[%s625] ss:$4 sm:$0x3]
      %627 = vset.pattern.permute.xlu0 1
      %628 = vperm.xlu0 %627, %v348
      %v629 = vpop.permute.xlu0 %628
      %v632 = vlaneseq
      %v633 = vshrl.u32 %v632, 7
      %v634 = vsub.s32 0, %v633
      %v635 = vrot.slane %v626, %v634
      %v636 = vlaneseq
      %v637 = vshrl.u32 %v636, 7
      %v638 = vsub.s32 1, %v637
      %v639 = vrot.slane %v626, %v638
      %v642 = vmul.f32 %v629, %v635
      %v643 = vmul.f32 %v629, %v639
      %v644 = vadd.f32 %v623, %v642
      %v645 = vadd.f32 %v624, %v643
      %s646 = scalar_lea.vmem %s3, 2
      %v647 = vld [vmem:[%s646] ss:$4 sm:$0x3]
      %648 = vset.pattern.permute.xlu0 2
      %649 = vperm.xlu0 %648, %v348
      %v650 = vpop.permute.xlu0 %649
      %v653 = vlaneseq
      %v654 = vshrl.u32 %v653, 7
      %v655 = vsub.s32 0, %v654
      %v656 = vrot.slane %v647, %v655
      %v657 = vlaneseq
      %v658 = vshrl.u32 %v657, 7
      %v659 = vsub.s32 1, %v658
      %v660 = vrot.slane %v647, %v659
      %v663 = vmul.f32 %v650, %v656
      %v664 = vmul.f32 %v650, %v660
      %v665 = vadd.f32 %v644, %v663
      %v666 = vadd.f32 %v645, %v664
      %v667 = vadd.f32 %v600, %v665
      %v668 = vadd.f32 %v602, %v666
      %v669 = vmax.f32 %v667, 0.0
      %v670 = vmax.f32 %v668, 0.0
      %v671 = vpack.c.bf16 %v669, %v669
      %v672 = vpack.c.bf16 %v670, %v670
      %v673 = vld [vmem:[%s5] sm:$0xff]
      %v674 = vld [vmem:[%s5 + $0x8] sm:$0xff]
      %v675 = vld [vmem:[%s5 + $0x10] sm:$0xff]
      %v676 = vld [vmem:[%s5 + $0x18] sm:$0xff]
      %v677 = vld [vmem:[%s5 + $0x20] sm:$0xff]
      %v678 = vld [vmem:[%s5 + $0x28] sm:$0xff]
      %v679 = vld [vmem:[%s5 + $0x30] sm:$0xff]
      %v680 = vld [vmem:[%s5 + $0x38] sm:$0xff]
      %v681 = vld [vmem:[%s5 + $0x40] sm:$0xff]
      %v682 = vld [vmem:[%s5 + $0x48] sm:$0xff]
      %v683 = vld [vmem:[%s5 + $0x50] sm:$0xff]
      %v684 = vld [vmem:[%s5 + $0x58] sm:$0xff]
      %v685 = vld [vmem:[%s5 + $0x60] sm:$0xff]
      %v686 = vld [vmem:[%s5 + $0x68] sm:$0xff]
      %v687 = vld [vmem:[%s5 + $0x70] sm:$0xff]
      %v688 = vld [vmem:[%s5 + $0x78] sm:$0xff]
      %v689 = vld [vmem:[%s5 + $0x80] sm:$0xff]
      %v690 = vld [vmem:[%s5 + $0x88] sm:$0xff]
      %v691 = vld [vmem:[%s5 + $0x90] sm:$0xff]
      %v692 = vld [vmem:[%s5 + $0x98] sm:$0xff]
      %v693 = vld [vmem:[%s5 + $0xa0] sm:$0xff]
      %v694 = vld [vmem:[%s5 + $0xa8] sm:$0xff]
      %v695 = vld [vmem:[%s5 + $0xb0] sm:$0xff]
      %v696 = vld [vmem:[%s5 + $0xb8] sm:$0xff]
      %v697 = vld [vmem:[%s5 + $0xc0] sm:$0xff]
      %v698 = vld [vmem:[%s5 + $0xc8] sm:$0xff]
      %v699 = vld [vmem:[%s5 + $0xd0] sm:$0xff]
      %v700 = vld [vmem:[%s5 + $0xd8] sm:$0xff]
      %v701 = vld [vmem:[%s5 + $0xe0] sm:$0xff]
      %v702 = vld [vmem:[%s5 + $0xe8] sm:$0xff]
      %v703 = vld [vmem:[%s5 + $0xf0] sm:$0xff]
      %v704 = vld [vmem:[%s5 + $0xf8] sm:$0xff]
      %v705 = vld [vmem:[%s5 + $0x100] sm:$0xff]
      %v706 = vld [vmem:[%s5 + $0x108] sm:$0xff]
      %v707 = vld [vmem:[%s5 + $0x110] sm:$0xff]
      %v708 = vld [vmem:[%s5 + $0x118] sm:$0xff]
      %v709 = vld [vmem:[%s5 + $0x120] sm:$0xff]
      %v710 = vld [vmem:[%s5 + $0x128] sm:$0xff]
      %v711 = vld [vmem:[%s5 + $0x130] sm:$0xff]
      %v712 = vld [vmem:[%s5 + $0x138] sm:$0xff]
      %v713 = vld [vmem:[%s5 + $0x140] sm:$0xff]
      %v714 = vld [vmem:[%s5 + $0x148] sm:$0xff]
      %v715 = vld [vmem:[%s5 + $0x150] sm:$0xff]
      %v716 = vld [vmem:[%s5 + $0x158] sm:$0xff]
      %v717 = vld [vmem:[%s5 + $0x160] sm:$0xff]
      %v718 = vld [vmem:[%s5 + $0x168] sm:$0xff]
      %v719 = vld [vmem:[%s5 + $0x170] sm:$0xff]
      %v720 = vld [vmem:[%s5 + $0x178] sm:$0xff]
      %v721 = vld [vmem:[%s5 + $0x180] sm:$0xff]
      %v722 = vld [vmem:[%s5 + $0x188] sm:$0xff]
      %v723 = vld [vmem:[%s5 + $0x190] sm:$0xff]
      %v724 = vld [vmem:[%s5 + $0x198] sm:$0xff]
      %v725 = vld [vmem:[%s5 + $0x1a0] sm:$0xff]
      %v726 = vld [vmem:[%s5 + $0x1a8] sm:$0xff]
      %v727 = vld [vmem:[%s5 + $0x1b0] sm:$0xff]
      %v728 = vld [vmem:[%s5 + $0x1b8] sm:$0xff]
      %v729 = vld [vmem:[%s5 + $0x1c0] sm:$0xff]
      %v730 = vld [vmem:[%s5 + $0x1c8] sm:$0xff]
      %v731 = vld [vmem:[%s5 + $0x1d0] sm:$0xff]
      %v732 = vld [vmem:[%s5 + $0x1d8] sm:$0xff]
      %v733 = vld [vmem:[%s5 + $0x1e0] sm:$0xff]
      %v734 = vld [vmem:[%s5 + $0x1e8] sm:$0xff]
      %v735 = vld [vmem:[%s5 + $0x1f0] sm:$0xff]
      %v736 = vld [vmem:[%s5 + $0x1f8] sm:$0xff]
      %v737 = vld [vmem:[%s6] sm:$0xf]
      %v739 = vlaneseq
      %v740 = vshrl.u32 %v739, 7
      %v741 = vsub.s32 0, %v740
      %v742 = vrot.slane %v737, %v741
      %v743 = vlaneseq
      %v744 = vshrl.u32 %v743, 7
      %v745 = vsub.s32 1, %v744
      %v746 = vrot.slane %v737, %v745
      %v747 = vlaneseq
      %v748 = vshrl.u32 %v747, 7
      %v749 = vsub.s32 2, %v748
      %v750 = vrot.slane %v737, %v749
      %v751 = vlaneseq
      %v752 = vshrl.u32 %v751, 7
      %v753 = vsub.s32 3, %v752
      %v754 = vrot.slane %v737, %v753
      %v823 = vunpack.c.l.b16 %v673
      %v824 = vunpack.c.h.b16 %v673
      %v825 = vunpack.c.l.b16 %v674
      %v826 = vunpack.c.h.b16 %v674
      %v827 = vunpack.c.l.b16 %v675
      %v828 = vunpack.c.h.b16 %v675
      %v829 = vunpack.c.l.b16 %v676
      %v830 = vunpack.c.h.b16 %v676
      %v831 = vunpack.c.l.b16 %v677
      %v832 = vunpack.c.h.b16 %v677
      %v833 = vunpack.c.l.b16 %v678
      %v834 = vunpack.c.h.b16 %v678
      %v835 = vunpack.c.l.b16 %v679
      %v836 = vunpack.c.h.b16 %v679
      %v837 = vunpack.c.l.b16 %v680
      %v838 = vunpack.c.h.b16 %v680
      %v839 = vunpack.c.l.b16 %v681
      %v840 = vunpack.c.h.b16 %v681
      %v841 = vunpack.c.l.b16 %v682
      %v842 = vunpack.c.h.b16 %v682
      %v843 = vunpack.c.l.b16 %v683
      %v844 = vunpack.c.h.b16 %v683
      %v845 = vunpack.c.l.b16 %v684
      %v846 = vunpack.c.h.b16 %v684
      %v847 = vunpack.c.l.b16 %v685
      %v848 = vunpack.c.h.b16 %v685
      %v849 = vunpack.c.l.b16 %v686
      %v850 = vunpack.c.h.b16 %v686
      %v851 = vunpack.c.l.b16 %v687
      %v852 = vunpack.c.h.b16 %v687
      %v853 = vunpack.c.l.b16 %v688
      %v854 = vunpack.c.h.b16 %v688
      %v855 = vunpack.c.l.b16 %v689
      %v856 = vunpack.c.h.b16 %v689
      %v857 = vunpack.c.l.b16 %v690
      %v858 = vunpack.c.h.b16 %v690
      %v859 = vunpack.c.l.b16 %v691
      %v860 = vunpack.c.h.b16 %v691
      %v861 = vunpack.c.l.b16 %v692
      %v862 = vunpack.c.h.b16 %v692
      %v863 = vunpack.c.l.b16 %v693
      %v864 = vunpack.c.h.b16 %v693
      %v865 = vunpack.c.l.b16 %v694
      %v866 = vunpack.c.h.b16 %v694
      %v867 = vunpack.c.l.b16 %v695
      %v868 = vunpack.c.h.b16 %v695
      %v869 = vunpack.c.l.b16 %v696
      %v870 = vunpack.c.h.b16 %v696
      %v871 = vunpack.c.l.b16 %v697
      %v872 = vunpack.c.h.b16 %v697
      %v873 = vunpack.c.l.b16 %v698
      %v874 = vunpack.c.h.b16 %v698
      %v875 = vunpack.c.l.b16 %v699
      %v876 = vunpack.c.h.b16 %v699
      %v877 = vunpack.c.l.b16 %v700
      %v878 = vunpack.c.h.b16 %v700
      %v879 = vunpack.c.l.b16 %v701
      %v880 = vunpack.c.h.b16 %v701
      %v881 = vunpack.c.l.b16 %v702
      %v882 = vunpack.c.h.b16 %v702
      %v883 = vunpack.c.l.b16 %v703
      %v884 = vunpack.c.h.b16 %v703
      %v885 = vunpack.c.l.b16 %v704
      %v886 = vunpack.c.h.b16 %v704
      %v887 = vunpack.c.l.b16 %v705
      %v888 = vunpack.c.h.b16 %v705
      %v889 = vunpack.c.l.b16 %v706
      %v890 = vunpack.c.h.b16 %v706
      %v891 = vunpack.c.l.b16 %v707
      %v892 = vunpack.c.h.b16 %v707
      %v893 = vunpack.c.l.b16 %v708
      %v894 = vunpack.c.h.b16 %v708
      %v895 = vunpack.c.l.b16 %v709
      %v896 = vunpack.c.h.b16 %v709
      %v897 = vunpack.c.l.b16 %v710
      %v898 = vunpack.c.h.b16 %v710
      %v899 = vunpack.c.l.b16 %v711
      %v900 = vunpack.c.h.b16 %v711
      %v901 = vunpack.c.l.b16 %v712
      %v902 = vunpack.c.h.b16 %v712
      %v903 = vunpack.c.l.b16 %v713
      %v904 = vunpack.c.h.b16 %v713
      %v905 = vunpack.c.l.b16 %v714
      %v906 = vunpack.c.h.b16 %v714
      %v907 = vunpack.c.l.b16 %v715
      %v908 = vunpack.c.h.b16 %v715
      %v909 = vunpack.c.l.b16 %v716
      %v910 = vunpack.c.h.b16 %v716
      %v911 = vunpack.c.l.b16 %v717
      %v912 = vunpack.c.h.b16 %v717
      %v913 = vunpack.c.l.b16 %v718
      %v914 = vunpack.c.h.b16 %v718
      %v915 = vunpack.c.l.b16 %v719
      %v916 = vunpack.c.h.b16 %v719
      %v917 = vunpack.c.l.b16 %v720
      %v918 = vunpack.c.h.b16 %v720
      %v919 = vunpack.c.l.b16 %v721
      %v920 = vunpack.c.h.b16 %v721
      %v921 = vunpack.c.l.b16 %v722
      %v922 = vunpack.c.h.b16 %v722
      %v923 = vunpack.c.l.b16 %v723
      %v924 = vunpack.c.h.b16 %v723
      %v925 = vunpack.c.l.b16 %v724
      %v926 = vunpack.c.h.b16 %v724
      %v927 = vunpack.c.l.b16 %v725
      %v928 = vunpack.c.h.b16 %v725
      %v929 = vunpack.c.l.b16 %v726
      %v930 = vunpack.c.h.b16 %v726
      %v931 = vunpack.c.l.b16 %v727
      %v932 = vunpack.c.h.b16 %v727
      %v933 = vunpack.c.l.b16 %v728
      %v934 = vunpack.c.h.b16 %v728
      %v935 = vunpack.c.l.b16 %v729
      %v936 = vunpack.c.h.b16 %v729
      %v937 = vunpack.c.l.b16 %v730
      %v938 = vunpack.c.h.b16 %v730
      %v939 = vunpack.c.l.b16 %v731
      %v940 = vunpack.c.h.b16 %v731
      %v941 = vunpack.c.l.b16 %v732
      %v942 = vunpack.c.h.b16 %v732
      %v943 = vunpack.c.l.b16 %v733
      %v944 = vunpack.c.h.b16 %v733
      %v945 = vunpack.c.l.b16 %v734
      %v946 = vunpack.c.h.b16 %v734
      %v947 = vunpack.c.l.b16 %v735
      %v948 = vunpack.c.h.b16 %v735
      %v949 = vunpack.c.l.b16 %v736
      %v950 = vunpack.c.h.b16 %v736
      %v951 = vpack.c.b16 %v827, %v823
      %v952 = vpack.c.b16 %v828, %v824
      %v953 = vpack.c.b16 %v829, %v825
      %v954 = vpack.c.b16 %v830, %v826
      %v955 = vpack.c.b16 %v835, %v831
      %v956 = vpack.c.b16 %v836, %v832
      %v957 = vpack.c.b16 %v837, %v833
      %v958 = vpack.c.b16 %v838, %v834
      %v959 = vpack.c.b16 %v843, %v839
      %v960 = vpack.c.b16 %v844, %v840
      %v961 = vpack.c.b16 %v845, %v841
      %v962 = vpack.c.b16 %v846, %v842
      %v963 = vpack.c.b16 %v851, %v847
      %v964 = vpack.c.b16 %v852, %v848
      %v965 = vpack.c.b16 %v853, %v849
      %v966 = vpack.c.b16 %v854, %v850
      %v967 = vpack.c.b16 %v859, %v855
      %v968 = vpack.c.b16 %v860, %v856
      %v969 = vpack.c.b16 %v861, %v857
      %v970 = vpack.c.b16 %v862, %v858
      %v971 = vpack.c.b16 %v867, %v863
      %v972 = vpack.c.b16 %v868, %v864
      %v973 = vpack.c.b16 %v869, %v865
      %v974 = vpack.c.b16 %v870, %v866
      %v975 = vpack.c.b16 %v875, %v871
      %v976 = vpack.c.b16 %v876, %v872
      %v977 = vpack.c.b16 %v877, %v873
      %v978 = vpack.c.b16 %v878, %v874
      %v979 = vpack.c.b16 %v883, %v879
      %v980 = vpack.c.b16 %v884, %v880
      %v981 = vpack.c.b16 %v885, %v881
      %v982 = vpack.c.b16 %v886, %v882
      %v983 = vpack.c.b16 %v891, %v887
      %v984 = vpack.c.b16 %v892, %v888
      %v985 = vpack.c.b16 %v893, %v889
      %v986 = vpack.c.b16 %v894, %v890
      %v987 = vpack.c.b16 %v899, %v895
      %v988 = vpack.c.b16 %v900, %v896
      %v989 = vpack.c.b16 %v901, %v897
      %v990 = vpack.c.b16 %v902, %v898
      %v991 = vpack.c.b16 %v907, %v903
      %v992 = vpack.c.b16 %v908, %v904
      %v993 = vpack.c.b16 %v909, %v905
      %v994 = vpack.c.b16 %v910, %v906
      %v995 = vpack.c.b16 %v915, %v911
      %v996 = vpack.c.b16 %v916, %v912
      %v997 = vpack.c.b16 %v917, %v913
      %v998 = vpack.c.b16 %v918, %v914
      %v999 = vpack.c.b16 %v923, %v919
      %v1000 = vpack.c.b16 %v924, %v920
      %v1001 = vpack.c.b16 %v925, %v921
      %v1002 = vpack.c.b16 %v926, %v922
      %v1003 = vpack.c.b16 %v931, %v927
      %v1004 = vpack.c.b16 %v932, %v928
      %v1005 = vpack.c.b16 %v933, %v929
      %v1006 = vpack.c.b16 %v934, %v930
      %v1007 = vpack.c.b16 %v939, %v935
      %v1008 = vpack.c.b16 %v940, %v936
      %v1009 = vpack.c.b16 %v941, %v937
      %v1010 = vpack.c.b16 %v942, %v938
      %v1011 = vpack.c.b16 %v947, %v943
      %v1012 = vpack.c.b16 %v948, %v944
      %v1013 = vpack.c.b16 %v949, %v945
      %v1014 = vpack.c.b16 %v950, %v946
      %1079 = vmatprep.subr.bf16.mxu0 %v980
      %1080 = vmatpush1.bf16.msra.mxu0 %v979
      %1081 = vmatprep.subr.bf16.mxu0 %v976
      %1082 = vmatpush1.bf16.msra.mxu0 %v975
      %1083 = vmatprep.subr.bf16.mxu0 %v972
      %1084 = vmatpush1.bf16.msra.mxu0 %v971
      %1085 = vmatprep.subr.bf16.mxu0 %v968
      %1086 = vmatpush1.bf16.msra.mxu0 %v967
      %1087 = vmatprep.subr.bf16.mxu0 %v964
      %1088 = vmatpush1.bf16.msra.mxu0 %v963
      %1089 = vmatprep.subr.bf16.mxu0 %v960
      %1090 = vmatpush1.bf16.msra.mxu0 %v959
      %1091 = vmatprep.subr.bf16.mxu0 %v956
      %1092 = vmatpush1.bf16.msra.mxu0 %v955
      %1093 = vmatprep.subr.bf16.mxu0 %v952
      %1094 = vmatpush1.bf16.msra.mxu0 %v951
      %1095 = vmatprep.subr.bf16.mxu0 %v1012
      %1096 = vmatpush2.bf16.msra.mxu0 %v1011
      %1097 = vmatprep.subr.bf16.mxu0 %v1008
      %1098 = vmatpush2.bf16.msra.mxu0 %v1007
      %1099 = vmatprep.subr.bf16.mxu0 %v1004
      %1100 = vmatpush2.bf16.msra.mxu0 %v1003
      %1101 = vmatprep.subr.bf16.mxu0 %v1000
      %1102 = vmatpush2.bf16.msra.mxu0 %v999
      %1103 = vmatprep.subr.bf16.mxu0 %v996
      %1104 = vmatpush2.bf16.msra.mxu0 %v995
      %1105 = vmatprep.subr.bf16.mxu0 %v992
      %1106 = vmatpush2.bf16.msra.mxu0 %v991
      %1107 = vmatprep.subr.bf16.mxu0 %v988
      %1108 = vmatpush2.bf16.msra.mxu0 %v987
      %1109 = vmatprep.subr.bf16.mxu0 %v984
      %1110 = vmatpush2.bf16.msra.mxu0 %v983
      %1111 = vmatprep.mubr.bf16.mxu0 %v672
      %1112 = vmatmul.mubr.bf16.gmra.mxu0 %v671
      %v1113 = vpop.f32.mrf.mxu0
      %v1114 = vadd.f32 %v742, %v1113
      %v1115 = vpop.f32.mrf.mxu0
      %v1116 = vadd.f32 %v746, %v1115
      %v1117 = vpop.f32.mrf.mxu0
      %v1118 = vpop.f32.mrf.mxu0
      %1119 = vdwg.mxu0
      %1120 = vmatprep.subr.bf16.mxu0 %v982
      %1121 = vmatpush1.bf16.msra.mxu0 %v981
      %1122 = vmatprep.subr.bf16.mxu0 %v978
      %1123 = vmatpush1.bf16.msra.mxu0 %v977
      %1124 = vmatprep.subr.bf16.mxu0 %v974
      %1125 = vmatpush1.bf16.msra.mxu0 %v973
      %1126 = vmatprep.subr.bf16.mxu0 %v970
      %1127 = vmatpush1.bf16.msra.mxu0 %v969
      %1128 = vmatprep.subr.bf16.mxu0 %v966
      %1129 = vmatpush1.bf16.msra.mxu0 %v965
      %1130 = vmatprep.subr.bf16.mxu0 %v962
      %1131 = vmatpush1.bf16.msra.mxu0 %v961
      %1132 = vmatprep.subr.bf16.mxu0 %v958
      %1133 = vmatpush1.bf16.msra.mxu0 %v957
      %1134 = vmatprep.subr.bf16.mxu0 %v954
      %1135 = vmatpush1.bf16.msra.mxu0 %v953
      %1136 = vmatprep.subr.bf16.mxu0 %v1014
      %1137 = vmatpush2.bf16.msra.mxu0 %v1013
      %1138 = vmatprep.subr.bf16.mxu0 %v1010
      %1139 = vmatpush2.bf16.msra.mxu0 %v1009
      %1140 = vmatprep.subr.bf16.mxu0 %v1006
      %1141 = vmatpush2.bf16.msra.mxu0 %v1005
      %1142 = vmatprep.subr.bf16.mxu0 %v1002
      %1143 = vmatpush2.bf16.msra.mxu0 %v1001
      %1144 = vmatprep.subr.bf16.mxu0 %v998
      %1145 = vmatpush2.bf16.msra.mxu0 %v997
      %1146 = vmatprep.subr.bf16.mxu0 %v994
      %1147 = vmatpush2.bf16.msra.mxu0 %v993
      %1148 = vmatprep.subr.bf16.mxu0 %v990
      %1149 = vmatpush2.bf16.msra.mxu0 %v989
      %1150 = vmatprep.subr.bf16.mxu0 %v986
      %1151 = vmatpush2.bf16.msra.mxu0 %v985
      %1152 = vmatprep.mubr.bf16.mxu0 %v672
      %1153 = vmatmul.mubr.bf16.gmra.mxu0 %v671
      %v1154 = vpop.f32.mrf.mxu0
      %v1155 = vadd.f32 %v750, %v1154
      %v1156 = vpop.f32.mrf.mxu0
      %v1157 = vadd.f32 %v754, %v1156
      %v1158 = vpop.f32.mrf.mxu0
      %v1159 = vpop.f32.mrf.mxu0
      %1160 = vdwg.mxu0
      %v1161 = vmax.f32 %v1114, 0.0
      %v1162 = vmax.f32 %v1116, 0.0
      %v1163 = vmax.f32 %v1155, 0.0
      %v1164 = vmax.f32 %v1157, 0.0
      %v1165 = vpack.c.bf16 %v1161, %v1161
      %v1166 = vpack.c.bf16 %v1162, %v1162
      %v1167 = vpack.c.bf16 %v1163, %v1163
      %v1168 = vpack.c.bf16 %v1164, %v1164
      %v1169 = vld [vmem:[%s7] sm:$0xff]
      %v1170 = vld [vmem:[%s7 + $0x8] sm:$0xff]
      %v1171 = vld [vmem:[%s7 + $0x10] sm:$0xff]
      %v1172 = vld [vmem:[%s7 + $0x18] sm:$0xff]
      %v1173 = vld [vmem:[%s7 + $0x20] sm:$0xff]
      %v1174 = vld [vmem:[%s7 + $0x28] sm:$0xff]
      %v1175 = vld [vmem:[%s7 + $0x30] sm:$0xff]
      %v1176 = vld [vmem:[%s7 + $0x38] sm:$0xff]
      %v1177 = vld [vmem:[%s7 + $0x40] sm:$0xff]
      %v1178 = vld [vmem:[%s7 + $0x48] sm:$0xff]
      %v1179 = vld [vmem:[%s7 + $0x50] sm:$0xff]
      %v1180 = vld [vmem:[%s7 + $0x58] sm:$0xff]
      %v1181 = vld [vmem:[%s7 + $0x60] sm:$0xff]
      %v1182 = vld [vmem:[%s7 + $0x68] sm:$0xff]
      %v1183 = vld [vmem:[%s7 + $0x70] sm:$0xff]
      %v1184 = vld [vmem:[%s7 + $0x78] sm:$0xff]
      %v1185 = vld [vmem:[%s7 + $0x80] sm:$0xff]
      %v1186 = vld [vmem:[%s7 + $0x88] sm:$0xff]
      %v1187 = vld [vmem:[%s7 + $0x90] sm:$0xff]
      %v1188 = vld [vmem:[%s7 + $0x98] sm:$0xff]
      %v1189 = vld [vmem:[%s7 + $0xa0] sm:$0xff]
      %v1190 = vld [vmem:[%s7 + $0xa8] sm:$0xff]
      %v1191 = vld [vmem:[%s7 + $0xb0] sm:$0xff]
      %v1192 = vld [vmem:[%s7 + $0xb8] sm:$0xff]
      %v1193 = vld [vmem:[%s7 + $0xc0] sm:$0xff]
      %v1194 = vld [vmem:[%s7 + $0xc8] sm:$0xff]
      %v1195 = vld [vmem:[%s7 + $0xd0] sm:$0xff]
      %v1196 = vld [vmem:[%s7 + $0xd8] sm:$0xff]
      %v1197 = vld [vmem:[%s7 + $0xe0] sm:$0xff]
      %v1198 = vld [vmem:[%s7 + $0xe8] sm:$0xff]
      %v1199 = vld [vmem:[%s7 + $0xf0] sm:$0xff]
      %v1200 = vld [vmem:[%s7 + $0xf8] sm:$0xff]
      %v1201 = vld [vmem:[%s7 + $0x100] sm:$0xff]
      %v1202 = vld [vmem:[%s7 + $0x108] sm:$0xff]
      %v1203 = vld [vmem:[%s7 + $0x110] sm:$0xff]
      %v1204 = vld [vmem:[%s7 + $0x118] sm:$0xff]
      %v1205 = vld [vmem:[%s7 + $0x120] sm:$0xff]
      %v1206 = vld [vmem:[%s7 + $0x128] sm:$0xff]
      %v1207 = vld [vmem:[%s7 + $0x130] sm:$0xff]
      %v1208 = vld [vmem:[%s7 + $0x138] sm:$0xff]
      %v1209 = vld [vmem:[%s7 + $0x140] sm:$0xff]
      %v1210 = vld [vmem:[%s7 + $0x148] sm:$0xff]
      %v1211 = vld [vmem:[%s7 + $0x150] sm:$0xff]
      %v1212 = vld [vmem:[%s7 + $0x158] sm:$0xff]
      %v1213 = vld [vmem:[%s7 + $0x160] sm:$0xff]
      %v1214 = vld [vmem:[%s7 + $0x168] sm:$0xff]
      %v1215 = vld [vmem:[%s7 + $0x170] sm:$0xff]
      %v1216 = vld [vmem:[%s7 + $0x178] sm:$0xff]
      %v1217 = vld [vmem:[%s7 + $0x180] sm:$0xff]
      %v1218 = vld [vmem:[%s7 + $0x188] sm:$0xff]
      %v1219 = vld [vmem:[%s7 + $0x190] sm:$0xff]
      %v1220 = vld [vmem:[%s7 + $0x198] sm:$0xff]
      %v1221 = vld [vmem:[%s7 + $0x1a0] sm:$0xff]
      %v1222 = vld [vmem:[%s7 + $0x1a8] sm:$0xff]
      %v1223 = vld [vmem:[%s7 + $0x1b0] sm:$0xff]
      %v1224 = vld [vmem:[%s7 + $0x1b8] sm:$0xff]
      %v1225 = vld [vmem:[%s7 + $0x1c0] sm:$0xff]
      %v1226 = vld [vmem:[%s7 + $0x1c8] sm:$0xff]
      %v1227 = vld [vmem:[%s7 + $0x1d0] sm:$0xff]
      %v1228 = vld [vmem:[%s7 + $0x1d8] sm:$0xff]
      %v1229 = vld [vmem:[%s7 + $0x1e0] sm:$0xff]
      %v1230 = vld [vmem:[%s7 + $0x1e8] sm:$0xff]
      %v1231 = vld [vmem:[%s7 + $0x1f0] sm:$0xff]
      %v1232 = vld [vmem:[%s7 + $0x1f8] sm:$0xff]
      %v1233 = vld [vmem:[%s7 + $0x200] sm:$0xff]
      %v1234 = vld [vmem:[%s7 + $0x208] sm:$0xff]
      %v1235 = vld [vmem:[%s7 + $0x210] sm:$0xff]
      %v1236 = vld [vmem:[%s7 + $0x218] sm:$0xff]
      %v1237 = vld [vmem:[%s7 + $0x220] sm:$0xff]
      %v1238 = vld [vmem:[%s7 + $0x228] sm:$0xff]
      %v1239 = vld [vmem:[%s7 + $0x230] sm:$0xff]
      %v1240 = vld [vmem:[%s7 + $0x238] sm:$0xff]
      %v1241 = vld [vmem:[%s7 + $0x240] sm:$0xff]
      %v1242 = vld [vmem:[%s7 + $0x248] sm:$0xff]
      %v1243 = vld [vmem:[%s7 + $0x250] sm:$0xff]
      %v1244 = vld [vmem:[%s7 + $0x258] sm:$0xff]
      %v1245 = vld [vmem:[%s7 + $0x260] sm:$0xff]
      %v1246 = vld [vmem:[%s7 + $0x268] sm:$0xff]
      %v1247 = vld [vmem:[%s7 + $0x270] sm:$0xff]
      %v1248 = vld [vmem:[%s7 + $0x278] sm:$0xff]
      %v1249 = vld [vmem:[%s7 + $0x280] sm:$0xff]
      %v1250 = vld [vmem:[%s7 + $0x288] sm:$0xff]
      %v1251 = vld [vmem:[%s7 + $0x290] sm:$0xff]
      %v1252 = vld [vmem:[%s7 + $0x298] sm:$0xff]
      %v1253 = vld [vmem:[%s7 + $0x2a0] sm:$0xff]
      %v1254 = vld [vmem:[%s7 + $0x2a8] sm:$0xff]
      %v1255 = vld [vmem:[%s7 + $0x2b0] sm:$0xff]
      %v1256 = vld [vmem:[%s7 + $0x2b8] sm:$0xff]
      %v1257 = vld [vmem:[%s7 + $0x2c0] sm:$0xff]
      %v1258 = vld [vmem:[%s7 + $0x2c8] sm:$0xff]
      %v1259 = vld [vmem:[%s7 + $0x2d0] sm:$0xff]
      %v1260 = vld [vmem:[%s7 + $0x2d8] sm:$0xff]
      %v1261 = vld [vmem:[%s7 + $0x2e0] sm:$0xff]
      %v1262 = vld [vmem:[%s7 + $0x2e8] sm:$0xff]
      %v1263 = vld [vmem:[%s7 + $0x2f0] sm:$0xff]
      %v1264 = vld [vmem:[%s7 + $0x2f8] sm:$0xff]
      %v1265 = vld [vmem:[%s7 + $0x300] sm:$0xff]
      %v1266 = vld [vmem:[%s7 + $0x308] sm:$0xff]
      %v1267 = vld [vmem:[%s7 + $0x310] sm:$0xff]
      %v1268 = vld [vmem:[%s7 + $0x318] sm:$0xff]
      %v1269 = vld [vmem:[%s7 + $0x320] sm:$0xff]
      %v1270 = vld [vmem:[%s7 + $0x328] sm:$0xff]
      %v1271 = vld [vmem:[%s7 + $0x330] sm:$0xff]
      %v1272 = vld [vmem:[%s7 + $0x338] sm:$0xff]
      %v1273 = vld [vmem:[%s7 + $0x340] sm:$0xff]
      %v1274 = vld [vmem:[%s7 + $0x348] sm:$0xff]
      %v1275 = vld [vmem:[%s7 + $0x350] sm:$0xff]
      %v1276 = vld [vmem:[%s7 + $0x358] sm:$0xff]
      %v1277 = vld [vmem:[%s7 + $0x360] sm:$0xff]
      %v1278 = vld [vmem:[%s7 + $0x368] sm:$0xff]
      %v1279 = vld [vmem:[%s7 + $0x370] sm:$0xff]
      %v1280 = vld [vmem:[%s7 + $0x378] sm:$0xff]
      %v1281 = vld [vmem:[%s7 + $0x380] sm:$0xff]
      %v1282 = vld [vmem:[%s7 + $0x388] sm:$0xff]
      %v1283 = vld [vmem:[%s7 + $0x390] sm:$0xff]
      %v1284 = vld [vmem:[%s7 + $0x398] sm:$0xff]
      %v1285 = vld [vmem:[%s7 + $0x3a0] sm:$0xff]
      %v1286 = vld [vmem:[%s7 + $0x3a8] sm:$0xff]
      %v1287 = vld [vmem:[%s7 + $0x3b0] sm:$0xff]
      %v1288 = vld [vmem:[%s7 + $0x3b8] sm:$0xff]
      %v1289 = vld [vmem:[%s7 + $0x3c0] sm:$0xff]
      %v1290 = vld [vmem:[%s7 + $0x3c8] sm:$0xff]
      %v1291 = vld [vmem:[%s7 + $0x3d0] sm:$0xff]
      %v1292 = vld [vmem:[%s7 + $0x3d8] sm:$0xff]
      %v1293 = vld [vmem:[%s7 + $0x3e0] sm:$0xff]
      %v1294 = vld [vmem:[%s7 + $0x3e8] sm:$0xff]
      %v1295 = vld [vmem:[%s7 + $0x3f0] sm:$0xff]
      %v1296 = vld [vmem:[%s7 + $0x3f8] sm:$0xff]
      %v1297 = vld [vmem:[%s7 + $0x400] sm:$0xff]
      %v1298 = vld [vmem:[%s7 + $0x408] sm:$0xff]
      %v1299 = vld [vmem:[%s7 + $0x410] sm:$0xff]
      %v1300 = vld [vmem:[%s7 + $0x418] sm:$0xff]
      %v1301 = vld [vmem:[%s7 + $0x420] sm:$0xff]
      %v1302 = vld [vmem:[%s7 + $0x428] sm:$0xff]
      %v1303 = vld [vmem:[%s7 + $0x430] sm:$0xff]
      %v1304 = vld [vmem:[%s7 + $0x438] sm:$0xff]
      %v1305 = vld [vmem:[%s7 + $0x440] sm:$0xff]
      %v1306 = vld [vmem:[%s7 + $0x448] sm:$0xff]
      %v1307 = vld [vmem:[%s7 + $0x450] sm:$0xff]
      %v1308 = vld [vmem:[%s7 + $0x458] sm:$0xff]
      %v1309 = vld [vmem:[%s7 + $0x460] sm:$0xff]
      %v1310 = vld [vmem:[%s7 + $0x468] sm:$0xff]
      %v1311 = vld [vmem:[%s7 + $0x470] sm:$0xff]
      %v1312 = vld [vmem:[%s7 + $0x478] sm:$0xff]
      %v1313 = vld [vmem:[%s7 + $0x480] sm:$0xff]
      %v1314 = vld [vmem:[%s7 + $0x488] sm:$0xff]
      %v1315 = vld [vmem:[%s7 + $0x490] sm:$0xff]
      %v1316 = vld [vmem:[%s7 + $0x498] sm:$0xff]
      %v1317 = vld [vmem:[%s7 + $0x4a0] sm:$0xff]
      %v1318 = vld [vmem:[%s7 + $0x4a8] sm:$0xff]
      %v1319 = vld [vmem:[%s7 + $0x4b0] sm:$0xff]
      %v1320 = vld [vmem:[%s7 + $0x4b8] sm:$0xff]
      %v1321 = vld [vmem:[%s7 + $0x4c0] sm:$0xff]
      %v1322 = vld [vmem:[%s7 + $0x4c8] sm:$0xff]
      %v1323 = vld [vmem:[%s7 + $0x4d0] sm:$0xff]
      %v1324 = vld [vmem:[%s7 + $0x4d8] sm:$0xff]
      %v1325 = vld [vmem:[%s7 + $0x4e0] sm:$0xff]
      %v1326 = vld [vmem:[%s7 + $0x4e8] sm:$0xff]
      %v1327 = vld [vmem:[%s7 + $0x4f0] sm:$0xff]
      %v1328 = vld [vmem:[%s7 + $0x4f8] sm:$0xff]
      %v1329 = vld [vmem:[%s7 + $0x500] sm:$0xff]
      %v1330 = vld [vmem:[%s7 + $0x508] sm:$0xff]
      %v1331 = vld [vmem:[%s7 + $0x510] sm:$0xff]
      %v1332 = vld [vmem:[%s7 + $0x518] sm:$0xff]
      %v1333 = vld [vmem:[%s7 + $0x520] sm:$0xff]
      %v1334 = vld [vmem:[%s7 + $0x528] sm:$0xff]
      %v1335 = vld [vmem:[%s7 + $0x530] sm:$0xff]
      %v1336 = vld [vmem:[%s7 + $0x538] sm:$0xff]
      %v1337 = vld [vmem:[%s7 + $0x540] sm:$0xff]
      %v1338 = vld [vmem:[%s7 + $0x548] sm:$0xff]
      %v1339 = vld [vmem:[%s7 + $0x550] sm:$0xff]
      %v1340 = vld [vmem:[%s7 + $0x558] sm:$0xff]
      %v1341 = vld [vmem:[%s7 + $0x560] sm:$0xff]
      %v1342 = vld [vmem:[%s7 + $0x568] sm:$0xff]
      %v1343 = vld [vmem:[%s7 + $0x570] sm:$0xff]
      %v1344 = vld [vmem:[%s7 + $0x578] sm:$0xff]
      %v1345 = vld [vmem:[%s7 + $0x580] sm:$0xff]
      %v1346 = vld [vmem:[%s7 + $0x588] sm:$0xff]
      %v1347 = vld [vmem:[%s7 + $0x590] sm:$0xff]
      %v1348 = vld [vmem:[%s7 + $0x598] sm:$0xff]
      %v1349 = vld [vmem:[%s7 + $0x5a0] sm:$0xff]
      %v1350 = vld [vmem:[%s7 + $0x5a8] sm:$0xff]
      %v1351 = vld [vmem:[%s7 + $0x5b0] sm:$0xff]
      %v1352 = vld [vmem:[%s7 + $0x5b8] sm:$0xff]
      %v1353 = vld [vmem:[%s7 + $0x5c0] sm:$0xff]
      %v1354 = vld [vmem:[%s7 + $0x5c8] sm:$0xff]
      %v1355 = vld [vmem:[%s7 + $0x5d0] sm:$0xff]
      %v1356 = vld [vmem:[%s7 + $0x5d8] sm:$0xff]
      %v1357 = vld [vmem:[%s7 + $0x5e0] sm:$0xff]
      %v1358 = vld [vmem:[%s7 + $0x5e8] sm:$0xff]
      %v1359 = vld [vmem:[%s7 + $0x5f0] sm:$0xff]
      %v1360 = vld [vmem:[%s7 + $0x5f8] sm:$0xff]
      %v1361 = vld [vmem:[%s7 + $0x600] sm:$0xff]
      %v1362 = vld [vmem:[%s7 + $0x608] sm:$0xff]
      %v1363 = vld [vmem:[%s7 + $0x610] sm:$0xff]
      %v1364 = vld [vmem:[%s7 + $0x618] sm:$0xff]
      %v1365 = vld [vmem:[%s7 + $0x620] sm:$0xff]
      %v1366 = vld [vmem:[%s7 + $0x628] sm:$0xff]
      %v1367 = vld [vmem:[%s7 + $0x630] sm:$0xff]
      %v1368 = vld [vmem:[%s7 + $0x638] sm:$0xff]
      %v1369 = vld [vmem:[%s7 + $0x640] sm:$0xff]
      %v1370 = vld [vmem:[%s7 + $0x648] sm:$0xff]
      %v1371 = vld [vmem:[%s7 + $0x650] sm:$0xff]
      %v1372 = vld [vmem:[%s7 + $0x658] sm:$0xff]
      %v1373 = vld [vmem:[%s7 + $0x660] sm:$0xff]
      %v1374 = vld [vmem:[%s7 + $0x668] sm:$0xff]
      %v1375 = vld [vmem:[%s7 + $0x670] sm:$0xff]
      %v1376 = vld [vmem:[%s7 + $0x678] sm:$0xff]
      %v1377 = vld [vmem:[%s7 + $0x680] sm:$0xff]
      %v1378 = vld [vmem:[%s7 + $0x688] sm:$0xff]
      %v1379 = vld [vmem:[%s7 + $0x690] sm:$0xff]
      %v1380 = vld [vmem:[%s7 + $0x698] sm:$0xff]
      %v1381 = vld [vmem:[%s7 + $0x6a0] sm:$0xff]
      %v1382 = vld [vmem:[%s7 + $0x6a8] sm:$0xff]
      %v1383 = vld [vmem:[%s7 + $0x6b0] sm:$0xff]
      %v1384 = vld [vmem:[%s7 + $0x6b8] sm:$0xff]
      %v1385 = vld [vmem:[%s7 + $0x6c0] sm:$0xff]
      %v1386 = vld [vmem:[%s7 + $0x6c8] sm:$0xff]
      %v1387 = vld [vmem:[%s7 + $0x6d0] sm:$0xff]
      %v1388 = vld [vmem:[%s7 + $0x6d8] sm:$0xff]
      %v1389 = vld [vmem:[%s7 + $0x6e0] sm:$0xff]
      %v1390 = vld [vmem:[%s7 + $0x6e8] sm:$0xff]
      %v1391 = vld [vmem:[%s7 + $0x6f0] sm:$0xff]
      %v1392 = vld [vmem:[%s7 + $0x6f8] sm:$0xff]
      %v1393 = vld [vmem:[%s7 + $0x700] sm:$0xff]
      %v1394 = vld [vmem:[%s7 + $0x708] sm:$0xff]
      %v1395 = vld [vmem:[%s7 + $0x710] sm:$0xff]
      %v1396 = vld [vmem:[%s7 + $0x718] sm:$0xff]
      %v1397 = vld [vmem:[%s7 + $0x720] sm:$0xff]
      %v1398 = vld [vmem:[%s7 + $0x728] sm:$0xff]
      %v1399 = vld [vmem:[%s7 + $0x730] sm:$0xff]
      %v1400 = vld [vmem:[%s7 + $0x738] sm:$0xff]
      %v1401 = vld [vmem:[%s7 + $0x740] sm:$0xff]
      %v1402 = vld [vmem:[%s7 + $0x748] sm:$0xff]
      %v1403 = vld [vmem:[%s7 + $0x750] sm:$0xff]
      %v1404 = vld [vmem:[%s7 + $0x758] sm:$0xff]
      %v1405 = vld [vmem:[%s7 + $0x760] sm:$0xff]
      %v1406 = vld [vmem:[%s7 + $0x768] sm:$0xff]
      %v1407 = vld [vmem:[%s7 + $0x770] sm:$0xff]
      %v1408 = vld [vmem:[%s7 + $0x778] sm:$0xff]
      %v1409 = vld [vmem:[%s7 + $0x780] sm:$0xff]
      %v1410 = vld [vmem:[%s7 + $0x788] sm:$0xff]
      %v1411 = vld [vmem:[%s7 + $0x790] sm:$0xff]
      %v1412 = vld [vmem:[%s7 + $0x798] sm:$0xff]
      %v1413 = vld [vmem:[%s7 + $0x7a0] sm:$0xff]
      %v1414 = vld [vmem:[%s7 + $0x7a8] sm:$0xff]
      %v1415 = vld [vmem:[%s7 + $0x7b0] sm:$0xff]
      %v1416 = vld [vmem:[%s7 + $0x7b8] sm:$0xff]
      %v1417 = vld [vmem:[%s7 + $0x7c0] sm:$0xff]
      %v1418 = vld [vmem:[%s7 + $0x7c8] sm:$0xff]
      %v1419 = vld [vmem:[%s7 + $0x7d0] sm:$0xff]
      %v1420 = vld [vmem:[%s7 + $0x7d8] sm:$0xff]
      %v1421 = vld [vmem:[%s7 + $0x7e0] sm:$0xff]
      %v1422 = vld [vmem:[%s7 + $0x7e8] sm:$0xff]
      %v1423 = vld [vmem:[%s7 + $0x7f0] sm:$0xff]
      %v1424 = vld [vmem:[%s7 + $0x7f8] sm:$0xff]
      %v1425 = vld [vmem:[%s8] sm:$0xff]
      %v1427 = vlaneseq
      %v1428 = vshrl.u32 %v1427, 7
      %v1429 = vsub.s32 0, %v1428
      %v1430 = vrot.slane %v1425, %v1429
      %v1431 = vlaneseq
      %v1432 = vshrl.u32 %v1431, 7
      %v1433 = vsub.s32 1, %v1432
      %v1434 = vrot.slane %v1425, %v1433
      %v1435 = vlaneseq
      %v1436 = vshrl.u32 %v1435, 7
      %v1437 = vsub.s32 2, %v1436
      %v1438 = vrot.slane %v1425, %v1437
      %v1439 = vlaneseq
      %v1440 = vshrl.u32 %v1439, 7
      %v1441 = vsub.s32 3, %v1440
      %v1442 = vrot.slane %v1425, %v1441
      %v1443 = vlaneseq
      %v1444 = vshrl.u32 %v1443, 7
      %v1445 = vsub.s32 4, %v1444
      %v1446 = vrot.slane %v1425, %v1445
      %v1447 = vlaneseq
      %v1448 = vshrl.u32 %v1447, 7
      %v1449 = vsub.s32 5, %v1448
      %v1450 = vrot.slane %v1425, %v1449
      %v1451 = vlaneseq
      %v1452 = vshrl.u32 %v1451, 7
      %v1453 = vsub.s32 6, %v1452
      %v1454 = vrot.slane %v1425, %v1453
      %v1455 = vlaneseq
      %v1456 = vshrl.u32 %v1455, 7
      %v1457 = vsub.s32 7, %v1456
      %v1458 = vrot.slane %v1425, %v1457
      %v1723 = vunpack.c.l.b16 %v1169
      %v1724 = vunpack.c.h.b16 %v1169
      %v1725 = vunpack.c.l.b16 %v1170
      %v1726 = vunpack.c.h.b16 %v1170
      %v1727 = vunpack.c.l.b16 %v1171
      %v1728 = vunpack.c.h.b16 %v1171
      %v1729 = vunpack.c.l.b16 %v1172
      %v1730 = vunpack.c.h.b16 %v1172
      %v1731 = vunpack.c.l.b16 %v1173
      %v1732 = vunpack.c.h.b16 %v1173
      %v1733 = vunpack.c.l.b16 %v1174
      %v1734 = vunpack.c.h.b16 %v1174
      %v1735 = vunpack.c.l.b16 %v1175
      %v1736 = vunpack.c.h.b16 %v1175
      %v1737 = vunpack.c.l.b16 %v1176
      %v1738 = vunpack.c.h.b16 %v1176
      %v1739 = vunpack.c.l.b16 %v1177
      %v1740 = vunpack.c.h.b16 %v1177
      %v1741 = vunpack.c.l.b16 %v1178
      %v1742 = vunpack.c.h.b16 %v1178
      %v1743 = vunpack.c.l.b16 %v1179
      %v1744 = vunpack.c.h.b16 %v1179
      %v1745 = vunpack.c.l.b16 %v1180
      %v1746 = vunpack.c.h.b16 %v1180
      %v1747 = vunpack.c.l.b16 %v1181
      %v1748 = vunpack.c.h.b16 %v1181
      %v1749 = vunpack.c.l.b16 %v1182
      %v1750 = vunpack.c.h.b16 %v1182
      %v1751 = vunpack.c.l.b16 %v1183
      %v1752 = vunpack.c.h.b16 %v1183
      %v1753 = vunpack.c.l.b16 %v1184
      %v1754 = vunpack.c.h.b16 %v1184
      %v1755 = vunpack.c.l.b16 %v1185
      %v1756 = vunpack.c.h.b16 %v1185
      %v1757 = vunpack.c.l.b16 %v1186
      %v1758 = vunpack.c.h.b16 %v1186
      %v1759 = vunpack.c.l.b16 %v1187
      %v1760 = vunpack.c.h.b16 %v1187
      %v1761 = vunpack.c.l.b16 %v1188
      %v1762 = vunpack.c.h.b16 %v1188
      %v1763 = vunpack.c.l.b16 %v1189
      %v1764 = vunpack.c.h.b16 %v1189
      %v1765 = vunpack.c.l.b16 %v1190
      %v1766 = vunpack.c.h.b16 %v1190
      %v1767 = vunpack.c.l.b16 %v1191
      %v1768 = vunpack.c.h.b16 %v1191
      %v1769 = vunpack.c.l.b16 %v1192
      %v1770 = vunpack.c.h.b16 %v1192
      %v1771 = vunpack.c.l.b16 %v1193
      %v1772 = vunpack.c.h.b16 %v1193
      %v1773 = vunpack.c.l.b16 %v1194
      %v1774 = vunpack.c.h.b16 %v1194
      %v1775 = vunpack.c.l.b16 %v1195
      %v1776 = vunpack.c.h.b16 %v1195
      %v1777 = vunpack.c.l.b16 %v1196
      %v1778 = vunpack.c.h.b16 %v1196
      %v1779 = vunpack.c.l.b16 %v1197
      %v1780 = vunpack.c.h.b16 %v1197
      %v1781 = vunpack.c.l.b16 %v1198
      %v1782 = vunpack.c.h.b16 %v1198
      %v1783 = vunpack.c.l.b16 %v1199
      %v1784 = vunpack.c.h.b16 %v1199
      %v1785 = vunpack.c.l.b16 %v1200
      %v1786 = vunpack.c.h.b16 %v1200
      %v1787 = vunpack.c.l.b16 %v1201
      %v1788 = vunpack.c.h.b16 %v1201
      %v1789 = vunpack.c.l.b16 %v1202
      %v1790 = vunpack.c.h.b16 %v1202
      %v1791 = vunpack.c.l.b16 %v1203
      %v1792 = vunpack.c.h.b16 %v1203
      %v1793 = vunpack.c.l.b16 %v1204
      %v1794 = vunpack.c.h.b16 %v1204
      %v1795 = vunpack.c.l.b16 %v1205
      %v1796 = vunpack.c.h.b16 %v1205
      %v1797 = vunpack.c.l.b16 %v1206
      %v1798 = vunpack.c.h.b16 %v1206
      %v1799 = vunpack.c.l.b16 %v1207
      %v1800 = vunpack.c.h.b16 %v1207
      %v1801 = vunpack.c.l.b16 %v1208
      %v1802 = vunpack.c.h.b16 %v1208
      %v1803 = vunpack.c.l.b16 %v1209
      %v1804 = vunpack.c.h.b16 %v1209
      %v1805 = vunpack.c.l.b16 %v1210
      %v1806 = vunpack.c.h.b16 %v1210
      %v1807 = vunpack.c.l.b16 %v1211
      %v1808 = vunpack.c.h.b16 %v1211
      %v1809 = vunpack.c.l.b16 %v1212
      %v1810 = vunpack.c.h.b16 %v1212
      %v1811 = vunpack.c.l.b16 %v1213
      %v1812 = vunpack.c.h.b16 %v1213
      %v1813 = vunpack.c.l.b16 %v1214
      %v1814 = vunpack.c.h.b16 %v1214
      %v1815 = vunpack.c.l.b16 %v1215
      %v1816 = vunpack.c.h.b16 %v1215
      %v1817 = vunpack.c.l.b16 %v1216
      %v1818 = vunpack.c.h.b16 %v1216
      %v1819 = vunpack.c.l.b16 %v1217
      %v1820 = vunpack.c.h.b16 %v1217
      %v1821 = vunpack.c.l.b16 %v1218
      %v1822 = vunpack.c.h.b16 %v1218
      %v1823 = vunpack.c.l.b16 %v1219
      %v1824 = vunpack.c.h.b16 %v1219
      %v1825 = vunpack.c.l.b16 %v1220
      %v1826 = vunpack.c.h.b16 %v1220
      %v1827 = vunpack.c.l.b16 %v1221
      %v1828 = vunpack.c.h.b16 %v1221
      %v1829 = vunpack.c.l.b16 %v1222
      %v1830 = vunpack.c.h.b16 %v1222
      %v1831 = vunpack.c.l.b16 %v1223
      %v1832 = vunpack.c.h.b16 %v1223
      %v1833 = vunpack.c.l.b16 %v1224
      %v1834 = vunpack.c.h.b16 %v1224
      %v1835 = vunpack.c.l.b16 %v1225
      %v1836 = vunpack.c.h.b16 %v1225
      %v1837 = vunpack.c.l.b16 %v1226
      %v1838 = vunpack.c.h.b16 %v1226
      %v1839 = vunpack.c.l.b16 %v1227
      %v1840 = vunpack.c.h.b16 %v1227
      %v1841 = vunpack.c.l.b16 %v1228
      %v1842 = vunpack.c.h.b16 %v1228
      %v1843 = vunpack.c.l.b16 %v1229
      %v1844 = vunpack.c.h.b16 %v1229
      %v1845 = vunpack.c.l.b16 %v1230
      %v1846 = vunpack.c.h.b16 %v1230
      %v1847 = vunpack.c.l.b16 %v1231
      %v1848 = vunpack.c.h.b16 %v1231
      %v1849 = vunpack.c.l.b16 %v1232
      %v1850 = vunpack.c.h.b16 %v1232
      %v1851 = vunpack.c.l.b16 %v1233
      %v1852 = vunpack.c.h.b16 %v1233
      %v1853 = vunpack.c.l.b16 %v1234
      %v1854 = vunpack.c.h.b16 %v1234
      %v1855 = vunpack.c.l.b16 %v1235
      %v1856 = vunpack.c.h.b16 %v1235
      %v1857 = vunpack.c.l.b16 %v1236
      %v1858 = vunpack.c.h.b16 %v1236
      %v1859 = vunpack.c.l.b16 %v1237
      %v1860 = vunpack.c.h.b16 %v1237
      %v1861 = vunpack.c.l.b16 %v1238
      %v1862 = vunpack.c.h.b16 %v1238
      %v1863 = vunpack.c.l.b16 %v1239
      %v1864 = vunpack.c.h.b16 %v1239
      %v1865 = vunpack.c.l.b16 %v1240
      %v1866 = vunpack.c.h.b16 %v1240
      %v1867 = vunpack.c.l.b16 %v1241
      %v1868 = vunpack.c.h.b16 %v1241
      %v1869 = vunpack.c.l.b16 %v1242
      %v1870 = vunpack.c.h.b16 %v1242
      %v1871 = vunpack.c.l.b16 %v1243
      %v1872 = vunpack.c.h.b16 %v1243
      %v1873 = vunpack.c.l.b16 %v1244
      %v1874 = vunpack.c.h.b16 %v1244
      %v1875 = vunpack.c.l.b16 %v1245
      %v1876 = vunpack.c.h.b16 %v1245
      %v1877 = vunpack.c.l.b16 %v1246
      %v1878 = vunpack.c.h.b16 %v1246
      %v1879 = vunpack.c.l.b16 %v1247
      %v1880 = vunpack.c.h.b16 %v1247
      %v1881 = vunpack.c.l.b16 %v1248
      %v1882 = vunpack.c.h.b16 %v1248
      %v1883 = vunpack.c.l.b16 %v1249
      %v1884 = vunpack.c.h.b16 %v1249
      %v1885 = vunpack.c.l.b16 %v1250
      %v1886 = vunpack.c.h.b16 %v1250
      %v1887 = vunpack.c.l.b16 %v1251
      %v1888 = vunpack.c.h.b16 %v1251
      %v1889 = vunpack.c.l.b16 %v1252
      %v1890 = vunpack.c.h.b16 %v1252
      %v1891 = vunpack.c.l.b16 %v1253
      %v1892 = vunpack.c.h.b16 %v1253
      %v1893 = vunpack.c.l.b16 %v1254
      %v1894 = vunpack.c.h.b16 %v1254
      %v1895 = vunpack.c.l.b16 %v1255
      %v1896 = vunpack.c.h.b16 %v1255
      %v1897 = vunpack.c.l.b16 %v1256
      %v1898 = vunpack.c.h.b16 %v1256
      %v1899 = vunpack.c.l.b16 %v1257
      %v1900 = vunpack.c.h.b16 %v1257
      %v1901 = vunpack.c.l.b16 %v1258
      %v1902 = vunpack.c.h.b16 %v1258
      %v1903 = vunpack.c.l.b16 %v1259
      %v1904 = vunpack.c.h.b16 %v1259
      %v1905 = vunpack.c.l.b16 %v1260
      %v1906 = vunpack.c.h.b16 %v1260
      %v1907 = vunpack.c.l.b16 %v1261
      %v1908 = vunpack.c.h.b16 %v1261
      %v1909 = vunpack.c.l.b16 %v1262
      %v1910 = vunpack.c.h.b16 %v1262
      %v1911 = vunpack.c.l.b16 %v1263
      %v1912 = vunpack.c.h.b16 %v1263
      %v1913 = vunpack.c.l.b16 %v1264
      %v1914 = vunpack.c.h.b16 %v1264
      %v1915 = vunpack.c.l.b16 %v1265
      %v1916 = vunpack.c.h.b16 %v1265
      %v1917 = vunpack.c.l.b16 %v1266
      %v1918 = vunpack.c.h.b16 %v1266
      %v1919 = vunpack.c.l.b16 %v1267
      %v1920 = vunpack.c.h.b16 %v1267
      %v1921 = vunpack.c.l.b16 %v1268
      %v1922 = vunpack.c.h.b16 %v1268
      %v1923 = vunpack.c.l.b16 %v1269
      %v1924 = vunpack.c.h.b16 %v1269
      %v1925 = vunpack.c.l.b16 %v1270
      %v1926 = vunpack.c.h.b16 %v1270
      %v1927 = vunpack.c.l.b16 %v1271
      %v1928 = vunpack.c.h.b16 %v1271
      %v1929 = vunpack.c.l.b16 %v1272
      %v1930 = vunpack.c.h.b16 %v1272
      %v1931 = vunpack.c.l.b16 %v1273
      %v1932 = vunpack.c.h.b16 %v1273
      %v1933 = vunpack.c.l.b16 %v1274
      %v1934 = vunpack.c.h.b16 %v1274
      %v1935 = vunpack.c.l.b16 %v1275
      %v1936 = vunpack.c.h.b16 %v1275
      %v1937 = vunpack.c.l.b16 %v1276
      %v1938 = vunpack.c.h.b16 %v1276
      %v1939 = vunpack.c.l.b16 %v1277
      %v1940 = vunpack.c.h.b16 %v1277
      %v1941 = vunpack.c.l.b16 %v1278
      %v1942 = vunpack.c.h.b16 %v1278
      %v1943 = vunpack.c.l.b16 %v1279
      %v1944 = vunpack.c.h.b16 %v1279
      %v1945 = vunpack.c.l.b16 %v1280
      %v1946 = vunpack.c.h.b16 %v1280
      %v1947 = vunpack.c.l.b16 %v1281
      %v1948 = vunpack.c.h.b16 %v1281
      %v1949 = vunpack.c.l.b16 %v1282
      %v1950 = vunpack.c.h.b16 %v1282
      %v1951 = vunpack.c.l.b16 %v1283
      %v1952 = vunpack.c.h.b16 %v1283
      %v1953 = vunpack.c.l.b16 %v1284
      %v1954 = vunpack.c.h.b16 %v1284
      %v1955 = vunpack.c.l.b16 %v1285
      %v1956 = vunpack.c.h.b16 %v1285
      %v1957 = vunpack.c.l.b16 %v1286
      %v1958 = vunpack.c.h.b16 %v1286
      %v1959 = vunpack.c.l.b16 %v1287
      %v1960 = vunpack.c.h.b16 %v1287
      %v1961 = vunpack.c.l.b16 %v1288
      %v1962 = vunpack.c.h.b16 %v1288
      %v1963 = vunpack.c.l.b16 %v1289
      %v1964 = vunpack.c.h.b16 %v1289
      %v1965 = vunpack.c.l.b16 %v1290
      %v1966 = vunpack.c.h.b16 %v1290
      %v1967 = vunpack.c.l.b16 %v1291
      %v1968 = vunpack.c.h.b16 %v1291
      %v1969 = vunpack.c.l.b16 %v1292
      %v1970 = vunpack.c.h.b16 %v1292
      %v1971 = vunpack.c.l.b16 %v1293
      %v1972 = vunpack.c.h.b16 %v1293
      %v1973 = vunpack.c.l.b16 %v1294
      %v1974 = vunpack.c.h.b16 %v1294
      %v1975 = vunpack.c.l.b16 %v1295
      %v1976 = vunpack.c.h.b16 %v1295
      %v1977 = vunpack.c.l.b16 %v1296
      %v1978 = vunpack.c.h.b16 %v1296
      %v1979 = vunpack.c.l.b16 %v1297
      %v1980 = vunpack.c.h.b16 %v1297
      %v1981 = vunpack.c.l.b16 %v1298
      %v1982 = vunpack.c.h.b16 %v1298
      %v1983 = vunpack.c.l.b16 %v1299
      %v1984 = vunpack.c.h.b16 %v1299
      %v1985 = vunpack.c.l.b16 %v1300
      %v1986 = vunpack.c.h.b16 %v1300
      %v1987 = vunpack.c.l.b16 %v1301
      %v1988 = vunpack.c.h.b16 %v1301
      %v1989 = vunpack.c.l.b16 %v1302
      %v1990 = vunpack.c.h.b16 %v1302
      %v1991 = vunpack.c.l.b16 %v1303
      %v1992 = vunpack.c.h.b16 %v1303
      %v1993 = vunpack.c.l.b16 %v1304
      %v1994 = vunpack.c.h.b16 %v1304
      %v1995 = vunpack.c.l.b16 %v1305
      %v1996 = vunpack.c.h.b16 %v1305
      %v1997 = vunpack.c.l.b16 %v1306
      %v1998 = vunpack.c.h.b16 %v1306
      %v1999 = vunpack.c.l.b16 %v1307
      %v2000 = vunpack.c.h.b16 %v1307
      %v2001 = vunpack.c.l.b16 %v1308
      %v2002 = vunpack.c.h.b16 %v1308
      %v2003 = vunpack.c.l.b16 %v1309
      %v2004 = vunpack.c.h.b16 %v1309
      %v2005 = vunpack.c.l.b16 %v1310
      %v2006 = vunpack.c.h.b16 %v1310
      %v2007 = vunpack.c.l.b16 %v1311
      %v2008 = vunpack.c.h.b16 %v1311
      %v2009 = vunpack.c.l.b16 %v1312
      %v2010 = vunpack.c.h.b16 %v1312
      %v2011 = vunpack.c.l.b16 %v1313
      %v2012 = vunpack.c.h.b16 %v1313
      %v2013 = vunpack.c.l.b16 %v1314
      %v2014 = vunpack.c.h.b16 %v1314
      %v2015 = vunpack.c.l.b16 %v1315
      %v2016 = vunpack.c.h.b16 %v1315
      %v2017 = vunpack.c.l.b16 %v1316
      %v2018 = vunpack.c.h.b16 %v1316
      %v2019 = vunpack.c.l.b16 %v1317
      %v2020 = vunpack.c.h.b16 %v1317
      %v2021 = vunpack.c.l.b16 %v1318
      %v2022 = vunpack.c.h.b16 %v1318
      %v2023 = vunpack.c.l.b16 %v1319
      %v2024 = vunpack.c.h.b16 %v1319
      %v2025 = vunpack.c.l.b16 %v1320
      %v2026 = vunpack.c.h.b16 %v1320
      %v2027 = vunpack.c.l.b16 %v1321
      %v2028 = vunpack.c.h.b16 %v1321
      %v2029 = vunpack.c.l.b16 %v1322
      %v2030 = vunpack.c.h.b16 %v1322
      %v2031 = vunpack.c.l.b16 %v1323
      %v2032 = vunpack.c.h.b16 %v1323
      %v2033 = vunpack.c.l.b16 %v1324
      %v2034 = vunpack.c.h.b16 %v1324
      %v2035 = vunpack.c.l.b16 %v1325
      %v2036 = vunpack.c.h.b16 %v1325
      %v2037 = vunpack.c.l.b16 %v1326
      %v2038 = vunpack.c.h.b16 %v1326
      %v2039 = vunpack.c.l.b16 %v1327
      %v2040 = vunpack.c.h.b16 %v1327
      %v2041 = vunpack.c.l.b16 %v1328
      %v2042 = vunpack.c.h.b16 %v1328
      %v2043 = vunpack.c.l.b16 %v1329
      %v2044 = vunpack.c.h.b16 %v1329
      %v2045 = vunpack.c.l.b16 %v1330
      %v2046 = vunpack.c.h.b16 %v1330
      %v2047 = vunpack.c.l.b16 %v1331
      %v2048 = vunpack.c.h.b16 %v1331
      %v2049 = vunpack.c.l.b16 %v1332
      %v2050 = vunpack.c.h.b16 %v1332
      %v2051 = vunpack.c.l.b16 %v1333
      %v2052 = vunpack.c.h.b16 %v1333
      %v2053 = vunpack.c.l.b16 %v1334
      %v2054 = vunpack.c.h.b16 %v1334
      %v2055 = vunpack.c.l.b16 %v1335
      %v2056 = vunpack.c.h.b16 %v1335
      %v2057 = vunpack.c.l.b16 %v1336
      %v2058 = vunpack.c.h.b16 %v1336
      %v2059 = vunpack.c.l.b16 %v1337
      %v2060 = vunpack.c.h.b16 %v1337
      %v2061 = vunpack.c.l.b16 %v1338
      %v2062 = vunpack.c.h.b16 %v1338
      %v2063 = vunpack.c.l.b16 %v1339
      %v2064 = vunpack.c.h.b16 %v1339
      %v2065 = vunpack.c.l.b16 %v1340
      %v2066 = vunpack.c.h.b16 %v1340
      %v2067 = vunpack.c.l.b16 %v1341
      %v2068 = vunpack.c.h.b16 %v1341
      %v2069 = vunpack.c.l.b16 %v1342
      %v2070 = vunpack.c.h.b16 %v1342
      %v2071 = vunpack.c.l.b16 %v1343
      %v2072 = vunpack.c.h.b16 %v1343
      %v2073 = vunpack.c.l.b16 %v1344
      %v2074 = vunpack.c.h.b16 %v1344
      %v2075 = vunpack.c.l.b16 %v1345
      %v2076 = vunpack.c.h.b16 %v1345
      %v2077 = vunpack.c.l.b16 %v1346
      %v2078 = vunpack.c.h.b16 %v1346
      %v2079 = vunpack.c.l.b16 %v1347
      %v2080 = vunpack.c.h.b16 %v1347
      %v2081 = vunpack.c.l.b16 %v1348
      %v2082 = vunpack.c.h.b16 %v1348
      %v2083 = vunpack.c.l.b16 %v1349
      %v2084 = vunpack.c.h.b16 %v1349
      %v2085 = vunpack.c.l.b16 %v1350
      %v2086 = vunpack.c.h.b16 %v1350
      %v2087 = vunpack.c.l.b16 %v1351
      %v2088 = vunpack.c.h.b16 %v1351
      %v2089 = vunpack.c.l.b16 %v1352
      %v2090 = vunpack.c.h.b16 %v1352
      %v2091 = vunpack.c.l.b16 %v1353
      %v2092 = vunpack.c.h.b16 %v1353
      %v2093 = vunpack.c.l.b16 %v1354
      %v2094 = vunpack.c.h.b16 %v1354
      %v2095 = vunpack.c.l.b16 %v1355
      %v2096 = vunpack.c.h.b16 %v1355
      %v2097 = vunpack.c.l.b16 %v1356
      %v2098 = vunpack.c.h.b16 %v1356
      %v2099 = vunpack.c.l.b16 %v1357
      %v2100 = vunpack.c.h.b16 %v1357
      %v2101 = vunpack.c.l.b16 %v1358
      %v2102 = vunpack.c.h.b16 %v1358
      %v2103 = vunpack.c.l.b16 %v1359
      %v2104 = vunpack.c.h.b16 %v1359
      %v2105 = vunpack.c.l.b16 %v1360
      %v2106 = vunpack.c.h.b16 %v1360
      %v2107 = vunpack.c.l.b16 %v1361
      %v2108 = vunpack.c.h.b16 %v1361
      %v2109 = vunpack.c.l.b16 %v1362
      %v2110 = vunpack.c.h.b16 %v1362
      %v2111 = vunpack.c.l.b16 %v1363
      %v2112 = vunpack.c.h.b16 %v1363
      %v2113 = vunpack.c.l.b16 %v1364
      %v2114 = vunpack.c.h.b16 %v1364
      %v2115 = vunpack.c.l.b16 %v1365
      %v2116 = vunpack.c.h.b16 %v1365
      %v2117 = vunpack.c.l.b16 %v1366
      %v2118 = vunpack.c.h.b16 %v1366
      %v2119 = vunpack.c.l.b16 %v1367
      %v2120 = vunpack.c.h.b16 %v1367
      %v2121 = vunpack.c.l.b16 %v1368
      %v2122 = vunpack.c.h.b16 %v1368
      %v2123 = vunpack.c.l.b16 %v1369
      %v2124 = vunpack.c.h.b16 %v1369
      %v2125 = vunpack.c.l.b16 %v1370
      %v2126 = vunpack.c.h.b16 %v1370
      %v2127 = vunpack.c.l.b16 %v1371
      %v2128 = vunpack.c.h.b16 %v1371
      %v2129 = vunpack.c.l.b16 %v1372
      %v2130 = vunpack.c.h.b16 %v1372
      %v2131 = vunpack.c.l.b16 %v1373
      %v2132 = vunpack.c.h.b16 %v1373
      %v2133 = vunpack.c.l.b16 %v1374
      %v2134 = vunpack.c.h.b16 %v1374
      %v2135 = vunpack.c.l.b16 %v1375
      %v2136 = vunpack.c.h.b16 %v1375
      %v2137 = vunpack.c.l.b16 %v1376
      %v2138 = vunpack.c.h.b16 %v1376
      %v2139 = vunpack.c.l.b16 %v1377
      %v2140 = vunpack.c.h.b16 %v1377
      %v2141 = vunpack.c.l.b16 %v1378
      %v2142 = vunpack.c.h.b16 %v1378
      %v2143 = vunpack.c.l.b16 %v1379
      %v2144 = vunpack.c.h.b16 %v1379
      %v2145 = vunpack.c.l.b16 %v1380
      %v2146 = vunpack.c.h.b16 %v1380
      %v2147 = vunpack.c.l.b16 %v1381
      %v2148 = vunpack.c.h.b16 %v1381
      %v2149 = vunpack.c.l.b16 %v1382
      %v2150 = vunpack.c.h.b16 %v1382
      %v2151 = vunpack.c.l.b16 %v1383
      %v2152 = vunpack.c.h.b16 %v1383
      %v2153 = vunpack.c.l.b16 %v1384
      %v2154 = vunpack.c.h.b16 %v1384
      %v2155 = vunpack.c.l.b16 %v1385
      %v2156 = vunpack.c.h.b16 %v1385
      %v2157 = vunpack.c.l.b16 %v1386
      %v2158 = vunpack.c.h.b16 %v1386
      %v2159 = vunpack.c.l.b16 %v1387
      %v2160 = vunpack.c.h.b16 %v1387
      %v2161 = vunpack.c.l.b16 %v1388
      %v2162 = vunpack.c.h.b16 %v1388
      %v2163 = vunpack.c.l.b16 %v1389
      %v2164 = vunpack.c.h.b16 %v1389
      %v2165 = vunpack.c.l.b16 %v1390
      %v2166 = vunpack.c.h.b16 %v1390
      %v2167 = vunpack.c.l.b16 %v1391
      %v2168 = vunpack.c.h.b16 %v1391
      %v2169 = vunpack.c.l.b16 %v1392
      %v2170 = vunpack.c.h.b16 %v1392
      %v2171 = vunpack.c.l.b16 %v1393
      %v2172 = vunpack.c.h.b16 %v1393
      %v2173 = vunpack.c.l.b16 %v1394
      %v2174 = vunpack.c.h.b16 %v1394
      %v2175 = vunpack.c.l.b16 %v1395
      %v2176 = vunpack.c.h.b16 %v1395
      %v2177 = vunpack.c.l.b16 %v1396
      %v2178 = vunpack.c.h.b16 %v1396
      %v2179 = vunpack.c.l.b16 %v1397
      %v2180 = vunpack.c.h.b16 %v1397
      %v2181 = vunpack.c.l.b16 %v1398
      %v2182 = vunpack.c.h.b16 %v1398
      %v2183 = vunpack.c.l.b16 %v1399
      %v2184 = vunpack.c.h.b16 %v1399
      %v2185 = vunpack.c.l.b16 %v1400
      %v2186 = vunpack.c.h.b16 %v1400
      %v2187 = vunpack.c.l.b16 %v1401
      %v2188 = vunpack.c.h.b16 %v1401
      %v2189 = vunpack.c.l.b16 %v1402
      %v2190 = vunpack.c.h.b16 %v1402
      %v2191 = vunpack.c.l.b16 %v1403
      %v2192 = vunpack.c.h.b16 %v1403
      %v2193 = vunpack.c.l.b16 %v1404
      %v2194 = vunpack.c.h.b16 %v1404
      %v2195 = vunpack.c.l.b16 %v1405
      %v2196 = vunpack.c.h.b16 %v1405
      %v2197 = vunpack.c.l.b16 %v1406
      %v2198 = vunpack.c.h.b16 %v1406
      %v2199 = vunpack.c.l.b16 %v1407
      %v2200 = vunpack.c.h.b16 %v1407
      %v2201 = vunpack.c.l.b16 %v1408
      %v2202 = vunpack.c.h.b16 %v1408
      %v2203 = vunpack.c.l.b16 %v1409
      %v2204 = vunpack.c.h.b16 %v1409
      %v2205 = vunpack.c.l.b16 %v1410
      %v2206 = vunpack.c.h.b16 %v1410
      %v2207 = vunpack.c.l.b16 %v1411
      %v2208 = vunpack.c.h.b16 %v1411
      %v2209 = vunpack.c.l.b16 %v1412
      %v2210 = vunpack.c.h.b16 %v1412
      %v2211 = vunpack.c.l.b16 %v1413
      %v2212 = vunpack.c.h.b16 %v1413
      %v2213 = vunpack.c.l.b16 %v1414
      %v2214 = vunpack.c.h.b16 %v1414
      %v2215 = vunpack.c.l.b16 %v1415
      %v2216 = vunpack.c.h.b16 %v1415
      %v2217 = vunpack.c.l.b16 %v1416
      %v2218 = vunpack.c.h.b16 %v1416
      %v2219 = vunpack.c.l.b16 %v1417
      %v2220 = vunpack.c.h.b16 %v1417
      %v2221 = vunpack.c.l.b16 %v1418
      %v2222 = vunpack.c.h.b16 %v1418
      %v2223 = vunpack.c.l.b16 %v1419
      %v2224 = vunpack.c.h.b16 %v1419
      %v2225 = vunpack.c.l.b16 %v1420
      %v2226 = vunpack.c.h.b16 %v1420
      %v2227 = vunpack.c.l.b16 %v1421
      %v2228 = vunpack.c.h.b16 %v1421
      %v2229 = vunpack.c.l.b16 %v1422
      %v2230 = vunpack.c.h.b16 %v1422
      %v2231 = vunpack.c.l.b16 %v1423
      %v2232 = vunpack.c.h.b16 %v1423
      %v2233 = vunpack.c.l.b16 %v1424
      %v2234 = vunpack.c.h.b16 %v1424
      %v2235 = vpack.c.b16 %v1731, %v1723
      %v2236 = vpack.c.b16 %v1732, %v1724
      %v2237 = vpack.c.b16 %v1733, %v1725
      %v2238 = vpack.c.b16 %v1734, %v1726
      %v2239 = vpack.c.b16 %v1735, %v1727
      %v2240 = vpack.c.b16 %v1736, %v1728
      %v2241 = vpack.c.b16 %v1737, %v1729
      %v2242 = vpack.c.b16 %v1738, %v1730
      %v2243 = vpack.c.b16 %v1747, %v1739
      %v2244 = vpack.c.b16 %v1748, %v1740
      %v2245 = vpack.c.b16 %v1749, %v1741
      %v2246 = vpack.c.b16 %v1750, %v1742
      %v2247 = vpack.c.b16 %v1751, %v1743
      %v2248 = vpack.c.b16 %v1752, %v1744
      %v2249 = vpack.c.b16 %v1753, %v1745
      %v2250 = vpack.c.b16 %v1754, %v1746
      %v2251 = vpack.c.b16 %v1763, %v1755
      %v2252 = vpack.c.b16 %v1764, %v1756
      %v2253 = vpack.c.b16 %v1765, %v1757
      %v2254 = vpack.c.b16 %v1766, %v1758
      %v2255 = vpack.c.b16 %v1767, %v1759
      %v2256 = vpack.c.b16 %v1768, %v1760
      %v2257 = vpack.c.b16 %v1769, %v1761
      %v2258 = vpack.c.b16 %v1770, %v1762
      %v2259 = vpack.c.b16 %v1779, %v1771
      %v2260 = vpack.c.b16 %v1780, %v1772
      %v2261 = vpack.c.b16 %v1781, %v1773
      %v2262 = vpack.c.b16 %v1782, %v1774
      %v2263 = vpack.c.b16 %v1783, %v1775
      %v2264 = vpack.c.b16 %v1784, %v1776
      %v2265 = vpack.c.b16 %v1785, %v1777
      %v2266 = vpack.c.b16 %v1786, %v1778
      %v2267 = vpack.c.b16 %v1795, %v1787
      %v2268 = vpack.c.b16 %v1796, %v1788
      %v2269 = vpack.c.b16 %v1797, %v1789
      %v2270 = vpack.c.b16 %v1798, %v1790
      %v2271 = vpack.c.b16 %v1799, %v1791
      %v2272 = vpack.c.b16 %v1800, %v1792
      %v2273 = vpack.c.b16 %v1801, %v1793
      %v2274 = vpack.c.b16 %v1802, %v1794
      %v2275 = vpack.c.b16 %v1811, %v1803
      %v2276 = vpack.c.b16 %v1812, %v1804
      %v2277 = vpack.c.b16 %v1813, %v1805
      %v2278 = vpack.c.b16 %v1814, %v1806
      %v2279 = vpack.c.b16 %v1815, %v1807
      %v2280 = vpack.c.b16 %v1816, %v1808
      %v2281 = vpack.c.b16 %v1817, %v1809
      %v2282 = vpack.c.b16 %v1818, %v1810
      %v2283 = vpack.c.b16 %v1827, %v1819
      %v2284 = vpack.c.b16 %v1828, %v1820
      %v2285 = vpack.c.b16 %v1829, %v1821
      %v2286 = vpack.c.b16 %v1830, %v1822
      %v2287 = vpack.c.b16 %v1831, %v1823
      %v2288 = vpack.c.b16 %v1832, %v1824
      %v2289 = vpack.c.b16 %v1833, %v1825
      %v2290 = vpack.c.b16 %v1834, %v1826
      %v2291 = vpack.c.b16 %v1843, %v1835
      %v2292 = vpack.c.b16 %v1844, %v1836
      %v2293 = vpack.c.b16 %v1845, %v1837
      %v2294 = vpack.c.b16 %v1846, %v1838
      %v2295 = vpack.c.b16 %v1847, %v1839
      %v2296 = vpack.c.b16 %v1848, %v1840
      %v2297 = vpack.c.b16 %v1849, %v1841
      %v2298 = vpack.c.b16 %v1850, %v1842
      %v2299 = vpack.c.b16 %v1859, %v1851
      %v2300 = vpack.c.b16 %v1860, %v1852
      %v2301 = vpack.c.b16 %v1861, %v1853
      %v2302 = vpack.c.b16 %v1862, %v1854
      %v2303 = vpack.c.b16 %v1863, %v1855
      %v2304 = vpack.c.b16 %v1864, %v1856
      %v2305 = vpack.c.b16 %v1865, %v1857
      %v2306 = vpack.c.b16 %v1866, %v1858
      %v2307 = vpack.c.b16 %v1875, %v1867
      %v2308 = vpack.c.b16 %v1876, %v1868
      %v2309 = vpack.c.b16 %v1877, %v1869
      %v2310 = vpack.c.b16 %v1878, %v1870
      %v2311 = vpack.c.b16 %v1879, %v1871
      %v2312 = vpack.c.b16 %v1880, %v1872
      %v2313 = vpack.c.b16 %v1881, %v1873
      %v2314 = vpack.c.b16 %v1882, %v1874
      %v2315 = vpack.c.b16 %v1891, %v1883
      %v2316 = vpack.c.b16 %v1892, %v1884
      %v2317 = vpack.c.b16 %v1893, %v1885
      %v2318 = vpack.c.b16 %v1894, %v1886
      %v2319 = vpack.c.b16 %v1895, %v1887
      %v2320 = vpack.c.b16 %v1896, %v1888
      %v2321 = vpack.c.b16 %v1897, %v1889
      %v2322 = vpack.c.b16 %v1898, %v1890
      %v2323 = vpack.c.b16 %v1907, %v1899
      %v2324 = vpack.c.b16 %v1908, %v1900
      %v2325 = vpack.c.b16 %v1909, %v1901
      %v2326 = vpack.c.b16 %v1910, %v1902
      %v2327 = vpack.c.b16 %v1911, %v1903
      %v2328 = vpack.c.b16 %v1912, %v1904
      %v2329 = vpack.c.b16 %v1913, %v1905
      %v2330 = vpack.c.b16 %v1914, %v1906
      %v2331 = vpack.c.b16 %v1923, %v1915
      %v2332 = vpack.c.b16 %v1924, %v1916
      %v2333 = vpack.c.b16 %v1925, %v1917
      %v2334 = vpack.c.b16 %v1926, %v1918
      %v2335 = vpack.c.b16 %v1927, %v1919
      %v2336 = vpack.c.b16 %v1928, %v1920
      %v2337 = vpack.c.b16 %v1929, %v1921
      %v2338 = vpack.c.b16 %v1930, %v1922
      %v2339 = vpack.c.b16 %v1939, %v1931
      %v2340 = vpack.c.b16 %v1940, %v1932
      %v2341 = vpack.c.b16 %v1941, %v1933
      %v2342 = vpack.c.b16 %v1942, %v1934
      %v2343 = vpack.c.b16 %v1943, %v1935
      %v2344 = vpack.c.b16 %v1944, %v1936
      %v2345 = vpack.c.b16 %v1945, %v1937
      %v2346 = vpack.c.b16 %v1946, %v1938
      %v2347 = vpack.c.b16 %v1955, %v1947
      %v2348 = vpack.c.b16 %v1956, %v1948
      %v2349 = vpack.c.b16 %v1957, %v1949
      %v2350 = vpack.c.b16 %v1958, %v1950
      %v2351 = vpack.c.b16 %v1959, %v1951
      %v2352 = vpack.c.b16 %v1960, %v1952
      %v2353 = vpack.c.b16 %v1961, %v1953
      %v2354 = vpack.c.b16 %v1962, %v1954
      %v2355 = vpack.c.b16 %v1971, %v1963
      %v2356 = vpack.c.b16 %v1972, %v1964
      %v2357 = vpack.c.b16 %v1973, %v1965
      %v2358 = vpack.c.b16 %v1974, %v1966
      %v2359 = vpack.c.b16 %v1975, %v1967
      %v2360 = vpack.c.b16 %v1976, %v1968
      %v2361 = vpack.c.b16 %v1977, %v1969
      %v2362 = vpack.c.b16 %v1978, %v1970
      %v2363 = vpack.c.b16 %v1987, %v1979
      %v2364 = vpack.c.b16 %v1988, %v1980
      %v2365 = vpack.c.b16 %v1989, %v1981
      %v2366 = vpack.c.b16 %v1990, %v1982
      %v2367 = vpack.c.b16 %v1991, %v1983
      %v2368 = vpack.c.b16 %v1992, %v1984
      %v2369 = vpack.c.b16 %v1993, %v1985
      %v2370 = vpack.c.b16 %v1994, %v1986
      %v2371 = vpack.c.b16 %v2003, %v1995
      %v2372 = vpack.c.b16 %v2004, %v1996
      %v2373 = vpack.c.b16 %v2005, %v1997
      %v2374 = vpack.c.b16 %v2006, %v1998
      %v2375 = vpack.c.b16 %v2007, %v1999
      %v2376 = vpack.c.b16 %v2008, %v2000
      %v2377 = vpack.c.b16 %v2009, %v2001
      %v2378 = vpack.c.b16 %v2010, %v2002
      %v2379 = vpack.c.b16 %v2019, %v2011
      %v2380 = vpack.c.b16 %v2020, %v2012
      %v2381 = vpack.c.b16 %v2021, %v2013
      %v2382 = vpack.c.b16 %v2022, %v2014
      %v2383 = vpack.c.b16 %v2023, %v2015
      %v2384 = vpack.c.b16 %v2024, %v2016
      %v2385 = vpack.c.b16 %v2025, %v2017
      %v2386 = vpack.c.b16 %v2026, %v2018
      %v2387 = vpack.c.b16 %v2035, %v2027
      %v2388 = vpack.c.b16 %v2036, %v2028
      %v2389 = vpack.c.b16 %v2037, %v2029
      %v2390 = vpack.c.b16 %v2038, %v2030
      %v2391 = vpack.c.b16 %v2039, %v2031
      %v2392 = vpack.c.b16 %v2040, %v2032
      %v2393 = vpack.c.b16 %v2041, %v2033
      %v2394 = vpack.c.b16 %v2042, %v2034
      %v2395 = vpack.c.b16 %v2051, %v2043
      %v2396 = vpack.c.b16 %v2052, %v2044
      %v2397 = vpack.c.b16 %v2053, %v2045
      %v2398 = vpack.c.b16 %v2054, %v2046
      %v2399 = vpack.c.b16 %v2055, %v2047
      %v2400 = vpack.c.b16 %v2056, %v2048
      %v2401 = vpack.c.b16 %v2057, %v2049
      %v2402 = vpack.c.b16 %v2058, %v2050
      %v2403 = vpack.c.b16 %v2067, %v2059
      %v2404 = vpack.c.b16 %v2068, %v2060
      %v2405 = vpack.c.b16 %v2069, %v2061
      %v2406 = vpack.c.b16 %v2070, %v2062
      %v2407 = vpack.c.b16 %v2071, %v2063
      %v2408 = vpack.c.b16 %v2072, %v2064
      %v2409 = vpack.c.b16 %v2073, %v2065
      %v2410 = vpack.c.b16 %v2074, %v2066
      %v2411 = vpack.c.b16 %v2083, %v2075
      %v2412 = vpack.c.b16 %v2084, %v2076
      %v2413 = vpack.c.b16 %v2085, %v2077
      %v2414 = vpack.c.b16 %v2086, %v2078
      %v2415 = vpack.c.b16 %v2087, %v2079
      %v2416 = vpack.c.b16 %v2088, %v2080
      %v2417 = vpack.c.b16 %v2089, %v2081
      %v2418 = vpack.c.b16 %v2090, %v2082
      %v2419 = vpack.c.b16 %v2099, %v2091
      %v2420 = vpack.c.b16 %v2100, %v2092
      %v2421 = vpack.c.b16 %v2101, %v2093
      %v2422 = vpack.c.b16 %v2102, %v2094
      %v2423 = vpack.c.b16 %v2103, %v2095
      %v2424 = vpack.c.b16 %v2104, %v2096
      %v2425 = vpack.c.b16 %v2105, %v2097
      %v2426 = vpack.c.b16 %v2106, %v2098
      %v2427 = vpack.c.b16 %v2115, %v2107
      %v2428 = vpack.c.b16 %v2116, %v2108
      %v2429 = vpack.c.b16 %v2117, %v2109
      %v2430 = vpack.c.b16 %v2118, %v2110
      %v2431 = vpack.c.b16 %v2119, %v2111
      %v2432 = vpack.c.b16 %v2120, %v2112
      %v2433 = vpack.c.b16 %v2121, %v2113
      %v2434 = vpack.c.b16 %v2122, %v2114
      %v2435 = vpack.c.b16 %v2131, %v2123
      %v2436 = vpack.c.b16 %v2132, %v2124
      %v2437 = vpack.c.b16 %v2133, %v2125
      %v2438 = vpack.c.b16 %v2134, %v2126
      %v2439 = vpack.c.b16 %v2135, %v2127
      %v2440 = vpack.c.b16 %v2136, %v2128
      %v2441 = vpack.c.b16 %v2137, %v2129
      %v2442 = vpack.c.b16 %v2138, %v2130
      %v2443 = vpack.c.b16 %v2147, %v2139
      %v2444 = vpack.c.b16 %v2148, %v2140
      %v2445 = vpack.c.b16 %v2149, %v2141
      %v2446 = vpack.c.b16 %v2150, %v2142
      %v2447 = vpack.c.b16 %v2151, %v2143
      %v2448 = vpack.c.b16 %v2152, %v2144
      %v2449 = vpack.c.b16 %v2153, %v2145
      %v2450 = vpack.c.b16 %v2154, %v2146
      %v2451 = vpack.c.b16 %v2163, %v2155
      %v2452 = vpack.c.b16 %v2164, %v2156
      %v2453 = vpack.c.b16 %v2165, %v2157
      %v2454 = vpack.c.b16 %v2166, %v2158
      %v2455 = vpack.c.b16 %v2167, %v2159
      %v2456 = vpack.c.b16 %v2168, %v2160
      %v2457 = vpack.c.b16 %v2169, %v2161
      %v2458 = vpack.c.b16 %v2170, %v2162
      %v2459 = vpack.c.b16 %v2179, %v2171
      %v2460 = vpack.c.b16 %v2180, %v2172
      %v2461 = vpack.c.b16 %v2181, %v2173
      %v2462 = vpack.c.b16 %v2182, %v2174
      %v2463 = vpack.c.b16 %v2183, %v2175
      %v2464 = vpack.c.b16 %v2184, %v2176
      %v2465 = vpack.c.b16 %v2185, %v2177
      %v2466 = vpack.c.b16 %v2186, %v2178
      %v2467 = vpack.c.b16 %v2195, %v2187
      %v2468 = vpack.c.b16 %v2196, %v2188
      %v2469 = vpack.c.b16 %v2197, %v2189
      %v2470 = vpack.c.b16 %v2198, %v2190
      %v2471 = vpack.c.b16 %v2199, %v2191
      %v2472 = vpack.c.b16 %v2200, %v2192
      %v2473 = vpack.c.b16 %v2201, %v2193
      %v2474 = vpack.c.b16 %v2202, %v2194
      %v2475 = vpack.c.b16 %v2211, %v2203
      %v2476 = vpack.c.b16 %v2212, %v2204
      %v2477 = vpack.c.b16 %v2213, %v2205
      %v2478 = vpack.c.b16 %v2214, %v2206
      %v2479 = vpack.c.b16 %v2215, %v2207
      %v2480 = vpack.c.b16 %v2216, %v2208
      %v2481 = vpack.c.b16 %v2217, %v2209
      %v2482 = vpack.c.b16 %v2218, %v2210
      %v2483 = vpack.c.b16 %v2227, %v2219
      %v2484 = vpack.c.b16 %v2228, %v2220
      %v2485 = vpack.c.b16 %v2229, %v2221
      %v2486 = vpack.c.b16 %v2230, %v2222
      %v2487 = vpack.c.b16 %v2231, %v2223
      %v2488 = vpack.c.b16 %v2232, %v2224
      %v2489 = vpack.c.b16 %v2233, %v2225
      %v2490 = vpack.c.b16 %v2234, %v2226
      %2747 = vmatprep.subr.bf16.mxu0 %v2292
      %2748 = vmatpush1.bf16.msra.mxu0 %v2291
      %2749 = vmatprep.subr.bf16.mxu0 %v2284
      %2750 = vmatpush1.bf16.msra.mxu0 %v2283
      %2751 = vmatprep.subr.bf16.mxu0 %v2276
      %2752 = vmatpush1.bf16.msra.mxu0 %v2275
      %2753 = vmatprep.subr.bf16.mxu0 %v2268
      %2754 = vmatpush1.bf16.msra.mxu0 %v2267
      %2755 = vmatprep.subr.bf16.mxu0 %v2260
      %2756 = vmatpush1.bf16.msra.mxu0 %v2259
      %2757 = vmatprep.subr.bf16.mxu0 %v2252
      %2758 = vmatpush1.bf16.msra.mxu0 %v2251
      %2759 = vmatprep.subr.bf16.mxu0 %v2244
      %2760 = vmatpush1.bf16.msra.mxu0 %v2243
      %2761 = vmatprep.subr.bf16.mxu0 %v2236
      %2762 = vmatpush1.bf16.msra.mxu0 %v2235
      %2763 = vmatprep.subr.bf16.mxu0 %v2356
      %2764 = vmatpush2.bf16.msra.mxu0 %v2355
      %2765 = vmatprep.subr.bf16.mxu0 %v2348
      %2766 = vmatpush2.bf16.msra.mxu0 %v2347
      %2767 = vmatprep.subr.bf16.mxu0 %v2340
      %2768 = vmatpush2.bf16.msra.mxu0 %v2339
      %2769 = vmatprep.subr.bf16.mxu0 %v2332
      %2770 = vmatpush2.bf16.msra.mxu0 %v2331
      %2771 = vmatprep.subr.bf16.mxu0 %v2324
      %2772 = vmatpush2.bf16.msra.mxu0 %v2323
      %2773 = vmatprep.subr.bf16.mxu0 %v2316
      %2774 = vmatpush2.bf16.msra.mxu0 %v2315
      %2775 = vmatprep.subr.bf16.mxu0 %v2308
      %2776 = vmatpush2.bf16.msra.mxu0 %v2307
      %2777 = vmatprep.subr.bf16.mxu0 %v2300
      %2778 = vmatpush2.bf16.msra.mxu0 %v2299
      %2779 = vmatprep.mubr.bf16.mxu0 %v1166
      %2780 = vmatmul.mubr.bf16.gmra.mxu0 %v1165
      %v2781 = vpop.f32.mrf.mxu0
      %v2782 = vadd.f32 %v1430, %v2781
      %v2783 = vpop.f32.mrf.mxu0
      %v2784 = vadd.f32 %v1434, %v2783
      %v2785 = vpop.f32.mrf.mxu0
      %v2786 = vpop.f32.mrf.mxu0
      %2787 = vdwg.mxu0
      %2788 = vmatprep.subr.bf16.mxu0 %v2420
      %2789 = vmatpush1.bf16.msra.mxu0 %v2419
      %2790 = vmatprep.subr.bf16.mxu0 %v2412
      %2791 = vmatpush1.bf16.msra.mxu0 %v2411
      %2792 = vmatprep.subr.bf16.mxu0 %v2404
      %2793 = vmatpush1.bf16.msra.mxu0 %v2403
      %2794 = vmatprep.subr.bf16.mxu0 %v2396
      %2795 = vmatpush1.bf16.msra.mxu0 %v2395
      %2796 = vmatprep.subr.bf16.mxu0 %v2388
      %2797 = vmatpush1.bf16.msra.mxu0 %v2387
      %2798 = vmatprep.subr.bf16.mxu0 %v2380
      %2799 = vmatpush1.bf16.msra.mxu0 %v2379
      %2800 = vmatprep.subr.bf16.mxu0 %v2372
      %2801 = vmatpush1.bf16.msra.mxu0 %v2371
      %2802 = vmatprep.subr.bf16.mxu0 %v2364
      %2803 = vmatpush1.bf16.msra.mxu0 %v2363
      %2804 = vmatprep.subr.bf16.mxu0 %v2484
      %2805 = vmatpush2.bf16.msra.mxu0 %v2483
      %2806 = vmatprep.subr.bf16.mxu0 %v2476
      %2807 = vmatpush2.bf16.msra.mxu0 %v2475
      %2808 = vmatprep.subr.bf16.mxu0 %v2468
      %2809 = vmatpush2.bf16.msra.mxu0 %v2467
      %2810 = vmatprep.subr.bf16.mxu0 %v2460
      %2811 = vmatpush2.bf16.msra.mxu0 %v2459
      %2812 = vmatprep.subr.bf16.mxu0 %v2452
      %2813 = vmatpush2.bf16.msra.mxu0 %v2451
      %2814 = vmatprep.subr.bf16.mxu0 %v2444
      %2815 = vmatpush2.bf16.msra.mxu0 %v2443
      %2816 = vmatprep.subr.bf16.mxu0 %v2436
      %2817 = vmatpush2.bf16.msra.mxu0 %v2435
      %2818 = vmatprep.subr.bf16.mxu0 %v2428
      %2819 = vmatpush2.bf16.msra.mxu0 %v2427
      %2820 = vmatprep.mubr.bf16.mxu0 %v1168
      %2821 = vmatmul.mubr.bf16.gmra.mxu0 %v1167
      %v2822 = vpop.f32.mrf.mxu0
      %v2823 = vadd.f32 %v2782, %v2822
      %v2824 = vpop.f32.mrf.mxu0
      %v2825 = vadd.f32 %v2784, %v2824
      %v2826 = vpop.f32.mrf.mxu0
      %v2827 = vpop.f32.mrf.mxu0
      %2828 = vdwg.mxu0
      %2829 = vmatprep.subr.bf16.mxu0 %v2294
      %2830 = vmatpush1.bf16.msra.mxu0 %v2293
      %2831 = vmatprep.subr.bf16.mxu0 %v2286
      %2832 = vmatpush1.bf16.msra.mxu0 %v2285
      %2833 = vmatprep.subr.bf16.mxu0 %v2278
      %2834 = vmatpush1.bf16.msra.mxu0 %v2277
      %2835 = vmatprep.subr.bf16.mxu0 %v2270
      %2836 = vmatpush1.bf16.msra.mxu0 %v2269
      %2837 = vmatprep.subr.bf16.mxu0 %v2262
      %2838 = vmatpush1.bf16.msra.mxu0 %v2261
      %2839 = vmatprep.subr.bf16.mxu0 %v2254
      %2840 = vmatpush1.bf16.msra.mxu0 %v2253
      %2841 = vmatprep.subr.bf16.mxu0 %v2246
      %2842 = vmatpush1.bf16.msra.mxu0 %v2245
      %2843 = vmatprep.subr.bf16.mxu0 %v2238
      %2844 = vmatpush1.bf16.msra.mxu0 %v2237
      %2845 = vmatprep.subr.bf16.mxu0 %v2358
      %2846 = vmatpush2.bf16.msra.mxu0 %v2357
      %2847 = vmatprep.subr.bf16.mxu0 %v2350
      %2848 = vmatpush2.bf16.msra.mxu0 %v2349
      %2849 = vmatprep.subr.bf16.mxu0 %v2342
      %2850 = vmatpush2.bf16.msra.mxu0 %v2341
      %2851 = vmatprep.subr.bf16.mxu0 %v2334
      %2852 = vmatpush2.bf16.msra.mxu0 %v2333
      %2853 = vmatprep.subr.bf16.mxu0 %v2326
      %2854 = vmatpush2.bf16.msra.mxu0 %v2325
      %2855 = vmatprep.subr.bf16.mxu0 %v2318
      %2856 = vmatpush2.bf16.msra.mxu0 %v2317
      %2857 = vmatprep.subr.bf16.mxu0 %v2310
      %2858 = vmatpush2.bf16.msra.mxu0 %v2309
      %2859 = vmatprep.subr.bf16.mxu0 %v2302
      %2860 = vmatpush2.bf16.msra.mxu0 %v2301
      %2861 = vmatprep.mubr.bf16.mxu0 %v1166
      %2862 = vmatmul.mubr.bf16.gmra.mxu0 %v1165
      %v2863 = vpop.f32.mrf.mxu0
      %v2864 = vadd.f32 %v1438, %v2863
      %v2865 = vpop.f32.mrf.mxu0
      %v2866 = vadd.f32 %v1442, %v2865
      %v2867 = vpop.f32.mrf.mxu0
      %v2868 = vpop.f32.mrf.mxu0
      %2869 = vdwg.mxu0
      %2870 = vmatprep.subr.bf16.mxu0 %v2422
      %2871 = vmatpush1.bf16.msra.mxu0 %v2421
      %2872 = vmatprep.subr.bf16.mxu0 %v2414
      %2873 = vmatpush1.bf16.msra.mxu0 %v2413
      %2874 = vmatprep.subr.bf16.mxu0 %v2406
      %2875 = vmatpush1.bf16.msra.mxu0 %v2405
      %2876 = vmatprep.subr.bf16.mxu0 %v2398
      %2877 = vmatpush1.bf16.msra.mxu0 %v2397
      %2878 = vmatprep.subr.bf16.mxu0 %v2390
      %2879 = vmatpush1.bf16.msra.mxu0 %v2389
      %2880 = vmatprep.subr.bf16.mxu0 %v2382
      %2881 = vmatpush1.bf16.msra.mxu0 %v2381
      %2882 = vmatprep.subr.bf16.mxu0 %v2374
      %2883 = vmatpush1.bf16.msra.mxu0 %v2373
      %2884 = vmatprep.subr.bf16.mxu0 %v2366
      %2885 = vmatpush1.bf16.msra.mxu0 %v2365
      %2886 = vmatprep.subr.bf16.mxu0 %v2486
      %2887 = vmatpush2.bf16.msra.mxu0 %v2485
      %2888 = vmatprep.subr.bf16.mxu0 %v2478
      %2889 = vmatpush2.bf16.msra.mxu0 %v2477
      %2890 = vmatprep.subr.bf16.mxu0 %v2470
      %2891 = vmatpush2.bf16.msra.mxu0 %v2469
      %2892 = vmatprep.subr.bf16.mxu0 %v2462
      %2893 = vmatpush2.bf16.msra.mxu0 %v2461
      %2894 = vmatprep.subr.bf16.mxu0 %v2454
      %2895 = vmatpush2.bf16.msra.mxu0 %v2453
      %2896 = vmatprep.subr.bf16.mxu0 %v2446
      %2897 = vmatpush2.bf16.msra.mxu0 %v2445
      %2898 = vmatprep.subr.bf16.mxu0 %v2438
      %2899 = vmatpush2.bf16.msra.mxu0 %v2437
      %2900 = vmatprep.subr.bf16.mxu0 %v2430
      %2901 = vmatpush2.bf16.msra.mxu0 %v2429
      %2902 = vmatprep.mubr.bf16.mxu0 %v1168
      %2903 = vmatmul.mubr.bf16.gmra.mxu0 %v1167
      %v2904 = vpop.f32.mrf.mxu0
      %v2905 = vadd.f32 %v2864, %v2904
      %v2906 = vpop.f32.mrf.mxu0
      %v2907 = vadd.f32 %v2866, %v2906
      %v2908 = vpop.f32.mrf.mxu0
      %v2909 = vpop.f32.mrf.mxu0
      %2910 = vdwg.mxu0
      %2911 = vmatprep.subr.bf16.mxu0 %v2296
      %2912 = vmatpush1.bf16.msra.mxu0 %v2295
      %2913 = vmatprep.subr.bf16.mxu0 %v2288
      %2914 = vmatpush1.bf16.msra.mxu0 %v2287
      %2915 = vmatprep.subr.bf16.mxu0 %v2280
      %2916 = vmatpush1.bf16.msra.mxu0 %v2279
      %2917 = vmatprep.subr.bf16.mxu0 %v2272
      %2918 = vmatpush1.bf16.msra.mxu0 %v2271
      %2919 = vmatprep.subr.bf16.mxu0 %v2264
      %2920 = vmatpush1.bf16.msra.mxu0 %v2263
      %2921 = vmatprep.subr.bf16.mxu0 %v2256
      %2922 = vmatpush1.bf16.msra.mxu0 %v2255
      %2923 = vmatprep.subr.bf16.mxu0 %v2248
      %2924 = vmatpush1.bf16.msra.mxu0 %v2247
      %2925 = vmatprep.subr.bf16.mxu0 %v2240
      %2926 = vmatpush1.bf16.msra.mxu0 %v2239
      %2927 = vmatprep.subr.bf16.mxu0 %v2360
      %2928 = vmatpush2.bf16.msra.mxu0 %v2359
      %2929 = vmatprep.subr.bf16.mxu0 %v2352
      %2930 = vmatpush2.bf16.msra.mxu0 %v2351
      %2931 = vmatprep.subr.bf16.mxu0 %v2344
      %2932 = vmatpush2.bf16.msra.mxu0 %v2343
      %2933 = vmatprep.subr.bf16.mxu0 %v2336
      %2934 = vmatpush2.bf16.msra.mxu0 %v2335
      %2935 = vmatprep.subr.bf16.mxu0 %v2328
      %2936 = vmatpush2.bf16.msra.mxu0 %v2327
      %2937 = vmatprep.subr.bf16.mxu0 %v2320
      %2938 = vmatpush2.bf16.msra.mxu0 %v2319
      %2939 = vmatprep.subr.bf16.mxu0 %v2312
      %2940 = vmatpush2.bf16.msra.mxu0 %v2311
      %2941 = vmatprep.subr.bf16.mxu0 %v2304
      %2942 = vmatpush2.bf16.msra.mxu0 %v2303
      %2943 = vmatprep.mubr.bf16.mxu0 %v1166
      %2944 = vmatmul.mubr.bf16.gmra.mxu0 %v1165
      %v2945 = vpop.f32.mrf.mxu0
      %v2946 = vadd.f32 %v1446, %v2945
      %v2947 = vpop.f32.mrf.mxu0
      %v2948 = vadd.f32 %v1450, %v2947
      %v2949 = vpop.f32.mrf.mxu0
      %v2950 = vpop.f32.mrf.mxu0
      %2951 = vdwg.mxu0
      %2952 = vmatprep.subr.bf16.mxu0 %v2424
      %2953 = vmatpush1.bf16.msra.mxu0 %v2423
      %2954 = vmatprep.subr.bf16.mxu0 %v2416
      %2955 = vmatpush1.bf16.msra.mxu0 %v2415
      %2956 = vmatprep.subr.bf16.mxu0 %v2408
      %2957 = vmatpush1.bf16.msra.mxu0 %v2407
      %2958 = vmatprep.subr.bf16.mxu0 %v2400
      %2959 = vmatpush1.bf16.msra.mxu0 %v2399
      %2960 = vmatprep.subr.bf16.mxu0 %v2392
      %2961 = vmatpush1.bf16.msra.mxu0 %v2391
      %2962 = vmatprep.subr.bf16.mxu0 %v2384
      %2963 = vmatpush1.bf16.msra.mxu0 %v2383
      %2964 = vmatprep.subr.bf16.mxu0 %v2376
      %2965 = vmatpush1.bf16.msra.mxu0 %v2375
      %2966 = vmatprep.subr.bf16.mxu0 %v2368
      %2967 = vmatpush1.bf16.msra.mxu0 %v2367
      %2968 = vmatprep.subr.bf16.mxu0 %v2488
      %2969 = vmatpush2.bf16.msra.mxu0 %v2487
      %2970 = vmatprep.subr.bf16.mxu0 %v2480
      %2971 = vmatpush2.bf16.msra.mxu0 %v2479
      %2972 = vmatprep.subr.bf16.mxu0 %v2472
      %2973 = vmatpush2.bf16.msra.mxu0 %v2471
      %2974 = vmatprep.subr.bf16.mxu0 %v2464
      %2975 = vmatpush2.bf16.msra.mxu0 %v2463
      %2976 = vmatprep.subr.bf16.mxu0 %v2456
      %2977 = vmatpush2.bf16.msra.mxu0 %v2455
      %2978 = vmatprep.subr.bf16.mxu0 %v2448
      %2979 = vmatpush2.bf16.msra.mxu0 %v2447
      %2980 = vmatprep.subr.bf16.mxu0 %v2440
      %2981 = vmatpush2.bf16.msra.mxu0 %v2439
      %2982 = vmatprep.subr.bf16.mxu0 %v2432
      %2983 = vmatpush2.bf16.msra.mxu0 %v2431
      %2984 = vmatprep.mubr.bf16.mxu0 %v1168
      %2985 = vmatmul.mubr.bf16.gmra.mxu0 %v1167
      %v2986 = vpop.f32.mrf.mxu0
      %v2987 = vadd.f32 %v2946, %v2986
      %v2988 = vpop.f32.mrf.mxu0
      %v2989 = vadd.f32 %v2948, %v2988
      %v2990 = vpop.f32.mrf.mxu0
      %v2991 = vpop.f32.mrf.mxu0
      %2992 = vdwg.mxu0
      %2993 = vmatprep.subr.bf16.mxu0 %v2298
      %2994 = vmatpush1.bf16.msra.mxu0 %v2297
      %2995 = vmatprep.subr.bf16.mxu0 %v2290
      %2996 = vmatpush1.bf16.msra.mxu0 %v2289
      %2997 = vmatprep.subr.bf16.mxu0 %v2282
      %2998 = vmatpush1.bf16.msra.mxu0 %v2281
      %2999 = vmatprep.subr.bf16.mxu0 %v2274
      %3000 = vmatpush1.bf16.msra.mxu0 %v2273
      %3001 = vmatprep.subr.bf16.mxu0 %v2266
      %3002 = vmatpush1.bf16.msra.mxu0 %v2265
      %3003 = vmatprep.subr.bf16.mxu0 %v2258
      %3004 = vmatpush1.bf16.msra.mxu0 %v2257
      %3005 = vmatprep.subr.bf16.mxu0 %v2250
      %3006 = vmatpush1.bf16.msra.mxu0 %v2249
      %3007 = vmatprep.subr.bf16.mxu0 %v2242
      %3008 = vmatpush1.bf16.msra.mxu0 %v2241
      %3009 = vmatprep.subr.bf16.mxu0 %v2362
      %3010 = vmatpush2.bf16.msra.mxu0 %v2361
      %3011 = vmatprep.subr.bf16.mxu0 %v2354
      %3012 = vmatpush2.bf16.msra.mxu0 %v2353
      %3013 = vmatprep.subr.bf16.mxu0 %v2346
      %3014 = vmatpush2.bf16.msra.mxu0 %v2345
      %3015 = vmatprep.subr.bf16.mxu0 %v2338
      %3016 = vmatpush2.bf16.msra.mxu0 %v2337
      %3017 = vmatprep.subr.bf16.mxu0 %v2330
      %3018 = vmatpush2.bf16.msra.mxu0 %v2329
      %3019 = vmatprep.subr.bf16.mxu0 %v2322
      %3020 = vmatpush2.bf16.msra.mxu0 %v2321
      %3021 = vmatprep.subr.bf16.mxu0 %v2314
      %3022 = vmatpush2.bf16.msra.mxu0 %v2313
      %3023 = vmatprep.subr.bf16.mxu0 %v2306
      %3024 = vmatpush2.bf16.msra.mxu0 %v2305
      %3025 = vmatprep.mubr.bf16.mxu0 %v1166
      %3026 = vmatmul.mubr.bf16.gmra.mxu0 %v1165
      %v3027 = vpop.f32.mrf.mxu0
      %v3028 = vadd.f32 %v1454, %v3027
      %v3029 = vpop.f32.mrf.mxu0
      %v3030 = vadd.f32 %v1458, %v3029
      %v3031 = vpop.f32.mrf.mxu0
      %v3032 = vpop.f32.mrf.mxu0
      %3033 = vdwg.mxu0
      %3034 = vmatprep.subr.bf16.mxu0 %v2426
      %3035 = vmatpush1.bf16.msra.mxu0 %v2425
      %3036 = vmatprep.subr.bf16.mxu0 %v2418
      %3037 = vmatpush1.bf16.msra.mxu0 %v2417
      %3038 = vmatprep.subr.bf16.mxu0 %v2410
      %3039 = vmatpush1.bf16.msra.mxu0 %v2409
      %3040 = vmatprep.subr.bf16.mxu0 %v2402
      %3041 = vmatpush1.bf16.msra.mxu0 %v2401
      %3042 = vmatprep.subr.bf16.mxu0 %v2394
      %3043 = vmatpush1.bf16.msra.mxu0 %v2393
      %3044 = vmatprep.subr.bf16.mxu0 %v2386
      %3045 = vmatpush1.bf16.msra.mxu0 %v2385
      %3046 = vmatprep.subr.bf16.mxu0 %v2378
      %3047 = vmatpush1.bf16.msra.mxu0 %v2377
      %3048 = vmatprep.subr.bf16.mxu0 %v2370
      %3049 = vmatpush1.bf16.msra.mxu0 %v2369
      %3050 = vmatprep.subr.bf16.mxu0 %v2490
      %3051 = vmatpush2.bf16.msra.mxu0 %v2489
      %3052 = vmatprep.subr.bf16.mxu0 %v2482
      %3053 = vmatpush2.bf16.msra.mxu0 %v2481
      %3054 = vmatprep.subr.bf16.mxu0 %v2474
      %3055 = vmatpush2.bf16.msra.mxu0 %v2473
      %3056 = vmatprep.subr.bf16.mxu0 %v2466
      %3057 = vmatpush2.bf16.msra.mxu0 %v2465
      %3058 = vmatprep.subr.bf16.mxu0 %v2458
      %3059 = vmatpush2.bf16.msra.mxu0 %v2457
      %3060 = vmatprep.subr.bf16.mxu0 %v2450
      %3061 = vmatpush2.bf16.msra.mxu0 %v2449
      %3062 = vmatprep.subr.bf16.mxu0 %v2442
      %3063 = vmatpush2.bf16.msra.mxu0 %v2441
      %3064 = vmatprep.subr.bf16.mxu0 %v2434
      %3065 = vmatpush2.bf16.msra.mxu0 %v2433
      %3066 = vmatprep.mubr.bf16.mxu0 %v1168
      %3067 = vmatmul.mubr.bf16.gmra.mxu0 %v1167
      %v3068 = vpop.f32.mrf.mxu0
      %v3069 = vadd.f32 %v3028, %v3068
      %v3070 = vpop.f32.mrf.mxu0
      %v3071 = vadd.f32 %v3030, %v3070
      %v3072 = vpop.f32.mrf.mxu0
      %v3073 = vpop.f32.mrf.mxu0
      %3074 = vdwg.mxu0
      %vm3075 = vcmask 1043456
      %v3076 = vsel %vm3075, %v2823, -inf
      %v3077 = vrot.slane %v3076, 4
      %v3078 = vmax.f32 %v3076, %v3077
      %v3079 = vrot.slane %v3078, 2
      %v3080 = vmax.f32 %v3078, %v3079
      %v3081 = vrot.slane %v3080, 1
      %v3082 = vmax.f32 %v3080, %v3081
      %v3083 = vsel %vm3075, %v2825, -inf
      %v3084 = vrot.slane %v3083, 4
      %v3085 = vmax.f32 %v3083, %v3084
      %v3086 = vrot.slane %v3085, 2
      %v3087 = vmax.f32 %v3085, %v3086
      %v3088 = vrot.slane %v3087, 1
      %v3089 = vmax.f32 %v3087, %v3088
      %v3090 = vsel %vm3075, %v2905, -inf
      %v3091 = vrot.slane %v3090, 4
      %v3092 = vmax.f32 %v3090, %v3091
      %v3093 = vrot.slane %v3092, 2
      %v3094 = vmax.f32 %v3092, %v3093
      %v3095 = vrot.slane %v3094, 1
      %v3096 = vmax.f32 %v3094, %v3095
      %v3097 = vsel %vm3075, %v2907, -inf
      %v3098 = vrot.slane %v3097, 4
      %v3099 = vmax.f32 %v3097, %v3098
      %v3100 = vrot.slane %v3099, 2
      %v3101 = vmax.f32 %v3099, %v3100
      %v3102 = vrot.slane %v3101, 1
      %v3103 = vmax.f32 %v3101, %v3102
      %v3104 = vsel %vm3075, %v2987, -inf
      %v3105 = vrot.slane %v3104, 4
      %v3106 = vmax.f32 %v3104, %v3105
      %v3107 = vrot.slane %v3106, 2
      %v3108 = vmax.f32 %v3106, %v3107
      %v3109 = vrot.slane %v3108, 1
      %v3110 = vmax.f32 %v3108, %v3109
      %v3111 = vsel %vm3075, %v2989, -inf
      %v3112 = vrot.slane %v3111, 4
      %v3113 = vmax.f32 %v3111, %v3112
      %v3114 = vrot.slane %v3113, 2
      %v3115 = vmax.f32 %v3113, %v3114
      %v3116 = vrot.slane %v3115, 1
      %v3117 = vmax.f32 %v3115, %v3116
      %v3118 = vsel %vm3075, %v3069, -inf
      %v3119 = vrot.slane %v3118, 4
      %v3120 = vmax.f32 %v3118, %v3119
      %v3121 = vrot.slane %v3120, 2
      %v3122 = vmax.f32 %v3120, %v3121
      %v3123 = vrot.slane %v3122, 1
      %v3124 = vmax.f32 %v3122, %v3123
      %v3125 = vsel %vm3075, %v3071, -inf
      %v3126 = vrot.slane %v3125, 4
      %v3127 = vmax.f32 %v3125, %v3126
      %v3128 = vrot.slane %v3127, 2
      %v3129 = vmax.f32 %v3127, %v3128
      %v3130 = vrot.slane %v3129, 1
      %v3131 = vmax.f32 %v3129, %v3130
      %v3132 = vpack.c.bf16 %v3082, %v3082
      %v3133 = vpack.c.bf16 %v3089, %v3089
      %v3134 = vpack.c.bf16 %v3096, %v3096
      %v3135 = vpack.c.bf16 %v3103, %v3103
      %v3136 = vpack.c.bf16 %v3110, %v3110
      %v3137 = vpack.c.bf16 %v3117, %v3117
      %v3138 = vpack.c.bf16 %v3124, %v3124
      %v3139 = vpack.c.bf16 %v3131, %v3131
      %v3148 = vcombine.low %v3132, %v3133
      %v3149 = vcombine.low %v3134, %v3135
      %v3150 = vcombine.low %v3136, %v3137
      %v3151 = vcombine.low %v3138, %v3139
      %v3153 = vunpack.c.l.s4 1966171168
      %v3154 = vunpack.c.0.s8 %v3153
      %v3155 = vlaneseq
      %v3156 = vshrl.u32 %v3155, 7
      %v3157 = vsub.s32 %v3154, %v3156
      %v3158 = vrot.slane %v3148, %v3157
      %v3160 = vunpack.c.l.s4 1966171168
      %v3161 = vunpack.c.0.s8 %v3160
      %v3162 = vlaneseq
      %v3163 = vshrl.u32 %v3162, 7
      %v3164 = vsub.s32 %v3161, %v3163
      %v3165 = vrot.slane %v3149, %v3164
      %v3167 = vunpack.c.l.s4 1966171168
      %v3168 = vunpack.c.0.s8 %v3167
      %v3169 = vlaneseq
      %v3170 = vshrl.u32 %v3169, 7
      %v3171 = vsub.s32 %v3168, %v3170
      %v3172 = vrot.slane %v3150, %v3171
      %v3174 = vunpack.c.l.s4 1966171168
      %v3175 = vunpack.c.0.s8 %v3174
      %v3176 = vlaneseq
      %v3177 = vshrl.u32 %v3176, 7
      %v3178 = vsub.s32 %v3175, %v3177
      %v3179 = vrot.slane %v3151, %v3178
      %v3180 = vcombine.low %v3158, %v3165
      %v3181 = vcombine.low %v3172, %v3179
      %v3183 = vunpack.c.l.s4 1966171168
      %v3184 = vunpack.c.0.s8 %v3183
      %v3185 = vlaneseq
      %v3186 = vshrl.u32 %v3185, 7
      %v3187 = vsub.s32 %v3184, %v3186
      %v3188 = vrot.slane %v3180, %v3187
      %v3190 = vunpack.c.l.s4 1966171168
      %v3191 = vunpack.c.0.s8 %v3190
      %v3192 = vlaneseq
      %v3193 = vshrl.u32 %v3192, 7
      %v3194 = vsub.s32 %v3191, %v3193
      %v3195 = vrot.slane %v3181, %v3194
      %v3196 = vcombine.low %v3188, %v3195
      %vm3198 = vcmask 1040384
      %vm3199 = vsmask.f32 256
      %vm3200 = vmand %vm3198, %vm3199
      %vm3201 = vcmask 1041409
      %vm3202 = vsmask.f32 1280
      %vm3203 = vmand %vm3201, %vm3202
      %vm3204 = vmor %vm3203, %vm3200
      %vm3205 = vcmask 1042434
      %vm3206 = vsmask.f32 2304
      %vm3207 = vmand %vm3205, %vm3206
      %vm3208 = vmor %vm3207, %vm3204
      %vm3209 = vcmask 1043459
      %vm3210 = vsmask.f32 3328
      %vm3211 = vmand %vm3209, %vm3210
      %vm3212 = vmor %vm3211, %vm3208
      %vm3213 = vcmask 1044484
      %vm3214 = vsmask.f32 4352
      %vm3215 = vmand %vm3213, %vm3214
      %vm3216 = vmor %vm3215, %vm3212
      %vm3217 = vcmask 1045509
      %vm3218 = vsmask.f32 5376
      %vm3219 = vmand %vm3217, %vm3218
      %vm3220 = vmor %vm3219, %vm3216
      %vm3221 = vcmask 1046534
      %vm3222 = vsmask.f32 6400
      %vm3223 = vmand %vm3221, %vm3222
      %vm3224 = vmor %vm3223, %vm3220
      %vm3225 = vcmask 1047559
      %vm3226 = vsmask.f32 7424
      %vm3227 = vmand %vm3225, %vm3226
      %vm3228 = vmor %vm3227, %vm3224
      %v3229 = vld [vmem:[%s347] sm:$0xff]
      %v3230 = vsel %vm3228, %v3196, %v3229
      %3231 = vst [vmem:[%s347] sm:$0xff] %v3230
      %p3232 = scmp.lt.s32.totalorder %s20, 1
      %s3233 = scalar_select %p3232, %s20, 1
      %s3234 = smul.addr %s3233, 8
      %s3235 = scalar_lea.vmem %s9, %s3234
      // Predicated region
      $region57: #{pointnet_forward.6} parent=55 // pred_check
        %p3236 = pneg %p237
      $region58: #{pointnet_forward.6} parent=55 // pred_check_branch
        %3238 = sbr.rel (%p3236) target = $region60
      $region59: #{pointnet_forward.6} parent=55 // pred_region
        _
      $region60: #{pointnet_forward.6} parent=55 // pred_fallthru
        _
    $region56: #{pointnet_forward.6} parent=5 // pred_fallthru
      _
    %p3239 = scmp.le.s32.totalorder 2, %s15
    // Predicated region
    $region61: #{pointnet_forward.6} parent=5 // pred_check
      %p3240 = pneg %p3239
    $region62: #{pointnet_forward.6} parent=5 // pred_check_branch
      %3242 = sbr.rel (%p3240) target = $region64
    $region63: #{pointnet_forward.6} parent=5 // pred_region
      %s3243 = ssub.s32 %s15, 2
      // Predicated region
      $region65: #{pointnet_forward.6} parent=63 // pred_check
        %p3244 = pneg %p243
      $region66: #{pointnet_forward.6} parent=63 // pred_check_branch
        %3246 = sbr.rel (%p3244) target = $region68
      $region67: #{pointnet_forward.6} parent=63 // pred_region
        %p3247 = scmp.lt.s32.totalorder %s21, 1
        %s3248 = scalar_select %p3247, %s21, 1
        %s3249 = smul.addr %s3248, 8
        %s3250 = scalar_lea.vmem %s9, %s3249
      $region68: #{pointnet_forward.6} parent=63 // pred_fallthru
        _
    $region64: #{pointnet_forward.6} parent=5 // pred_fallthru
      _
  $region6: #{pointnet_forward.6} parent=0 // loop_footer
    %s19 = sadd.s32 1, %s15
  $region7: #{pointnet_forward.6} parent=0 // loop_footer_branch
    %14 = sbr.rel target = $region3
  $region8: #{pointnet_forward.6} parent=0 // loop_exit
    _

// kernel: pointnet_forward.7
$region0: #{pointnet_forward.7}
  #allocation0 [shape = 'u32[]', space=smem, size = 0x4, offset = 0x4, fixed_abs, tag = 'smem constant byte address 0x4 - core index']
  #allocation1 [shape = 'u32[144,128]{1,0:T(1,128)}', space=vmem, size = 0x12000, scoped, tag = 'internal scratch']
  %s0 = inlined_call_operand.vmem [shape: bf16[2,1024], index: 0, kind: input, shape index: {}]
  %s1 = inlined_call_operand.vmem [shape: bf16[1024,512], index: 1, kind: input, shape index: {}]
  %s2 = inlined_call_operand.vmem [shape: f32[1,512], index: 2, kind: input, shape index: {}]
  %s3 = inlined_call_operand.vmem [shape: bf16[512,256], index: 3, kind: input, shape index: {}]
  %s4 = inlined_call_operand.vmem [shape: f32[1,256], index: 4, kind: input, shape index: {}]
  %s5 = inlined_call_operand.vmem [shape: bf16[256,10], index: 5, kind: input, shape index: {}]
  %s6 = inlined_call_operand.vmem [shape: f32[1,10], index: 6, kind: input, shape index: {}]
  %s7 = inlined_call_operand.hbm [shape: f32[2,10], index: 7, kind: output, shape index: {}]
  %s8 = sld [smem:[#allocation0]]
  $region38: #{pointnet_forward.7} parent=0
    _
  %s10 = ssub.s32 1, %s8
  %s11 = scalar_select 0, %s10, %s8
  $region1: #{pointnet_forward.7} parent=0
    #allocation2 [shape = 'u8[1024]{0}', space=vmem, size = 0x400, scoped, tag = 'output window, operand 0, single buffered']
    #allocation3 [shape = 's32[1]{0}', space=sflag, size = 0x4, scoped, tag = 'scoped memory for pointnet_forward.7']
    %12 = vsyncpa [#allocation3], 0
    // Predicated region
    $region2: #{pointnet_forward.7} parent=1 // pred_check
      _
    $region3: #{pointnet_forward.7} parent=1 // pred_check_branch
      %14 = sbr.rel (0) target = $region5
    $region4: #{pointnet_forward.7} parent=1 // pred_region
      _
    $region5: #{pointnet_forward.7} parent=1 // pred_fallthru
      _
    // Predicated region
    $region6: #{pointnet_forward.7} parent=1 // pred_check
      _
    $region7: #{pointnet_forward.7} parent=1 // pred_check_branch
      %16 = sbr.rel (0) target = $region9
    $region8: #{pointnet_forward.7} parent=1 // pred_region
      _
    $region9: #{pointnet_forward.7} parent=1 // pred_fallthru
      _
    // Predicated region
    $region10: #{pointnet_forward.7} parent=1 // pred_check
      _
    $region11: #{pointnet_forward.7} parent=1 // pred_check_branch
      %18 = sbr.rel (0) target = $region13
    $region12: #{pointnet_forward.7} parent=1 // pred_region
      _
    $region13: #{pointnet_forward.7} parent=1 // pred_fallthru
      _
    // Predicated region
    $region14: #{pointnet_forward.7} parent=1 // pred_check
      _
    $region15: #{pointnet_forward.7} parent=1 // pred_check_branch
      %20 = sbr.rel (0) target = $region17
    $region16: #{pointnet_forward.7} parent=1 // pred_region
      _
    $region17: #{pointnet_forward.7} parent=1 // pred_fallthru
      _
    // Predicated region
    $region18: #{pointnet_forward.7} parent=1 // pred_check
      _
    $region19: #{pointnet_forward.7} parent=1 // pred_check_branch
      %22 = sbr.rel (0) target = $region21
    $region20: #{pointnet_forward.7} parent=1 // pred_region
      _
    $region21: #{pointnet_forward.7} parent=1 // pred_fallthru
      _
    // Predicated region
    $region22: #{pointnet_forward.7} parent=1 // pred_check
      _
    $region23: #{pointnet_forward.7} parent=1 // pred_check_branch
      %24 = sbr.rel (0) target = $region25
    $region24: #{pointnet_forward.7} parent=1 // pred_region
      _
    $region25: #{pointnet_forward.7} parent=1 // pred_fallthru
      _
    // Predicated region
    $region26: #{pointnet_forward.7} parent=1 // pred_check
      _
    $region27: #{pointnet_forward.7} parent=1 // pred_check_branch
      %26 = sbr.rel (0) target = $region29
    $region28: #{pointnet_forward.7} parent=1 // pred_region
      _
    $region29: #{pointnet_forward.7} parent=1 // pred_fallthru
      _
    %v28 = vld [vmem:[%s0] sm:$0xff]
    %v29 = vld [vmem:[%s1] sm:$0xff]
    %v30 = vld [vmem:[%s1 + $0x8] sm:$0xff]
    %v31 = vld [vmem:[%s1 + $0x10] sm:$0xff]
    %v32 = vld [vmem:[%s1 + $0x18] sm:$0xff]
    %v33 = vld [vmem:[%s1 + $0x20] sm:$0xff]
    %v34 = vld [vmem:[%s1 + $0x28] sm:$0xff]
    %v35 = vld [vmem:[%s1 + $0x30] sm:$0xff]
    %v36 = vld [vmem:[%s1 + $0x38] sm:$0xff]
    %v37 = vld [vmem:[%s1 + $0x40] sm:$0xff]
    %v38 = vld [vmem:[%s1 + $0x48] sm:$0xff]
    %v39 = vld [vmem:[%s1 + $0x50] sm:$0xff]
    %v40 = vld [vmem:[%s1 + $0x58] sm:$0xff]
    %v41 = vld [vmem:[%s1 + $0x60] sm:$0xff]
    %v42 = vld [vmem:[%s1 + $0x68] sm:$0xff]
    %v43 = vld [vmem:[%s1 + $0x70] sm:$0xff]
    %v44 = vld [vmem:[%s1 + $0x78] sm:$0xff]
    %v45 = vld [vmem:[%s1 + $0x80] sm:$0xff]
    %v46 = vld [vmem:[%s1 + $0x88] sm:$0xff]
    %v47 = vld [vmem:[%s1 + $0x90] sm:$0xff]
    %v48 = vld [vmem:[%s1 + $0x98] sm:$0xff]
    %v49 = vld [vmem:[%s1 + $0xa0] sm:$0xff]
    %v50 = vld [vmem:[%s1 + $0xa8] sm:$0xff]
    %v51 = vld [vmem:[%s1 + $0xb0] sm:$0xff]
    %v52 = vld [vmem:[%s1 + $0xb8] sm:$0xff]
    %v53 = vld [vmem:[%s1 + $0xc0] sm:$0xff]
    %v54 = vld [vmem:[%s1 + $0xc8] sm:$0xff]
    %v55 = vld [vmem:[%s1 + $0xd0] sm:$0xff]
    %v56 = vld [vmem:[%s1 + $0xd8] sm:$0xff]
    %v57 = vld [vmem:[%s1 + $0xe0] sm:$0xff]
    %v58 = vld [vmem:[%s1 + $0xe8] sm:$0xff]
    %v59 = vld [vmem:[%s1 + $0xf0] sm:$0xff]
    %v60 = vld [vmem:[%s1 + $0xf8] sm:$0xff]
    %v61 = vld [vmem:[%s1 + $0x100] sm:$0xff]
    %v62 = vld [vmem:[%s1 + $0x108] sm:$0xff]
    %v63 = vld [vmem:[%s1 + $0x110] sm:$0xff]
    %v64 = vld [vmem:[%s1 + $0x118] sm:$0xff]
    %v65 = vld [vmem:[%s1 + $0x120] sm:$0xff]
    %v66 = vld [vmem:[%s1 + $0x128] sm:$0xff]
    %v67 = vld [vmem:[%s1 + $0x130] sm:$0xff]
    %v68 = vld [vmem:[%s1 + $0x138] sm:$0xff]
    %v69 = vld [vmem:[%s1 + $0x140] sm:$0xff]
    %v70 = vld [vmem:[%s1 + $0x148] sm:$0xff]
    %v71 = vld [vmem:[%s1 + $0x150] sm:$0xff]
    %v72 = vld [vmem:[%s1 + $0x158] sm:$0xff]
    %v73 = vld [vmem:[%s1 + $0x160] sm:$0xff]
    %v74 = vld [vmem:[%s1 + $0x168] sm:$0xff]
    %v75 = vld [vmem:[%s1 + $0x170] sm:$0xff]
    %v76 = vld [vmem:[%s1 + $0x178] sm:$0xff]
    %v77 = vld [vmem:[%s1 + $0x180] sm:$0xff]
    %v78 = vld [vmem:[%s1 + $0x188] sm:$0xff]
    %v79 = vld [vmem:[%s1 + $0x190] sm:$0xff]
    %v80 = vld [vmem:[%s1 + $0x198] sm:$0xff]
    %v81 = vld [vmem:[%s1 + $0x1a0] sm:$0xff]
    %v82 = vld [vmem:[%s1 + $0x1a8] sm:$0xff]
    %v83 = vld [vmem:[%s1 + $0x1b0] sm:$0xff]
    %v84 = vld [vmem:[%s1 + $0x1b8] sm:$0xff]
    %v85 = vld [vmem:[%s1 + $0x1c0] sm:$0xff]
    %v86 = vld [vmem:[%s1 + $0x1c8] sm:$0xff]
    %v87 = vld [vmem:[%s1 + $0x1d0] sm:$0xff]
    %v88 = vld [vmem:[%s1 + $0x1d8] sm:$0xff]
    %v89 = vld [vmem:[%s1 + $0x1e0] sm:$0xff]
    %v90 = vld [vmem:[%s1 + $0x1e8] sm:$0xff]
    %v91 = vld [vmem:[%s1 + $0x1f0] sm:$0xff]
    %v92 = vld [vmem:[%s1 + $0x1f8] sm:$0xff]
    %v93 = vld [vmem:[%s1 + $0x200] sm:$0xff]
    %v94 = vld [vmem:[%s1 + $0x208] sm:$0xff]
    %v95 = vld [vmem:[%s1 + $0x210] sm:$0xff]
    %v96 = vld [vmem:[%s1 + $0x218] sm:$0xff]
    %v97 = vld [vmem:[%s1 + $0x220] sm:$0xff]
    %v98 = vld [vmem:[%s1 + $0x228] sm:$0xff]
    %v99 = vld [vmem:[%s1 + $0x230] sm:$0xff]
    %v100 = vld [vmem:[%s1 + $0x238] sm:$0xff]
    %v101 = vld [vmem:[%s1 + $0x240] sm:$0xff]
    %v102 = vld [vmem:[%s1 + $0x248] sm:$0xff]
    %v103 = vld [vmem:[%s1 + $0x250] sm:$0xff]
    %v104 = vld [vmem:[%s1 + $0x258] sm:$0xff]
    %v105 = vld [vmem:[%s1 + $0x260] sm:$0xff]
    %v106 = vld [vmem:[%s1 + $0x268] sm:$0xff]
    %v107 = vld [vmem:[%s1 + $0x270] sm:$0xff]
    %v108 = vld [vmem:[%s1 + $0x278] sm:$0xff]
    %v109 = vld [vmem:[%s1 + $0x280] sm:$0xff]
    %v110 = vld [vmem:[%s1 + $0x288] sm:$0xff]
    %v111 = vld [vmem:[%s1 + $0x290] sm:$0xff]
    %v112 = vld [vmem:[%s1 + $0x298] sm:$0xff]
    %v113 = vld [vmem:[%s1 + $0x2a0] sm:$0xff]
    %v114 = vld [vmem:[%s1 + $0x2a8] sm:$0xff]
    %v115 = vld [vmem:[%s1 + $0x2b0] sm:$0xff]
    %v116 = vld [vmem:[%s1 + $0x2b8] sm:$0xff]
    %v117 = vld [vmem:[%s1 + $0x2c0] sm:$0xff]
    %v118 = vld [vmem:[%s1 + $0x2c8] sm:$0xff]
    %v119 = vld [vmem:[%s1 + $0x2d0] sm:$0xff]
    %v120 = vld [vmem:[%s1 + $0x2d8] sm:$0xff]
    %v121 = vld [vmem:[%s1 + $0x2e0] sm:$0xff]
    %v122 = vld [vmem:[%s1 + $0x2e8] sm:$0xff]
    %v123 = vld [vmem:[%s1 + $0x2f0] sm:$0xff]
    %v124 = vld [vmem:[%s1 + $0x2f8] sm:$0xff]
    %v125 = vld [vmem:[%s1 + $0x300] sm:$0xff]
    %v126 = vld [vmem:[%s1 + $0x308] sm:$0xff]
    %v127 = vld [vmem:[%s1 + $0x310] sm:$0xff]
    %v128 = vld [vmem:[%s1 + $0x318] sm:$0xff]
    %v129 = vld [vmem:[%s1 + $0x320] sm:$0xff]
    %v130 = vld [vmem:[%s1 + $0x328] sm:$0xff]
    %v131 = vld [vmem:[%s1 + $0x330] sm:$0xff]
    %v132 = vld [vmem:[%s1 + $0x338] sm:$0xff]
    %v133 = vld [vmem:[%s1 + $0x340] sm:$0xff]
    %v134 = vld [vmem:[%s1 + $0x348] sm:$0xff]
    %v135 = vld [vmem:[%s1 + $0x350] sm:$0xff]
    %v136 = vld [vmem:[%s1 + $0x358] sm:$0xff]
    %v137 = vld [vmem:[%s1 + $0x360] sm:$0xff]
    %v138 = vld [vmem:[%s1 + $0x368] sm:$0xff]
    %v139 = vld [vmem:[%s1 + $0x370] sm:$0xff]
    %v140 = vld [vmem:[%s1 + $0x378] sm:$0xff]
    %v141 = vld [vmem:[%s1 + $0x380] sm:$0xff]
    %v142 = vld [vmem:[%s1 + $0x388] sm:$0xff]
    %v143 = vld [vmem:[%s1 + $0x390] sm:$0xff]
    %v144 = vld [vmem:[%s1 + $0x398] sm:$0xff]
    %v145 = vld [vmem:[%s1 + $0x3a0] sm:$0xff]
    %v146 = vld [vmem:[%s1 + $0x3a8] sm:$0xff]
    %v147 = vld [vmem:[%s1 + $0x3b0] sm:$0xff]
    %v148 = vld [vmem:[%s1 + $0x3b8] sm:$0xff]
    %v149 = vld [vmem:[%s1 + $0x3c0] sm:$0xff]
    %v150 = vld [vmem:[%s1 + $0x3c8] sm:$0xff]
    %v151 = vld [vmem:[%s1 + $0x3d0] sm:$0xff]
    %v152 = vld [vmem:[%s1 + $0x3d8] sm:$0xff]
    %v153 = vld [vmem:[%s1 + $0x3e0] sm:$0xff]
    %v154 = vld [vmem:[%s1 + $0x3e8] sm:$0xff]
    %v155 = vld [vmem:[%s1 + $0x3f0] sm:$0xff]
    %v156 = vld [vmem:[%s1 + $0x3f8] sm:$0xff]
    %v157 = vld [vmem:[%s1 + $0x400] sm:$0xff]
    %v158 = vld [vmem:[%s1 + $0x408] sm:$0xff]
    %v159 = vld [vmem:[%s1 + $0x410] sm:$0xff]
    %v160 = vld [vmem:[%s1 + $0x418] sm:$0xff]
    %v161 = vld [vmem:[%s1 + $0x420] sm:$0xff]
    %v162 = vld [vmem:[%s1 + $0x428] sm:$0xff]
    %v163 = vld [vmem:[%s1 + $0x430] sm:$0xff]
    %v164 = vld [vmem:[%s1 + $0x438] sm:$0xff]
    %v165 = vld [vmem:[%s1 + $0x440] sm:$0xff]
    %v166 = vld [vmem:[%s1 + $0x448] sm:$0xff]
    %v167 = vld [vmem:[%s1 + $0x450] sm:$0xff]
    %v168 = vld [vmem:[%s1 + $0x458] sm:$0xff]
    %v169 = vld [vmem:[%s1 + $0x460] sm:$0xff]
    %v170 = vld [vmem:[%s1 + $0x468] sm:$0xff]
    %v171 = vld [vmem:[%s1 + $0x470] sm:$0xff]
    %v172 = vld [vmem:[%s1 + $0x478] sm:$0xff]
    %v173 = vld [vmem:[%s1 + $0x480] sm:$0xff]
    %v174 = vld [vmem:[%s1 + $0x488] sm:$0xff]
    %v175 = vld [vmem:[%s1 + $0x490] sm:$0xff]
    %v176 = vld [vmem:[%s1 + $0x498] sm:$0xff]
    %v177 = vld [vmem:[%s1 + $0x4a0] sm:$0xff]
    %v178 = vld [vmem:[%s1 + $0x4a8] sm:$0xff]
    %v179 = vld [vmem:[%s1 + $0x4b0] sm:$0xff]
    %v180 = vld [vmem:[%s1 + $0x4b8] sm:$0xff]
    %v181 = vld [vmem:[%s1 + $0x4c0] sm:$0xff]
    %v182 = vld [vmem:[%s1 + $0x4c8] sm:$0xff]
    %v183 = vld [vmem:[%s1 + $0x4d0] sm:$0xff]
    %v184 = vld [vmem:[%s1 + $0x4d8] sm:$0xff]
    %v185 = vld [vmem:[%s1 + $0x4e0] sm:$0xff]
    %v186 = vld [vmem:[%s1 + $0x4e8] sm:$0xff]
    %v187 = vld [vmem:[%s1 + $0x4f0] sm:$0xff]
    %v188 = vld [vmem:[%s1 + $0x4f8] sm:$0xff]
    %v189 = vld [vmem:[%s1 + $0x500] sm:$0xff]
    %v190 = vld [vmem:[%s1 + $0x508] sm:$0xff]
    %v191 = vld [vmem:[%s1 + $0x510] sm:$0xff]
    %v192 = vld [vmem:[%s1 + $0x518] sm:$0xff]
    %v193 = vld [vmem:[%s1 + $0x520] sm:$0xff]
    %v194 = vld [vmem:[%s1 + $0x528] sm:$0xff]
    %v195 = vld [vmem:[%s1 + $0x530] sm:$0xff]
    %v196 = vld [vmem:[%s1 + $0x538] sm:$0xff]
    %v197 = vld [vmem:[%s1 + $0x540] sm:$0xff]
    %v198 = vld [vmem:[%s1 + $0x548] sm:$0xff]
    %v199 = vld [vmem:[%s1 + $0x550] sm:$0xff]
    %v200 = vld [vmem:[%s1 + $0x558] sm:$0xff]
    %v201 = vld [vmem:[%s1 + $0x560] sm:$0xff]
    %v202 = vld [vmem:[%s1 + $0x568] sm:$0xff]
    %v203 = vld [vmem:[%s1 + $0x570] sm:$0xff]
    %v204 = vld [vmem:[%s1 + $0x578] sm:$0xff]
    %v205 = vld [vmem:[%s1 + $0x580] sm:$0xff]
    %v206 = vld [vmem:[%s1 + $0x588] sm:$0xff]
    %v207 = vld [vmem:[%s1 + $0x590] sm:$0xff]
    %v208 = vld [vmem:[%s1 + $0x598] sm:$0xff]
    %v209 = vld [vmem:[%s1 + $0x5a0] sm:$0xff]
    %v210 = vld [vmem:[%s1 + $0x5a8] sm:$0xff]
    %v211 = vld [vmem:[%s1 + $0x5b0] sm:$0xff]
    %v212 = vld [vmem:[%s1 + $0x5b8] sm:$0xff]
    %v213 = vld [vmem:[%s1 + $0x5c0] sm:$0xff]
    %v214 = vld [vmem:[%s1 + $0x5c8] sm:$0xff]
    %v215 = vld [vmem:[%s1 + $0x5d0] sm:$0xff]
    %v216 = vld [vmem:[%s1 + $0x5d8] sm:$0xff]
    %v217 = vld [vmem:[%s1 + $0x5e0] sm:$0xff]
    %v218 = vld [vmem:[%s1 + $0x5e8] sm:$0xff]
    %v219 = vld [vmem:[%s1 + $0x5f0] sm:$0xff]
    %v220 = vld [vmem:[%s1 + $0x5f8] sm:$0xff]
    %v221 = vld [vmem:[%s1 + $0x600] sm:$0xff]
    %v222 = vld [vmem:[%s1 + $0x608] sm:$0xff]
    %v223 = vld [vmem:[%s1 + $0x610] sm:$0xff]
    %v224 = vld [vmem:[%s1 + $0x618] sm:$0xff]
    %v225 = vld [vmem:[%s1 + $0x620] sm:$0xff]
    %v226 = vld [vmem:[%s1 + $0x628] sm:$0xff]
    %v227 = vld [vmem:[%s1 + $0x630] sm:$0xff]
    %v228 = vld [vmem:[%s1 + $0x638] sm:$0xff]
    %v229 = vld [vmem:[%s1 + $0x640] sm:$0xff]
    %v230 = vld [vmem:[%s1 + $0x648] sm:$0xff]
    %v231 = vld [vmem:[%s1 + $0x650] sm:$0xff]
    %v232 = vld [vmem:[%s1 + $0x658] sm:$0xff]
    %v233 = vld [vmem:[%s1 + $0x660] sm:$0xff]
    %v234 = vld [vmem:[%s1 + $0x668] sm:$0xff]
    %v235 = vld [vmem:[%s1 + $0x670] sm:$0xff]
    %v236 = vld [vmem:[%s1 + $0x678] sm:$0xff]
    %v237 = vld [vmem:[%s1 + $0x680] sm:$0xff]
    %v238 = vld [vmem:[%s1 + $0x688] sm:$0xff]
    %v239 = vld [vmem:[%s1 + $0x690] sm:$0xff]
    %v240 = vld [vmem:[%s1 + $0x698] sm:$0xff]
    %v241 = vld [vmem:[%s1 + $0x6a0] sm:$0xff]
    %v242 = vld [vmem:[%s1 + $0x6a8] sm:$0xff]
    %v243 = vld [vmem:[%s1 + $0x6b0] sm:$0xff]
    %v244 = vld [vmem:[%s1 + $0x6b8] sm:$0xff]
    %v245 = vld [vmem:[%s1 + $0x6c0] sm:$0xff]
    %v246 = vld [vmem:[%s1 + $0x6c8] sm:$0xff]
    %v247 = vld [vmem:[%s1 + $0x6d0] sm:$0xff]
    %v248 = vld [vmem:[%s1 + $0x6d8] sm:$0xff]
    %v249 = vld [vmem:[%s1 + $0x6e0] sm:$0xff]
    %v250 = vld [vmem:[%s1 + $0x6e8] sm:$0xff]
    %v251 = vld [vmem:[%s1 + $0x6f0] sm:$0xff]
    %v252 = vld [vmem:[%s1 + $0x6f8] sm:$0xff]
    %v253 = vld [vmem:[%s1 + $0x700] sm:$0xff]
    %v254 = vld [vmem:[%s1 + $0x708] sm:$0xff]
    %v255 = vld [vmem:[%s1 + $0x710] sm:$0xff]
    %v256 = vld [vmem:[%s1 + $0x718] sm:$0xff]
    %v257 = vld [vmem:[%s1 + $0x720] sm:$0xff]
    %v258 = vld [vmem:[%s1 + $0x728] sm:$0xff]
    %v259 = vld [vmem:[%s1 + $0x730] sm:$0xff]
    %v260 = vld [vmem:[%s1 + $0x738] sm:$0xff]
    %v261 = vld [vmem:[%s1 + $0x740] sm:$0xff]
    %v262 = vld [vmem:[%s1 + $0x748] sm:$0xff]
    %v263 = vld [vmem:[%s1 + $0x750] sm:$0xff]
    %v264 = vld [vmem:[%s1 + $0x758] sm:$0xff]
    %v265 = vld [vmem:[%s1 + $0x760] sm:$0xff]
    %v266 = vld [vmem:[%s1 + $0x768] sm:$0xff]
    %v267 = vld [vmem:[%s1 + $0x770] sm:$0xff]
    %v268 = vld [vmem:[%s1 + $0x778] sm:$0xff]
    %v269 = vld [vmem:[%s1 + $0x780] sm:$0xff]
    %v270 = vld [vmem:[%s1 + $0x788] sm:$0xff]
    %v271 = vld [vmem:[%s1 + $0x790] sm:$0xff]
    %v272 = vld [vmem:[%s1 + $0x798] sm:$0xff]
    %v273 = vld [vmem:[%s1 + $0x7a0] sm:$0xff]
    %v274 = vld [vmem:[%s1 + $0x7a8] sm:$0xff]
    %v275 = vld [vmem:[%s1 + $0x7b0] sm:$0xff]
    %v276 = vld [vmem:[%s1 + $0x7b8] sm:$0xff]
    %v277 = vld [vmem:[%s1 + $0x7c0] sm:$0xff]
    %v278 = vld [vmem:[%s1 + $0x7c8] sm:$0xff]
    %v279 = vld [vmem:[%s1 + $0x7d0] sm:$0xff]
    %v280 = vld [vmem:[%s1 + $0x7d8] sm:$0xff]
    %v281 = vld [vmem:[%s1 + $0x7e0] sm:$0xff]
    %v282 = vld [vmem:[%s1 + $0x7e8] sm:$0xff]
    %v283 = vld [vmem:[%s1 + $0x7f0] sm:$0xff]
    %v284 = vld [vmem:[%s1 + $0x7f8] sm:$0xff]
    %v285 = vld [vmem:[%s2] sm:$0xf]
    %v287 = vlaneseq
    %v288 = vshrl.u32 %v287, 7
    %v289 = vsub.s32 0, %v288
    %v290 = vrot.slane %v285, %v289
    %v291 = vlaneseq
    %v292 = vshrl.u32 %v291, 7
    %v293 = vsub.s32 1, %v292
    %v294 = vrot.slane %v285, %v293
    %v295 = vlaneseq
    %v296 = vshrl.u32 %v295, 7
    %v297 = vsub.s32 2, %v296
    %v298 = vrot.slane %v285, %v297
    %v299 = vlaneseq
    %v300 = vshrl.u32 %v299, 7
    %v301 = vsub.s32 3, %v300
    %v302 = vrot.slane %v285, %v301
    %v308 = vcombine.high %v28, %v28
    %v310 = vunpack.c.l.s4 1966171168
    %v311 = vunpack.c.0.s8 %v310
    %v312 = vlaneseq
    %v313 = vshrl.u32 %v312, 7
    %v314 = vsub.s32 %v311, %v313
    %v315 = vrot.slane %v28, %v314
    %v317 = vunpack.c.l.s4 1966171168
    %v318 = vunpack.c.0.s8 %v317
    %v319 = vlaneseq
    %v320 = vshrl.u32 %v319, 7
    %v321 = vsub.s32 %v318, %v320
    %v322 = vrot.slane %v308, %v321
    %v323 = vcombine.high %v315, %v315
    %v324 = vcombine.high %v322, %v322
    %v326 = vunpack.c.l.s4 1966171168
    %v327 = vunpack.c.0.s8 %v326
    %v328 = vlaneseq
    %v329 = vshrl.u32 %v328, 7
    %v330 = vsub.s32 %v327, %v329
    %v331 = vrot.slane %v315, %v330
    %v333 = vunpack.c.l.s4 1966171168
    %v334 = vunpack.c.0.s8 %v333
    %v335 = vlaneseq
    %v336 = vshrl.u32 %v335, 7
    %v337 = vsub.s32 %v334, %v336
    %v338 = vrot.slane %v322, %v337
    %v340 = vunpack.c.l.s4 1966171168
    %v341 = vunpack.c.0.s8 %v340
    %v342 = vlaneseq
    %v343 = vshrl.u32 %v342, 7
    %v344 = vsub.s32 %v341, %v343
    %v345 = vrot.slane %v323, %v344
    %v347 = vunpack.c.l.s4 1966171168
    %v348 = vunpack.c.0.s8 %v347
    %v349 = vlaneseq
    %v350 = vshrl.u32 %v349, 7
    %v351 = vsub.s32 %v348, %v350
    %v352 = vrot.slane %v324, %v351
    %v353 = vcombine.high %v331, %v331
    %v354 = vcombine.high %v338, %v338
    %v355 = vcombine.high %v345, %v345
    %v356 = vcombine.high %v352, %v352
    %v621 = vunpack.c.l.b16 %v29
    %v622 = vunpack.c.h.b16 %v29
    %v623 = vunpack.c.l.b16 %v30
    %v624 = vunpack.c.h.b16 %v30
    %v625 = vunpack.c.l.b16 %v31
    %v626 = vunpack.c.h.b16 %v31
    %v627 = vunpack.c.l.b16 %v32
    %v628 = vunpack.c.h.b16 %v32
    %v629 = vunpack.c.l.b16 %v33
    %v630 = vunpack.c.h.b16 %v33
    %v631 = vunpack.c.l.b16 %v34
    %v632 = vunpack.c.h.b16 %v34
    %v633 = vunpack.c.l.b16 %v35
    %v634 = vunpack.c.h.b16 %v35
    %v635 = vunpack.c.l.b16 %v36
    %v636 = vunpack.c.h.b16 %v36
    %v637 = vunpack.c.l.b16 %v37
    %v638 = vunpack.c.h.b16 %v37
    %v639 = vunpack.c.l.b16 %v38
    %v640 = vunpack.c.h.b16 %v38
    %v641 = vunpack.c.l.b16 %v39
    %v642 = vunpack.c.h.b16 %v39
    %v643 = vunpack.c.l.b16 %v40
    %v644 = vunpack.c.h.b16 %v40
    %v645 = vunpack.c.l.b16 %v41
    %v646 = vunpack.c.h.b16 %v41
    %v647 = vunpack.c.l.b16 %v42
    %v648 = vunpack.c.h.b16 %v42
    %v649 = vunpack.c.l.b16 %v43
    %v650 = vunpack.c.h.b16 %v43
    %v651 = vunpack.c.l.b16 %v44
    %v652 = vunpack.c.h.b16 %v44
    %v653 = vunpack.c.l.b16 %v45
    %v654 = vunpack.c.h.b16 %v45
    %v655 = vunpack.c.l.b16 %v46
    %v656 = vunpack.c.h.b16 %v46
    %v657 = vunpack.c.l.b16 %v47
    %v658 = vunpack.c.h.b16 %v47
    %v659 = vunpack.c.l.b16 %v48
    %v660 = vunpack.c.h.b16 %v48
    %v661 = vunpack.c.l.b16 %v49
    %v662 = vunpack.c.h.b16 %v49
    %v663 = vunpack.c.l.b16 %v50
    %v664 = vunpack.c.h.b16 %v50
    %v665 = vunpack.c.l.b16 %v51
    %v666 = vunpack.c.h.b16 %v51
    %v667 = vunpack.c.l.b16 %v52
    %v668 = vunpack.c.h.b16 %v52
    %v669 = vunpack.c.l.b16 %v53
    %v670 = vunpack.c.h.b16 %v53
    %v671 = vunpack.c.l.b16 %v54
    %v672 = vunpack.c.h.b16 %v54
    %v673 = vunpack.c.l.b16 %v55
    %v674 = vunpack.c.h.b16 %v55
    %v675 = vunpack.c.l.b16 %v56
    %v676 = vunpack.c.h.b16 %v56
    %v677 = vunpack.c.l.b16 %v57
    %v678 = vunpack.c.h.b16 %v57
    %v679 = vunpack.c.l.b16 %v58
    %v680 = vunpack.c.h.b16 %v58
    %v681 = vunpack.c.l.b16 %v59
    %v682 = vunpack.c.h.b16 %v59
    %v683 = vunpack.c.l.b16 %v60
    %v684 = vunpack.c.h.b16 %v60
    %v685 = vunpack.c.l.b16 %v61
    %v686 = vunpack.c.h.b16 %v61
    %v687 = vunpack.c.l.b16 %v62
    %v688 = vunpack.c.h.b16 %v62
    %v689 = vunpack.c.l.b16 %v63
    %v690 = vunpack.c.h.b16 %v63
    %v691 = vunpack.c.l.b16 %v64
    %v692 = vunpack.c.h.b16 %v64
    %v693 = vunpack.c.l.b16 %v65
    %v694 = vunpack.c.h.b16 %v65
    %v695 = vunpack.c.l.b16 %v66
    %v696 = vunpack.c.h.b16 %v66
    %v697 = vunpack.c.l.b16 %v67
    %v698 = vunpack.c.h.b16 %v67
    %v699 = vunpack.c.l.b16 %v68
    %v700 = vunpack.c.h.b16 %v68
    %v701 = vunpack.c.l.b16 %v69
    %v702 = vunpack.c.h.b16 %v69
    %v703 = vunpack.c.l.b16 %v70
    %v704 = vunpack.c.h.b16 %v70
    %v705 = vunpack.c.l.b16 %v71
    %v706 = vunpack.c.h.b16 %v71
    %v707 = vunpack.c.l.b16 %v72
    %v708 = vunpack.c.h.b16 %v72
    %v709 = vunpack.c.l.b16 %v73
    %v710 = vunpack.c.h.b16 %v73
    %v711 = vunpack.c.l.b16 %v74
    %v712 = vunpack.c.h.b16 %v74
    %v713 = vunpack.c.l.b16 %v75
    %v714 = vunpack.c.h.b16 %v75
    %v715 = vunpack.c.l.b16 %v76
    %v716 = vunpack.c.h.b16 %v76
    %v717 = vunpack.c.l.b16 %v77
    %v718 = vunpack.c.h.b16 %v77
    %v719 = vunpack.c.l.b16 %v78
    %v720 = vunpack.c.h.b16 %v78
    %v721 = vunpack.c.l.b16 %v79
    %v722 = vunpack.c.h.b16 %v79
    %v723 = vunpack.c.l.b16 %v80
    %v724 = vunpack.c.h.b16 %v80
    %v725 = vunpack.c.l.b16 %v81
    %v726 = vunpack.c.h.b16 %v81
    %v727 = vunpack.c.l.b16 %v82
    %v728 = vunpack.c.h.b16 %v82
    %v729 = vunpack.c.l.b16 %v83
    %v730 = vunpack.c.h.b16 %v83
    %v731 = vunpack.c.l.b16 %v84
    %v732 = vunpack.c.h.b16 %v84
    %v733 = vunpack.c.l.b16 %v85
    %v734 = vunpack.c.h.b16 %v85
    %v735 = vunpack.c.l.b16 %v86
    %v736 = vunpack.c.h.b16 %v86
    %v737 = vunpack.c.l.b16 %v87
    %v738 = vunpack.c.h.b16 %v87
    %v739 = vunpack.c.l.b16 %v88
    %v740 = vunpack.c.h.b16 %v88
    %v741 = vunpack.c.l.b16 %v89
    %v742 = vunpack.c.h.b16 %v89
    %v743 = vunpack.c.l.b16 %v90
    %v744 = vunpack.c.h.b16 %v90
    %v745 = vunpack.c.l.b16 %v91
    %v746 = vunpack.c.h.b16 %v91
    %v747 = vunpack.c.l.b16 %v92
    %v748 = vunpack.c.h.b16 %v92
    %v749 = vunpack.c.l.b16 %v93
    %v750 = vunpack.c.h.b16 %v93
    %v751 = vunpack.c.l.b16 %v94
    %v752 = vunpack.c.h.b16 %v94
    %v753 = vunpack.c.l.b16 %v95
    %v754 = vunpack.c.h.b16 %v95
    %v755 = vunpack.c.l.b16 %v96
    %v756 = vunpack.c.h.b16 %v96
    %v757 = vunpack.c.l.b16 %v97
    %v758 = vunpack.c.h.b16 %v97
    %v759 = vunpack.c.l.b16 %v98
    %v760 = vunpack.c.h.b16 %v98
    %v761 = vunpack.c.l.b16 %v99
    %v762 = vunpack.c.h.b16 %v99
    %v763 = vunpack.c.l.b16 %v100
    %v764 = vunpack.c.h.b16 %v100
    %v765 = vunpack.c.l.b16 %v101
    %v766 = vunpack.c.h.b16 %v101
    %v767 = vunpack.c.l.b16 %v102
    %v768 = vunpack.c.h.b16 %v102
    %v769 = vunpack.c.l.b16 %v103
    %v770 = vunpack.c.h.b16 %v103
    %v771 = vunpack.c.l.b16 %v104
    %v772 = vunpack.c.h.b16 %v104
    %v773 = vunpack.c.l.b16 %v105
    %v774 = vunpack.c.h.b16 %v105
    %v775 = vunpack.c.l.b16 %v106
    %v776 = vunpack.c.h.b16 %v106
    %v777 = vunpack.c.l.b16 %v107
    %v778 = vunpack.c.h.b16 %v107
    %v779 = vunpack.c.l.b16 %v108
    %v780 = vunpack.c.h.b16 %v108
    %v781 = vunpack.c.l.b16 %v109
    %v782 = vunpack.c.h.b16 %v109
    %v783 = vunpack.c.l.b16 %v110
    %v784 = vunpack.c.h.b16 %v110
    %v785 = vunpack.c.l.b16 %v111
    %v786 = vunpack.c.h.b16 %v111
    %v787 = vunpack.c.l.b16 %v112
    %v788 = vunpack.c.h.b16 %v112
    %v789 = vunpack.c.l.b16 %v113
    %v790 = vunpack.c.h.b16 %v113
    %v791 = vunpack.c.l.b16 %v114
    %v792 = vunpack.c.h.b16 %v114
    %v793 = vunpack.c.l.b16 %v115
    %v794 = vunpack.c.h.b16 %v115
    %v795 = vunpack.c.l.b16 %v116
    %v796 = vunpack.c.h.b16 %v116
    %v797 = vunpack.c.l.b16 %v117
    %v798 = vunpack.c.h.b16 %v117
    %v799 = vunpack.c.l.b16 %v118
    %v800 = vunpack.c.h.b16 %v118
    %v801 = vunpack.c.l.b16 %v119
    %v802 = vunpack.c.h.b16 %v119
    %v803 = vunpack.c.l.b16 %v120
    %v804 = vunpack.c.h.b16 %v120
    %v805 = vunpack.c.l.b16 %v121
    %v806 = vunpack.c.h.b16 %v121
    %v807 = vunpack.c.l.b16 %v122
    %v808 = vunpack.c.h.b16 %v122
    %v809 = vunpack.c.l.b16 %v123
    %v810 = vunpack.c.h.b16 %v123
    %v811 = vunpack.c.l.b16 %v124
    %v812 = vunpack.c.h.b16 %v124
    %v813 = vunpack.c.l.b16 %v125
    %v814 = vunpack.c.h.b16 %v125
    %v815 = vunpack.c.l.b16 %v126
    %v816 = vunpack.c.h.b16 %v126
    %v817 = vunpack.c.l.b16 %v127
    %v818 = vunpack.c.h.b16 %v127
    %v819 = vunpack.c.l.b16 %v128
    %v820 = vunpack.c.h.b16 %v128
    %v821 = vunpack.c.l.b16 %v129
    %v822 = vunpack.c.h.b16 %v129
    %v823 = vunpack.c.l.b16 %v130
    %v824 = vunpack.c.h.b16 %v130
    %v825 = vunpack.c.l.b16 %v131
    %v826 = vunpack.c.h.b16 %v131
    %v827 = vunpack.c.l.b16 %v132
    %v828 = vunpack.c.h.b16 %v132
    %v829 = vunpack.c.l.b16 %v133
    %v830 = vunpack.c.h.b16 %v133
    %v831 = vunpack.c.l.b16 %v134
    %v832 = vunpack.c.h.b16 %v134
    %v833 = vunpack.c.l.b16 %v135
    %v834 = vunpack.c.h.b16 %v135
    %v835 = vunpack.c.l.b16 %v136
    %v836 = vunpack.c.h.b16 %v136
    %v837 = vunpack.c.l.b16 %v137
    %v838 = vunpack.c.h.b16 %v137
    %v839 = vunpack.c.l.b16 %v138
    %v840 = vunpack.c.h.b16 %v138
    %v841 = vunpack.c.l.b16 %v139
    %v842 = vunpack.c.h.b16 %v139
    %v843 = vunpack.c.l.b16 %v140
    %v844 = vunpack.c.h.b16 %v140
    %v845 = vunpack.c.l.b16 %v141
    %v846 = vunpack.c.h.b16 %v141
    %v847 = vunpack.c.l.b16 %v142
    %v848 = vunpack.c.h.b16 %v142
    %v849 = vunpack.c.l.b16 %v143
    %v850 = vunpack.c.h.b16 %v143
    %v851 = vunpack.c.l.b16 %v144
    %v852 = vunpack.c.h.b16 %v144
    %v853 = vunpack.c.l.b16 %v145
    %v854 = vunpack.c.h.b16 %v145
    %v855 = vunpack.c.l.b16 %v146
    %v856 = vunpack.c.h.b16 %v146
    %v857 = vunpack.c.l.b16 %v147
    %v858 = vunpack.c.h.b16 %v147
    %v859 = vunpack.c.l.b16 %v148
    %v860 = vunpack.c.h.b16 %v148
    %v861 = vunpack.c.l.b16 %v149
    %v862 = vunpack.c.h.b16 %v149
    %v863 = vunpack.c.l.b16 %v150
    %v864 = vunpack.c.h.b16 %v150
    %v865 = vunpack.c.l.b16 %v151
    %v866 = vunpack.c.h.b16 %v151
    %v867 = vunpack.c.l.b16 %v152
    %v868 = vunpack.c.h.b16 %v152
    %v869 = vunpack.c.l.b16 %v153
    %v870 = vunpack.c.h.b16 %v153
    %v871 = vunpack.c.l.b16 %v154
    %v872 = vunpack.c.h.b16 %v154
    %v873 = vunpack.c.l.b16 %v155
    %v874 = vunpack.c.h.b16 %v155
    %v875 = vunpack.c.l.b16 %v156
    %v876 = vunpack.c.h.b16 %v156
    %v877 = vunpack.c.l.b16 %v157
    %v878 = vunpack.c.h.b16 %v157
    %v879 = vunpack.c.l.b16 %v158
    %v880 = vunpack.c.h.b16 %v158
    %v881 = vunpack.c.l.b16 %v159
    %v882 = vunpack.c.h.b16 %v159
    %v883 = vunpack.c.l.b16 %v160
    %v884 = vunpack.c.h.b16 %v160
    %v885 = vunpack.c.l.b16 %v161
    %v886 = vunpack.c.h.b16 %v161
    %v887 = vunpack.c.l.b16 %v162
    %v888 = vunpack.c.h.b16 %v162
    %v889 = vunpack.c.l.b16 %v163
    %v890 = vunpack.c.h.b16 %v163
    %v891 = vunpack.c.l.b16 %v164
    %v892 = vunpack.c.h.b16 %v164
    %v893 = vunpack.c.l.b16 %v165
    %v894 = vunpack.c.h.b16 %v165
    %v895 = vunpack.c.l.b16 %v166
    %v896 = vunpack.c.h.b16 %v166
    %v897 = vunpack.c.l.b16 %v167
    %v898 = vunpack.c.h.b16 %v167
    %v899 = vunpack.c.l.b16 %v168
    %v900 = vunpack.c.h.b16 %v168
    %v901 = vunpack.c.l.b16 %v169
    %v902 = vunpack.c.h.b16 %v169
    %v903 = vunpack.c.l.b16 %v170
    %v904 = vunpack.c.h.b16 %v170
    %v905 = vunpack.c.l.b16 %v171
    %v906 = vunpack.c.h.b16 %v171
    %v907 = vunpack.c.l.b16 %v172
    %v908 = vunpack.c.h.b16 %v172
    %v909 = vunpack.c.l.b16 %v173
    %v910 = vunpack.c.h.b16 %v173
    %v911 = vunpack.c.l.b16 %v174
    %v912 = vunpack.c.h.b16 %v174
    %v913 = vunpack.c.l.b16 %v175
    %v914 = vunpack.c.h.b16 %v175
    %v915 = vunpack.c.l.b16 %v176
    %v916 = vunpack.c.h.b16 %v176
    %v917 = vunpack.c.l.b16 %v177
    %v918 = vunpack.c.h.b16 %v177
    %v919 = vunpack.c.l.b16 %v178
    %v920 = vunpack.c.h.b16 %v178
    %v921 = vunpack.c.l.b16 %v179
    %v922 = vunpack.c.h.b16 %v179
    %v923 = vunpack.c.l.b16 %v180
    %v924 = vunpack.c.h.b16 %v180
    %v925 = vunpack.c.l.b16 %v181
    %v926 = vunpack.c.h.b16 %v181
    %v927 = vunpack.c.l.b16 %v182
    %v928 = vunpack.c.h.b16 %v182
    %v929 = vunpack.c.l.b16 %v183
    %v930 = vunpack.c.h.b16 %v183
    %v931 = vunpack.c.l.b16 %v184
    %v932 = vunpack.c.h.b16 %v184
    %v933 = vunpack.c.l.b16 %v185
    %v934 = vunpack.c.h.b16 %v185
    %v935 = vunpack.c.l.b16 %v186
    %v936 = vunpack.c.h.b16 %v186
    %v937 = vunpack.c.l.b16 %v187
    %v938 = vunpack.c.h.b16 %v187
    %v939 = vunpack.c.l.b16 %v188
    %v940 = vunpack.c.h.b16 %v188
    %v941 = vunpack.c.l.b16 %v189
    %v942 = vunpack.c.h.b16 %v189
    %v943 = vunpack.c.l.b16 %v190
    %v944 = vunpack.c.h.b16 %v190
    %v945 = vunpack.c.l.b16 %v191
    %v946 = vunpack.c.h.b16 %v191
    %v947 = vunpack.c.l.b16 %v192
    %v948 = vunpack.c.h.b16 %v192
    %v949 = vunpack.c.l.b16 %v193
    %v950 = vunpack.c.h.b16 %v193
    %v951 = vunpack.c.l.b16 %v194
    %v952 = vunpack.c.h.b16 %v194
    %v953 = vunpack.c.l.b16 %v195
    %v954 = vunpack.c.h.b16 %v195
    %v955 = vunpack.c.l.b16 %v196
    %v956 = vunpack.c.h.b16 %v196
    %v957 = vunpack.c.l.b16 %v197
    %v958 = vunpack.c.h.b16 %v197
    %v959 = vunpack.c.l.b16 %v198
    %v960 = vunpack.c.h.b16 %v198
    %v961 = vunpack.c.l.b16 %v199
    %v962 = vunpack.c.h.b16 %v199
    %v963 = vunpack.c.l.b16 %v200
    %v964 = vunpack.c.h.b16 %v200
    %v965 = vunpack.c.l.b16 %v201
    %v966 = vunpack.c.h.b16 %v201
    %v967 = vunpack.c.l.b16 %v202
    %v968 = vunpack.c.h.b16 %v202
    %v969 = vunpack.c.l.b16 %v203
    %v970 = vunpack.c.h.b16 %v203
    %v971 = vunpack.c.l.b16 %v204
    %v972 = vunpack.c.h.b16 %v204
    %v973 = vunpack.c.l.b16 %v205
    %v974 = vunpack.c.h.b16 %v205
    %v975 = vunpack.c.l.b16 %v206
    %v976 = vunpack.c.h.b16 %v206
    %v977 = vunpack.c.l.b16 %v207
    %v978 = vunpack.c.h.b16 %v207
    %v979 = vunpack.c.l.b16 %v208
    %v980 = vunpack.c.h.b16 %v208
    %v981 = vunpack.c.l.b16 %v209
    %v982 = vunpack.c.h.b16 %v209
    %v983 = vunpack.c.l.b16 %v210
    %v984 = vunpack.c.h.b16 %v210
    %v985 = vunpack.c.l.b16 %v211
    %v986 = vunpack.c.h.b16 %v211
    %v987 = vunpack.c.l.b16 %v212
    %v988 = vunpack.c.h.b16 %v212
    %v989 = vunpack.c.l.b16 %v213
    %v990 = vunpack.c.h.b16 %v213
    %v991 = vunpack.c.l.b16 %v214
    %v992 = vunpack.c.h.b16 %v214
    %v993 = vunpack.c.l.b16 %v215
    %v994 = vunpack.c.h.b16 %v215
    %v995 = vunpack.c.l.b16 %v216
    %v996 = vunpack.c.h.b16 %v216
    %v997 = vunpack.c.l.b16 %v217
    %v998 = vunpack.c.h.b16 %v217
    %v999 = vunpack.c.l.b16 %v218
    %v1000 = vunpack.c.h.b16 %v218
    %v1001 = vunpack.c.l.b16 %v219
    %v1002 = vunpack.c.h.b16 %v219
    %v1003 = vunpack.c.l.b16 %v220
    %v1004 = vunpack.c.h.b16 %v220
    %v1005 = vunpack.c.l.b16 %v221
    %v1006 = vunpack.c.h.b16 %v221
    %v1007 = vunpack.c.l.b16 %v222
    %v1008 = vunpack.c.h.b16 %v222
    %v1009 = vunpack.c.l.b16 %v223
    %v1010 = vunpack.c.h.b16 %v223
    %v1011 = vunpack.c.l.b16 %v224
    %v1012 = vunpack.c.h.b16 %v224
    %v1013 = vunpack.c.l.b16 %v225
    %v1014 = vunpack.c.h.b16 %v225
    %v1015 = vunpack.c.l.b16 %v226
    %v1016 = vunpack.c.h.b16 %v226
    %v1017 = vunpack.c.l.b16 %v227
    %v1018 = vunpack.c.h.b16 %v227
    %v1019 = vunpack.c.l.b16 %v228
    %v1020 = vunpack.c.h.b16 %v228
    %v1021 = vunpack.c.l.b16 %v229
    %v1022 = vunpack.c.h.b16 %v229
    %v1023 = vunpack.c.l.b16 %v230
    %v1024 = vunpack.c.h.b16 %v230
    %v1025 = vunpack.c.l.b16 %v231
    %v1026 = vunpack.c.h.b16 %v231
    %v1027 = vunpack.c.l.b16 %v232
    %v1028 = vunpack.c.h.b16 %v232
    %v1029 = vunpack.c.l.b16 %v233
    %v1030 = vunpack.c.h.b16 %v233
    %v1031 = vunpack.c.l.b16 %v234
    %v1032 = vunpack.c.h.b16 %v234
    %v1033 = vunpack.c.l.b16 %v235
    %v1034 = vunpack.c.h.b16 %v235
    %v1035 = vunpack.c.l.b16 %v236
    %v1036 = vunpack.c.h.b16 %v236
    %v1037 = vunpack.c.l.b16 %v237
    %v1038 = vunpack.c.h.b16 %v237
    %v1039 = vunpack.c.l.b16 %v238
    %v1040 = vunpack.c.h.b16 %v238
    %v1041 = vunpack.c.l.b16 %v239
    %v1042 = vunpack.c.h.b16 %v239
    %v1043 = vunpack.c.l.b16 %v240
    %v1044 = vunpack.c.h.b16 %v240
    %v1045 = vunpack.c.l.b16 %v241
    %v1046 = vunpack.c.h.b16 %v241
    %v1047 = vunpack.c.l.b16 %v242
    %v1048 = vunpack.c.h.b16 %v242
    %v1049 = vunpack.c.l.b16 %v243
    %v1050 = vunpack.c.h.b16 %v243
    %v1051 = vunpack.c.l.b16 %v244
    %v1052 = vunpack.c.h.b16 %v244
    %v1053 = vunpack.c.l.b16 %v245
    %v1054 = vunpack.c.h.b16 %v245
    %v1055 = vunpack.c.l.b16 %v246
    %v1056 = vunpack.c.h.b16 %v246
    %v1057 = vunpack.c.l.b16 %v247
    %v1058 = vunpack.c.h.b16 %v247
    %v1059 = vunpack.c.l.b16 %v248
    %v1060 = vunpack.c.h.b16 %v248
    %v1061 = vunpack.c.l.b16 %v249
    %v1062 = vunpack.c.h.b16 %v249
    %v1063 = vunpack.c.l.b16 %v250
    %v1064 = vunpack.c.h.b16 %v250
    %v1065 = vunpack.c.l.b16 %v251
    %v1066 = vunpack.c.h.b16 %v251
    %v1067 = vunpack.c.l.b16 %v252
    %v1068 = vunpack.c.h.b16 %v252
    %v1069 = vunpack.c.l.b16 %v253
    %v1070 = vunpack.c.h.b16 %v253
    %v1071 = vunpack.c.l.b16 %v254
    %v1072 = vunpack.c.h.b16 %v254
    %v1073 = vunpack.c.l.b16 %v255
    %v1074 = vunpack.c.h.b16 %v255
    %v1075 = vunpack.c.l.b16 %v256
    %v1076 = vunpack.c.h.b16 %v256
    %v1077 = vunpack.c.l.b16 %v257
    %v1078 = vunpack.c.h.b16 %v257
    %v1079 = vunpack.c.l.b16 %v258
    %v1080 = vunpack.c.h.b16 %v258
    %v1081 = vunpack.c.l.b16 %v259
    %v1082 = vunpack.c.h.b16 %v259
    %v1083 = vunpack.c.l.b16 %v260
    %v1084 = vunpack.c.h.b16 %v260
    %v1085 = vunpack.c.l.b16 %v261
    %v1086 = vunpack.c.h.b16 %v261
    %v1087 = vunpack.c.l.b16 %v262
    %v1088 = vunpack.c.h.b16 %v262
    %v1089 = vunpack.c.l.b16 %v263
    %v1090 = vunpack.c.h.b16 %v263
    %v1091 = vunpack.c.l.b16 %v264
    %v1092 = vunpack.c.h.b16 %v264
    %v1093 = vunpack.c.l.b16 %v265
    %v1094 = vunpack.c.h.b16 %v265
    %v1095 = vunpack.c.l.b16 %v266
    %v1096 = vunpack.c.h.b16 %v266
    %v1097 = vunpack.c.l.b16 %v267
    %v1098 = vunpack.c.h.b16 %v267
    %v1099 = vunpack.c.l.b16 %v268
    %v1100 = vunpack.c.h.b16 %v268
    %v1101 = vunpack.c.l.b16 %v269
    %v1102 = vunpack.c.h.b16 %v269
    %v1103 = vunpack.c.l.b16 %v270
    %v1104 = vunpack.c.h.b16 %v270
    %v1105 = vunpack.c.l.b16 %v271
    %v1106 = vunpack.c.h.b16 %v271
    %v1107 = vunpack.c.l.b16 %v272
    %v1108 = vunpack.c.h.b16 %v272
    %v1109 = vunpack.c.l.b16 %v273
    %v1110 = vunpack.c.h.b16 %v273
    %v1111 = vunpack.c.l.b16 %v274
    %v1112 = vunpack.c.h.b16 %v274
    %v1113 = vunpack.c.l.b16 %v275
    %v1114 = vunpack.c.h.b16 %v275
    %v1115 = vunpack.c.l.b16 %v276
    %v1116 = vunpack.c.h.b16 %v276
    %v1117 = vunpack.c.l.b16 %v277
    %v1118 = vunpack.c.h.b16 %v277
    %v1119 = vunpack.c.l.b16 %v278
    %v1120 = vunpack.c.h.b16 %v278
    %v1121 = vunpack.c.l.b16 %v279
    %v1122 = vunpack.c.h.b16 %v279
    %v1123 = vunpack.c.l.b16 %v280
    %v1124 = vunpack.c.h.b16 %v280
    %v1125 = vunpack.c.l.b16 %v281
    %v1126 = vunpack.c.h.b16 %v281
    %v1127 = vunpack.c.l.b16 %v282
    %v1128 = vunpack.c.h.b16 %v282
    %v1129 = vunpack.c.l.b16 %v283
    %v1130 = vunpack.c.h.b16 %v283
    %v1131 = vunpack.c.l.b16 %v284
    %v1132 = vunpack.c.h.b16 %v284
    %v1133 = vpack.c.b16 %v625, %v621
    %v1134 = vpack.c.b16 %v626, %v622
    %v1135 = vpack.c.b16 %v627, %v623
    %v1136 = vpack.c.b16 %v628, %v624
    %v1137 = vpack.c.b16 %v633, %v629
    %v1138 = vpack.c.b16 %v634, %v630
    %v1139 = vpack.c.b16 %v635, %v631
    %v1140 = vpack.c.b16 %v636, %v632
    %v1141 = vpack.c.b16 %v641, %v637
    %v1142 = vpack.c.b16 %v642, %v638
    %v1143 = vpack.c.b16 %v643, %v639
    %v1144 = vpack.c.b16 %v644, %v640
    %v1145 = vpack.c.b16 %v649, %v645
    %v1146 = vpack.c.b16 %v650, %v646
    %v1147 = vpack.c.b16 %v651, %v647
    %v1148 = vpack.c.b16 %v652, %v648
    %v1149 = vpack.c.b16 %v657, %v653
    %v1150 = vpack.c.b16 %v658, %v654
    %v1151 = vpack.c.b16 %v659, %v655
    %v1152 = vpack.c.b16 %v660, %v656
    %v1153 = vpack.c.b16 %v665, %v661
    %v1154 = vpack.c.b16 %v666, %v662
    %v1155 = vpack.c.b16 %v667, %v663
    %v1156 = vpack.c.b16 %v668, %v664
    %v1157 = vpack.c.b16 %v673, %v669
    %v1158 = vpack.c.b16 %v674, %v670
    %v1159 = vpack.c.b16 %v675, %v671
    %v1160 = vpack.c.b16 %v676, %v672
    %v1161 = vpack.c.b16 %v681, %v677
    %v1162 = vpack.c.b16 %v682, %v678
    %v1163 = vpack.c.b16 %v683, %v679
    %v1164 = vpack.c.b16 %v684, %v680
    %v1165 = vpack.c.b16 %v689, %v685
    %v1166 = vpack.c.b16 %v690, %v686
    %v1167 = vpack.c.b16 %v691, %v687
    %v1168 = vpack.c.b16 %v692, %v688
    %v1169 = vpack.c.b16 %v697, %v693
    %v1170 = vpack.c.b16 %v698, %v694
    %v1171 = vpack.c.b16 %v699, %v695
    %v1172 = vpack.c.b16 %v700, %v696
    %v1173 = vpack.c.b16 %v705, %v701
    %v1174 = vpack.c.b16 %v706, %v702
    %v1175 = vpack.c.b16 %v707, %v703
    %v1176 = vpack.c.b16 %v708, %v704
    %v1177 = vpack.c.b16 %v713, %v709
    %v1178 = vpack.c.b16 %v714, %v710
    %v1179 = vpack.c.b16 %v715, %v711
    %v1180 = vpack.c.b16 %v716, %v712
    %v1181 = vpack.c.b16 %v721, %v717
    %v1182 = vpack.c.b16 %v722, %v718
    %v1183 = vpack.c.b16 %v723, %v719
    %v1184 = vpack.c.b16 %v724, %v720
    %v1185 = vpack.c.b16 %v729, %v725
    %v1186 = vpack.c.b16 %v730, %v726
    %v1187 = vpack.c.b16 %v731, %v727
    %v1188 = vpack.c.b16 %v732, %v728
    %v1189 = vpack.c.b16 %v737, %v733
    %v1190 = vpack.c.b16 %v738, %v734
    %v1191 = vpack.c.b16 %v739, %v735
    %v1192 = vpack.c.b16 %v740, %v736
    %v1193 = vpack.c.b16 %v745, %v741
    %v1194 = vpack.c.b16 %v746, %v742
    %v1195 = vpack.c.b16 %v747, %v743
    %v1196 = vpack.c.b16 %v748, %v744
    %v1197 = vpack.c.b16 %v753, %v749
    %v1198 = vpack.c.b16 %v754, %v750
    %v1199 = vpack.c.b16 %v755, %v751
    %v1200 = vpack.c.b16 %v756, %v752
    %v1201 = vpack.c.b16 %v761, %v757
    %v1202 = vpack.c.b16 %v762, %v758
    %v1203 = vpack.c.b16 %v763, %v759
    %v1204 = vpack.c.b16 %v764, %v760
    %v1205 = vpack.c.b16 %v769, %v765
    %v1206 = vpack.c.b16 %v770, %v766
    %v1207 = vpack.c.b16 %v771, %v767
    %v1208 = vpack.c.b16 %v772, %v768
    %v1209 = vpack.c.b16 %v777, %v773
    %v1210 = vpack.c.b16 %v778, %v774
    %v1211 = vpack.c.b16 %v779, %v775
    %v1212 = vpack.c.b16 %v780, %v776
    %v1213 = vpack.c.b16 %v785, %v781
    %v1214 = vpack.c.b16 %v786, %v782
    %v1215 = vpack.c.b16 %v787, %v783
    %v1216 = vpack.c.b16 %v788, %v784
    %v1217 = vpack.c.b16 %v793, %v789
    %v1218 = vpack.c.b16 %v794, %v790
    %v1219 = vpack.c.b16 %v795, %v791
    %v1220 = vpack.c.b16 %v796, %v792
    %v1221 = vpack.c.b16 %v801, %v797
    %v1222 = vpack.c.b16 %v802, %v798
    %v1223 = vpack.c.b16 %v803, %v799
    %v1224 = vpack.c.b16 %v804, %v800
    %v1225 = vpack.c.b16 %v809, %v805
    %v1226 = vpack.c.b16 %v810, %v806
    %v1227 = vpack.c.b16 %v811, %v807
    %v1228 = vpack.c.b16 %v812, %v808
    %v1229 = vpack.c.b16 %v817, %v813
    %v1230 = vpack.c.b16 %v818, %v814
    %v1231 = vpack.c.b16 %v819, %v815
    %v1232 = vpack.c.b16 %v820, %v816
    %v1233 = vpack.c.b16 %v825, %v821
    %v1234 = vpack.c.b16 %v826, %v822
    %v1235 = vpack.c.b16 %v827, %v823
    %v1236 = vpack.c.b16 %v828, %v824
    %v1237 = vpack.c.b16 %v833, %v829
    %v1238 = vpack.c.b16 %v834, %v830
    %v1239 = vpack.c.b16 %v835, %v831
    %v1240 = vpack.c.b16 %v836, %v832
    %v1241 = vpack.c.b16 %v841, %v837
    %v1242 = vpack.c.b16 %v842, %v838
    %v1243 = vpack.c.b16 %v843, %v839
    %v1244 = vpack.c.b16 %v844, %v840
    %v1245 = vpack.c.b16 %v849, %v845
    %v1246 = vpack.c.b16 %v850, %v846
    %v1247 = vpack.c.b16 %v851, %v847
    %v1248 = vpack.c.b16 %v852, %v848
    %v1249 = vpack.c.b16 %v857, %v853
    %v1250 = vpack.c.b16 %v858, %v854
    %v1251 = vpack.c.b16 %v859, %v855
    %v1252 = vpack.c.b16 %v860, %v856
    %v1253 = vpack.c.b16 %v865, %v861
    %v1254 = vpack.c.b16 %v866, %v862
    %v1255 = vpack.c.b16 %v867, %v863
    %v1256 = vpack.c.b16 %v868, %v864
    %v1257 = vpack.c.b16 %v873, %v869
    %v1258 = vpack.c.b16 %v874, %v870
    %v1259 = vpack.c.b16 %v875, %v871
    %v1260 = vpack.c.b16 %v876, %v872
    %v1261 = vpack.c.b16 %v881, %v877
    %v1262 = vpack.c.b16 %v882, %v878
    %v1263 = vpack.c.b16 %v883, %v879
    %v1264 = vpack.c.b16 %v884, %v880
    %v1265 = vpack.c.b16 %v889, %v885
    %v1266 = vpack.c.b16 %v890, %v886
    %v1267 = vpack.c.b16 %v891, %v887
    %v1268 = vpack.c.b16 %v892, %v888
    %v1269 = vpack.c.b16 %v897, %v893
    %v1270 = vpack.c.b16 %v898, %v894
    %v1271 = vpack.c.b16 %v899, %v895
    %v1272 = vpack.c.b16 %v900, %v896
    %v1273 = vpack.c.b16 %v905, %v901
    %v1274 = vpack.c.b16 %v906, %v902
    %v1275 = vpack.c.b16 %v907, %v903
    %v1276 = vpack.c.b16 %v908, %v904
    %v1277 = vpack.c.b16 %v913, %v909
    %v1278 = vpack.c.b16 %v914, %v910
    %v1279 = vpack.c.b16 %v915, %v911
    %v1280 = vpack.c.b16 %v916, %v912
    %v1281 = vpack.c.b16 %v921, %v917
    %v1282 = vpack.c.b16 %v922, %v918
    %v1283 = vpack.c.b16 %v923, %v919
    %v1284 = vpack.c.b16 %v924, %v920
    %v1285 = vpack.c.b16 %v929, %v925
    %v1286 = vpack.c.b16 %v930, %v926
    %v1287 = vpack.c.b16 %v931, %v927
    %v1288 = vpack.c.b16 %v932, %v928
    %v1289 = vpack.c.b16 %v937, %v933
    %v1290 = vpack.c.b16 %v938, %v934
    %v1291 = vpack.c.b16 %v939, %v935
    %v1292 = vpack.c.b16 %v940, %v936
    %v1293 = vpack.c.b16 %v945, %v941
    %v1294 = vpack.c.b16 %v946, %v942
    %v1295 = vpack.c.b16 %v947, %v943
    %v1296 = vpack.c.b16 %v948, %v944
    %v1297 = vpack.c.b16 %v953, %v949
    %v1298 = vpack.c.b16 %v954, %v950
    %v1299 = vpack.c.b16 %v955, %v951
    %v1300 = vpack.c.b16 %v956, %v952
    %v1301 = vpack.c.b16 %v961, %v957
    %v1302 = vpack.c.b16 %v962, %v958
    %v1303 = vpack.c.b16 %v963, %v959
    %v1304 = vpack.c.b16 %v964, %v960
    %v1305 = vpack.c.b16 %v969, %v965
    %v1306 = vpack.c.b16 %v970, %v966
    %v1307 = vpack.c.b16 %v971, %v967
    %v1308 = vpack.c.b16 %v972, %v968
    %v1309 = vpack.c.b16 %v977, %v973
    %v1310 = vpack.c.b16 %v978, %v974
    %v1311 = vpack.c.b16 %v979, %v975
    %v1312 = vpack.c.b16 %v980, %v976
    %v1313 = vpack.c.b16 %v985, %v981
    %v1314 = vpack.c.b16 %v986, %v982
    %v1315 = vpack.c.b16 %v987, %v983
    %v1316 = vpack.c.b16 %v988, %v984
    %v1317 = vpack.c.b16 %v993, %v989
    %v1318 = vpack.c.b16 %v994, %v990
    %v1319 = vpack.c.b16 %v995, %v991
    %v1320 = vpack.c.b16 %v996, %v992
    %v1321 = vpack.c.b16 %v1001, %v997
    %v1322 = vpack.c.b16 %v1002, %v998
    %v1323 = vpack.c.b16 %v1003, %v999
    %v1324 = vpack.c.b16 %v1004, %v1000
    %v1325 = vpack.c.b16 %v1009, %v1005
    %v1326 = vpack.c.b16 %v1010, %v1006
    %v1327 = vpack.c.b16 %v1011, %v1007
    %v1328 = vpack.c.b16 %v1012, %v1008
    %v1329 = vpack.c.b16 %v1017, %v1013
    %v1330 = vpack.c.b16 %v1018, %v1014
    %v1331 = vpack.c.b16 %v1019, %v1015
    %v1332 = vpack.c.b16 %v1020, %v1016
    %v1333 = vpack.c.b16 %v1025, %v1021
    %v1334 = vpack.c.b16 %v1026, %v1022
    %v1335 = vpack.c.b16 %v1027, %v1023
    %v1336 = vpack.c.b16 %v1028, %v1024
    %v1337 = vpack.c.b16 %v1033, %v1029
    %v1338 = vpack.c.b16 %v1034, %v1030
    %v1339 = vpack.c.b16 %v1035, %v1031
    %v1340 = vpack.c.b16 %v1036, %v1032
    %v1341 = vpack.c.b16 %v1041, %v1037
    %v1342 = vpack.c.b16 %v1042, %v1038
    %v1343 = vpack.c.b16 %v1043, %v1039
    %v1344 = vpack.c.b16 %v1044, %v1040
    %v1345 = vpack.c.b16 %v1049, %v1045
    %v1346 = vpack.c.b16 %v1050, %v1046
    %v1347 = vpack.c.b16 %v1051, %v1047
    %v1348 = vpack.c.b16 %v1052, %v1048
    %v1349 = vpack.c.b16 %v1057, %v1053
    %v1350 = vpack.c.b16 %v1058, %v1054
    %v1351 = vpack.c.b16 %v1059, %v1055
    %v1352 = vpack.c.b16 %v1060, %v1056
    %v1353 = vpack.c.b16 %v1065, %v1061
    %v1354 = vpack.c.b16 %v1066, %v1062
    %v1355 = vpack.c.b16 %v1067, %v1063
    %v1356 = vpack.c.b16 %v1068, %v1064
    %v1357 = vpack.c.b16 %v1073, %v1069
    %v1358 = vpack.c.b16 %v1074, %v1070
    %v1359 = vpack.c.b16 %v1075, %v1071
    %v1360 = vpack.c.b16 %v1076, %v1072
    %v1361 = vpack.c.b16 %v1081, %v1077
    %v1362 = vpack.c.b16 %v1082, %v1078
    %v1363 = vpack.c.b16 %v1083, %v1079
    %v1364 = vpack.c.b16 %v1084, %v1080
    %v1365 = vpack.c.b16 %v1089, %v1085
    %v1366 = vpack.c.b16 %v1090, %v1086
    %v1367 = vpack.c.b16 %v1091, %v1087
    %v1368 = vpack.c.b16 %v1092, %v1088
    %v1369 = vpack.c.b16 %v1097, %v1093
    %v1370 = vpack.c.b16 %v1098, %v1094
    %v1371 = vpack.c.b16 %v1099, %v1095
    %v1372 = vpack.c.b16 %v1100, %v1096
    %v1373 = vpack.c.b16 %v1105, %v1101
    %v1374 = vpack.c.b16 %v1106, %v1102
    %v1375 = vpack.c.b16 %v1107, %v1103
    %v1376 = vpack.c.b16 %v1108, %v1104
    %v1377 = vpack.c.b16 %v1113, %v1109
    %v1378 = vpack.c.b16 %v1114, %v1110
    %v1379 = vpack.c.b16 %v1115, %v1111
    %v1380 = vpack.c.b16 %v1116, %v1112
    %v1381 = vpack.c.b16 %v1121, %v1117
    %v1382 = vpack.c.b16 %v1122, %v1118
    %v1383 = vpack.c.b16 %v1123, %v1119
    %v1384 = vpack.c.b16 %v1124, %v1120
    %v1385 = vpack.c.b16 %v1129, %v1125
    %v1386 = vpack.c.b16 %v1130, %v1126
    %v1387 = vpack.c.b16 %v1131, %v1127
    %v1388 = vpack.c.b16 %v1132, %v1128
    %1645 = vmatprep.subr.bf16.mxu0 %v1162
    %1646 = vmatpush1.bf16.msra.mxu0 %v1161
    %1647 = vmatprep.subr.bf16.mxu0 %v1158
    %1648 = vmatpush1.bf16.msra.mxu0 %v1157
    %1649 = vmatprep.subr.bf16.mxu0 %v1154
    %1650 = vmatpush1.bf16.msra.mxu0 %v1153
    %1651 = vmatprep.subr.bf16.mxu0 %v1150
    %1652 = vmatpush1.bf16.msra.mxu0 %v1149
    %1653 = vmatprep.subr.bf16.mxu0 %v1146
    %1654 = vmatpush1.bf16.msra.mxu0 %v1145
    %1655 = vmatprep.subr.bf16.mxu0 %v1142
    %1656 = vmatpush1.bf16.msra.mxu0 %v1141
    %1657 = vmatprep.subr.bf16.mxu0 %v1138
    %1658 = vmatpush1.bf16.msra.mxu0 %v1137
    %1659 = vmatprep.subr.bf16.mxu0 %v1134
    %1660 = vmatpush1.bf16.msra.mxu0 %v1133
    %1661 = vmatprep.subr.bf16.mxu0 %v1194
    %1662 = vmatpush2.bf16.msra.mxu0 %v1193
    %1663 = vmatprep.subr.bf16.mxu0 %v1190
    %1664 = vmatpush2.bf16.msra.mxu0 %v1189
    %1665 = vmatprep.subr.bf16.mxu0 %v1186
    %1666 = vmatpush2.bf16.msra.mxu0 %v1185
    %1667 = vmatprep.subr.bf16.mxu0 %v1182
    %1668 = vmatpush2.bf16.msra.mxu0 %v1181
    %1669 = vmatprep.subr.bf16.mxu0 %v1178
    %1670 = vmatpush2.bf16.msra.mxu0 %v1177
    %1671 = vmatprep.subr.bf16.mxu0 %v1174
    %1672 = vmatpush2.bf16.msra.mxu0 %v1173
    %1673 = vmatprep.subr.bf16.mxu0 %v1170
    %1674 = vmatpush2.bf16.msra.mxu0 %v1169
    %1675 = vmatprep.subr.bf16.mxu0 %v1166
    %1676 = vmatpush2.bf16.msra.mxu0 %v1165
    %1677 = vmatprep.mubr.bf16.mxu0 %v345
    %1678 = vmatmul.mubr.bf16.gmra.mxu0 %v331
    %v1679 = vpop.f32.mrf.mxu0
    %v1680 = vadd.f32 %v290, %v1679
    %v1681 = vpop.f32.mrf.mxu0
    %v1682 = vadd.f32 %v294, %v1681
    %v1683 = vpop.f32.mrf.mxu0
    %v1684 = vpop.f32.mrf.mxu0
    %1685 = vdwg.mxu0
    %1686 = vmatprep.subr.bf16.mxu0 %v1226
    %1687 = vmatpush1.bf16.msra.mxu0 %v1225
    %1688 = vmatprep.subr.bf16.mxu0 %v1222
    %1689 = vmatpush1.bf16.msra.mxu0 %v1221
    %1690 = vmatprep.subr.bf16.mxu0 %v1218
    %1691 = vmatpush1.bf16.msra.mxu0 %v1217
    %1692 = vmatprep.subr.bf16.mxu0 %v1214
    %1693 = vmatpush1.bf16.msra.mxu0 %v1213
    %1694 = vmatprep.subr.bf16.mxu0 %v1210
    %1695 = vmatpush1.bf16.msra.mxu0 %v1209
    %1696 = vmatprep.subr.bf16.mxu0 %v1206
    %1697 = vmatpush1.bf16.msra.mxu0 %v1205
    %1698 = vmatprep.subr.bf16.mxu0 %v1202
    %1699 = vmatpush1.bf16.msra.mxu0 %v1201
    %1700 = vmatprep.subr.bf16.mxu0 %v1198
    %1701 = vmatpush1.bf16.msra.mxu0 %v1197
    %1702 = vmatprep.subr.bf16.mxu0 %v1258
    %1703 = vmatpush2.bf16.msra.mxu0 %v1257
    %1704 = vmatprep.subr.bf16.mxu0 %v1254
    %1705 = vmatpush2.bf16.msra.mxu0 %v1253
    %1706 = vmatprep.subr.bf16.mxu0 %v1250
    %1707 = vmatpush2.bf16.msra.mxu0 %v1249
    %1708 = vmatprep.subr.bf16.mxu0 %v1246
    %1709 = vmatpush2.bf16.msra.mxu0 %v1245
    %1710 = vmatprep.subr.bf16.mxu0 %v1242
    %1711 = vmatpush2.bf16.msra.mxu0 %v1241
    %1712 = vmatprep.subr.bf16.mxu0 %v1238
    %1713 = vmatpush2.bf16.msra.mxu0 %v1237
    %1714 = vmatprep.subr.bf16.mxu0 %v1234
    %1715 = vmatpush2.bf16.msra.mxu0 %v1233
    %1716 = vmatprep.subr.bf16.mxu0 %v1230
    %1717 = vmatpush2.bf16.msra.mxu0 %v1229
    %1718 = vmatprep.mubr.bf16.mxu0 %v355
    %1719 = vmatmul.mubr.bf16.gmra.mxu0 %v353
    %v1720 = vpop.f32.mrf.mxu0
    %v1721 = vadd.f32 %v1680, %v1720
    %v1722 = vpop.f32.mrf.mxu0
    %v1723 = vadd.f32 %v1682, %v1722
    %v1724 = vpop.f32.mrf.mxu0
    %v1725 = vpop.f32.mrf.mxu0
    %1726 = vdwg.mxu0
    %1727 = vmatprep.subr.bf16.mxu0 %v1290
    %1728 = vmatpush1.bf16.msra.mxu0 %v1289
    %1729 = vmatprep.subr.bf16.mxu0 %v1286
    %1730 = vmatpush1.bf16.msra.mxu0 %v1285
    %1731 = vmatprep.subr.bf16.mxu0 %v1282
    %1732 = vmatpush1.bf16.msra.mxu0 %v1281
    %1733 = vmatprep.subr.bf16.mxu0 %v1278
    %1734 = vmatpush1.bf16.msra.mxu0 %v1277
    %1735 = vmatprep.subr.bf16.mxu0 %v1274
    %1736 = vmatpush1.bf16.msra.mxu0 %v1273
    %1737 = vmatprep.subr.bf16.mxu0 %v1270
    %1738 = vmatpush1.bf16.msra.mxu0 %v1269
    %1739 = vmatprep.subr.bf16.mxu0 %v1266
    %1740 = vmatpush1.bf16.msra.mxu0 %v1265
    %1741 = vmatprep.subr.bf16.mxu0 %v1262
    %1742 = vmatpush1.bf16.msra.mxu0 %v1261
    %1743 = vmatprep.subr.bf16.mxu0 %v1322
    %1744 = vmatpush2.bf16.msra.mxu0 %v1321
    %1745 = vmatprep.subr.bf16.mxu0 %v1318
    %1746 = vmatpush2.bf16.msra.mxu0 %v1317
    %1747 = vmatprep.subr.bf16.mxu0 %v1314
    %1748 = vmatpush2.bf16.msra.mxu0 %v1313
    %1749 = vmatprep.subr.bf16.mxu0 %v1310
    %1750 = vmatpush2.bf16.msra.mxu0 %v1309
    %1751 = vmatprep.subr.bf16.mxu0 %v1306
    %1752 = vmatpush2.bf16.msra.mxu0 %v1305
    %1753 = vmatprep.subr.bf16.mxu0 %v1302
    %1754 = vmatpush2.bf16.msra.mxu0 %v1301
    %1755 = vmatprep.subr.bf16.mxu0 %v1298
    %1756 = vmatpush2.bf16.msra.mxu0 %v1297
    %1757 = vmatprep.subr.bf16.mxu0 %v1294
    %1758 = vmatpush2.bf16.msra.mxu0 %v1293
    %1759 = vmatprep.mubr.bf16.mxu0 %v352
    %1760 = vmatmul.mubr.bf16.gmra.mxu0 %v338
    %v1761 = vpop.f32.mrf.mxu0
    %v1762 = vadd.f32 %v1721, %v1761
    %v1763 = vpop.f32.mrf.mxu0
    %v1764 = vadd.f32 %v1723, %v1763
    %v1765 = vpop.f32.mrf.mxu0
    %v1766 = vpop.f32.mrf.mxu0
    %1767 = vdwg.mxu0
    %1768 = vmatprep.subr.bf16.mxu0 %v1354
    %1769 = vmatpush1.bf16.msra.mxu0 %v1353
    %1770 = vmatprep.subr.bf16.mxu0 %v1350
    %1771 = vmatpush1.bf16.msra.mxu0 %v1349
    %1772 = vmatprep.subr.bf16.mxu0 %v1346
    %1773 = vmatpush1.bf16.msra.mxu0 %v1345
    %1774 = vmatprep.subr.bf16.mxu0 %v1342
    %1775 = vmatpush1.bf16.msra.mxu0 %v1341
    %1776 = vmatprep.subr.bf16.mxu0 %v1338
    %1777 = vmatpush1.bf16.msra.mxu0 %v1337
    %1778 = vmatprep.subr.bf16.mxu0 %v1334
    %1779 = vmatpush1.bf16.msra.mxu0 %v1333
    %1780 = vmatprep.subr.bf16.mxu0 %v1330
    %1781 = vmatpush1.bf16.msra.mxu0 %v1329
    %1782 = vmatprep.subr.bf16.mxu0 %v1326
    %1783 = vmatpush1.bf16.msra.mxu0 %v1325
    %1784 = vmatprep.subr.bf16.mxu0 %v1386
    %1785 = vmatpush2.bf16.msra.mxu0 %v1385
    %1786 = vmatprep.subr.bf16.mxu0 %v1382
    %1787 = vmatpush2.bf16.msra.mxu0 %v1381
    %1788 = vmatprep.subr.bf16.mxu0 %v1378
    %1789 = vmatpush2.bf16.msra.mxu0 %v1377
    %1790 = vmatprep.subr.bf16.mxu0 %v1374
    %1791 = vmatpush2.bf16.msra.mxu0 %v1373
    %1792 = vmatprep.subr.bf16.mxu0 %v1370
    %1793 = vmatpush2.bf16.msra.mxu0 %v1369
    %1794 = vmatprep.subr.bf16.mxu0 %v1366
    %1795 = vmatpush2.bf16.msra.mxu0 %v1365
    %1796 = vmatprep.subr.bf16.mxu0 %v1362
    %1797 = vmatpush2.bf16.msra.mxu0 %v1361
    %1798 = vmatprep.subr.bf16.mxu0 %v1358
    %1799 = vmatpush2.bf16.msra.mxu0 %v1357
    %1800 = vmatprep.mubr.bf16.mxu0 %v356
    %1801 = vmatmul.mubr.bf16.gmra.mxu0 %v354
    %v1802 = vpop.f32.mrf.mxu0
    %v1803 = vadd.f32 %v1762, %v1802
    %v1804 = vpop.f32.mrf.mxu0
    %v1805 = vadd.f32 %v1764, %v1804
    %v1806 = vpop.f32.mrf.mxu0
    %v1807 = vpop.f32.mrf.mxu0
    %1808 = vdwg.mxu0
    %1809 = vmatprep.subr.bf16.mxu0 %v1164
    %1810 = vmatpush1.bf16.msra.mxu0 %v1163
    %1811 = vmatprep.subr.bf16.mxu0 %v1160
    %1812 = vmatpush1.bf16.msra.mxu0 %v1159
    %1813 = vmatprep.subr.bf16.mxu0 %v1156
    %1814 = vmatpush1.bf16.msra.mxu0 %v1155
    %1815 = vmatprep.subr.bf16.mxu0 %v1152
    %1816 = vmatpush1.bf16.msra.mxu0 %v1151
    %1817 = vmatprep.subr.bf16.mxu0 %v1148
    %1818 = vmatpush1.bf16.msra.mxu0 %v1147
    %1819 = vmatprep.subr.bf16.mxu0 %v1144
    %1820 = vmatpush1.bf16.msra.mxu0 %v1143
    %1821 = vmatprep.subr.bf16.mxu0 %v1140
    %1822 = vmatpush1.bf16.msra.mxu0 %v1139
    %1823 = vmatprep.subr.bf16.mxu0 %v1136
    %1824 = vmatpush1.bf16.msra.mxu0 %v1135
    %1825 = vmatprep.subr.bf16.mxu0 %v1196
    %1826 = vmatpush2.bf16.msra.mxu0 %v1195
    %1827 = vmatprep.subr.bf16.mxu0 %v1192
    %1828 = vmatpush2.bf16.msra.mxu0 %v1191
    %1829 = vmatprep.subr.bf16.mxu0 %v1188
    %1830 = vmatpush2.bf16.msra.mxu0 %v1187
    %1831 = vmatprep.subr.bf16.mxu0 %v1184
    %1832 = vmatpush2.bf16.msra.mxu0 %v1183
    %1833 = vmatprep.subr.bf16.mxu0 %v1180
    %1834 = vmatpush2.bf16.msra.mxu0 %v1179
    %1835 = vmatprep.subr.bf16.mxu0 %v1176
    %1836 = vmatpush2.bf16.msra.mxu0 %v1175
    %1837 = vmatprep.subr.bf16.mxu0 %v1172
    %1838 = vmatpush2.bf16.msra.mxu0 %v1171
    %1839 = vmatprep.subr.bf16.mxu0 %v1168
    %1840 = vmatpush2.bf16.msra.mxu0 %v1167
    %1841 = vmatprep.mubr.bf16.mxu0 %v345
    %1842 = vmatmul.mubr.bf16.gmra.mxu0 %v331
    %v1843 = vpop.f32.mrf.mxu0
    %v1844 = vadd.f32 %v298, %v1843
    %v1845 = vpop.f32.mrf.mxu0
    %v1846 = vadd.f32 %v302, %v1845
    %v1847 = vpop.f32.mrf.mxu0
    %v1848 = vpop.f32.mrf.mxu0
    %1849 = vdwg.mxu0
    %1850 = vmatprep.subr.bf16.mxu0 %v1228
    %1851 = vmatpush1.bf16.msra.mxu0 %v1227
    %1852 = vmatprep.subr.bf16.mxu0 %v1224
    %1853 = vmatpush1.bf16.msra.mxu0 %v1223
    %1854 = vmatprep.subr.bf16.mxu0 %v1220
    %1855 = vmatpush1.bf16.msra.mxu0 %v1219
    %1856 = vmatprep.subr.bf16.mxu0 %v1216
    %1857 = vmatpush1.bf16.msra.mxu0 %v1215
    %1858 = vmatprep.subr.bf16.mxu0 %v1212
    %1859 = vmatpush1.bf16.msra.mxu0 %v1211
    %1860 = vmatprep.subr.bf16.mxu0 %v1208
    %1861 = vmatpush1.bf16.msra.mxu0 %v1207
    %1862 = vmatprep.subr.bf16.mxu0 %v1204
    %1863 = vmatpush1.bf16.msra.mxu0 %v1203
    %1864 = vmatprep.subr.bf16.mxu0 %v1200
    %1865 = vmatpush1.bf16.msra.mxu0 %v1199
    %1866 = vmatprep.subr.bf16.mxu0 %v1260
    %1867 = vmatpush2.bf16.msra.mxu0 %v1259
    %1868 = vmatprep.subr.bf16.mxu0 %v1256
    %1869 = vmatpush2.bf16.msra.mxu0 %v1255
    %1870 = vmatprep.subr.bf16.mxu0 %v1252
    %1871 = vmatpush2.bf16.msra.mxu0 %v1251
    %1872 = vmatprep.subr.bf16.mxu0 %v1248
    %1873 = vmatpush2.bf16.msra.mxu0 %v1247
    %1874 = vmatprep.subr.bf16.mxu0 %v1244
    %1875 = vmatpush2.bf16.msra.mxu0 %v1243
    %1876 = vmatprep.subr.bf16.mxu0 %v1240
    %1877 = vmatpush2.bf16.msra.mxu0 %v1239
    %1878 = vmatprep.subr.bf16.mxu0 %v1236
    %1879 = vmatpush2.bf16.msra.mxu0 %v1235
    %1880 = vmatprep.subr.bf16.mxu0 %v1232
    %1881 = vmatpush2.bf16.msra.mxu0 %v1231
    %1882 = vmatprep.mubr.bf16.mxu0 %v355
    %1883 = vmatmul.mubr.bf16.gmra.mxu0 %v353
    %v1884 = vpop.f32.mrf.mxu0
    %v1885 = vadd.f32 %v1844, %v1884
    %v1886 = vpop.f32.mrf.mxu0
    %v1887 = vadd.f32 %v1846, %v1886
    %v1888 = vpop.f32.mrf.mxu0
    %v1889 = vpop.f32.mrf.mxu0
    %1890 = vdwg.mxu0
    %1891 = vmatprep.subr.bf16.mxu0 %v1292
    %1892 = vmatpush1.bf16.msra.mxu0 %v1291
    %1893 = vmatprep.subr.bf16.mxu0 %v1288
    %1894 = vmatpush1.bf16.msra.mxu0 %v1287
    %1895 = vmatprep.subr.bf16.mxu0 %v1284
    %1896 = vmatpush1.bf16.msra.mxu0 %v1283
    %1897 = vmatprep.subr.bf16.mxu0 %v1280
    %1898 = vmatpush1.bf16.msra.mxu0 %v1279
    %1899 = vmatprep.subr.bf16.mxu0 %v1276
    %1900 = vmatpush1.bf16.msra.mxu0 %v1275
    %1901 = vmatprep.subr.bf16.mxu0 %v1272
    %1902 = vmatpush1.bf16.msra.mxu0 %v1271
    %1903 = vmatprep.subr.bf16.mxu0 %v1268
    %1904 = vmatpush1.bf16.msra.mxu0 %v1267
    %1905 = vmatprep.subr.bf16.mxu0 %v1264
    %1906 = vmatpush1.bf16.msra.mxu0 %v1263
    %1907 = vmatprep.subr.bf16.mxu0 %v1324
    %1908 = vmatpush2.bf16.msra.mxu0 %v1323
    %1909 = vmatprep.subr.bf16.mxu0 %v1320
    %1910 = vmatpush2.bf16.msra.mxu0 %v1319
    %1911 = vmatprep.subr.bf16.mxu0 %v1316
    %1912 = vmatpush2.bf16.msra.mxu0 %v1315
    %1913 = vmatprep.subr.bf16.mxu0 %v1312
    %1914 = vmatpush2.bf16.msra.mxu0 %v1311
    %1915 = vmatprep.subr.bf16.mxu0 %v1308
    %1916 = vmatpush2.bf16.msra.mxu0 %v1307
    %1917 = vmatprep.subr.bf16.mxu0 %v1304
    %1918 = vmatpush2.bf16.msra.mxu0 %v1303
    %1919 = vmatprep.subr.bf16.mxu0 %v1300
    %1920 = vmatpush2.bf16.msra.mxu0 %v1299
    %1921 = vmatprep.subr.bf16.mxu0 %v1296
    %1922 = vmatpush2.bf16.msra.mxu0 %v1295
    %1923 = vmatprep.mubr.bf16.mxu0 %v352
    %1924 = vmatmul.mubr.bf16.gmra.mxu0 %v338
    %v1925 = vpop.f32.mrf.mxu0
    %v1926 = vadd.f32 %v1885, %v1925
    %v1927 = vpop.f32.mrf.mxu0
    %v1928 = vadd.f32 %v1887, %v1927
    %v1929 = vpop.f32.mrf.mxu0
    %v1930 = vpop.f32.mrf.mxu0
    %1931 = vdwg.mxu0
    %1932 = vmatprep.subr.bf16.mxu0 %v1356
    %1933 = vmatpush1.bf16.msra.mxu0 %v1355
    %1934 = vmatprep.subr.bf16.mxu0 %v1352
    %1935 = vmatpush1.bf16.msra.mxu0 %v1351
    %1936 = vmatprep.subr.bf16.mxu0 %v1348
    %1937 = vmatpush1.bf16.msra.mxu0 %v1347
    %1938 = vmatprep.subr.bf16.mxu0 %v1344
    %1939 = vmatpush1.bf16.msra.mxu0 %v1343
    %1940 = vmatprep.subr.bf16.mxu0 %v1340
    %1941 = vmatpush1.bf16.msra.mxu0 %v1339
    %1942 = vmatprep.subr.bf16.mxu0 %v1336
    %1943 = vmatpush1.bf16.msra.mxu0 %v1335
    %1944 = vmatprep.subr.bf16.mxu0 %v1332
    %1945 = vmatpush1.bf16.msra.mxu0 %v1331
    %1946 = vmatprep.subr.bf16.mxu0 %v1328
    %1947 = vmatpush1.bf16.msra.mxu0 %v1327
    %1948 = vmatprep.subr.bf16.mxu0 %v1388
    %1949 = vmatpush2.bf16.msra.mxu0 %v1387
    %1950 = vmatprep.subr.bf16.mxu0 %v1384
    %1951 = vmatpush2.bf16.msra.mxu0 %v1383
    %1952 = vmatprep.subr.bf16.mxu0 %v1380
    %1953 = vmatpush2.bf16.msra.mxu0 %v1379
    %1954 = vmatprep.subr.bf16.mxu0 %v1376
    %1955 = vmatpush2.bf16.msra.mxu0 %v1375
    %1956 = vmatprep.subr.bf16.mxu0 %v1372
    %1957 = vmatpush2.bf16.msra.mxu0 %v1371
    %1958 = vmatprep.subr.bf16.mxu0 %v1368
    %1959 = vmatpush2.bf16.msra.mxu0 %v1367
    %1960 = vmatprep.subr.bf16.mxu0 %v1364
    %1961 = vmatpush2.bf16.msra.mxu0 %v1363
    %1962 = vmatprep.subr.bf16.mxu0 %v1360
    %1963 = vmatpush2.bf16.msra.mxu0 %v1359
    %1964 = vmatprep.mubr.bf16.mxu0 %v356
    %1965 = vmatmul.mubr.bf16.gmra.mxu0 %v354
    %v1966 = vpop.f32.mrf.mxu0
    %v1967 = vadd.f32 %v1926, %v1966
    %v1968 = vpop.f32.mrf.mxu0
    %v1969 = vadd.f32 %v1928, %v1968
    %v1970 = vpop.f32.mrf.mxu0
    %v1971 = vpop.f32.mrf.mxu0
    %1972 = vdwg.mxu0
    %v1973 = vmax.f32 %v1803, 0.0
    %v1974 = vmax.f32 %v1805, 0.0
    %v1975 = vmax.f32 %v1967, 0.0
    %v1976 = vmax.f32 %v1969, 0.0
    %v1977 = vpack.c.bf16 %v1973, %v1973
    %v1978 = vpack.c.bf16 %v1974, %v1974
    %v1979 = vpack.c.bf16 %v1975, %v1975
    %v1980 = vpack.c.bf16 %v1976, %v1976
    %v1981 = vld [vmem:[%s3] sm:$0xff]
    %v1982 = vld [vmem:[%s3 + $0x8] sm:$0xff]
    %v1983 = vld [vmem:[%s3 + $0x10] sm:$0xff]
    %v1984 = vld [vmem:[%s3 + $0x18] sm:$0xff]
    %v1985 = vld [vmem:[%s3 + $0x20] sm:$0xff]
    %v1986 = vld [vmem:[%s3 + $0x28] sm:$0xff]
    %v1987 = vld [vmem:[%s3 + $0x30] sm:$0xff]
    %v1988 = vld [vmem:[%s3 + $0x38] sm:$0xff]
    %v1989 = vld [vmem:[%s3 + $0x40] sm:$0xff]
    %v1990 = vld [vmem:[%s3 + $0x48] sm:$0xff]
    %v1991 = vld [vmem:[%s3 + $0x50] sm:$0xff]
    %v1992 = vld [vmem:[%s3 + $0x58] sm:$0xff]
    %v1993 = vld [vmem:[%s3 + $0x60] sm:$0xff]
    %v1994 = vld [vmem:[%s3 + $0x68] sm:$0xff]
    %v1995 = vld [vmem:[%s3 + $0x70] sm:$0xff]
    %v1996 = vld [vmem:[%s3 + $0x78] sm:$0xff]
    %v1997 = vld [vmem:[%s3 + $0x80] sm:$0xff]
    %v1998 = vld [vmem:[%s3 + $0x88] sm:$0xff]
    %v1999 = vld [vmem:[%s3 + $0x90] sm:$0xff]
    %v2000 = vld [vmem:[%s3 + $0x98] sm:$0xff]
    %v2001 = vld [vmem:[%s3 + $0xa0] sm:$0xff]
    %v2002 = vld [vmem:[%s3 + $0xa8] sm:$0xff]
    %v2003 = vld [vmem:[%s3 + $0xb0] sm:$0xff]
    %v2004 = vld [vmem:[%s3 + $0xb8] sm:$0xff]
    %v2005 = vld [vmem:[%s3 + $0xc0] sm:$0xff]
    %v2006 = vld [vmem:[%s3 + $0xc8] sm:$0xff]
    %v2007 = vld [vmem:[%s3 + $0xd0] sm:$0xff]
    %v2008 = vld [vmem:[%s3 + $0xd8] sm:$0xff]
    %v2009 = vld [vmem:[%s3 + $0xe0] sm:$0xff]
    %v2010 = vld [vmem:[%s3 + $0xe8] sm:$0xff]
    %v2011 = vld [vmem:[%s3 + $0xf0] sm:$0xff]
    %v2012 = vld [vmem:[%s3 + $0xf8] sm:$0xff]
    %v2013 = vld [vmem:[%s3 + $0x100] sm:$0xff]
    %v2014 = vld [vmem:[%s3 + $0x108] sm:$0xff]
    %v2015 = vld [vmem:[%s3 + $0x110] sm:$0xff]
    %v2016 = vld [vmem:[%s3 + $0x118] sm:$0xff]
    %v2017 = vld [vmem:[%s3 + $0x120] sm:$0xff]
    %v2018 = vld [vmem:[%s3 + $0x128] sm:$0xff]
    %v2019 = vld [vmem:[%s3 + $0x130] sm:$0xff]
    %v2020 = vld [vmem:[%s3 + $0x138] sm:$0xff]
    %v2021 = vld [vmem:[%s3 + $0x140] sm:$0xff]
    %v2022 = vld [vmem:[%s3 + $0x148] sm:$0xff]
    %v2023 = vld [vmem:[%s3 + $0x150] sm:$0xff]
    %v2024 = vld [vmem:[%s3 + $0x158] sm:$0xff]
    %v2025 = vld [vmem:[%s3 + $0x160] sm:$0xff]
    %v2026 = vld [vmem:[%s3 + $0x168] sm:$0xff]
    %v2027 = vld [vmem:[%s3 + $0x170] sm:$0xff]
    %v2028 = vld [vmem:[%s3 + $0x178] sm:$0xff]
    %v2029 = vld [vmem:[%s3 + $0x180] sm:$0xff]
    %v2030 = vld [vmem:[%s3 + $0x188] sm:$0xff]
    %v2031 = vld [vmem:[%s3 + $0x190] sm:$0xff]
    %v2032 = vld [vmem:[%s3 + $0x198] sm:$0xff]
    %v2033 = vld [vmem:[%s3 + $0x1a0] sm:$0xff]
    %v2034 = vld [vmem:[%s3 + $0x1a8] sm:$0xff]
    %v2035 = vld [vmem:[%s3 + $0x1b0] sm:$0xff]
    %v2036 = vld [vmem:[%s3 + $0x1b8] sm:$0xff]
    %v2037 = vld [vmem:[%s3 + $0x1c0] sm:$0xff]
    %v2038 = vld [vmem:[%s3 + $0x1c8] sm:$0xff]
    %v2039 = vld [vmem:[%s3 + $0x1d0] sm:$0xff]
    %v2040 = vld [vmem:[%s3 + $0x1d8] sm:$0xff]
    %v2041 = vld [vmem:[%s3 + $0x1e0] sm:$0xff]
    %v2042 = vld [vmem:[%s3 + $0x1e8] sm:$0xff]
    %v2043 = vld [vmem:[%s3 + $0x1f0] sm:$0xff]
    %v2044 = vld [vmem:[%s3 + $0x1f8] sm:$0xff]
    %v2045 = vld [vmem:[%s4] sm:$0x3]
    %v2047 = vlaneseq
    %v2048 = vshrl.u32 %v2047, 7
    %v2049 = vsub.s32 0, %v2048
    %v2050 = vrot.slane %v2045, %v2049
    %v2051 = vlaneseq
    %v2052 = vshrl.u32 %v2051, 7
    %v2053 = vsub.s32 1, %v2052
    %v2054 = vrot.slane %v2045, %v2053
    %v2121 = vunpack.c.l.b16 %v1981
    %v2122 = vunpack.c.h.b16 %v1981
    %v2123 = vunpack.c.l.b16 %v1982
    %v2124 = vunpack.c.h.b16 %v1982
    %v2125 = vunpack.c.l.b16 %v1983
    %v2126 = vunpack.c.h.b16 %v1983
    %v2127 = vunpack.c.l.b16 %v1984
    %v2128 = vunpack.c.h.b16 %v1984
    %v2129 = vunpack.c.l.b16 %v1985
    %v2130 = vunpack.c.h.b16 %v1985
    %v2131 = vunpack.c.l.b16 %v1986
    %v2132 = vunpack.c.h.b16 %v1986
    %v2133 = vunpack.c.l.b16 %v1987
    %v2134 = vunpack.c.h.b16 %v1987
    %v2135 = vunpack.c.l.b16 %v1988
    %v2136 = vunpack.c.h.b16 %v1988
    %v2137 = vunpack.c.l.b16 %v1989
    %v2138 = vunpack.c.h.b16 %v1989
    %v2139 = vunpack.c.l.b16 %v1990
    %v2140 = vunpack.c.h.b16 %v1990
    %v2141 = vunpack.c.l.b16 %v1991
    %v2142 = vunpack.c.h.b16 %v1991
    %v2143 = vunpack.c.l.b16 %v1992
    %v2144 = vunpack.c.h.b16 %v1992
    %v2145 = vunpack.c.l.b16 %v1993
    %v2146 = vunpack.c.h.b16 %v1993
    %v2147 = vunpack.c.l.b16 %v1994
    %v2148 = vunpack.c.h.b16 %v1994
    %v2149 = vunpack.c.l.b16 %v1995
    %v2150 = vunpack.c.h.b16 %v1995
    %v2151 = vunpack.c.l.b16 %v1996
    %v2152 = vunpack.c.h.b16 %v1996
    %v2153 = vunpack.c.l.b16 %v1997
    %v2154 = vunpack.c.h.b16 %v1997
    %v2155 = vunpack.c.l.b16 %v1998
    %v2156 = vunpack.c.h.b16 %v1998
    %v2157 = vunpack.c.l.b16 %v1999
    %v2158 = vunpack.c.h.b16 %v1999
    %v2159 = vunpack.c.l.b16 %v2000
    %v2160 = vunpack.c.h.b16 %v2000
    %v2161 = vunpack.c.l.b16 %v2001
    %v2162 = vunpack.c.h.b16 %v2001
    %v2163 = vunpack.c.l.b16 %v2002
    %v2164 = vunpack.c.h.b16 %v2002
    %v2165 = vunpack.c.l.b16 %v2003
    %v2166 = vunpack.c.h.b16 %v2003
    %v2167 = vunpack.c.l.b16 %v2004
    %v2168 = vunpack.c.h.b16 %v2004
    %v2169 = vunpack.c.l.b16 %v2005
    %v2170 = vunpack.c.h.b16 %v2005
    %v2171 = vunpack.c.l.b16 %v2006
    %v2172 = vunpack.c.h.b16 %v2006
    %v2173 = vunpack.c.l.b16 %v2007
    %v2174 = vunpack.c.h.b16 %v2007
    %v2175 = vunpack.c.l.b16 %v2008
    %v2176 = vunpack.c.h.b16 %v2008
    %v2177 = vunpack.c.l.b16 %v2009
    %v2178 = vunpack.c.h.b16 %v2009
    %v2179 = vunpack.c.l.b16 %v2010
    %v2180 = vunpack.c.h.b16 %v2010
    %v2181 = vunpack.c.l.b16 %v2011
    %v2182 = vunpack.c.h.b16 %v2011
    %v2183 = vunpack.c.l.b16 %v2012
    %v2184 = vunpack.c.h.b16 %v2012
    %v2185 = vunpack.c.l.b16 %v2013
    %v2186 = vunpack.c.h.b16 %v2013
    %v2187 = vunpack.c.l.b16 %v2014
    %v2188 = vunpack.c.h.b16 %v2014
    %v2189 = vunpack.c.l.b16 %v2015
    %v2190 = vunpack.c.h.b16 %v2015
    %v2191 = vunpack.c.l.b16 %v2016
    %v2192 = vunpack.c.h.b16 %v2016
    %v2193 = vunpack.c.l.b16 %v2017
    %v2194 = vunpack.c.h.b16 %v2017
    %v2195 = vunpack.c.l.b16 %v2018
    %v2196 = vunpack.c.h.b16 %v2018
    %v2197 = vunpack.c.l.b16 %v2019
    %v2198 = vunpack.c.h.b16 %v2019
    %v2199 = vunpack.c.l.b16 %v2020
    %v2200 = vunpack.c.h.b16 %v2020
    %v2201 = vunpack.c.l.b16 %v2021
    %v2202 = vunpack.c.h.b16 %v2021
    %v2203 = vunpack.c.l.b16 %v2022
    %v2204 = vunpack.c.h.b16 %v2022
    %v2205 = vunpack.c.l.b16 %v2023
    %v2206 = vunpack.c.h.b16 %v2023
    %v2207 = vunpack.c.l.b16 %v2024
    %v2208 = vunpack.c.h.b16 %v2024
    %v2209 = vunpack.c.l.b16 %v2025
    %v2210 = vunpack.c.h.b16 %v2025
    %v2211 = vunpack.c.l.b16 %v2026
    %v2212 = vunpack.c.h.b16 %v2026
    %v2213 = vunpack.c.l.b16 %v2027
    %v2214 = vunpack.c.h.b16 %v2027
    %v2215 = vunpack.c.l.b16 %v2028
    %v2216 = vunpack.c.h.b16 %v2028
    %v2217 = vunpack.c.l.b16 %v2029
    %v2218 = vunpack.c.h.b16 %v2029
    %v2219 = vunpack.c.l.b16 %v2030
    %v2220 = vunpack.c.h.b16 %v2030
    %v2221 = vunpack.c.l.b16 %v2031
    %v2222 = vunpack.c.h.b16 %v2031
    %v2223 = vunpack.c.l.b16 %v2032
    %v2224 = vunpack.c.h.b16 %v2032
    %v2225 = vunpack.c.l.b16 %v2033
    %v2226 = vunpack.c.h.b16 %v2033
    %v2227 = vunpack.c.l.b16 %v2034
    %v2228 = vunpack.c.h.b16 %v2034
    %v2229 = vunpack.c.l.b16 %v2035
    %v2230 = vunpack.c.h.b16 %v2035
    %v2231 = vunpack.c.l.b16 %v2036
    %v2232 = vunpack.c.h.b16 %v2036
    %v2233 = vunpack.c.l.b16 %v2037
    %v2234 = vunpack.c.h.b16 %v2037
    %v2235 = vunpack.c.l.b16 %v2038
    %v2236 = vunpack.c.h.b16 %v2038
    %v2237 = vunpack.c.l.b16 %v2039
    %v2238 = vunpack.c.h.b16 %v2039
    %v2239 = vunpack.c.l.b16 %v2040
    %v2240 = vunpack.c.h.b16 %v2040
    %v2241 = vunpack.c.l.b16 %v2041
    %v2242 = vunpack.c.h.b16 %v2041
    %v2243 = vunpack.c.l.b16 %v2042
    %v2244 = vunpack.c.h.b16 %v2042
    %v2245 = vunpack.c.l.b16 %v2043
    %v2246 = vunpack.c.h.b16 %v2043
    %v2247 = vunpack.c.l.b16 %v2044
    %v2248 = vunpack.c.h.b16 %v2044
    %v2249 = vpack.c.b16 %v2123, %v2121
    %v2250 = vpack.c.b16 %v2124, %v2122
    %v2251 = vpack.c.b16 %v2127, %v2125
    %v2252 = vpack.c.b16 %v2128, %v2126
    %v2253 = vpack.c.b16 %v2131, %v2129
    %v2254 = vpack.c.b16 %v2132, %v2130
    %v2255 = vpack.c.b16 %v2135, %v2133
    %v2256 = vpack.c.b16 %v2136, %v2134
    %v2257 = vpack.c.b16 %v2139, %v2137
    %v2258 = vpack.c.b16 %v2140, %v2138
    %v2259 = vpack.c.b16 %v2143, %v2141
    %v2260 = vpack.c.b16 %v2144, %v2142
    %v2261 = vpack.c.b16 %v2147, %v2145
    %v2262 = vpack.c.b16 %v2148, %v2146
    %v2263 = vpack.c.b16 %v2151, %v2149
    %v2264 = vpack.c.b16 %v2152, %v2150
    %v2265 = vpack.c.b16 %v2155, %v2153
    %v2266 = vpack.c.b16 %v2156, %v2154
    %v2267 = vpack.c.b16 %v2159, %v2157
    %v2268 = vpack.c.b16 %v2160, %v2158
    %v2269 = vpack.c.b16 %v2163, %v2161
    %v2270 = vpack.c.b16 %v2164, %v2162
    %v2271 = vpack.c.b16 %v2167, %v2165
    %v2272 = vpack.c.b16 %v2168, %v2166
    %v2273 = vpack.c.b16 %v2171, %v2169
    %v2274 = vpack.c.b16 %v2172, %v2170
    %v2275 = vpack.c.b16 %v2175, %v2173
    %v2276 = vpack.c.b16 %v2176, %v2174
    %v2277 = vpack.c.b16 %v2179, %v2177
    %v2278 = vpack.c.b16 %v2180, %v2178
    %v2279 = vpack.c.b16 %v2183, %v2181
    %v2280 = vpack.c.b16 %v2184, %v2182
    %v2281 = vpack.c.b16 %v2187, %v2185
    %v2282 = vpack.c.b16 %v2188, %v2186
    %v2283 = vpack.c.b16 %v2191, %v2189
    %v2284 = vpack.c.b16 %v2192, %v2190
    %v2285 = vpack.c.b16 %v2195, %v2193
    %v2286 = vpack.c.b16 %v2196, %v2194
    %v2287 = vpack.c.b16 %v2199, %v2197
    %v2288 = vpack.c.b16 %v2200, %v2198
    %v2289 = vpack.c.b16 %v2203, %v2201
    %v2290 = vpack.c.b16 %v2204, %v2202
    %v2291 = vpack.c.b16 %v2207, %v2205
    %v2292 = vpack.c.b16 %v2208, %v2206
    %v2293 = vpack.c.b16 %v2211, %v2209
    %v2294 = vpack.c.b16 %v2212, %v2210
    %v2295 = vpack.c.b16 %v2215, %v2213
    %v2296 = vpack.c.b16 %v2216, %v2214
    %v2297 = vpack.c.b16 %v2219, %v2217
    %v2298 = vpack.c.b16 %v2220, %v2218
    %v2299 = vpack.c.b16 %v2223, %v2221
    %v2300 = vpack.c.b16 %v2224, %v2222
    %v2301 = vpack.c.b16 %v2227, %v2225
    %v2302 = vpack.c.b16 %v2228, %v2226
    %v2303 = vpack.c.b16 %v2231, %v2229
    %v2304 = vpack.c.b16 %v2232, %v2230
    %v2305 = vpack.c.b16 %v2235, %v2233
    %v2306 = vpack.c.b16 %v2236, %v2234
    %v2307 = vpack.c.b16 %v2239, %v2237
    %v2308 = vpack.c.b16 %v2240, %v2238
    %v2309 = vpack.c.b16 %v2243, %v2241
    %v2310 = vpack.c.b16 %v2244, %v2242
    %v2311 = vpack.c.b16 %v2247, %v2245
    %v2312 = vpack.c.b16 %v2248, %v2246
    %2377 = vmatprep.subr.bf16.mxu0 %v2264
    %2378 = vmatpush1.bf16.msra.mxu0 %v2263
    %2379 = vmatprep.subr.bf16.mxu0 %v2262
    %2380 = vmatpush1.bf16.msra.mxu0 %v2261
    %2381 = vmatprep.subr.bf16.mxu0 %v2260
    %2382 = vmatpush1.bf16.msra.mxu0 %v2259
    %2383 = vmatprep.subr.bf16.mxu0 %v2258
    %2384 = vmatpush1.bf16.msra.mxu0 %v2257
    %2385 = vmatprep.subr.bf16.mxu0 %v2256
    %2386 = vmatpush1.bf16.msra.mxu0 %v2255
    %2387 = vmatprep.subr.bf16.mxu0 %v2254
    %2388 = vmatpush1.bf16.msra.mxu0 %v2253
    %2389 = vmatprep.subr.bf16.mxu0 %v2252
    %2390 = vmatpush1.bf16.msra.mxu0 %v2251
    %2391 = vmatprep.subr.bf16.mxu0 %v2250
    %2392 = vmatpush1.bf16.msra.mxu0 %v2249
    %2393 = vmatprep.subr.bf16.mxu0 %v2280
    %2394 = vmatpush2.bf16.msra.mxu0 %v2279
    %2395 = vmatprep.subr.bf16.mxu0 %v2278
    %2396 = vmatpush2.bf16.msra.mxu0 %v2277
    %2397 = vmatprep.subr.bf16.mxu0 %v2276
    %2398 = vmatpush2.bf16.msra.mxu0 %v2275
    %2399 = vmatprep.subr.bf16.mxu0 %v2274
    %2400 = vmatpush2.bf16.msra.mxu0 %v2273
    %2401 = vmatprep.subr.bf16.mxu0 %v2272
    %2402 = vmatpush2.bf16.msra.mxu0 %v2271
    %2403 = vmatprep.subr.bf16.mxu0 %v2270
    %2404 = vmatpush2.bf16.msra.mxu0 %v2269
    %2405 = vmatprep.subr.bf16.mxu0 %v2268
    %2406 = vmatpush2.bf16.msra.mxu0 %v2267
    %2407 = vmatprep.subr.bf16.mxu0 %v2266
    %2408 = vmatpush2.bf16.msra.mxu0 %v2265
    %2409 = vmatprep.mubr.bf16.mxu0 %v1978
    %2410 = vmatmul.mubr.bf16.gmra.mxu0 %v1977
    %v2411 = vpop.f32.mrf.mxu0
    %v2412 = vadd.f32 %v2050, %v2411
    %v2413 = vpop.f32.mrf.mxu0
    %v2414 = vadd.f32 %v2054, %v2413
    %v2415 = vpop.f32.mrf.mxu0
    %v2416 = vpop.f32.mrf.mxu0
    %2417 = vdwg.mxu0
    %2418 = vmatprep.subr.bf16.mxu0 %v2296
    %2419 = vmatpush1.bf16.msra.mxu0 %v2295
    %2420 = vmatprep.subr.bf16.mxu0 %v2294
    %2421 = vmatpush1.bf16.msra.mxu0 %v2293
    %2422 = vmatprep.subr.bf16.mxu0 %v2292
    %2423 = vmatpush1.bf16.msra.mxu0 %v2291
    %2424 = vmatprep.subr.bf16.mxu0 %v2290
    %2425 = vmatpush1.bf16.msra.mxu0 %v2289
    %2426 = vmatprep.subr.bf16.mxu0 %v2288
    %2427 = vmatpush1.bf16.msra.mxu0 %v2287
    %2428 = vmatprep.subr.bf16.mxu0 %v2286
    %2429 = vmatpush1.bf16.msra.mxu0 %v2285
    %2430 = vmatprep.subr.bf16.mxu0 %v2284
    %2431 = vmatpush1.bf16.msra.mxu0 %v2283
    %2432 = vmatprep.subr.bf16.mxu0 %v2282
    %2433 = vmatpush1.bf16.msra.mxu0 %v2281
    %2434 = vmatprep.subr.bf16.mxu0 %v2312
    %2435 = vmatpush2.bf16.msra.mxu0 %v2311
    %2436 = vmatprep.subr.bf16.mxu0 %v2310
    %2437 = vmatpush2.bf16.msra.mxu0 %v2309
    %2438 = vmatprep.subr.bf16.mxu0 %v2308
    %2439 = vmatpush2.bf16.msra.mxu0 %v2307
    %2440 = vmatprep.subr.bf16.mxu0 %v2306
    %2441 = vmatpush2.bf16.msra.mxu0 %v2305
    %2442 = vmatprep.subr.bf16.mxu0 %v2304
    %2443 = vmatpush2.bf16.msra.mxu0 %v2303
    %2444 = vmatprep.subr.bf16.mxu0 %v2302
    %2445 = vmatpush2.bf16.msra.mxu0 %v2301
    %2446 = vmatprep.subr.bf16.mxu0 %v2300
    %2447 = vmatpush2.bf16.msra.mxu0 %v2299
    %2448 = vmatprep.subr.bf16.mxu0 %v2298
    %2449 = vmatpush2.bf16.msra.mxu0 %v2297
    %2450 = vmatprep.mubr.bf16.mxu0 %v1980
    %2451 = vmatmul.mubr.bf16.gmra.mxu0 %v1979
    %v2452 = vpop.f32.mrf.mxu0
    %v2453 = vadd.f32 %v2412, %v2452
    %v2454 = vpop.f32.mrf.mxu0
    %v2455 = vadd.f32 %v2414, %v2454
    %v2456 = vpop.f32.mrf.mxu0
    %v2457 = vpop.f32.mrf.mxu0
    %2458 = vdwg.mxu0
    %v2459 = vmax.f32 %v2453, 0.0
    %v2460 = vmax.f32 %v2455, 0.0
    %v2461 = vpack.c.bf16 %v2459, %v2459
    %v2462 = vpack.c.bf16 %v2460, %v2460
    %v2463 = vld [vmem:[%s5] sm:$0xf]
    %v2464 = vld [vmem:[%s5 + $0x4] sm:$0xf]
    %v2465 = vld [vmem:[%s5 + $0x8] sm:$0xf]
    %v2466 = vld [vmem:[%s5 + $0xc] sm:$0xf]
    %v2467 = vld [vmem:[%s5 + $0x10] sm:$0xf]
    %v2468 = vld [vmem:[%s5 + $0x14] sm:$0xf]
    %v2469 = vld [vmem:[%s5 + $0x18] sm:$0xf]
    %v2470 = vld [vmem:[%s5 + $0x1c] sm:$0xf]
    %v2471 = vld [vmem:[%s5 + $0x20] sm:$0xf]
    %v2472 = vld [vmem:[%s5 + $0x24] sm:$0xf]
    %v2473 = vld [vmem:[%s5 + $0x28] sm:$0xf]
    %v2474 = vld [vmem:[%s5 + $0x2c] sm:$0xf]
    %v2475 = vld [vmem:[%s5 + $0x30] sm:$0xf]
    %v2476 = vld [vmem:[%s5 + $0x34] sm:$0xf]
    %v2477 = vld [vmem:[%s5 + $0x38] sm:$0xf]
    %v2478 = vld [vmem:[%s5 + $0x3c] sm:$0xf]
    %v2479 = vld [vmem:[%s5 + $0x40] sm:$0xf]
    %v2480 = vld [vmem:[%s5 + $0x44] sm:$0xf]
    %v2481 = vld [vmem:[%s5 + $0x48] sm:$0xf]
    %v2482 = vld [vmem:[%s5 + $0x4c] sm:$0xf]
    %v2483 = vld [vmem:[%s5 + $0x50] sm:$0xf]
    %v2484 = vld [vmem:[%s5 + $0x54] sm:$0xf]
    %v2485 = vld [vmem:[%s5 + $0x58] sm:$0xf]
    %v2486 = vld [vmem:[%s5 + $0x5c] sm:$0xf]
    %v2487 = vld [vmem:[%s5 + $0x60] sm:$0xf]
    %v2488 = vld [vmem:[%s5 + $0x64] sm:$0xf]
    %v2489 = vld [vmem:[%s5 + $0x68] sm:$0xf]
    %v2490 = vld [vmem:[%s5 + $0x6c] sm:$0xf]
    %v2491 = vld [vmem:[%s5 + $0x70] sm:$0xf]
    %v2492 = vld [vmem:[%s5 + $0x74] sm:$0xf]
    %v2493 = vld [vmem:[%s5 + $0x78] sm:$0xf]
    %v2494 = vld [vmem:[%s5 + $0x7c] sm:$0xf]
    %v2495 = vld [vmem:[%s6] sm:$0x1]
    %v2497 = vlaneseq
    %v2498 = vshrl.u32 %v2497, 7
    %v2499 = vsub.s32 0, %v2498
    %v2500 = vrot.slane %v2495, %v2499
    %v2534 = vunpack.c.l.b16 %v2463
    %v2535 = vunpack.c.l.b16 %v2464
    %v2536 = vunpack.c.l.b16 %v2465
    %v2537 = vunpack.c.l.b16 %v2466
    %v2538 = vunpack.c.l.b16 %v2467
    %v2539 = vunpack.c.l.b16 %v2468
    %v2540 = vunpack.c.l.b16 %v2469
    %v2541 = vunpack.c.l.b16 %v2470
    %v2542 = vunpack.c.l.b16 %v2471
    %v2543 = vunpack.c.l.b16 %v2472
    %v2544 = vunpack.c.l.b16 %v2473
    %v2545 = vunpack.c.l.b16 %v2474
    %v2546 = vunpack.c.l.b16 %v2475
    %v2547 = vunpack.c.l.b16 %v2476
    %v2548 = vunpack.c.l.b16 %v2477
    %v2549 = vunpack.c.l.b16 %v2478
    %v2550 = vunpack.c.l.b16 %v2479
    %v2551 = vunpack.c.l.b16 %v2480
    %v2552 = vunpack.c.l.b16 %v2481
    %v2553 = vunpack.c.l.b16 %v2482
    %v2554 = vunpack.c.l.b16 %v2483
    %v2555 = vunpack.c.l.b16 %v2484
    %v2556 = vunpack.c.l.b16 %v2485
    %v2557 = vunpack.c.l.b16 %v2486
    %v2558 = vunpack.c.l.b16 %v2487
    %v2559 = vunpack.c.l.b16 %v2488
    %v2560 = vunpack.c.l.b16 %v2489
    %v2561 = vunpack.c.l.b16 %v2490
    %v2562 = vunpack.c.l.b16 %v2491
    %v2563 = vunpack.c.l.b16 %v2492
    %v2564 = vunpack.c.l.b16 %v2493
    %v2565 = vunpack.c.l.b16 %v2494
    %v2566 = vpack.c.b16 %v2535, %v2534
    %v2567 = vpack.c.b16 %v2537, %v2536
    %v2568 = vpack.c.b16 %v2539, %v2538
    %v2569 = vpack.c.b16 %v2541, %v2540
    %v2570 = vpack.c.b16 %v2543, %v2542
    %v2571 = vpack.c.b16 %v2545, %v2544
    %v2572 = vpack.c.b16 %v2547, %v2546
    %v2573 = vpack.c.b16 %v2549, %v2548
    %v2574 = vpack.c.b16 %v2551, %v2550
    %v2575 = vpack.c.b16 %v2553, %v2552
    %v2576 = vpack.c.b16 %v2555, %v2554
    %v2577 = vpack.c.b16 %v2557, %v2556
    %v2578 = vpack.c.b16 %v2559, %v2558
    %v2579 = vpack.c.b16 %v2561, %v2560
    %v2580 = vpack.c.b16 %v2563, %v2562
    %v2581 = vpack.c.b16 %v2565, %v2564
    %2598 = vmatprep.subr.bf16.mxu0 0
    %2599 = vmatpush1.bf16.msra.mxu0 %v2573
    %2600 = vmatprep.subr.bf16.mxu0 0
    %2601 = vmatpush1.bf16.msra.mxu0 %v2572
    %2602 = vmatprep.subr.bf16.mxu0 0
    %2603 = vmatpush1.bf16.msra.mxu0 %v2571
    %2604 = vmatprep.subr.bf16.mxu0 0
    %2605 = vmatpush1.bf16.msra.mxu0 %v2570
    %2606 = vmatprep.subr.bf16.mxu0 0
    %2607 = vmatpush1.bf16.msra.mxu0 %v2569
    %2608 = vmatprep.subr.bf16.mxu0 0
    %2609 = vmatpush1.bf16.msra.mxu0 %v2568
    %2610 = vmatprep.subr.bf16.mxu0 0
    %2611 = vmatpush1.bf16.msra.mxu0 %v2567
    %2612 = vmatprep.subr.bf16.mxu0 0
    %2613 = vmatpush1.bf16.msra.mxu0 %v2566
    %2614 = vmatprep.subr.bf16.mxu0 0
    %2615 = vmatpush2.bf16.msra.mxu0 %v2581
    %2616 = vmatprep.subr.bf16.mxu0 0
    %2617 = vmatpush2.bf16.msra.mxu0 %v2580
    %2618 = vmatprep.subr.bf16.mxu0 0
    %2619 = vmatpush2.bf16.msra.mxu0 %v2579
    %2620 = vmatprep.subr.bf16.mxu0 0
    %2621 = vmatpush2.bf16.msra.mxu0 %v2578
    %2622 = vmatprep.subr.bf16.mxu0 0
    %2623 = vmatpush2.bf16.msra.mxu0 %v2577
    %2624 = vmatprep.subr.bf16.mxu0 0
    %2625 = vmatpush2.bf16.msra.mxu0 %v2576
    %2626 = vmatprep.subr.bf16.mxu0 0
    %2627 = vmatpush2.bf16.msra.mxu0 %v2575
    %2628 = vmatprep.subr.bf16.mxu0 0
    %2629 = vmatpush2.bf16.msra.mxu0 %v2574
    %2630 = vmatprep.mubr.bf16.mxu0 %v2462
    %2631 = vmatmul.mubr.bf16.gmra.mxu0 %v2461
    %v2632 = vpop.f32.mrf.mxu0
    %v2633 = vadd.f32 %v2500, %v2632
    %v2634 = vpop.f32.mrf.mxu0
    %v2635 = vpop.f32.mrf.mxu0
    %v2636 = vpop.f32.mrf.mxu0
    %2637 = vdwg.mxu0
    %vm2638 = vcmask 74752
    %2639 = vst.msk [vmem:[#allocation2] sm:$0x3] %vm2638, %v2633
    // Predicated region
    $region30: #{pointnet_forward.7} parent=1 // pred_check
      _
    $region31: #{pointnet_forward.7} parent=1 // pred_check_branch
      %2641 = sbr.rel (0) target = $region33
    $region32: #{pointnet_forward.7} parent=1 // pred_region
      %s2643 = ssub.s32 32, 32
      %2644 = vsyncadd [#allocation3], %s2643
      %s2646 = sshll.u32 [#allocation2], 4
      %s2647 = int_to_ptr.vmem [resolvable:$true] %s2646
      %2649 = dma.vmem_to_hbm [thread:$0]  %s2647, 32, %s7, [#allocation3]
    $region33: #{pointnet_forward.7} parent=1 // pred_fallthru
      _
    // Predicated region
    $region34: #{pointnet_forward.7} parent=1 // pred_check
      _
    $region35: #{pointnet_forward.7} parent=1 // pred_check_branch
      %2651 = sbr.rel (0) target = $region37
    $region36: #{pointnet_forward.7} parent=1 // pred_region
      %2652 = dma.done [#allocation3], 32
    $region37: #{pointnet_forward.7} parent=1 // pred_fallthru
      _
    %2653 = vsyncpa [#allocation3], 1

</llo_original>
